<compile_context>
chip_gen: v7x
topology: tpu7x:2x2x1
jax: 0.10.0
libtpu: 0.0.40
codegen_flags: <defaults>
</compile_context>

<pallas_src>
import functools

import numpy as np
import jax
import jax.numpy as jnp
from jax.experimental import pallas as pl
from jax.experimental.pallas import tpu as pltpu


# ---------------------------------------------------------------------------
# Fused kernel: full LeNet forward, everything resident in VMEM.
# ---------------------------------------------------------------------------
def _lenet_kernel(x_ref,                      # (B*28, 28*Cin)
                  a1e_ref, a1o_ref, b1_ref,   # (5,28*Cin,72), (5,28*Cin,72), (1,72)
                  s1e_ref, s1o_ref,           # (12,24), (12,24)
                  a2e_ref, a2o_ref, b2_ref,   # (5,72,64), (5,72,64), (1,64)
                  s2e_ref, s2o_ref,           # (4,8), (4,8)
                  w1_ref, bf1_ref,            # (4,64,120), (1,120)
                  w2_ref, bf2_ref,            # (120,84), (1,84)
                  w3_ref, bo_ref,             # (84,D), (1,D)
                  o_ref,                      # (B,1,D)
                  h1_ref, h2_ref,             # VMEM scratch (B,12,72), (B,4,64)
                  *, batch):
    def mm(a, b):
        return jnp.dot(a, b, preferred_element_type=jnp.float32)

    for b in range(batch):
        # ---- conv1 (5x5, Cin->6) + ReLU + 2x2 maxpool: banded matmuls -------
        win = x_ref[pl.ds(b * 28, 24), :]                       # (24, 28*Cin)
        acc_e = mm(win, a1e_ref[0])                             # even output cols
        acc_o = mm(win, a1o_ref[0])                             # odd output cols
        for i in range(1, 5):
            win = x_ref[pl.ds(b * 28 + i, 24), :]
            acc_e = acc_e + mm(win, a1e_ref[i])
            acc_o = acc_o + mm(win, a1o_ref[i])
        ym = jnp.maximum(acc_e, acc_o)                          # W-pooled (24, 72)
        pm = jnp.maximum(mm(s1e_ref[...], ym), mm(s1o_ref[...], ym))  # H-pooled (12, 72)
        h1_ref[b] = jnp.maximum(pm + b1_ref[...], 0.0)          # bias + ReLU (post-pool)

        # ---- conv2 (5x5, 6->16) + ReLU + 2x2 maxpool -------------------------
        win = h1_ref[b, pl.ds(0, 8), :]                         # (8, 72)
        acc_e = mm(win, a2e_ref[0])
        acc_o = mm(win, a2o_ref[0])
        for i in range(1, 5):
            win = h1_ref[b, pl.ds(i, 8), :]
            acc_e = acc_e + mm(win, a2e_ref[i])
            acc_o = acc_o + mm(win, a2o_ref[i])
        ym = jnp.maximum(acc_e, acc_o)                          # (8, 64)
        pm = jnp.maximum(mm(s2e_ref[...], ym), mm(s2o_ref[...], ym))  # (4, 64)
        h2_ref[b] = jnp.maximum(pm + b2_ref[...], 0.0)

        # ---- fc1 (PyTorch CHW-flatten order folded into w1 prep) + ReLU -----
        f = mm(h2_ref[b, pl.ds(0, 1), :], w1_ref[0])            # (1, 120)
        for h in range(1, 4):
            f = f + mm(h2_ref[b, pl.ds(h, 1), :], w1_ref[h])
        f = jnp.maximum(f + bf1_ref[...], 0.0)
        # ---- fc2 + ReLU -------------------------------------------------------
        f = jnp.maximum(mm(f, w2_ref[...]) + bf2_ref[...], 0.0)  # (1, 84)
        # ---- out --------------------------------------------------------------
        o_ref[b] = mm(f, w3_ref[...]) + bo_ref[...]             # (1, D)


def _full_spec(shape):
    nd = len(shape)
    return pl.BlockSpec(tuple(int(s) for s in shape), lambda i, _nd=nd: (0,) * _nd)


def lenet_forward(prep, x_nchw):
    """Fused LeNet forward.  x_nchw: (B, Cin, 28, 28) float32."""
    B, Cin, H, W = x_nchw.shape
    assert (H, W) == (28, 28), "LeNetFeatureExtractor requires 28x28 inputs"
    out_dims = prep["bo"].shape[-1]

    # Layout glue (one tiny XLA transpose+reshape): NCHW -> rows=(b,h), cols=(w,c)
    x2d = jnp.transpose(x_nchw, (0, 2, 3, 1)).reshape(B * 28, 28 * Cin)

    operands = (x2d,
                prep["a1e"], prep["a1o"], prep["b1"], prep["s1e"], prep["s1o"],
                prep["a2e"], prep["a2o"], prep["b2"], prep["s2e"], prep["s2o"],
                prep["w1"], prep["bf1"], prep["w2"], prep["bf2"],
                prep["w3"], prep["bo"])

    out = pl.pallas_call(
        functools.partial(_lenet_kernel, batch=B),
        grid=(1,),
        in_specs=[_full_spec(op.shape) for op in operands],
        out_specs=_full_spec((B, 1, out_dims)),
        out_shape=jax.ShapeDtypeStruct((B, 1, out_dims), jnp.float32),
        scratch_shapes=[pltpu.VMEM((B, 12, 72), jnp.float32),   # pooled conv1 activ.
                        pltpu.VMEM((B, 4, 64), jnp.float32)],   # pooled conv2 activ.
    )(*operands)
    return out.reshape(B, out_dims)


# ---------------------------------------------------------------------------
# One-time, host-side (numpy) weight reformatting — outside the jitted forward.
# ---------------------------------------------------------------------------
def prepare_params(params):
    p = {k: np.asarray(v, dtype=np.float32) for k, v in params.items()}

    def conv_band(w, w_in, parity):
        # w: PyTorch conv weight (OC, C, KH, KW).
        # Returns band[i] of shape (W_in*C, (W_out/2)*OC) such that
        #   rows[h+i] @ band[i] accumulates the conv output at width positions
        #   w = 2*w2 + parity (even/odd halves feed the pooled W-max directly).
        oc_n, c_n, kh, kw = w.shape
        w_out = w_in - kw + 1
        w_half = w_out // 2
        band = np.zeros((kh, w_in * c_n, w_half * oc_n), np.float32)
        for i in range(kh):
            for j in range(kw):
                for w2 in range(w_half):
                    wi = 2 * w2 + parity + j          # input spatial column
                    band[i, wi * c_n:(wi + 1) * c_n,
                         w2 * oc_n:(w2 + 1) * oc_n] = w[:, :, i, j].T
        return band

    def pool_select(n_out):
        se = np.zeros((n_out, 2 * n_out), np.float32)
        so = np.zeros((n_out, 2 * n_out), np.float32)
        se[np.arange(n_out), 2 * np.arange(n_out)] = 1.0
        so[np.arange(n_out), 2 * np.arange(n_out) + 1] = 1.0
        return se, so

    s1e, s1o = pool_select(12)
    s2e, s2o = pool_select(4)
    # Permute fc1's input axis from PyTorch CHW-flatten order to the kernel's
    # (h, w, c) row layout, so no activation transpose/flatten is needed.
    w1 = np.transpose(p["fc1_w"].reshape(120, 16, 4, 4), (2, 3, 1, 0)).reshape(4, 64, 120)

    prep = dict(
        a1e=conv_band(p["conv1_w"], 28, 0), a1o=conv_band(p["conv1_w"], 28, 1),
        b1=np.tile(p["conv1_b"], 12)[None, :],
        s1e=s1e, s1o=s1o,
        a2e=conv_band(p["conv2_w"], 12, 0), a2o=conv_band(p["conv2_w"], 12, 1),
        b2=np.tile(p["conv2_b"], 4)[None, :],
        s2e=s2e, s2o=s2o,
        w1=w1, bf1=p["fc1_b"][None, :],
        w2=np.ascontiguousarray(p["fc2_w"].T), bf2=p["fc2_b"][None, :],
        w3=np.ascontiguousarray(p["out_w"].T), bo=p["out_b"][None, :],
    )
    return {k: jnp.asarray(v) for k, v in prep.items()}


# ---------------------------------------------------------------------------
# Parameters (deterministic, PyTorch-default-style uniform init, torch layouts)
# ---------------------------------------------------------------------------
def init_params(in_channels, out_dims, key):
    def uinit(k, shape, fan_in):
        bound = 1.0 / jnp.sqrt(float(fan_in))
        return jax.random.uniform(k, shape, jnp.float32, -bound, bound)

    ks = jax.random.split(key, 10)
    p = {}
    p["conv1_w"] = uinit(ks[0], (6, in_channels, 5, 5), in_channels * 25)
    p["conv1_b"] = uinit(ks[1], (6,), in_channels * 25)
    p["conv2_w"] = uinit(ks[2], (16, 6, 5, 5), 6 * 25)
    p["conv2_b"] = uinit(ks[3], (16,), 6 * 25)
    p["fc1_w"] = uinit(ks[4], (120, 16 * 4 * 4), 16 * 4 * 4)   # PyTorch (out, in)
    p["fc1_b"] = uinit(ks[5], (120,), 16 * 4 * 4)
    p["fc2_w"] = uinit(ks[6], (84, 120), 120)
    p["fc2_b"] = uinit(ks[7], (84,), 120)
    p["out_w"] = uinit(ks[8], (out_dims, 84), 84)
    p["out_b"] = uinit(ks[9], (out_dims,), 84)
    return p


# ---------------------------------------------------------------------------
# Pure-JAX reference (direct translation of the PyTorch module) for validation
# ---------------------------------------------------------------------------
def reference_forward(params, x_nchw):
    hp = jax.lax.Precision.HIGHEST
    y = jax.lax.conv_general_dilated(
        x_nchw, params["conv1_w"], (1, 1), "VALID",
        dimension_numbers=("NCHW", "OIHW", "NCHW"), precision=hp)
    y = jax.nn.relu(y + params["conv1_b"][None, :, None, None])
    y = jax.lax.reduce_window(y, -jnp.inf, jax.lax.max, (1, 1, 2, 2), (1, 1, 2, 2), "VALID")
    y = jax.lax.conv_general_dilated(
        y, params["conv2_w"], (1, 1), "VALID",
        dimension_numbers=("NCHW", "OIHW", "NCHW"), precision=hp)
    y = jax.nn.relu(y + params["conv2_b"][None, :, None, None])
    y = jax.lax.reduce_window(y, -jnp.inf, jax.lax.max, (1, 1, 2, 2), (1, 1, 2, 2), "VALID")
    y = y.reshape(y.shape[0], -1)                                 # CHW flatten
    y = jax.nn.relu(jnp.dot(y, params["fc1_w"].T, precision=hp) + params["fc1_b"])
    y = jax.nn.relu(jnp.dot(y, params["fc2_w"].T, precision=hp) + params["fc2_b"])
    return jnp.dot(y, params["out_w"].T, precision=hp) + params["out_b"]


if __name__ == "__main__":
    in_channels, out_dims, B = 3, 10, 2
    key = jax.random.PRNGKey(0)
    k_params, k_x = jax.random.split(key)
    params = init_params(in_channels, out_dims, k_params)
    prep = prepare_params(params)            # one-time host-side weight reformat
    # spatial must be 28x28 so the flatten size is 16*4*4 (matches fc1)
    x = jax.random.normal(k_x, (B, in_channels, 28, 28), jnp.float32)

    fwd = jax.jit(lenet_forward)
    out = jax.block_until_ready(fwd(prep, x))
    assert out.shape == (B, out_dims) and out.dtype == jnp.float32

    ref = jax.block_until_ready(reference_forward(params, x))
    if not bool(jnp.allclose(out, ref, rtol=5e-2, atol=5e-2)):
        raise AssertionError(
            f"kernel/reference mismatch, max abs err = {float(jnp.max(jnp.abs(out - ref)))}")
    print("KERNEL_OK")
</pallas_src>

<mosaic_0001>
module attributes {stable_mosaic.version = 11 : i64} {
  func.func @_lenet_kernel(%arg0: i32, %arg1: memref<56x84xf32, #tpu.memory_space<vmem>>, %arg2: memref<5x84x72xf32, #tpu.memory_space<vmem>>, %arg3: memref<5x84x72xf32, #tpu.memory_space<vmem>>, %arg4: memref<1x72xf32, #tpu.memory_space<vmem>>, %arg5: memref<12x24xf32, #tpu.memory_space<vmem>>, %arg6: memref<12x24xf32, #tpu.memory_space<vmem>>, %arg7: memref<5x72x64xf32, #tpu.memory_space<vmem>>, %arg8: memref<5x72x64xf32, #tpu.memory_space<vmem>>, %arg9: memref<1x64xf32, #tpu.memory_space<vmem>>, %arg10: memref<4x8xf32, #tpu.memory_space<vmem>>, %arg11: memref<4x8xf32, #tpu.memory_space<vmem>>, %arg12: memref<4x64x120xf32, #tpu.memory_space<vmem>>, %arg13: memref<1x120xf32, #tpu.memory_space<vmem>>, %arg14: memref<120x84xf32, #tpu.memory_space<vmem>>, %arg15: memref<1x84xf32, #tpu.memory_space<vmem>>, %arg16: memref<84x10xf32, #tpu.memory_space<vmem>>, %arg17: memref<1x10xf32, #tpu.memory_space<vmem>>, %arg18: memref<2x1x10xf32, #tpu.memory_space<vmem>>, %arg19: memref<2x12x72xf32, #tpu.memory_space<vmem>>, %arg20: memref<2x4x64xf32, #tpu.memory_space<vmem>>) attributes {dimension_semantics = [#tpu.dimension_semantics<arbitrary>], iteration_bounds = array<i64: 1>, scalar_prefetch = 0 : i64, scratch_operands = 2 : i64, tpu.core_type = #tpu.core_type<tc>, window_params = [{pipeline_mode = #tpu.pipeline_mode<synchronous>, transform_indices = @transform_0, window_bounds = array<i64: 56, 84>}, {pipeline_mode = #tpu.pipeline_mode<synchronous>, transform_indices = @transform_1, window_bounds = array<i64: 5, 84, 72>}, {pipeline_mode = #tpu.pipeline_mode<synchronous>, transform_indices = @transform_2, window_bounds = array<i64: 5, 84, 72>}, {pipeline_mode = #tpu.pipeline_mode<synchronous>, transform_indices = @transform_3, window_bounds = array<i64: 1, 72>}, {pipeline_mode = #tpu.pipeline_mode<synchronous>, transform_indices = @transform_4, window_bounds = array<i64: 12, 24>}, {pipeline_mode = #tpu.pipeline_mode<synchronous>, transform_indices = @transform_5, window_bounds = array<i64: 12, 24>}, {pipeline_mode = #tpu.pipeline_mode<synchronous>, transform_indices = @transform_6, window_bounds = array<i64: 5, 72, 64>}, {pipeline_mode = #tpu.pipeline_mode<synchronous>, transform_indices = @transform_7, window_bounds = array<i64: 5, 72, 64>}, {pipeline_mode = #tpu.pipeline_mode<synchronous>, transform_indices = @transform_8, window_bounds = array<i64: 1, 64>}, {pipeline_mode = #tpu.pipeline_mode<synchronous>, transform_indices = @transform_9, window_bounds = array<i64: 4, 8>}, {pipeline_mode = #tpu.pipeline_mode<synchronous>, transform_indices = @transform_10, window_bounds = array<i64: 4, 8>}, {pipeline_mode = #tpu.pipeline_mode<synchronous>, transform_indices = @transform_11, window_bounds = array<i64: 4, 64, 120>}, {pipeline_mode = #tpu.pipeline_mode<synchronous>, transform_indices = @transform_12, window_bounds = array<i64: 1, 120>}, {pipeline_mode = #tpu.pipeline_mode<synchronous>, transform_indices = @transform_13, window_bounds = array<i64: 120, 84>}, {pipeline_mode = #tpu.pipeline_mode<synchronous>, transform_indices = @transform_14, window_bounds = array<i64: 1, 84>}, {pipeline_mode = #tpu.pipeline_mode<synchronous>, transform_indices = @transform_15, window_bounds = array<i64: 84, 10>}, {pipeline_mode = #tpu.pipeline_mode<synchronous>, transform_indices = @transform_16, window_bounds = array<i64: 1, 10>}, {pipeline_mode = #tpu.pipeline_mode<synchronous>, transform_indices = @transform_17, window_bounds = array<i64: 2, 1, 10>}]} {
    %c0 = arith.constant 0 : index
    %c0_0 = arith.constant 0 : index
    %0 = vector.load %arg1[%c0, %c0_0] : memref<56x84xf32, #tpu.memory_space<vmem>>, vector<24x84xf32>
    %c0_1 = arith.constant 0 : index
    %c0_2 = arith.constant 0 : index
    %c0_3 = arith.constant 0 : index
    %1 = vector.load %arg2[%c0_1, %c0_2, %c0_3] : memref<5x84x72xf32, #tpu.memory_space<vmem>>, vector<1x84x72xf32>
    %2 = vector.shape_cast %1 : vector<1x84x72xf32> to vector<84x72xf32>
    %cst = arith.constant dense<0.000000e+00> : vector<24x72xf32>
    %3 = tpu.matmul %0, %2, %cst {dimension_numbers = #tpu.dot_dimension_numbers<[1], [0], [0], [1], [0, 0, 1, 1], [], []>} : vector<24x84xf32>, vector<84x72xf32>, vector<24x72xf32> -> vector<24x72xf32>
    %c0_4 = arith.constant 0 : index
    %c0_5 = arith.constant 0 : index
    %c0_6 = arith.constant 0 : index
    %4 = vector.load %arg3[%c0_4, %c0_5, %c0_6] : memref<5x84x72xf32, #tpu.memory_space<vmem>>, vector<1x84x72xf32>
    %5 = vector.shape_cast %4 : vector<1x84x72xf32> to vector<84x72xf32>
    %cst_7 = arith.constant dense<0.000000e+00> : vector<24x72xf32>
    %6 = tpu.matmul %0, %5, %cst_7 {dimension_numbers = #tpu.dot_dimension_numbers<[1], [0], [0], [1], [0, 0, 1, 1], [], []>} : vector<24x84xf32>, vector<84x72xf32>, vector<24x72xf32> -> vector<24x72xf32>
    %c1 = arith.constant 1 : index
    %c0_8 = arith.constant 0 : index
    %7 = vector.load %arg1[%c1, %c0_8] : memref<56x84xf32, #tpu.memory_space<vmem>>, vector<24x84xf32>
    %c1_9 = arith.constant 1 : index
    %c0_10 = arith.constant 0 : index
    %c0_11 = arith.constant 0 : index
    %8 = vector.load %arg2[%c1_9, %c0_10, %c0_11] : memref<5x84x72xf32, #tpu.memory_space<vmem>>, vector<1x84x72xf32>
    %9 = vector.shape_cast %8 : vector<1x84x72xf32> to vector<84x72xf32>
    %cst_12 = arith.constant dense<0.000000e+00> : vector<24x72xf32>
    %10 = tpu.matmul %7, %9, %cst_12 {dimension_numbers = #tpu.dot_dimension_numbers<[1], [0], [0], [1], [0, 0, 1, 1], [], []>} : vector<24x84xf32>, vector<84x72xf32>, vector<24x72xf32> -> vector<24x72xf32>
    %11 = arith.addf %3, %10 : vector<24x72xf32>
    %c1_13 = arith.constant 1 : index
    %c0_14 = arith.constant 0 : index
    %c0_15 = arith.constant 0 : index
    %12 = vector.load %arg3[%c1_13, %c0_14, %c0_15] : memref<5x84x72xf32, #tpu.memory_space<vmem>>, vector<1x84x72xf32>
    %13 = vector.shape_cast %12 : vector<1x84x72xf32> to vector<84x72xf32>
    %cst_16 = arith.constant dense<0.000000e+00> : vector<24x72xf32>
    %14 = tpu.matmul %7, %13, %cst_16 {dimension_numbers = #tpu.dot_dimension_numbers<[1], [0], [0], [1], [0, 0, 1, 1], [], []>} : vector<24x84xf32>, vector<84x72xf32>, vector<24x72xf32> -> vector<24x72xf32>
    %15 = arith.addf %6, %14 : vector<24x72xf32>
    %c2 = arith.constant 2 : index
    %c0_17 = arith.constant 0 : index
    %16 = vector.load %arg1[%c2, %c0_17] : memref<56x84xf32, #tpu.memory_space<vmem>>, vector<24x84xf32>
    %c2_18 = arith.constant 2 : index
    %c0_19 = arith.constant 0 : index
    %c0_20 = arith.constant 0 : index
    %17 = vector.load %arg2[%c2_18, %c0_19, %c0_20] : memref<5x84x72xf32, #tpu.memory_space<vmem>>, vector<1x84x72xf32>
    %18 = vector.shape_cast %17 : vector<1x84x72xf32> to vector<84x72xf32>
    %cst_21 = arith.constant dense<0.000000e+00> : vector<24x72xf32>
    %19 = tpu.matmul %16, %18, %cst_21 {dimension_numbers = #tpu.dot_dimension_numbers<[1], [0], [0], [1], [0, 0, 1, 1], [], []>} : vector<24x84xf32>, vector<84x72xf32>, vector<24x72xf32> -> vector<24x72xf32>
    %20 = arith.addf %11, %19 : vector<24x72xf32>
    %c2_22 = arith.constant 2 : index
    %c0_23 = arith.constant 0 : index
    %c0_24 = arith.constant 0 : index
    %21 = vector.load %arg3[%c2_22, %c0_23, %c0_24] : memref<5x84x72xf32, #tpu.memory_space<vmem>>, vector<1x84x72xf32>
    %22 = vector.shape_cast %21 : vector<1x84x72xf32> to vector<84x72xf32>
    %cst_25 = arith.constant dense<0.000000e+00> : vector<24x72xf32>
    %23 = tpu.matmul %16, %22, %cst_25 {dimension_numbers = #tpu.dot_dimension_numbers<[1], [0], [0], [1], [0, 0, 1, 1], [], []>} : vector<24x84xf32>, vector<84x72xf32>, vector<24x72xf32> -> vector<24x72xf32>
    %24 = arith.addf %15, %23 : vector<24x72xf32>
    %c3 = arith.constant 3 : index
    %c0_26 = arith.constant 0 : index
    %25 = vector.load %arg1[%c3, %c0_26] : memref<56x84xf32, #tpu.memory_space<vmem>>, vector<24x84xf32>
    %c3_27 = arith.constant 3 : index
    %c0_28 = arith.constant 0 : index
    %c0_29 = arith.constant 0 : index
    %26 = vector.load %arg2[%c3_27, %c0_28, %c0_29] : memref<5x84x72xf32, #tpu.memory_space<vmem>>, vector<1x84x72xf32>
    %27 = vector.shape_cast %26 : vector<1x84x72xf32> to vector<84x72xf32>
    %cst_30 = arith.constant dense<0.000000e+00> : vector<24x72xf32>
    %28 = tpu.matmul %25, %27, %cst_30 {dimension_numbers = #tpu.dot_dimension_numbers<[1], [0], [0], [1], [0, 0, 1, 1], [], []>} : vector<24x84xf32>, vector<84x72xf32>, vector<24x72xf32> -> vector<24x72xf32>
    %29 = arith.addf %20, %28 : vector<24x72xf32>
    %c3_31 = arith.constant 3 : index
    %c0_32 = arith.constant 0 : index
    %c0_33 = arith.constant 0 : index
    %30 = vector.load %arg3[%c3_31, %c0_32, %c0_33] : memref<5x84x72xf32, #tpu.memory_space<vmem>>, vector<1x84x72xf32>
    %31 = vector.shape_cast %30 : vector<1x84x72xf32> to vector<84x72xf32>
    %cst_34 = arith.constant dense<0.000000e+00> : vector<24x72xf32>
    %32 = tpu.matmul %25, %31, %cst_34 {dimension_numbers = #tpu.dot_dimension_numbers<[1], [0], [0], [1], [0, 0, 1, 1], [], []>} : vector<24x84xf32>, vector<84x72xf32>, vector<24x72xf32> -> vector<24x72xf32>
    %33 = arith.addf %24, %32 : vector<24x72xf32>
    %c4 = arith.constant 4 : index
    %c0_35 = arith.constant 0 : index
    %34 = vector.load %arg1[%c4, %c0_35] : memref<56x84xf32, #tpu.memory_space<vmem>>, vector<24x84xf32>
    %c4_36 = arith.constant 4 : index
    %c0_37 = arith.constant 0 : index
    %c0_38 = arith.constant 0 : index
    %35 = vector.load %arg2[%c4_36, %c0_37, %c0_38] : memref<5x84x72xf32, #tpu.memory_space<vmem>>, vector<1x84x72xf32>
    %36 = vector.shape_cast %35 : vector<1x84x72xf32> to vector<84x72xf32>
    %cst_39 = arith.constant dense<0.000000e+00> : vector<24x72xf32>
    %37 = tpu.matmul %34, %36, %cst_39 {dimension_numbers = #tpu.dot_dimension_numbers<[1], [0], [0], [1], [0, 0, 1, 1], [], []>} : vector<24x84xf32>, vector<84x72xf32>, vector<24x72xf32> -> vector<24x72xf32>
    %38 = arith.addf %29, %37 : vector<24x72xf32>
    %c4_40 = arith.constant 4 : index
    %c0_41 = arith.constant 0 : index
    %c0_42 = arith.constant 0 : index
    %39 = vector.load %arg3[%c4_40, %c0_41, %c0_42] : memref<5x84x72xf32, #tpu.memory_space<vmem>>, vector<1x84x72xf32>
    %40 = vector.shape_cast %39 : vector<1x84x72xf32> to vector<84x72xf32>
    %cst_43 = arith.constant dense<0.000000e+00> : vector<24x72xf32>
    %41 = tpu.matmul %34, %40, %cst_43 {dimension_numbers = #tpu.dot_dimension_numbers<[1], [0], [0], [1], [0, 0, 1, 1], [], []>} : vector<24x84xf32>, vector<84x72xf32>, vector<24x72xf32> -> vector<24x72xf32>
    %42 = arith.addf %33, %41 : vector<24x72xf32>
    %43 = arith.maximumf %38, %42 : vector<24x72xf32>
    %c0_44 = arith.constant 0 : index
    %c0_45 = arith.constant 0 : index
    %44 = vector.load %arg5[%c0_44, %c0_45] : memref<12x24xf32, #tpu.memory_space<vmem>>, vector<12x24xf32>
    %cst_46 = arith.constant dense<0.000000e+00> : vector<12x72xf32>
    %45 = tpu.matmul %44, %43, %cst_46 {dimension_numbers = #tpu.dot_dimension_numbers<[1], [0], [0], [1], [0, 0, 1, 1], [], []>} : vector<12x24xf32>, vector<24x72xf32>, vector<12x72xf32> -> vector<12x72xf32>
    %c0_47 = arith.constant 0 : index
    %c0_48 = arith.constant 0 : index
    %46 = vector.load %arg6[%c0_47, %c0_48] : memref<12x24xf32, #tpu.memory_space<vmem>>, vector<12x24xf32>
    %cst_49 = arith.constant dense<0.000000e+00> : vector<12x72xf32>
    %47 = tpu.matmul %46, %43, %cst_49 {dimension_numbers = #tpu.dot_dimension_numbers<[1], [0], [0], [1], [0, 0, 1, 1], [], []>} : vector<12x24xf32>, vector<24x72xf32>, vector<12x72xf32> -> vector<12x72xf32>
    %48 = arith.maximumf %45, %47 : vector<12x72xf32>
    %c0_50 = arith.constant 0 : index
    %c0_51 = arith.constant 0 : index
    %49 = vector.load %arg4[%c0_50, %c0_51] : memref<1x72xf32, #tpu.memory_space<vmem>>, vector<1x72xf32>
    %50 = vector.broadcast %49 : vector<1x72xf32> to vector<12x72xf32>
    %51 = arith.addf %48, %50 : vector<12x72xf32>
    %cst_52 = arith.constant 0.000000e+00 : f32
    %52 = vector.broadcast %cst_52 : f32 to vector<12x72xf32>
    %53 = arith.maximumf %51, %52 : vector<12x72xf32>
    %c0_53 = arith.constant 0 : index
    %c0_54 = arith.constant 0 : index
    %c0_55 = arith.constant 0 : index
    %54 = vector.load %arg19[%c0_53, %c0_54, %c0_55] : memref<2x12x72xf32, #tpu.memory_space<vmem>>, vector<1x12x72xf32>
    %55 = vector.shape_cast %54 : vector<1x12x72xf32> to vector<12x72xf32>
    %56 = vector.shape_cast %53 : vector<12x72xf32> to vector<1x12x72xf32>
    tpu.vector_store %arg19[%c0_53, %c0_54, %c0_55], %56 {strides = array<i32>} : memref<2x12x72xf32, #tpu.memory_space<vmem>>, vector<1x12x72xf32>,
    %c0_56 = arith.constant 0 : index
    %c0_57 = arith.constant 0 : index
    %c0_58 = arith.constant 0 : index
    %57 = vector.load %arg19[%c0_56, %c0_57, %c0_58] : memref<2x12x72xf32, #tpu.memory_space<vmem>>, vector<1x8x72xf32>
    %58 = vector.shape_cast %57 : vector<1x8x72xf32> to vector<8x72xf32>
    %c0_59 = arith.constant 0 : index
    %c0_60 = arith.constant 0 : index
    %c0_61 = arith.constant 0 : index
    %59 = vector.load %arg7[%c0_59, %c0_60, %c0_61] : memref<5x72x64xf32, #tpu.memory_space<vmem>>, vector<1x72x64xf32>
    %60 = vector.shape_cast %59 : vector<1x72x64xf32> to vector<72x64xf32>
    %cst_62 = arith.constant dense<0.000000e+00> : vector<8x64xf32>
    %61 = tpu.matmul %58, %60, %cst_62 {dimension_numbers = #tpu.dot_dimension_numbers<[1], [0], [0], [1], [0, 0, 1, 1], [], []>} : vector<8x72xf32>, vector<72x64xf32>, vector<8x64xf32> -> vector<8x64xf32>
    %c0_63 = arith.constant 0 : index
    %c0_64 = arith.constant 0 : index
    %c0_65 = arith.constant 0 : index
    %62 = vector.load %arg8[%c0_63, %c0_64, %c0_65] : memref<5x72x64xf32, #tpu.memory_space<vmem>>, vector<1x72x64xf32>
    %63 = vector.shape_cast %62 : vector<1x72x64xf32> to vector<72x64xf32>
    %cst_66 = arith.constant dense<0.000000e+00> : vector<8x64xf32>
    %64 = tpu.matmul %58, %63, %cst_66 {dimension_numbers = #tpu.dot_dimension_numbers<[1], [0], [0], [1], [0, 0, 1, 1], [], []>} : vector<8x72xf32>, vector<72x64xf32>, vector<8x64xf32> -> vector<8x64xf32>
    %c0_67 = arith.constant 0 : index
    %c1_68 = arith.constant 1 : index
    %c0_69 = arith.constant 0 : index
    %65 = vector.load %arg19[%c0_67, %c1_68, %c0_69] : memref<2x12x72xf32, #tpu.memory_space<vmem>>, vector<1x8x72xf32>
    %66 = vector.shape_cast %65 : vector<1x8x72xf32> to vector<8x72xf32>
    %c1_70 = arith.constant 1 : index
    %c0_71 = arith.constant 0 : index
    %c0_72 = arith.constant 0 : index
    %67 = vector.load %arg7[%c1_70, %c0_71, %c0_72] : memref<5x72x64xf32, #tpu.memory_space<vmem>>, vector<1x72x64xf32>
    %68 = vector.shape_cast %67 : vector<1x72x64xf32> to vector<72x64xf32>
    %cst_73 = arith.constant dense<0.000000e+00> : vector<8x64xf32>
    %69 = tpu.matmul %66, %68, %cst_73 {dimension_numbers = #tpu.dot_dimension_numbers<[1], [0], [0], [1], [0, 0, 1, 1], [], []>} : vector<8x72xf32>, vector<72x64xf32>, vector<8x64xf32> -> vector<8x64xf32>
    %70 = arith.addf %61, %69 : vector<8x64xf32>
    %c1_74 = arith.constant 1 : index
    %c0_75 = arith.constant 0 : index
    %c0_76 = arith.constant 0 : index
    %71 = vector.load %arg8[%c1_74, %c0_75, %c0_76] : memref<5x72x64xf32, #tpu.memory_space<vmem>>, vector<1x72x64xf32>
    %72 = vector.shape_cast %71 : vector<1x72x64xf32> to vector<72x64xf32>
    %cst_77 = arith.constant dense<0.000000e+00> : vector<8x64xf32>
    %73 = tpu.matmul %66, %72, %cst_77 {dimension_numbers = #tpu.dot_dimension_numbers<[1], [0], [0], [1], [0, 0, 1, 1], [], []>} : vector<8x72xf32>, vector<72x64xf32>, vector<8x64xf32> -> vector<8x64xf32>
    %74 = arith.addf %64, %73 : vector<8x64xf32>
    %c0_78 = arith.constant 0 : index
    %c2_79 = arith.constant 2 : index
    %c0_80 = arith.constant 0 : index
    %75 = vector.load %arg19[%c0_78, %c2_79, %c0_80] : memref<2x12x72xf32, #tpu.memory_space<vmem>>, vector<1x8x72xf32>
    %76 = vector.shape_cast %75 : vector<1x8x72xf32> to vector<8x72xf32>
    %c2_81 = arith.constant 2 : index
    %c0_82 = arith.constant 0 : index
    %c0_83 = arith.constant 0 : index
    %77 = vector.load %arg7[%c2_81, %c0_82, %c0_83] : memref<5x72x64xf32, #tpu.memory_space<vmem>>, vector<1x72x64xf32>
    %78 = vector.shape_cast %77 : vector<1x72x64xf32> to vector<72x64xf32>
    %cst_84 = arith.constant dense<0.000000e+00> : vector<8x64xf32>
    %79 = tpu.matmul %76, %78, %cst_84 {dimension_numbers = #tpu.dot_dimension_numbers<[1], [0], [0], [1], [0, 0, 1, 1], [], []>} : vector<8x72xf32>, vector<72x64xf32>, vector<8x64xf32> -> vector<8x64xf32>
    %80 = arith.addf %70, %79 : vector<8x64xf32>
    %c2_85 = arith.constant 2 : index
    %c0_86 = arith.constant 0 : index
    %c0_87 = arith.constant 0 : index
    %81 = vector.load %arg8[%c2_85, %c0_86, %c0_87] : memref<5x72x64xf32, #tpu.memory_space<vmem>>, vector<1x72x64xf32>
    %82 = vector.shape_cast %81 : vector<1x72x64xf32> to vector<72x64xf32>
    %cst_88 = arith.constant dense<0.000000e+00> : vector<8x64xf32>
    %83 = tpu.matmul %76, %82, %cst_88 {dimension_numbers = #tpu.dot_dimension_numbers<[1], [0], [0], [1], [0, 0, 1, 1], [], []>} : vector<8x72xf32>, vector<72x64xf32>, vector<8x64xf32> -> vector<8x64xf32>
    %84 = arith.addf %74, %83 : vector<8x64xf32>
    %c0_89 = arith.constant 0 : index
    %c3_90 = arith.constant 3 : index
    %c0_91 = arith.constant 0 : index
    %85 = vector.load %arg19[%c0_89, %c3_90, %c0_91] : memref<2x12x72xf32, #tpu.memory_space<vmem>>, vector<1x8x72xf32>
    %86 = vector.shape_cast %85 : vector<1x8x72xf32> to vector<8x72xf32>
    %c3_92 = arith.constant 3 : index
    %c0_93 = arith.constant 0 : index
    %c0_94 = arith.constant 0 : index
    %87 = vector.load %arg7[%c3_92, %c0_93, %c0_94] : memref<5x72x64xf32, #tpu.memory_space<vmem>>, vector<1x72x64xf32>
    %88 = vector.shape_cast %87 : vector<1x72x64xf32> to vector<72x64xf32>
    %cst_95 = arith.constant dense<0.000000e+00> : vector<8x64xf32>
    %89 = tpu.matmul %86, %88, %cst_95 {dimension_numbers = #tpu.dot_dimension_numbers<[1], [0], [0], [1], [0, 0, 1, 1], [], []>} : vector<8x72xf32>, vector<72x64xf32>, vector<8x64xf32> -> vector<8x64xf32>
    %90 = arith.addf %80, %89 : vector<8x64xf32>
    %c3_96 = arith.constant 3 : index
    %c0_97 = arith.constant 0 : index
    %c0_98 = arith.constant 0 : index
    %91 = vector.load %arg8[%c3_96, %c0_97, %c0_98] : memref<5x72x64xf32, #tpu.memory_space<vmem>>, vector<1x72x64xf32>
    %92 = vector.shape_cast %91 : vector<1x72x64xf32> to vector<72x64xf32>
    %cst_99 = arith.constant dense<0.000000e+00> : vector<8x64xf32>
    %93 = tpu.matmul %86, %92, %cst_99 {dimension_numbers = #tpu.dot_dimension_numbers<[1], [0], [0], [1], [0, 0, 1, 1], [], []>} : vector<8x72xf32>, vector<72x64xf32>, vector<8x64xf32> -> vector<8x64xf32>
    %94 = arith.addf %84, %93 : vector<8x64xf32>
    %c0_100 = arith.constant 0 : index
    %c4_101 = arith.constant 4 : index
    %c0_102 = arith.constant 0 : index
    %95 = vector.load %arg19[%c0_100, %c4_101, %c0_102] : memref<2x12x72xf32, #tpu.memory_space<vmem>>, vector<1x8x72xf32>
    %96 = vector.shape_cast %95 : vector<1x8x72xf32> to vector<8x72xf32>
    %c4_103 = arith.constant 4 : index
    %c0_104 = arith.constant 0 : index
    %c0_105 = arith.constant 0 : index
    %97 = vector.load %arg7[%c4_103, %c0_104, %c0_105] : memref<5x72x64xf32, #tpu.memory_space<vmem>>, vector<1x72x64xf32>
    %98 = vector.shape_cast %97 : vector<1x72x64xf32> to vector<72x64xf32>
    %cst_106 = arith.constant dense<0.000000e+00> : vector<8x64xf32>
    %99 = tpu.matmul %96, %98, %cst_106 {dimension_numbers = #tpu.dot_dimension_numbers<[1], [0], [0], [1], [0, 0, 1, 1], [], []>} : vector<8x72xf32>, vector<72x64xf32>, vector<8x64xf32> -> vector<8x64xf32>
    %100 = arith.addf %90, %99 : vector<8x64xf32>
    %c4_107 = arith.constant 4 : index
    %c0_108 = arith.constant 0 : index
    %c0_109 = arith.constant 0 : index
    %101 = vector.load %arg8[%c4_107, %c0_108, %c0_109] : memref<5x72x64xf32, #tpu.memory_space<vmem>>, vector<1x72x64xf32>
    %102 = vector.shape_cast %101 : vector<1x72x64xf32> to vector<72x64xf32>
    %cst_110 = arith.constant dense<0.000000e+00> : vector<8x64xf32>
    %103 = tpu.matmul %96, %102, %cst_110 {dimension_numbers = #tpu.dot_dimension_numbers<[1], [0], [0], [1], [0, 0, 1, 1], [], []>} : vector<8x72xf32>, vector<72x64xf32>, vector<8x64xf32> -> vector<8x64xf32>
    %104 = arith.addf %94, %103 : vector<8x64xf32>
    %105 = arith.maximumf %100, %104 : vector<8x64xf32>
    %c0_111 = arith.constant 0 : index
    %c0_112 = arith.constant 0 : index
    %106 = vector.load %arg10[%c0_111, %c0_112] : memref<4x8xf32, #tpu.memory_space<vmem>>, vector<4x8xf32>
    %cst_113 = arith.constant dense<0.000000e+00> : vector<4x64xf32>
    %107 = tpu.matmul %106, %105, %cst_113 {dimension_numbers = #tpu.dot_dimension_numbers<[1], [0], [0], [1], [0, 0, 1, 1], [], []>} : vector<4x8xf32>, vector<8x64xf32>, vector<4x64xf32> -> vector<4x64xf32>
    %c0_114 = arith.constant 0 : index
    %c0_115 = arith.constant 0 : index
    %108 = vector.load %arg11[%c0_114, %c0_115] : memref<4x8xf32, #tpu.memory_space<vmem>>, vector<4x8xf32>
    %cst_116 = arith.constant dense<0.000000e+00> : vector<4x64xf32>
    %109 = tpu.matmul %108, %105, %cst_116 {dimension_numbers = #tpu.dot_dimension_numbers<[1], [0], [0], [1], [0, 0, 1, 1], [], []>} : vector<4x8xf32>, vector<8x64xf32>, vector<4x64xf32> -> vector<4x64xf32>
    %110 = arith.maximumf %107, %109 : vector<4x64xf32>
    %c0_117 = arith.constant 0 : index
    %c0_118 = arith.constant 0 : index
    %111 = vector.load %arg9[%c0_117, %c0_118] : memref<1x64xf32, #tpu.memory_space<vmem>>, vector<1x64xf32>
    %112 = vector.broadcast %111 : vector<1x64xf32> to vector<4x64xf32>
    %113 = arith.addf %110, %112 : vector<4x64xf32>
    %cst_119 = arith.constant 0.000000e+00 : f32
    %114 = vector.broadcast %cst_119 : f32 to vector<4x64xf32>
    %115 = arith.maximumf %113, %114 : vector<4x64xf32>
    %c0_120 = arith.constant 0 : index
    %c0_121 = arith.constant 0 : index
    %c0_122 = arith.constant 0 : index
    %116 = vector.load %arg20[%c0_120, %c0_121, %c0_122] : memref<2x4x64xf32, #tpu.memory_space<vmem>>, vector<1x4x64xf32>
    %117 = vector.shape_cast %116 : vector<1x4x64xf32> to vector<4x64xf32>
    %118 = vector.shape_cast %115 : vector<4x64xf32> to vector<1x4x64xf32>
    tpu.vector_store %arg20[%c0_120, %c0_121, %c0_122], %118 {strides = array<i32>} : memref<2x4x64xf32, #tpu.memory_space<vmem>>, vector<1x4x64xf32>,
    %c0_123 = arith.constant 0 : index
    %c0_124 = arith.constant 0 : index
    %c0_125 = arith.constant 0 : index
    %119 = vector.load %arg20[%c0_123, %c0_124, %c0_125] : memref<2x4x64xf32, #tpu.memory_space<vmem>>, vector<1x1x64xf32>
    %120 = vector.shape_cast %119 : vector<1x1x64xf32> to vector<1x64xf32>
    %c0_126 = arith.constant 0 : index
    %c0_127 = arith.constant 0 : index
    %c0_128 = arith.constant 0 : index
    %121 = vector.load %arg12[%c0_126, %c0_127, %c0_128] : memref<4x64x120xf32, #tpu.memory_space<vmem>>, vector<1x64x120xf32>
    %122 = vector.shape_cast %121 : vector<1x64x120xf32> to vector<64x120xf32>
    %cst_129 = arith.constant dense<0.000000e+00> : vector<1x120xf32>
    %123 = tpu.matmul %120, %122, %cst_129 {dimension_numbers = #tpu.dot_dimension_numbers<[1], [0], [0], [1], [0, 0, 1, 1], [], []>} : vector<1x64xf32>, vector<64x120xf32>, vector<1x120xf32> -> vector<1x120xf32>
    %c0_130 = arith.constant 0 : index
    %c1_131 = arith.constant 1 : index
    %c0_132 = arith.constant 0 : index
    %124 = vector.load %arg20[%c0_130, %c1_131, %c0_132] : memref<2x4x64xf32, #tpu.memory_space<vmem>>, vector<1x1x64xf32>
    %125 = vector.shape_cast %124 : vector<1x1x64xf32> to vector<1x64xf32>
    %c1_133 = arith.constant 1 : index
    %c0_134 = arith.constant 0 : index
    %c0_135 = arith.constant 0 : index
    %126 = vector.load %arg12[%c1_133, %c0_134, %c0_135] : memref<4x64x120xf32, #tpu.memory_space<vmem>>, vector<1x64x120xf32>
    %127 = vector.shape_cast %126 : vector<1x64x120xf32> to vector<64x120xf32>
    %cst_136 = arith.constant dense<0.000000e+00> : vector<1x120xf32>
    %128 = tpu.matmul %125, %127, %cst_136 {dimension_numbers = #tpu.dot_dimension_numbers<[1], [0], [0], [1], [0, 0, 1, 1], [], []>} : vector<1x64xf32>, vector<64x120xf32>, vector<1x120xf32> -> vector<1x120xf32>
    %129 = arith.addf %123, %128 : vector<1x120xf32>
    %c0_137 = arith.constant 0 : index
    %c2_138 = arith.constant 2 : index
    %c0_139 = arith.constant 0 : index
    %130 = vector.load %arg20[%c0_137, %c2_138, %c0_139] : memref<2x4x64xf32, #tpu.memory_space<vmem>>, vector<1x1x64xf32>
    %131 = vector.shape_cast %130 : vector<1x1x64xf32> to vector<1x64xf32>
    %c2_140 = arith.constant 2 : index
    %c0_141 = arith.constant 0 : index
    %c0_142 = arith.constant 0 : index
    %132 = vector.load %arg12[%c2_140, %c0_141, %c0_142] : memref<4x64x120xf32, #tpu.memory_space<vmem>>, vector<1x64x120xf32>
    %133 = vector.shape_cast %132 : vector<1x64x120xf32> to vector<64x120xf32>
    %cst_143 = arith.constant dense<0.000000e+00> : vector<1x120xf32>
    %134 = tpu.matmul %131, %133, %cst_143 {dimension_numbers = #tpu.dot_dimension_numbers<[1], [0], [0], [1], [0, 0, 1, 1], [], []>} : vector<1x64xf32>, vector<64x120xf32>, vector<1x120xf32> -> vector<1x120xf32>
    %135 = arith.addf %129, %134 : vector<1x120xf32>
    %c0_144 = arith.constant 0 : index
    %c3_145 = arith.constant 3 : index
    %c0_146 = arith.constant 0 : index
    %136 = vector.load %arg20[%c0_144, %c3_145, %c0_146] : memref<2x4x64xf32, #tpu.memory_space<vmem>>, vector<1x1x64xf32>
    %137 = vector.shape_cast %136 : vector<1x1x64xf32> to vector<1x64xf32>
    %c3_147 = arith.constant 3 : index
    %c0_148 = arith.constant 0 : index
    %c0_149 = arith.constant 0 : index
    %138 = vector.load %arg12[%c3_147, %c0_148, %c0_149] : memref<4x64x120xf32, #tpu.memory_space<vmem>>, vector<1x64x120xf32>
    %139 = vector.shape_cast %138 : vector<1x64x120xf32> to vector<64x120xf32>
    %cst_150 = arith.constant dense<0.000000e+00> : vector<1x120xf32>
    %140 = tpu.matmul %137, %139, %cst_150 {dimension_numbers = #tpu.dot_dimension_numbers<[1], [0], [0], [1], [0, 0, 1, 1], [], []>} : vector<1x64xf32>, vector<64x120xf32>, vector<1x120xf32> -> vector<1x120xf32>
    %141 = arith.addf %135, %140 : vector<1x120xf32>
    %c0_151 = arith.constant 0 : index
    %c0_152 = arith.constant 0 : index
    %142 = vector.load %arg13[%c0_151, %c0_152] : memref<1x120xf32, #tpu.memory_space<vmem>>, vector<1x120xf32>
    %143 = arith.addf %141, %142 : vector<1x120xf32>
    %cst_153 = arith.constant 0.000000e+00 : f32
    %144 = vector.broadcast %cst_153 : f32 to vector<1x120xf32>
    %145 = arith.maximumf %143, %144 : vector<1x120xf32>
    %c0_154 = arith.constant 0 : index
    %c0_155 = arith.constant 0 : index
    %146 = vector.load %arg14[%c0_154, %c0_155] : memref<120x84xf32, #tpu.memory_space<vmem>>, vector<120x84xf32>
    %cst_156 = arith.constant dense<0.000000e+00> : vector<1x84xf32>
    %147 = tpu.matmul %145, %146, %cst_156 {dimension_numbers = #tpu.dot_dimension_numbers<[1], [0], [0], [1], [0, 0, 1, 1], [], []>} : vector<1x120xf32>, vector<120x84xf32>, vector<1x84xf32> -> vector<1x84xf32>
    %c0_157 = arith.constant 0 : index
    %c0_158 = arith.constant 0 : index
    %148 = vector.load %arg15[%c0_157, %c0_158] : memref<1x84xf32, #tpu.memory_space<vmem>>, vector<1x84xf32>
    %149 = arith.addf %147, %148 : vector<1x84xf32>
    %cst_159 = arith.constant 0.000000e+00 : f32
    %150 = vector.broadcast %cst_159 : f32 to vector<1x84xf32>
    %151 = arith.maximumf %149, %150 : vector<1x84xf32>
    %c0_160 = arith.constant 0 : index
    %c0_161 = arith.constant 0 : index
    %152 = vector.load %arg16[%c0_160, %c0_161] : memref<84x10xf32, #tpu.memory_space<vmem>>, vector<84x10xf32>
    %cst_162 = arith.constant dense<0.000000e+00> : vector<1x10xf32>
    %153 = tpu.matmul %151, %152, %cst_162 {dimension_numbers = #tpu.dot_dimension_numbers<[1], [0], [0], [1], [0, 0, 1, 1], [], []>} : vector<1x84xf32>, vector<84x10xf32>, vector<1x10xf32> -> vector<1x10xf32>
    %c0_163 = arith.constant 0 : index
    %c0_164 = arith.constant 0 : index
    %154 = vector.load %arg17[%c0_163, %c0_164] : memref<1x10xf32, #tpu.memory_space<vmem>>, vector<1x10xf32>
    %155 = arith.addf %153, %154 : vector<1x10xf32>
    %c0_165 = arith.constant 0 : index
    %c0_166 = arith.constant 0 : index
    %c0_167 = arith.constant 0 : index
    %156 = vector.load %arg18[%c0_165, %c0_166, %c0_167] : memref<2x1x10xf32, #tpu.memory_space<vmem>>, vector<1x1x10xf32>
    %157 = vector.shape_cast %156 : vector<1x1x10xf32> to vector<1x10xf32>
    %158 = vector.shape_cast %155 : vector<1x10xf32> to vector<1x1x10xf32>
    tpu.vector_store %arg18[%c0_165, %c0_166, %c0_167], %158 {strides = array<i32>} : memref<2x1x10xf32, #tpu.memory_space<vmem>>, vector<1x1x10xf32>,
    %c28 = arith.constant 28 : index
    %c0_168 = arith.constant 0 : index
    %159 = vector.load %arg1[%c28, %c0_168] : memref<56x84xf32, #tpu.memory_space<vmem>>, vector<24x84xf32>
    %c0_169 = arith.constant 0 : index
    %c0_170 = arith.constant 0 : index
    %c0_171 = arith.constant 0 : index
    %160 = vector.load %arg2[%c0_169, %c0_170, %c0_171] : memref<5x84x72xf32, #tpu.memory_space<vmem>>, vector<1x84x72xf32>
    %161 = vector.shape_cast %160 : vector<1x84x72xf32> to vector<84x72xf32>
    %cst_172 = arith.constant dense<0.000000e+00> : vector<24x72xf32>
    %162 = tpu.matmul %159, %161, %cst_172 {dimension_numbers = #tpu.dot_dimension_numbers<[1], [0], [0], [1], [0, 0, 1, 1], [], []>} : vector<24x84xf32>, vector<84x72xf32>, vector<24x72xf32> -> vector<24x72xf32>
    %c0_173 = arith.constant 0 : index
    %c0_174 = arith.constant 0 : index
    %c0_175 = arith.constant 0 : index
    %163 = vector.load %arg3[%c0_173, %c0_174, %c0_175] : memref<5x84x72xf32, #tpu.memory_space<vmem>>, vector<1x84x72xf32>
    %164 = vector.shape_cast %163 : vector<1x84x72xf32> to vector<84x72xf32>
    %cst_176 = arith.constant dense<0.000000e+00> : vector<24x72xf32>
    %165 = tpu.matmul %159, %164, %cst_176 {dimension_numbers = #tpu.dot_dimension_numbers<[1], [0], [0], [1], [0, 0, 1, 1], [], []>} : vector<24x84xf32>, vector<84x72xf32>, vector<24x72xf32> -> vector<24x72xf32>
    %c29 = arith.constant 29 : index
    %c0_177 = arith.constant 0 : index
    %166 = vector.load %arg1[%c29, %c0_177] : memref<56x84xf32, #tpu.memory_space<vmem>>, vector<24x84xf32>
    %c1_178 = arith.constant 1 : index
    %c0_179 = arith.constant 0 : index
    %c0_180 = arith.constant 0 : index
    %167 = vector.load %arg2[%c1_178, %c0_179, %c0_180] : memref<5x84x72xf32, #tpu.memory_space<vmem>>, vector<1x84x72xf32>
    %168 = vector.shape_cast %167 : vector<1x84x72xf32> to vector<84x72xf32>
    %cst_181 = arith.constant dense<0.000000e+00> : vector<24x72xf32>
    %169 = tpu.matmul %166, %168, %cst_181 {dimension_numbers = #tpu.dot_dimension_numbers<[1], [0], [0], [1], [0, 0, 1, 1], [], []>} : vector<24x84xf32>, vector<84x72xf32>, vector<24x72xf32> -> vector<24x72xf32>
    %170 = arith.addf %162, %169 : vector<24x72xf32>
    %c1_182 = arith.constant 1 : index
    %c0_183 = arith.constant 0 : index
    %c0_184 = arith.constant 0 : index
    %171 = vector.load %arg3[%c1_182, %c0_183, %c0_184] : memref<5x84x72xf32, #tpu.memory_space<vmem>>, vector<1x84x72xf32>
    %172 = vector.shape_cast %171 : vector<1x84x72xf32> to vector<84x72xf32>
    %cst_185 = arith.constant dense<0.000000e+00> : vector<24x72xf32>
    %173 = tpu.matmul %166, %172, %cst_185 {dimension_numbers = #tpu.dot_dimension_numbers<[1], [0], [0], [1], [0, 0, 1, 1], [], []>} : vector<24x84xf32>, vector<84x72xf32>, vector<24x72xf32> -> vector<24x72xf32>
    %174 = arith.addf %165, %173 : vector<24x72xf32>
    %c30 = arith.constant 30 : index
    %c0_186 = arith.constant 0 : index
    %175 = vector.load %arg1[%c30, %c0_186] : memref<56x84xf32, #tpu.memory_space<vmem>>, vector<24x84xf32>
    %c2_187 = arith.constant 2 : index
    %c0_188 = arith.constant 0 : index
    %c0_189 = arith.constant 0 : index
    %176 = vector.load %arg2[%c2_187, %c0_188, %c0_189] : memref<5x84x72xf32, #tpu.memory_space<vmem>>, vector<1x84x72xf32>
    %177 = vector.shape_cast %176 : vector<1x84x72xf32> to vector<84x72xf32>
    %cst_190 = arith.constant dense<0.000000e+00> : vector<24x72xf32>
    %178 = tpu.matmul %175, %177, %cst_190 {dimension_numbers = #tpu.dot_dimension_numbers<[1], [0], [0], [1], [0, 0, 1, 1], [], []>} : vector<24x84xf32>, vector<84x72xf32>, vector<24x72xf32> -> vector<24x72xf32>
    %179 = arith.addf %170, %178 : vector<24x72xf32>
    %c2_191 = arith.constant 2 : index
    %c0_192 = arith.constant 0 : index
    %c0_193 = arith.constant 0 : index
    %180 = vector.load %arg3[%c2_191, %c0_192, %c0_193] : memref<5x84x72xf32, #tpu.memory_space<vmem>>, vector<1x84x72xf32>
    %181 = vector.shape_cast %180 : vector<1x84x72xf32> to vector<84x72xf32>
    %cst_194 = arith.constant dense<0.000000e+00> : vector<24x72xf32>
    %182 = tpu.matmul %175, %181, %cst_194 {dimension_numbers = #tpu.dot_dimension_numbers<[1], [0], [0], [1], [0, 0, 1, 1], [], []>} : vector<24x84xf32>, vector<84x72xf32>, vector<24x72xf32> -> vector<24x72xf32>
    %183 = arith.addf %174, %182 : vector<24x72xf32>
    %c31 = arith.constant 31 : index
    %c0_195 = arith.constant 0 : index
    %184 = vector.load %arg1[%c31, %c0_195] : memref<56x84xf32, #tpu.memory_space<vmem>>, vector<24x84xf32>
    %c3_196 = arith.constant 3 : index
    %c0_197 = arith.constant 0 : index
    %c0_198 = arith.constant 0 : index
    %185 = vector.load %arg2[%c3_196, %c0_197, %c0_198] : memref<5x84x72xf32, #tpu.memory_space<vmem>>, vector<1x84x72xf32>
    %186 = vector.shape_cast %185 : vector<1x84x72xf32> to vector<84x72xf32>
    %cst_199 = arith.constant dense<0.000000e+00> : vector<24x72xf32>
    %187 = tpu.matmul %184, %186, %cst_199 {dimension_numbers = #tpu.dot_dimension_numbers<[1], [0], [0], [1], [0, 0, 1, 1], [], []>} : vector<24x84xf32>, vector<84x72xf32>, vector<24x72xf32> -> vector<24x72xf32>
    %188 = arith.addf %179, %187 : vector<24x72xf32>
    %c3_200 = arith.constant 3 : index
    %c0_201 = arith.constant 0 : index
    %c0_202 = arith.constant 0 : index
    %189 = vector.load %arg3[%c3_200, %c0_201, %c0_202] : memref<5x84x72xf32, #tpu.memory_space<vmem>>, vector<1x84x72xf32>
    %190 = vector.shape_cast %189 : vector<1x84x72xf32> to vector<84x72xf32>
    %cst_203 = arith.constant dense<0.000000e+00> : vector<24x72xf32>
    %191 = tpu.matmul %184, %190, %cst_203 {dimension_numbers = #tpu.dot_dimension_numbers<[1], [0], [0], [1], [0, 0, 1, 1], [], []>} : vector<24x84xf32>, vector<84x72xf32>, vector<24x72xf32> -> vector<24x72xf32>
    %192 = arith.addf %183, %191 : vector<24x72xf32>
    %c32 = arith.constant 32 : index
    %c0_204 = arith.constant 0 : index
    %193 = vector.load %arg1[%c32, %c0_204] : memref<56x84xf32, #tpu.memory_space<vmem>>, vector<24x84xf32>
    %c4_205 = arith.constant 4 : index
    %c0_206 = arith.constant 0 : index
    %c0_207 = arith.constant 0 : index
    %194 = vector.load %arg2[%c4_205, %c0_206, %c0_207] : memref<5x84x72xf32, #tpu.memory_space<vmem>>, vector<1x84x72xf32>
    %195 = vector.shape_cast %194 : vector<1x84x72xf32> to vector<84x72xf32>
    %cst_208 = arith.constant dense<0.000000e+00> : vector<24x72xf32>
    %196 = tpu.matmul %193, %195, %cst_208 {dimension_numbers = #tpu.dot_dimension_numbers<[1], [0], [0], [1], [0, 0, 1, 1], [], []>} : vector<24x84xf32>, vector<84x72xf32>, vector<24x72xf32> -> vector<24x72xf32>
    %197 = arith.addf %188, %196 : vector<24x72xf32>
    %c4_209 = arith.constant 4 : index
    %c0_210 = arith.constant 0 : index
    %c0_211 = arith.constant 0 : index
    %198 = vector.load %arg3[%c4_209, %c0_210, %c0_211] : memref<5x84x72xf32, #tpu.memory_space<vmem>>, vector<1x84x72xf32>
    %199 = vector.shape_cast %198 : vector<1x84x72xf32> to vector<84x72xf32>
    %cst_212 = arith.constant dense<0.000000e+00> : vector<24x72xf32>
    %200 = tpu.matmul %193, %199, %cst_212 {dimension_numbers = #tpu.dot_dimension_numbers<[1], [0], [0], [1], [0, 0, 1, 1], [], []>} : vector<24x84xf32>, vector<84x72xf32>, vector<24x72xf32> -> vector<24x72xf32>
    %201 = arith.addf %192, %200 : vector<24x72xf32>
    %202 = arith.maximumf %197, %201 : vector<24x72xf32>
    %c0_213 = arith.constant 0 : index
    %c0_214 = arith.constant 0 : index
    %203 = vector.load %arg5[%c0_213, %c0_214] : memref<12x24xf32, #tpu.memory_space<vmem>>, vector<12x24xf32>
    %cst_215 = arith.constant dense<0.000000e+00> : vector<12x72xf32>
    %204 = tpu.matmul %203, %202, %cst_215 {dimension_numbers = #tpu.dot_dimension_numbers<[1], [0], [0], [1], [0, 0, 1, 1], [], []>} : vector<12x24xf32>, vector<24x72xf32>, vector<12x72xf32> -> vector<12x72xf32>
    %c0_216 = arith.constant 0 : index
    %c0_217 = arith.constant 0 : index
    %205 = vector.load %arg6[%c0_216, %c0_217] : memref<12x24xf32, #tpu.memory_space<vmem>>, vector<12x24xf32>
    %cst_218 = arith.constant dense<0.000000e+00> : vector<12x72xf32>
    %206 = tpu.matmul %205, %202, %cst_218 {dimension_numbers = #tpu.dot_dimension_numbers<[1], [0], [0], [1], [0, 0, 1, 1], [], []>} : vector<12x24xf32>, vector<24x72xf32>, vector<12x72xf32> -> vector<12x72xf32>
    %207 = arith.maximumf %204, %206 : vector<12x72xf32>
    %c0_219 = arith.constant 0 : index
    %c0_220 = arith.constant 0 : index
    %208 = vector.load %arg4[%c0_219, %c0_220] : memref<1x72xf32, #tpu.memory_space<vmem>>, vector<1x72xf32>
    %209 = vector.broadcast %208 : vector<1x72xf32> to vector<12x72xf32>
    %210 = arith.addf %207, %209 : vector<12x72xf32>
    %cst_221 = arith.constant 0.000000e+00 : f32
    %211 = vector.broadcast %cst_221 : f32 to vector<12x72xf32>
    %212 = arith.maximumf %210, %211 : vector<12x72xf32>
    %c1_222 = arith.constant 1 : index
    %c0_223 = arith.constant 0 : index
    %c0_224 = arith.constant 0 : index
    %213 = vector.load %arg19[%c1_222, %c0_223, %c0_224] : memref<2x12x72xf32, #tpu.memory_space<vmem>>, vector<1x12x72xf32>
    %214 = vector.shape_cast %213 : vector<1x12x72xf32> to vector<12x72xf32>
    %215 = vector.shape_cast %212 : vector<12x72xf32> to vector<1x12x72xf32>
    tpu.vector_store %arg19[%c1_222, %c0_223, %c0_224], %215 {strides = array<i32>} : memref<2x12x72xf32, #tpu.memory_space<vmem>>, vector<1x12x72xf32>,
    %c1_225 = arith.constant 1 : index
    %c0_226 = arith.constant 0 : index
    %c0_227 = arith.constant 0 : index
    %216 = vector.load %arg19[%c1_225, %c0_226, %c0_227] : memref<2x12x72xf32, #tpu.memory_space<vmem>>, vector<1x8x72xf32>
    %217 = vector.shape_cast %216 : vector<1x8x72xf32> to vector<8x72xf32>
    %c0_228 = arith.constant 0 : index
    %c0_229 = arith.constant 0 : index
    %c0_230 = arith.constant 0 : index
    %218 = vector.load %arg7[%c0_228, %c0_229, %c0_230] : memref<5x72x64xf32, #tpu.memory_space<vmem>>, vector<1x72x64xf32>
    %219 = vector.shape_cast %218 : vector<1x72x64xf32> to vector<72x64xf32>
    %cst_231 = arith.constant dense<0.000000e+00> : vector<8x64xf32>
    %220 = tpu.matmul %217, %219, %cst_231 {dimension_numbers = #tpu.dot_dimension_numbers<[1], [0], [0], [1], [0, 0, 1, 1], [], []>} : vector<8x72xf32>, vector<72x64xf32>, vector<8x64xf32> -> vector<8x64xf32>
    %c0_232 = arith.constant 0 : index
    %c0_233 = arith.constant 0 : index
    %c0_234 = arith.constant 0 : index
    %221 = vector.load %arg8[%c0_232, %c0_233, %c0_234] : memref<5x72x64xf32, #tpu.memory_space<vmem>>, vector<1x72x64xf32>
    %222 = vector.shape_cast %221 : vector<1x72x64xf32> to vector<72x64xf32>
    %cst_235 = arith.constant dense<0.000000e+00> : vector<8x64xf32>
    %223 = tpu.matmul %217, %222, %cst_235 {dimension_numbers = #tpu.dot_dimension_numbers<[1], [0], [0], [1], [0, 0, 1, 1], [], []>} : vector<8x72xf32>, vector<72x64xf32>, vector<8x64xf32> -> vector<8x64xf32>
    %c1_236 = arith.constant 1 : index
    %c1_237 = arith.constant 1 : index
    %c0_238 = arith.constant 0 : index
    %224 = vector.load %arg19[%c1_236, %c1_237, %c0_238] : memref<2x12x72xf32, #tpu.memory_space<vmem>>, vector<1x8x72xf32>
    %225 = vector.shape_cast %224 : vector<1x8x72xf32> to vector<8x72xf32>
    %c1_239 = arith.constant 1 : index
    %c0_240 = arith.constant 0 : index
    %c0_241 = arith.constant 0 : index
    %226 = vector.load %arg7[%c1_239, %c0_240, %c0_241] : memref<5x72x64xf32, #tpu.memory_space<vmem>>, vector<1x72x64xf32>
    %227 = vector.shape_cast %226 : vector<1x72x64xf32> to vector<72x64xf32>
    %cst_242 = arith.constant dense<0.000000e+00> : vector<8x64xf32>
    %228 = tpu.matmul %225, %227, %cst_242 {dimension_numbers = #tpu.dot_dimension_numbers<[1], [0], [0], [1], [0, 0, 1, 1], [], []>} : vector<8x72xf32>, vector<72x64xf32>, vector<8x64xf32> -> vector<8x64xf32>
    %229 = arith.addf %220, %228 : vector<8x64xf32>
    %c1_243 = arith.constant 1 : index
    %c0_244 = arith.constant 0 : index
    %c0_245 = arith.constant 0 : index
    %230 = vector.load %arg8[%c1_243, %c0_244, %c0_245] : memref<5x72x64xf32, #tpu.memory_space<vmem>>, vector<1x72x64xf32>
    %231 = vector.shape_cast %230 : vector<1x72x64xf32> to vector<72x64xf32>
    %cst_246 = arith.constant dense<0.000000e+00> : vector<8x64xf32>
    %232 = tpu.matmul %225, %231, %cst_246 {dimension_numbers = #tpu.dot_dimension_numbers<[1], [0], [0], [1], [0, 0, 1, 1], [], []>} : vector<8x72xf32>, vector<72x64xf32>, vector<8x64xf32> -> vector<8x64xf32>
    %233 = arith.addf %223, %232 : vector<8x64xf32>
    %c1_247 = arith.constant 1 : index
    %c2_248 = arith.constant 2 : index
    %c0_249 = arith.constant 0 : index
    %234 = vector.load %arg19[%c1_247, %c2_248, %c0_249] : memref<2x12x72xf32, #tpu.memory_space<vmem>>, vector<1x8x72xf32>
    %235 = vector.shape_cast %234 : vector<1x8x72xf32> to vector<8x72xf32>
    %c2_250 = arith.constant 2 : index
    %c0_251 = arith.constant 0 : index
    %c0_252 = arith.constant 0 : index
    %236 = vector.load %arg7[%c2_250, %c0_251, %c0_252] : memref<5x72x64xf32, #tpu.memory_space<vmem>>, vector<1x72x64xf32>
    %237 = vector.shape_cast %236 : vector<1x72x64xf32> to vector<72x64xf32>
    %cst_253 = arith.constant dense<0.000000e+00> : vector<8x64xf32>
    %238 = tpu.matmul %235, %237, %cst_253 {dimension_numbers = #tpu.dot_dimension_numbers<[1], [0], [0], [1], [0, 0, 1, 1], [], []>} : vector<8x72xf32>, vector<72x64xf32>, vector<8x64xf32> -> vector<8x64xf32>
    %239 = arith.addf %229, %238 : vector<8x64xf32>
    %c2_254 = arith.constant 2 : index
    %c0_255 = arith.constant 0 : index
    %c0_256 = arith.constant 0 : index
    %240 = vector.load %arg8[%c2_254, %c0_255, %c0_256] : memref<5x72x64xf32, #tpu.memory_space<vmem>>, vector<1x72x64xf32>
    %241 = vector.shape_cast %240 : vector<1x72x64xf32> to vector<72x64xf32>
    %cst_257 = arith.constant dense<0.000000e+00> : vector<8x64xf32>
    %242 = tpu.matmul %235, %241, %cst_257 {dimension_numbers = #tpu.dot_dimension_numbers<[1], [0], [0], [1], [0, 0, 1, 1], [], []>} : vector<8x72xf32>, vector<72x64xf32>, vector<8x64xf32> -> vector<8x64xf32>
    %243 = arith.addf %233, %242 : vector<8x64xf32>
    %c1_258 = arith.constant 1 : index
    %c3_259 = arith.constant 3 : index
    %c0_260 = arith.constant 0 : index
    %244 = vector.load %arg19[%c1_258, %c3_259, %c0_260] : memref<2x12x72xf32, #tpu.memory_space<vmem>>, vector<1x8x72xf32>
    %245 = vector.shape_cast %244 : vector<1x8x72xf32> to vector<8x72xf32>
    %c3_261 = arith.constant 3 : index
    %c0_262 = arith.constant 0 : index
    %c0_263 = arith.constant 0 : index
    %246 = vector.load %arg7[%c3_261, %c0_262, %c0_263] : memref<5x72x64xf32, #tpu.memory_space<vmem>>, vector<1x72x64xf32>
    %247 = vector.shape_cast %246 : vector<1x72x64xf32> to vector<72x64xf32>
    %cst_264 = arith.constant dense<0.000000e+00> : vector<8x64xf32>
    %248 = tpu.matmul %245, %247, %cst_264 {dimension_numbers = #tpu.dot_dimension_numbers<[1], [0], [0], [1], [0, 0, 1, 1], [], []>} : vector<8x72xf32>, vector<72x64xf32>, vector<8x64xf32> -> vector<8x64xf32>
    %249 = arith.addf %239, %248 : vector<8x64xf32>
    %c3_265 = arith.constant 3 : index
    %c0_266 = arith.constant 0 : index
    %c0_267 = arith.constant 0 : index
    %250 = vector.load %arg8[%c3_265, %c0_266, %c0_267] : memref<5x72x64xf32, #tpu.memory_space<vmem>>, vector<1x72x64xf32>
    %251 = vector.shape_cast %250 : vector<1x72x64xf32> to vector<72x64xf32>
    %cst_268 = arith.constant dense<0.000000e+00> : vector<8x64xf32>
    %252 = tpu.matmul %245, %251, %cst_268 {dimension_numbers = #tpu.dot_dimension_numbers<[1], [0], [0], [1], [0, 0, 1, 1], [], []>} : vector<8x72xf32>, vector<72x64xf32>, vector<8x64xf32> -> vector<8x64xf32>
    %253 = arith.addf %243, %252 : vector<8x64xf32>
    %c1_269 = arith.constant 1 : index
    %c4_270 = arith.constant 4 : index
    %c0_271 = arith.constant 0 : index
    %254 = vector.load %arg19[%c1_269, %c4_270, %c0_271] : memref<2x12x72xf32, #tpu.memory_space<vmem>>, vector<1x8x72xf32>
    %255 = vector.shape_cast %254 : vector<1x8x72xf32> to vector<8x72xf32>
    %c4_272 = arith.constant 4 : index
    %c0_273 = arith.constant 0 : index
    %c0_274 = arith.constant 0 : index
    %256 = vector.load %arg7[%c4_272, %c0_273, %c0_274] : memref<5x72x64xf32, #tpu.memory_space<vmem>>, vector<1x72x64xf32>
    %257 = vector.shape_cast %256 : vector<1x72x64xf32> to vector<72x64xf32>
    %cst_275 = arith.constant dense<0.000000e+00> : vector<8x64xf32>
    %258 = tpu.matmul %255, %257, %cst_275 {dimension_numbers = #tpu.dot_dimension_numbers<[1], [0], [0], [1], [0, 0, 1, 1], [], []>} : vector<8x72xf32>, vector<72x64xf32>, vector<8x64xf32> -> vector<8x64xf32>
    %259 = arith.addf %249, %258 : vector<8x64xf32>
    %c4_276 = arith.constant 4 : index
    %c0_277 = arith.constant 0 : index
    %c0_278 = arith.constant 0 : index
    %260 = vector.load %arg8[%c4_276, %c0_277, %c0_278] : memref<5x72x64xf32, #tpu.memory_space<vmem>>, vector<1x72x64xf32>
    %261 = vector.shape_cast %260 : vector<1x72x64xf32> to vector<72x64xf32>
    %cst_279 = arith.constant dense<0.000000e+00> : vector<8x64xf32>
    %262 = tpu.matmul %255, %261, %cst_279 {dimension_numbers = #tpu.dot_dimension_numbers<[1], [0], [0], [1], [0, 0, 1, 1], [], []>} : vector<8x72xf32>, vector<72x64xf32>, vector<8x64xf32> -> vector<8x64xf32>
    %263 = arith.addf %253, %262 : vector<8x64xf32>
    %264 = arith.maximumf %259, %263 : vector<8x64xf32>
    %c0_280 = arith.constant 0 : index
    %c0_281 = arith.constant 0 : index
    %265 = vector.load %arg10[%c0_280, %c0_281] : memref<4x8xf32, #tpu.memory_space<vmem>>, vector<4x8xf32>
    %cst_282 = arith.constant dense<0.000000e+00> : vector<4x64xf32>
    %266 = tpu.matmul %265, %264, %cst_282 {dimension_numbers = #tpu.dot_dimension_numbers<[1], [0], [0], [1], [0, 0, 1, 1], [], []>} : vector<4x8xf32>, vector<8x64xf32>, vector<4x64xf32> -> vector<4x64xf32>
    %c0_283 = arith.constant 0 : index
    %c0_284 = arith.constant 0 : index
    %267 = vector.load %arg11[%c0_283, %c0_284] : memref<4x8xf32, #tpu.memory_space<vmem>>, vector<4x8xf32>
    %cst_285 = arith.constant dense<0.000000e+00> : vector<4x64xf32>
    %268 = tpu.matmul %267, %264, %cst_285 {dimension_numbers = #tpu.dot_dimension_numbers<[1], [0], [0], [1], [0, 0, 1, 1], [], []>} : vector<4x8xf32>, vector<8x64xf32>, vector<4x64xf32> -> vector<4x64xf32>
    %269 = arith.maximumf %266, %268 : vector<4x64xf32>
    %c0_286 = arith.constant 0 : index
    %c0_287 = arith.constant 0 : index
    %270 = vector.load %arg9[%c0_286, %c0_287] : memref<1x64xf32, #tpu.memory_space<vmem>>, vector<1x64xf32>
    %271 = vector.broadcast %270 : vector<1x64xf32> to vector<4x64xf32>
    %272 = arith.addf %269, %271 : vector<4x64xf32>
    %cst_288 = arith.constant 0.000000e+00 : f32
    %273 = vector.broadcast %cst_288 : f32 to vector<4x64xf32>
    %274 = arith.maximumf %272, %273 : vector<4x64xf32>
    %c1_289 = arith.constant 1 : index
    %c0_290 = arith.constant 0 : index
    %c0_291 = arith.constant 0 : index
    %275 = vector.load %arg20[%c1_289, %c0_290, %c0_291] : memref<2x4x64xf32, #tpu.memory_space<vmem>>, vector<1x4x64xf32>
    %276 = vector.shape_cast %275 : vector<1x4x64xf32> to vector<4x64xf32>
    %277 = vector.shape_cast %274 : vector<4x64xf32> to vector<1x4x64xf32>
    tpu.vector_store %arg20[%c1_289, %c0_290, %c0_291], %277 {strides = array<i32>} : memref<2x4x64xf32, #tpu.memory_space<vmem>>, vector<1x4x64xf32>,
    %c1_292 = arith.constant 1 : index
    %c0_293 = arith.constant 0 : index
    %c0_294 = arith.constant 0 : index
    %278 = vector.load %arg20[%c1_292, %c0_293, %c0_294] : memref<2x4x64xf32, #tpu.memory_space<vmem>>, vector<1x1x64xf32>
    %279 = vector.shape_cast %278 : vector<1x1x64xf32> to vector<1x64xf32>
    %c0_295 = arith.constant 0 : index
    %c0_296 = arith.constant 0 : index
    %c0_297 = arith.constant 0 : index
    %280 = vector.load %arg12[%c0_295, %c0_296, %c0_297] : memref<4x64x120xf32, #tpu.memory_space<vmem>>, vector<1x64x120xf32>
    %281 = vector.shape_cast %280 : vector<1x64x120xf32> to vector<64x120xf32>
    %cst_298 = arith.constant dense<0.000000e+00> : vector<1x120xf32>
    %282 = tpu.matmul %279, %281, %cst_298 {dimension_numbers = #tpu.dot_dimension_numbers<[1], [0], [0], [1], [0, 0, 1, 1], [], []>} : vector<1x64xf32>, vector<64x120xf32>, vector<1x120xf32> -> vector<1x120xf32>
    %c1_299 = arith.constant 1 : index
    %c1_300 = arith.constant 1 : index
    %c0_301 = arith.constant 0 : index
    %283 = vector.load %arg20[%c1_299, %c1_300, %c0_301] : memref<2x4x64xf32, #tpu.memory_space<vmem>>, vector<1x1x64xf32>
    %284 = vector.shape_cast %283 : vector<1x1x64xf32> to vector<1x64xf32>
    %c1_302 = arith.constant 1 : index
    %c0_303 = arith.constant 0 : index
    %c0_304 = arith.constant 0 : index
    %285 = vector.load %arg12[%c1_302, %c0_303, %c0_304] : memref<4x64x120xf32, #tpu.memory_space<vmem>>, vector<1x64x120xf32>
    %286 = vector.shape_cast %285 : vector<1x64x120xf32> to vector<64x120xf32>
    %cst_305 = arith.constant dense<0.000000e+00> : vector<1x120xf32>
    %287 = tpu.matmul %284, %286, %cst_305 {dimension_numbers = #tpu.dot_dimension_numbers<[1], [0], [0], [1], [0, 0, 1, 1], [], []>} : vector<1x64xf32>, vector<64x120xf32>, vector<1x120xf32> -> vector<1x120xf32>
    %288 = arith.addf %282, %287 : vector<1x120xf32>
    %c1_306 = arith.constant 1 : index
    %c2_307 = arith.constant 2 : index
    %c0_308 = arith.constant 0 : index
    %289 = vector.load %arg20[%c1_306, %c2_307, %c0_308] : memref<2x4x64xf32, #tpu.memory_space<vmem>>, vector<1x1x64xf32>
    %290 = vector.shape_cast %289 : vector<1x1x64xf32> to vector<1x64xf32>
    %c2_309 = arith.constant 2 : index
    %c0_310 = arith.constant 0 : index
    %c0_311 = arith.constant 0 : index
    %291 = vector.load %arg12[%c2_309, %c0_310, %c0_311] : memref<4x64x120xf32, #tpu.memory_space<vmem>>, vector<1x64x120xf32>
    %292 = vector.shape_cast %291 : vector<1x64x120xf32> to vector<64x120xf32>
    %cst_312 = arith.constant dense<0.000000e+00> : vector<1x120xf32>
    %293 = tpu.matmul %290, %292, %cst_312 {dimension_numbers = #tpu.dot_dimension_numbers<[1], [0], [0], [1], [0, 0, 1, 1], [], []>} : vector<1x64xf32>, vector<64x120xf32>, vector<1x120xf32> -> vector<1x120xf32>
    %294 = arith.addf %288, %293 : vector<1x120xf32>
    %c1_313 = arith.constant 1 : index
    %c3_314 = arith.constant 3 : index
    %c0_315 = arith.constant 0 : index
    %295 = vector.load %arg20[%c1_313, %c3_314, %c0_315] : memref<2x4x64xf32, #tpu.memory_space<vmem>>, vector<1x1x64xf32>
    %296 = vector.shape_cast %295 : vector<1x1x64xf32> to vector<1x64xf32>
    %c3_316 = arith.constant 3 : index
    %c0_317 = arith.constant 0 : index
    %c0_318 = arith.constant 0 : index
    %297 = vector.load %arg12[%c3_316, %c0_317, %c0_318] : memref<4x64x120xf32, #tpu.memory_space<vmem>>, vector<1x64x120xf32>
    %298 = vector.shape_cast %297 : vector<1x64x120xf32> to vector<64x120xf32>
    %cst_319 = arith.constant dense<0.000000e+00> : vector<1x120xf32>
    %299 = tpu.matmul %296, %298, %cst_319 {dimension_numbers = #tpu.dot_dimension_numbers<[1], [0], [0], [1], [0, 0, 1, 1], [], []>} : vector<1x64xf32>, vector<64x120xf32>, vector<1x120xf32> -> vector<1x120xf32>
    %300 = arith.addf %294, %299 : vector<1x120xf32>
    %c0_320 = arith.constant 0 : index
    %c0_321 = arith.constant 0 : index
    %301 = vector.load %arg13[%c0_320, %c0_321] : memref<1x120xf32, #tpu.memory_space<vmem>>, vector<1x120xf32>
    %302 = arith.addf %300, %301 : vector<1x120xf32>
    %cst_322 = arith.constant 0.000000e+00 : f32
    %303 = vector.broadcast %cst_322 : f32 to vector<1x120xf32>
    %304 = arith.maximumf %302, %303 : vector<1x120xf32>
    %c0_323 = arith.constant 0 : index
    %c0_324 = arith.constant 0 : index
    %305 = vector.load %arg14[%c0_323, %c0_324] : memref<120x84xf32, #tpu.memory_space<vmem>>, vector<120x84xf32>
    %cst_325 = arith.constant dense<0.000000e+00> : vector<1x84xf32>
    %306 = tpu.matmul %304, %305, %cst_325 {dimension_numbers = #tpu.dot_dimension_numbers<[1], [0], [0], [1], [0, 0, 1, 1], [], []>} : vector<1x120xf32>, vector<120x84xf32>, vector<1x84xf32> -> vector<1x84xf32>
    %c0_326 = arith.constant 0 : index
    %c0_327 = arith.constant 0 : index
    %307 = vector.load %arg15[%c0_326, %c0_327] : memref<1x84xf32, #tpu.memory_space<vmem>>, vector<1x84xf32>
    %308 = arith.addf %306, %307 : vector<1x84xf32>
    %cst_328 = arith.constant 0.000000e+00 : f32
    %309 = vector.broadcast %cst_328 : f32 to vector<1x84xf32>
    %310 = arith.maximumf %308, %309 : vector<1x84xf32>
    %c0_329 = arith.constant 0 : index
    %c0_330 = arith.constant 0 : index
    %311 = vector.load %arg16[%c0_329, %c0_330] : memref<84x10xf32, #tpu.memory_space<vmem>>, vector<84x10xf32>
    %cst_331 = arith.constant dense<0.000000e+00> : vector<1x10xf32>
    %312 = tpu.matmul %310, %311, %cst_331 {dimension_numbers = #tpu.dot_dimension_numbers<[1], [0], [0], [1], [0, 0, 1, 1], [], []>} : vector<1x84xf32>, vector<84x10xf32>, vector<1x10xf32> -> vector<1x10xf32>
    %c0_332 = arith.constant 0 : index
    %c0_333 = arith.constant 0 : index
    %313 = vector.load %arg17[%c0_332, %c0_333] : memref<1x10xf32, #tpu.memory_space<vmem>>, vector<1x10xf32>
    %314 = arith.addf %312, %313 : vector<1x10xf32>
    %c1_334 = arith.constant 1 : index
    %c0_335 = arith.constant 0 : index
    %c0_336 = arith.constant 0 : index
    %315 = vector.load %arg18[%c1_334, %c0_335, %c0_336] : memref<2x1x10xf32, #tpu.memory_space<vmem>>, vector<1x1x10xf32>
    %316 = vector.shape_cast %315 : vector<1x1x10xf32> to vector<1x10xf32>
    %317 = vector.shape_cast %314 : vector<1x10xf32> to vector<1x1x10xf32>
    tpu.vector_store %arg18[%c1_334, %c0_335, %c0_336], %317 {strides = array<i32>} : memref<2x1x10xf32, #tpu.memory_space<vmem>>, vector<1x1x10xf32>,
    return
  }
  func.func @transform_0(%arg0: i32) -> (i32, i32) {
    %c0_i32 = arith.constant 0 : i32
    %c0_i32_0 = arith.constant 0 : i32
    %c0_i32_1 = arith.constant 0 : i32
    return %c0_i32, %c0_i32_0 : i32, i32
  }
  func.func @transform_1(%arg0: i32) -> (i32, i32, i32) {
    %c0_i32 = arith.constant 0 : i32
    %c0_i32_0 = arith.constant 0 : i32
    %c0_i32_1 = arith.constant 0 : i32
    %c0_i32_2 = arith.constant 0 : i32
    return %c0_i32, %c0_i32_0, %c0_i32_1 : i32, i32, i32
  }
  func.func @transform_2(%arg0: i32) -> (i32, i32, i32) {
    %c0_i32 = arith.constant 0 : i32
    %c0_i32_0 = arith.constant 0 : i32
    %c0_i32_1 = arith.constant 0 : i32
    %c0_i32_2 = arith.constant 0 : i32
    return %c0_i32, %c0_i32_0, %c0_i32_1 : i32, i32, i32
  }
  func.func @transform_3(%arg0: i32) -> (i32, i32) {
    %c0_i32 = arith.constant 0 : i32
    %c0_i32_0 = arith.constant 0 : i32
    %c0_i32_1 = arith.constant 0 : i32
    return %c0_i32, %c0_i32_0 : i32, i32
  }
  func.func @transform_4(%arg0: i32) -> (i32, i32) {
    %c0_i32 = arith.constant 0 : i32
    %c0_i32_0 = arith.constant 0 : i32
    %c0_i32_1 = arith.constant 0 : i32
    return %c0_i32, %c0_i32_0 : i32, i32
  }
  func.func @transform_5(%arg0: i32) -> (i32, i32) {
    %c0_i32 = arith.constant 0 : i32
    %c0_i32_0 = arith.constant 0 : i32
    %c0_i32_1 = arith.constant 0 : i32
    return %c0_i32, %c0_i32_0 : i32, i32
  }
  func.func @transform_6(%arg0: i32) -> (i32, i32, i32) {
    %c0_i32 = arith.constant 0 : i32
    %c0_i32_0 = arith.constant 0 : i32
    %c0_i32_1 = arith.constant 0 : i32
    %c0_i32_2 = arith.constant 0 : i32
    return %c0_i32, %c0_i32_0, %c0_i32_1 : i32, i32, i32
  }
  func.func @transform_7(%arg0: i32) -> (i32, i32, i32) {
    %c0_i32 = arith.constant 0 : i32
    %c0_i32_0 = arith.constant 0 : i32
    %c0_i32_1 = arith.constant 0 : i32
    %c0_i32_2 = arith.constant 0 : i32
    return %c0_i32, %c0_i32_0, %c0_i32_1 : i32, i32, i32
  }
  func.func @transform_8(%arg0: i32) -> (i32, i32) {
    %c0_i32 = arith.constant 0 : i32
    %c0_i32_0 = arith.constant 0 : i32
    %c0_i32_1 = arith.constant 0 : i32
    return %c0_i32, %c0_i32_0 : i32, i32
  }
  func.func @transform_9(%arg0: i32) -> (i32, i32) {
    %c0_i32 = arith.constant 0 : i32
    %c0_i32_0 = arith.constant 0 : i32
    %c0_i32_1 = arith.constant 0 : i32
    return %c0_i32, %c0_i32_0 : i32, i32
  }
  func.func @transform_10(%arg0: i32) -> (i32, i32) {
    %c0_i32 = arith.constant 0 : i32
    %c0_i32_0 = arith.constant 0 : i32
    %c0_i32_1 = arith.constant 0 : i32
    return %c0_i32, %c0_i32_0 : i32, i32
  }
  func.func @transform_11(%arg0: i32) -> (i32, i32, i32) {
    %c0_i32 = arith.constant 0 : i32
    %c0_i32_0 = arith.constant 0 : i32
    %c0_i32_1 = arith.constant 0 : i32
    %c0_i32_2 = arith.constant 0 : i32
    return %c0_i32, %c0_i32_0, %c0_i32_1 : i32, i32, i32
  }
  func.func @transform_12(%arg0: i32) -> (i32, i32) {
    %c0_i32 = arith.constant 0 : i32
    %c0_i32_0 = arith.constant 0 : i32
    %c0_i32_1 = arith.constant 0 : i32
    return %c0_i32, %c0_i32_0 : i32, i32
  }
  func.func @transform_13(%arg0: i32) -> (i32, i32) {
    %c0_i32 = arith.constant 0 : i32
    %c0_i32_0 = arith.constant 0 : i32
    %c0_i32_1 = arith.constant 0 : i32
    return %c0_i32, %c0_i32_0 : i32, i32
  }
  func.func @transform_14(%arg0: i32) -> (i32, i32) {
    %c0_i32 = arith.constant 0 : i32
    %c0_i32_0 = arith.constant 0 : i32
    %c0_i32_1 = arith.constant 0 : i32
    return %c0_i32, %c0_i32_0 : i32, i32
  }
  func.func @transform_15(%arg0: i32) -> (i32, i32) {
    %c0_i32 = arith.constant 0 : i32
    %c0_i32_0 = arith.constant 0 : i32
    %c0_i32_1 = arith.constant 0 : i32
    return %c0_i32, %c0_i32_0 : i32, i32
  }
  func.func @transform_16(%arg0: i32) -> (i32, i32) {
    %c0_i32 = arith.constant 0 : i32
    %c0_i32_0 = arith.constant 0 : i32
    %c0_i32_1 = arith.constant 0 : i32
    return %c0_i32, %c0_i32_0 : i32, i32
  }
  func.func @transform_17(%arg0: i32) -> (i32, i32, i32) {
    %c0_i32 = arith.constant 0 : i32
    %c0_i32_0 = arith.constant 0 : i32
    %c0_i32_1 = arith.constant 0 : i32
    %c0_i32_2 = arith.constant 0 : i32
    return %c0_i32, %c0_i32_0, %c0_i32_1 : i32, i32, i32
  }
}

</mosaic_0001>

<llo_original>
// kernel: lenet_forward.1
$region0: #{lenet_forward.1}
  #allocation0 [shape = 'u32[]', space=smem, size = 0x4, offset = 0x4, fixed_abs, tag = 'smem constant byte address 0x4 - core index']
  #allocation1 [shape = 'u32[144,128]{1,0:T(1,128)}', space=vmem, size = 0x12000, scoped, tag = 'internal scratch']
  #allocation2 [shape = 'f32[2,12,72]{2,1,0:T(8,128)}', space=vmem, size = 0x4000, scoped, tag = 'scratch operand']
  #allocation3 [shape = 'f32[2,4,64]{2,1,0:T(4,128)}', space=vmem, size = 0x1000, scoped, tag = 'scratch operand']
  %s0 = inlined_call_operand.vmem [shape: f32[56,84], index: 0, kind: input, shape index: {}]
  %s1 = inlined_call_operand.vmem [shape: f32[5,84,72], index: 1, kind: input, shape index: {}]
  %s2 = inlined_call_operand.vmem [shape: f32[5,84,72], index: 2, kind: input, shape index: {}]
  %s3 = inlined_call_operand.vmem [shape: f32[1,72], index: 3, kind: input, shape index: {}]
  %s4 = inlined_call_operand.vmem [shape: f32[12,24], index: 4, kind: input, shape index: {}]
  %s5 = inlined_call_operand.vmem [shape: f32[12,24], index: 5, kind: input, shape index: {}]
  %s6 = inlined_call_operand.vmem [shape: f32[5,72,64], index: 6, kind: input, shape index: {}]
  %s7 = inlined_call_operand.vmem [shape: f32[5,72,64], index: 7, kind: input, shape index: {}]
  %s8 = inlined_call_operand.vmem [shape: f32[1,64], index: 8, kind: input, shape index: {}]
  %s9 = inlined_call_operand.vmem [shape: f32[4,8], index: 9, kind: input, shape index: {}]
  %s10 = inlined_call_operand.vmem [shape: f32[4,8], index: 10, kind: input, shape index: {}]
  %s11 = inlined_call_operand.vmem [shape: f32[4,64,120], index: 11, kind: input, shape index: {}]
  %s12 = inlined_call_operand.vmem [shape: f32[1,120], index: 12, kind: input, shape index: {}]
  %s13 = inlined_call_operand.vmem [shape: f32[120,84], index: 13, kind: input, shape index: {}]
  %s14 = inlined_call_operand.vmem [shape: f32[1,84], index: 14, kind: input, shape index: {}]
  %s15 = inlined_call_operand.vmem [shape: f32[84,10], index: 15, kind: input, shape index: {}]
  %s16 = inlined_call_operand.vmem [shape: f32[1,10], index: 16, kind: input, shape index: {}]
  %s17 = inlined_call_operand.hbm [shape: f32[2,1,10], index: 17, kind: output, shape index: {}]
  %s18 = sld [smem:[#allocation0]]
  $region78: #{lenet_forward.1} parent=0
    _
  %s20 = ssub.s32 1, %s18
  %s21 = scalar_select 0, %s20, %s18
  $region1: #{lenet_forward.1} parent=0
    #allocation4 [shape = 'u8[1024]{0}', space=vmem, size = 0x400, scoped, tag = 'output window, operand 0, single buffered']
    #allocation5 [shape = 's32[1]{0}', space=sflag, size = 0x4, scoped, tag = 'scoped memory for lenet_forward.1']
    %22 = vsyncpa [#allocation5], 0
    // Predicated region
    $region2: #{lenet_forward.1} parent=1 // pred_check
      _
    $region3: #{lenet_forward.1} parent=1 // pred_check_branch
      %24 = sbr.rel (0) target = $region5
    $region4: #{lenet_forward.1} parent=1 // pred_region
      _
    $region5: #{lenet_forward.1} parent=1 // pred_fallthru
      _
    // Predicated region
    $region6: #{lenet_forward.1} parent=1 // pred_check
      _
    $region7: #{lenet_forward.1} parent=1 // pred_check_branch
      %26 = sbr.rel (0) target = $region9
    $region8: #{lenet_forward.1} parent=1 // pred_region
      _
    $region9: #{lenet_forward.1} parent=1 // pred_fallthru
      _
    // Predicated region
    $region10: #{lenet_forward.1} parent=1 // pred_check
      _
    $region11: #{lenet_forward.1} parent=1 // pred_check_branch
      %28 = sbr.rel (0) target = $region13
    $region12: #{lenet_forward.1} parent=1 // pred_region
      _
    $region13: #{lenet_forward.1} parent=1 // pred_fallthru
      _
    // Predicated region
    $region14: #{lenet_forward.1} parent=1 // pred_check
      _
    $region15: #{lenet_forward.1} parent=1 // pred_check_branch
      %30 = sbr.rel (0) target = $region17
    $region16: #{lenet_forward.1} parent=1 // pred_region
      _
    $region17: #{lenet_forward.1} parent=1 // pred_fallthru
      _
    // Predicated region
    $region18: #{lenet_forward.1} parent=1 // pred_check
      _
    $region19: #{lenet_forward.1} parent=1 // pred_check_branch
      %32 = sbr.rel (0) target = $region21
    $region20: #{lenet_forward.1} parent=1 // pred_region
      _
    $region21: #{lenet_forward.1} parent=1 // pred_fallthru
      _
    // Predicated region
    $region22: #{lenet_forward.1} parent=1 // pred_check
      _
    $region23: #{lenet_forward.1} parent=1 // pred_check_branch
      %34 = sbr.rel (0) target = $region25
    $region24: #{lenet_forward.1} parent=1 // pred_region
      _
    $region25: #{lenet_forward.1} parent=1 // pred_fallthru
      _
    // Predicated region
    $region26: #{lenet_forward.1} parent=1 // pred_check
      _
    $region27: #{lenet_forward.1} parent=1 // pred_check_branch
      %36 = sbr.rel (0) target = $region29
    $region28: #{lenet_forward.1} parent=1 // pred_region
      _
    $region29: #{lenet_forward.1} parent=1 // pred_fallthru
      _
    // Predicated region
    $region30: #{lenet_forward.1} parent=1 // pred_check
      _
    $region31: #{lenet_forward.1} parent=1 // pred_check_branch
      %38 = sbr.rel (0) target = $region33
    $region32: #{lenet_forward.1} parent=1 // pred_region
      _
    $region33: #{lenet_forward.1} parent=1 // pred_fallthru
      _
    // Predicated region
    $region34: #{lenet_forward.1} parent=1 // pred_check
      _
    $region35: #{lenet_forward.1} parent=1 // pred_check_branch
      %40 = sbr.rel (0) target = $region37
    $region36: #{lenet_forward.1} parent=1 // pred_region
      _
    $region37: #{lenet_forward.1} parent=1 // pred_fallthru
      _
    // Predicated region
    $region38: #{lenet_forward.1} parent=1 // pred_check
      _
    $region39: #{lenet_forward.1} parent=1 // pred_check_branch
      %42 = sbr.rel (0) target = $region41
    $region40: #{lenet_forward.1} parent=1 // pred_region
      _
    $region41: #{lenet_forward.1} parent=1 // pred_fallthru
      _
    // Predicated region
    $region42: #{lenet_forward.1} parent=1 // pred_check
      _
    $region43: #{lenet_forward.1} parent=1 // pred_check_branch
      %44 = sbr.rel (0) target = $region45
    $region44: #{lenet_forward.1} parent=1 // pred_region
      _
    $region45: #{lenet_forward.1} parent=1 // pred_fallthru
      _
    // Predicated region
    $region46: #{lenet_forward.1} parent=1 // pred_check
      _
    $region47: #{lenet_forward.1} parent=1 // pred_check_branch
      %46 = sbr.rel (0) target = $region49
    $region48: #{lenet_forward.1} parent=1 // pred_region
      _
    $region49: #{lenet_forward.1} parent=1 // pred_fallthru
      _
    // Predicated region
    $region50: #{lenet_forward.1} parent=1 // pred_check
      _
    $region51: #{lenet_forward.1} parent=1 // pred_check_branch
      %48 = sbr.rel (0) target = $region53
    $region52: #{lenet_forward.1} parent=1 // pred_region
      _
    $region53: #{lenet_forward.1} parent=1 // pred_fallthru
      _
    // Predicated region
    $region54: #{lenet_forward.1} parent=1 // pred_check
      _
    $region55: #{lenet_forward.1} parent=1 // pred_check_branch
      %50 = sbr.rel (0) target = $region57
    $region56: #{lenet_forward.1} parent=1 // pred_region
      _
    $region57: #{lenet_forward.1} parent=1 // pred_fallthru
      _
    // Predicated region
    $region58: #{lenet_forward.1} parent=1 // pred_check
      _
    $region59: #{lenet_forward.1} parent=1 // pred_check_branch
      %52 = sbr.rel (0) target = $region61
    $region60: #{lenet_forward.1} parent=1 // pred_region
      _
    $region61: #{lenet_forward.1} parent=1 // pred_fallthru
      _
    // Predicated region
    $region62: #{lenet_forward.1} parent=1 // pred_check
      _
    $region63: #{lenet_forward.1} parent=1 // pred_check_branch
      %54 = sbr.rel (0) target = $region65
    $region64: #{lenet_forward.1} parent=1 // pred_region
      _
    $region65: #{lenet_forward.1} parent=1 // pred_fallthru
      _
    // Predicated region
    $region66: #{lenet_forward.1} parent=1 // pred_check
      _
    $region67: #{lenet_forward.1} parent=1 // pred_check_branch
      %56 = sbr.rel (0) target = $region69
    $region68: #{lenet_forward.1} parent=1 // pred_region
      _
    $region69: #{lenet_forward.1} parent=1 // pred_fallthru
      _
    %v57 = vld [vmem:[%s0] sm:$0xff]
    %v58 = vld [vmem:[%s0 + $0x8] sm:$0xff]
    %v59 = vld [vmem:[%s0 + $0x10] sm:$0xff]
    %v60 = vld [vmem:[%s1] sm:$0xff]
    %v61 = vld [vmem:[%s1 + $0x8] sm:$0xff]
    %v62 = vld [vmem:[%s1 + $0x10] sm:$0xff]
    %v63 = vld [vmem:[%s1 + $0x18] sm:$0xff]
    %v64 = vld [vmem:[%s1 + $0x20] sm:$0xff]
    %v65 = vld [vmem:[%s1 + $0x28] sm:$0xff]
    %v66 = vld [vmem:[%s1 + $0x30] sm:$0xff]
    %v67 = vld [vmem:[%s1 + $0x38] sm:$0xff]
    %v68 = vld [vmem:[%s1 + $0x40] sm:$0xff]
    %v69 = vld [vmem:[%s1 + $0x48] sm:$0xff]
    %v70 = vld [vmem:[%s1 + $0x50] sm:$0xf]
    %v71 = vld [vmem:[%s2] sm:$0xff]
    %v72 = vld [vmem:[%s2 + $0x8] sm:$0xff]
    %v73 = vld [vmem:[%s2 + $0x10] sm:$0xff]
    %v74 = vld [vmem:[%s2 + $0x18] sm:$0xff]
    %v75 = vld [vmem:[%s2 + $0x20] sm:$0xff]
    %v76 = vld [vmem:[%s2 + $0x28] sm:$0xff]
    %v77 = vld [vmem:[%s2 + $0x30] sm:$0xff]
    %v78 = vld [vmem:[%s2 + $0x38] sm:$0xff]
    %v79 = vld [vmem:[%s2 + $0x40] sm:$0xff]
    %v80 = vld [vmem:[%s2 + $0x48] sm:$0xff]
    %v81 = vld [vmem:[%s2 + $0x50] sm:$0xf]
    %v82 = vld [vmem:[%s0 + $0x1] sm:$0xff]
    %v83 = vld [vmem:[%s0 + $0x9] sm:$0xff]
    %v84 = vld [vmem:[%s0 + $0x11] sm:$0xff]
    %s85 = scalar_lea.vmem %s1, 88
    %v86 = vld [vmem:[%s85] sm:$0xff]
    %v87 = vld [vmem:[%s85 + $0x8] sm:$0xff]
    %v88 = vld [vmem:[%s85 + $0x10] sm:$0xff]
    %v89 = vld [vmem:[%s85 + $0x18] sm:$0xff]
    %v90 = vld [vmem:[%s85 + $0x20] sm:$0xff]
    %v91 = vld [vmem:[%s85 + $0x28] sm:$0xff]
    %v92 = vld [vmem:[%s85 + $0x30] sm:$0xff]
    %v93 = vld [vmem:[%s85 + $0x38] sm:$0xff]
    %v94 = vld [vmem:[%s85 + $0x40] sm:$0xff]
    %v95 = vld [vmem:[%s85 + $0x48] sm:$0xff]
    %v96 = vld [vmem:[%s85 + $0x50] sm:$0xf]
    %vm97 = vcmask 687104
    %v99 = vsel %vm97, %v82, 0
    %v102 = vsel %vm97, %v83, 0
    %v105 = vsel %vm97, %v84, 0
    %vm107 = vcmask 1043456
    %v109 = vsel %vm107, %v96, 0
    %111 = vmatprep.subr.mxu0 0.0
    %112 = vmatpush1.msra.mxu0 %v86
    %113 = vmatprep.subr.mxu0 0.0
    %114 = vmatpush1.msra.mxu0 %v87
    %115 = vmatprep.subr.mxu0 0.0
    %116 = vmatpush1.msra.mxu0 %v88
    %117 = vmatprep.subr.mxu0 0.0
    %118 = vmatpush1.msra.mxu0 %v89
    %119 = vmatprep.subr.mxu0 0.0
    %120 = vmatpush1.msra.mxu0 %v90
    %121 = vmatprep.subr.mxu0 0.0
    %122 = vmatpush1.msra.mxu0 %v91
    %123 = vmatprep.subr.mxu0 0.0
    %124 = vmatpush1.msra.mxu0 %v92
    %125 = vmatprep.subr.mxu0 0.0
    %126 = vmatpush1.msra.mxu0 %v93
    %127 = vmatprep.subr.mxu0 0.0
    %128 = vmatpush1.msra.mxu0 %v94
    %129 = vmatprep.subr.mxu0 0.0
    %130 = vmatpush1.msra.mxu0 %v95
    %131 = vmatprep.subr.mxu0 0.0
    %132 = vmatpush1.msra.mxu0 %v109
    %133 = vmatprep.subr.mxu0 0.0
    %134 = vmatpush1.msra.mxu0 0.0
    %135 = vmatprep.subr.mxu0 0.0
    %136 = vmatpush1.msra.mxu0 0.0
    %137 = vmatprep.subr.mxu0 0.0
    %138 = vmatpush1.msra.mxu0 0.0
    %139 = vmatprep.subr.mxu0 0.0
    %140 = vmatpush1.msra.mxu0 0.0
    %141 = vmatprep.subr.mxu0 0.0
    %142 = vmatpush1.msra.mxu0 0.0
    %143 = vmatprep.subr.mxu0 0.0
    %144 = vmatpush1.msra.mxu0 0.0
    %145 = vmatprep.subr.mxu0 0.0
    %146 = vmatpush1.msra.mxu0 0.0
    %147 = vmatprep.subr.mxu0 0.0
    %148 = vmatpush1.msra.mxu0 0.0
    %149 = vmatprep.subr.mxu0 0.0
    %150 = vmatpush1.msra.mxu0 0.0
    %151 = vmatprep.subr.mxu0 0.0
    %152 = vmatpush1.msra.mxu0 0.0
    %153 = vmatprep.subr.mxu0 0.0
    %154 = vmatpush1.msra.mxu0 0.0
    %155 = vmatprep.subr.mxu0 0.0
    %156 = vmatpush1.msra.mxu0 0.0
    %157 = vmatprep.subr.mxu0 0.0
    %158 = vmatpush1.msra.mxu0 0.0
    %159 = vmatprep.subr.mxu0 0.0
    %160 = vmatpush1.msra.mxu0 0.0
    %161 = vmatprep.subr.mxu0 0.0
    %162 = vmatpush1.msra.mxu0 0.0
    %163 = vmatprep.subr.mxu0 0.0
    %164 = vmatpush1.msra.mxu0 0.0
    %165 = vmatprep.subr.mxu0 0.0
    %166 = vmatpush1.msra.mxu0 0.0
    %167 = vmatprep.subr.mxu0 0.0
    %168 = vmatpush1.msra.mxu0 0.0
    %169 = vmatprep.subr.mxu0 0.0
    %170 = vmatpush1.msra.mxu0 0.0
    %171 = vmatprep.subr.mxu0 0.0
    %172 = vmatpush1.msra.mxu0 0.0
    %173 = vmatprep.subr.mxu0 0.0
    %174 = vmatpush1.msra.mxu0 0.0
    %175 = vmatprep.mubr.f32.mxu0 0.0
    %176 = vmatmul.mubr.f32.gmra.mrb[0].mxu0 %v99
    %v177 = vpop.f32.mrb[0].mxu0
    %v178 = vadd.f32 0.0, %v177
    %v179 = vpop.f32.mrb[0].mxu0
    %180 = vmatprep.mubr.f32.mxu0 0.0
    %181 = vmatmul.mubr.f32.gmra.mrb[0].mxu0 %v102
    %v182 = vpop.f32.mrb[0].mxu0
    %v183 = vadd.f32 0.0, %v182
    %v184 = vpop.f32.mrb[0].mxu0
    %185 = vmatprep.mubr.f32.mxu0 0.0
    %186 = vmatmul.mubr.f32.gmra.mrb[0].mxu0 %v105
    %v187 = vpop.f32.mrb[0].mxu0
    %v188 = vadd.f32 0.0, %v187
    %v189 = vpop.f32.mrb[0].mxu0
    %190 = vdwg.mxu0
    %v192 = vsel %vm97, %v57, 0
    %v195 = vsel %vm97, %v58, 0
    %v198 = vsel %vm97, %v59, 0
    %v201 = vsel %vm107, %v70, 0
    %203 = vmatprep.subr.mxu0 0.0
    %204 = vmatpush1.msra.mxu0 %v60
    %205 = vmatprep.subr.mxu0 0.0
    %206 = vmatpush1.msra.mxu0 %v61
    %207 = vmatprep.subr.mxu0 0.0
    %208 = vmatpush1.msra.mxu0 %v62
    %209 = vmatprep.subr.mxu0 0.0
    %210 = vmatpush1.msra.mxu0 %v63
    %211 = vmatprep.subr.mxu0 0.0
    %212 = vmatpush1.msra.mxu0 %v64
    %213 = vmatprep.subr.mxu0 0.0
    %214 = vmatpush1.msra.mxu0 %v65
    %215 = vmatprep.subr.mxu0 0.0
    %216 = vmatpush1.msra.mxu0 %v66
    %217 = vmatprep.subr.mxu0 0.0
    %218 = vmatpush1.msra.mxu0 %v67
    %219 = vmatprep.subr.mxu0 0.0
    %220 = vmatpush1.msra.mxu0 %v68
    %221 = vmatprep.subr.mxu0 0.0
    %222 = vmatpush1.msra.mxu0 %v69
    %223 = vmatprep.subr.mxu0 0.0
    %224 = vmatpush1.msra.mxu0 %v201
    %225 = vmatprep.subr.mxu0 0.0
    %226 = vmatpush1.msra.mxu0 0.0
    %227 = vmatprep.subr.mxu0 0.0
    %228 = vmatpush1.msra.mxu0 0.0
    %229 = vmatprep.subr.mxu0 0.0
    %230 = vmatpush1.msra.mxu0 0.0
    %231 = vmatprep.subr.mxu0 0.0
    %232 = vmatpush1.msra.mxu0 0.0
    %233 = vmatprep.subr.mxu0 0.0
    %234 = vmatpush1.msra.mxu0 0.0
    %235 = vmatprep.subr.mxu0 0.0
    %236 = vmatpush1.msra.mxu0 0.0
    %237 = vmatprep.subr.mxu0 0.0
    %238 = vmatpush1.msra.mxu0 0.0
    %239 = vmatprep.subr.mxu0 0.0
    %240 = vmatpush1.msra.mxu0 0.0
    %241 = vmatprep.subr.mxu0 0.0
    %242 = vmatpush1.msra.mxu0 0.0
    %243 = vmatprep.subr.mxu0 0.0
    %244 = vmatpush1.msra.mxu0 0.0
    %245 = vmatprep.subr.mxu0 0.0
    %246 = vmatpush1.msra.mxu0 0.0
    %247 = vmatprep.subr.mxu0 0.0
    %248 = vmatpush1.msra.mxu0 0.0
    %249 = vmatprep.subr.mxu0 0.0
    %250 = vmatpush1.msra.mxu0 0.0
    %251 = vmatprep.subr.mxu0 0.0
    %252 = vmatpush1.msra.mxu0 0.0
    %253 = vmatprep.subr.mxu0 0.0
    %254 = vmatpush1.msra.mxu0 0.0
    %255 = vmatprep.subr.mxu0 0.0
    %256 = vmatpush1.msra.mxu0 0.0
    %257 = vmatprep.subr.mxu0 0.0
    %258 = vmatpush1.msra.mxu0 0.0
    %259 = vmatprep.subr.mxu0 0.0
    %260 = vmatpush1.msra.mxu0 0.0
    %261 = vmatprep.subr.mxu0 0.0
    %262 = vmatpush1.msra.mxu0 0.0
    %263 = vmatprep.subr.mxu0 0.0
    %264 = vmatpush1.msra.mxu0 0.0
    %265 = vmatprep.subr.mxu0 0.0
    %266 = vmatpush1.msra.mxu0 0.0
    %267 = vmatprep.mubr.f32.mxu0 0.0
    %268 = vmatmul.mubr.f32.gmra.mrb[0].mxu0 %v192
    %v269 = vpop.f32.mrb[0].mxu0
    %v270 = vadd.f32 %v178, %v269
    %v271 = vpop.f32.mrb[0].mxu0
    %272 = vmatprep.mubr.f32.mxu0 0.0
    %273 = vmatmul.mubr.f32.gmra.mrb[0].mxu0 %v195
    %v274 = vpop.f32.mrb[0].mxu0
    %v275 = vadd.f32 %v183, %v274
    %v276 = vpop.f32.mrb[0].mxu0
    %277 = vmatprep.mubr.f32.mxu0 0.0
    %278 = vmatmul.mubr.f32.gmra.mrb[0].mxu0 %v198
    %v279 = vpop.f32.mrb[0].mxu0
    %v280 = vadd.f32 %v188, %v279
    %v281 = vpop.f32.mrb[0].mxu0
    %282 = vdwg.mxu0
    %s283 = scalar_lea.vmem %s2, 88
    %v284 = vld [vmem:[%s283] sm:$0xff]
    %v285 = vld [vmem:[%s283 + $0x8] sm:$0xff]
    %v286 = vld [vmem:[%s283 + $0x10] sm:$0xff]
    %v287 = vld [vmem:[%s283 + $0x18] sm:$0xff]
    %v288 = vld [vmem:[%s283 + $0x20] sm:$0xff]
    %v289 = vld [vmem:[%s283 + $0x28] sm:$0xff]
    %v290 = vld [vmem:[%s283 + $0x30] sm:$0xff]
    %v291 = vld [vmem:[%s283 + $0x38] sm:$0xff]
    %v292 = vld [vmem:[%s283 + $0x40] sm:$0xff]
    %v293 = vld [vmem:[%s283 + $0x48] sm:$0xff]
    %v294 = vld [vmem:[%s283 + $0x50] sm:$0xf]
    %v296 = vsel %vm107, %v294, 0
    %298 = vmatprep.subr.mxu0 0.0
    %299 = vmatpush1.msra.mxu0 %v284
    %300 = vmatprep.subr.mxu0 0.0
    %301 = vmatpush1.msra.mxu0 %v285
    %302 = vmatprep.subr.mxu0 0.0
    %303 = vmatpush1.msra.mxu0 %v286
    %304 = vmatprep.subr.mxu0 0.0
    %305 = vmatpush1.msra.mxu0 %v287
    %306 = vmatprep.subr.mxu0 0.0
    %307 = vmatpush1.msra.mxu0 %v288
    %308 = vmatprep.subr.mxu0 0.0
    %309 = vmatpush1.msra.mxu0 %v289
    %310 = vmatprep.subr.mxu0 0.0
    %311 = vmatpush1.msra.mxu0 %v290
    %312 = vmatprep.subr.mxu0 0.0
    %313 = vmatpush1.msra.mxu0 %v291
    %314 = vmatprep.subr.mxu0 0.0
    %315 = vmatpush1.msra.mxu0 %v292
    %316 = vmatprep.subr.mxu0 0.0
    %317 = vmatpush1.msra.mxu0 %v293
    %318 = vmatprep.subr.mxu0 0.0
    %319 = vmatpush1.msra.mxu0 %v296
    %320 = vmatprep.subr.mxu0 0.0
    %321 = vmatpush1.msra.mxu0 0.0
    %322 = vmatprep.subr.mxu0 0.0
    %323 = vmatpush1.msra.mxu0 0.0
    %324 = vmatprep.subr.mxu0 0.0
    %325 = vmatpush1.msra.mxu0 0.0
    %326 = vmatprep.subr.mxu0 0.0
    %327 = vmatpush1.msra.mxu0 0.0
    %328 = vmatprep.subr.mxu0 0.0
    %329 = vmatpush1.msra.mxu0 0.0
    %330 = vmatprep.subr.mxu0 0.0
    %331 = vmatpush1.msra.mxu0 0.0
    %332 = vmatprep.subr.mxu0 0.0
    %333 = vmatpush1.msra.mxu0 0.0
    %334 = vmatprep.subr.mxu0 0.0
    %335 = vmatpush1.msra.mxu0 0.0
    %336 = vmatprep.subr.mxu0 0.0
    %337 = vmatpush1.msra.mxu0 0.0
    %338 = vmatprep.subr.mxu0 0.0
    %339 = vmatpush1.msra.mxu0 0.0
    %340 = vmatprep.subr.mxu0 0.0
    %341 = vmatpush1.msra.mxu0 0.0
    %342 = vmatprep.subr.mxu0 0.0
    %343 = vmatpush1.msra.mxu0 0.0
    %344 = vmatprep.subr.mxu0 0.0
    %345 = vmatpush1.msra.mxu0 0.0
    %346 = vmatprep.subr.mxu0 0.0
    %347 = vmatpush1.msra.mxu0 0.0
    %348 = vmatprep.subr.mxu0 0.0
    %349 = vmatpush1.msra.mxu0 0.0
    %350 = vmatprep.subr.mxu0 0.0
    %351 = vmatpush1.msra.mxu0 0.0
    %352 = vmatprep.subr.mxu0 0.0
    %353 = vmatpush1.msra.mxu0 0.0
    %354 = vmatprep.subr.mxu0 0.0
    %355 = vmatpush1.msra.mxu0 0.0
    %356 = vmatprep.subr.mxu0 0.0
    %357 = vmatpush1.msra.mxu0 0.0
    %358 = vmatprep.subr.mxu0 0.0
    %359 = vmatpush1.msra.mxu0 0.0
    %360 = vmatprep.subr.mxu0 0.0
    %361 = vmatpush1.msra.mxu0 0.0
    %362 = vmatprep.mubr.f32.mxu0 0.0
    %363 = vmatmul.mubr.f32.gmra.mrb[0].mxu0 %v99
    %v364 = vpop.f32.mrb[0].mxu0
    %v365 = vadd.f32 0.0, %v364
    %v366 = vpop.f32.mrb[0].mxu0
    %367 = vmatprep.mubr.f32.mxu0 0.0
    %368 = vmatmul.mubr.f32.gmra.mrb[0].mxu0 %v102
    %v369 = vpop.f32.mrb[0].mxu0
    %v370 = vadd.f32 0.0, %v369
    %v371 = vpop.f32.mrb[0].mxu0
    %372 = vmatprep.mubr.f32.mxu0 0.0
    %373 = vmatmul.mubr.f32.gmra.mrb[0].mxu0 %v105
    %v374 = vpop.f32.mrb[0].mxu0
    %v375 = vadd.f32 0.0, %v374
    %v376 = vpop.f32.mrb[0].mxu0
    %377 = vdwg.mxu0
    %v379 = vsel %vm107, %v81, 0
    %381 = vmatprep.subr.mxu0 0.0
    %382 = vmatpush1.msra.mxu0 %v71
    %383 = vmatprep.subr.mxu0 0.0
    %384 = vmatpush1.msra.mxu0 %v72
    %385 = vmatprep.subr.mxu0 0.0
    %386 = vmatpush1.msra.mxu0 %v73
    %387 = vmatprep.subr.mxu0 0.0
    %388 = vmatpush1.msra.mxu0 %v74
    %389 = vmatprep.subr.mxu0 0.0
    %390 = vmatpush1.msra.mxu0 %v75
    %391 = vmatprep.subr.mxu0 0.0
    %392 = vmatpush1.msra.mxu0 %v76
    %393 = vmatprep.subr.mxu0 0.0
    %394 = vmatpush1.msra.mxu0 %v77
    %395 = vmatprep.subr.mxu0 0.0
    %396 = vmatpush1.msra.mxu0 %v78
    %397 = vmatprep.subr.mxu0 0.0
    %398 = vmatpush1.msra.mxu0 %v79
    %399 = vmatprep.subr.mxu0 0.0
    %400 = vmatpush1.msra.mxu0 %v80
    %401 = vmatprep.subr.mxu0 0.0
    %402 = vmatpush1.msra.mxu0 %v379
    %403 = vmatprep.subr.mxu0 0.0
    %404 = vmatpush1.msra.mxu0 0.0
    %405 = vmatprep.subr.mxu0 0.0
    %406 = vmatpush1.msra.mxu0 0.0
    %407 = vmatprep.subr.mxu0 0.0
    %408 = vmatpush1.msra.mxu0 0.0
    %409 = vmatprep.subr.mxu0 0.0
    %410 = vmatpush1.msra.mxu0 0.0
    %411 = vmatprep.subr.mxu0 0.0
    %412 = vmatpush1.msra.mxu0 0.0
    %413 = vmatprep.subr.mxu0 0.0
    %414 = vmatpush1.msra.mxu0 0.0
    %415 = vmatprep.subr.mxu0 0.0
    %416 = vmatpush1.msra.mxu0 0.0
    %417 = vmatprep.subr.mxu0 0.0
    %418 = vmatpush1.msra.mxu0 0.0
    %419 = vmatprep.subr.mxu0 0.0
    %420 = vmatpush1.msra.mxu0 0.0
    %421 = vmatprep.subr.mxu0 0.0
    %422 = vmatpush1.msra.mxu0 0.0
    %423 = vmatprep.subr.mxu0 0.0
    %424 = vmatpush1.msra.mxu0 0.0
    %425 = vmatprep.subr.mxu0 0.0
    %426 = vmatpush1.msra.mxu0 0.0
    %427 = vmatprep.subr.mxu0 0.0
    %428 = vmatpush1.msra.mxu0 0.0
    %429 = vmatprep.subr.mxu0 0.0
    %430 = vmatpush1.msra.mxu0 0.0
    %431 = vmatprep.subr.mxu0 0.0
    %432 = vmatpush1.msra.mxu0 0.0
    %433 = vmatprep.subr.mxu0 0.0
    %434 = vmatpush1.msra.mxu0 0.0
    %435 = vmatprep.subr.mxu0 0.0
    %436 = vmatpush1.msra.mxu0 0.0
    %437 = vmatprep.subr.mxu0 0.0
    %438 = vmatpush1.msra.mxu0 0.0
    %439 = vmatprep.subr.mxu0 0.0
    %440 = vmatpush1.msra.mxu0 0.0
    %441 = vmatprep.subr.mxu0 0.0
    %442 = vmatpush1.msra.mxu0 0.0
    %443 = vmatprep.subr.mxu0 0.0
    %444 = vmatpush1.msra.mxu0 0.0
    %445 = vmatprep.mubr.f32.mxu0 0.0
    %446 = vmatmul.mubr.f32.gmra.mrb[0].mxu0 %v192
    %v447 = vpop.f32.mrb[0].mxu0
    %v448 = vadd.f32 %v365, %v447
    %v449 = vpop.f32.mrb[0].mxu0
    %450 = vmatprep.mubr.f32.mxu0 0.0
    %451 = vmatmul.mubr.f32.gmra.mrb[0].mxu0 %v195
    %v452 = vpop.f32.mrb[0].mxu0
    %v453 = vadd.f32 %v370, %v452
    %v454 = vpop.f32.mrb[0].mxu0
    %455 = vmatprep.mubr.f32.mxu0 0.0
    %456 = vmatmul.mubr.f32.gmra.mrb[0].mxu0 %v198
    %v457 = vpop.f32.mrb[0].mxu0
    %v458 = vadd.f32 %v375, %v457
    %v459 = vpop.f32.mrb[0].mxu0
    %460 = vdwg.mxu0
    %v461 = vld [vmem:[%s0 + $0x2] sm:$0xff]
    %v462 = vld [vmem:[%s0 + $0xa] sm:$0xff]
    %v463 = vld [vmem:[%s0 + $0x12] sm:$0xff]
    %s464 = scalar_lea.vmem %s1, 176
    %v465 = vld [vmem:[%s464] sm:$0xff]
    %v466 = vld [vmem:[%s464 + $0x8] sm:$0xff]
    %v467 = vld [vmem:[%s464 + $0x10] sm:$0xff]
    %v468 = vld [vmem:[%s464 + $0x18] sm:$0xff]
    %v469 = vld [vmem:[%s464 + $0x20] sm:$0xff]
    %v470 = vld [vmem:[%s464 + $0x28] sm:$0xff]
    %v471 = vld [vmem:[%s464 + $0x30] sm:$0xff]
    %v472 = vld [vmem:[%s464 + $0x38] sm:$0xff]
    %v473 = vld [vmem:[%s464 + $0x40] sm:$0xff]
    %v474 = vld [vmem:[%s464 + $0x48] sm:$0xff]
    %v475 = vld [vmem:[%s464 + $0x50] sm:$0xf]
    %v477 = vsel %vm97, %v461, 0
    %v480 = vsel %vm97, %v462, 0
    %v483 = vsel %vm97, %v463, 0
    %v486 = vsel %vm107, %v475, 0
    %488 = vmatprep.subr.mxu0 0.0
    %489 = vmatpush1.msra.mxu0 %v465
    %490 = vmatprep.subr.mxu0 0.0
    %491 = vmatpush1.msra.mxu0 %v466
    %492 = vmatprep.subr.mxu0 0.0
    %493 = vmatpush1.msra.mxu0 %v467
    %494 = vmatprep.subr.mxu0 0.0
    %495 = vmatpush1.msra.mxu0 %v468
    %496 = vmatprep.subr.mxu0 0.0
    %497 = vmatpush1.msra.mxu0 %v469
    %498 = vmatprep.subr.mxu0 0.0
    %499 = vmatpush1.msra.mxu0 %v470
    %500 = vmatprep.subr.mxu0 0.0
    %501 = vmatpush1.msra.mxu0 %v471
    %502 = vmatprep.subr.mxu0 0.0
    %503 = vmatpush1.msra.mxu0 %v472
    %504 = vmatprep.subr.mxu0 0.0
    %505 = vmatpush1.msra.mxu0 %v473
    %506 = vmatprep.subr.mxu0 0.0
    %507 = vmatpush1.msra.mxu0 %v474
    %508 = vmatprep.subr.mxu0 0.0
    %509 = vmatpush1.msra.mxu0 %v486
    %510 = vmatprep.subr.mxu0 0.0
    %511 = vmatpush1.msra.mxu0 0.0
    %512 = vmatprep.subr.mxu0 0.0
    %513 = vmatpush1.msra.mxu0 0.0
    %514 = vmatprep.subr.mxu0 0.0
    %515 = vmatpush1.msra.mxu0 0.0
    %516 = vmatprep.subr.mxu0 0.0
    %517 = vmatpush1.msra.mxu0 0.0
    %518 = vmatprep.subr.mxu0 0.0
    %519 = vmatpush1.msra.mxu0 0.0
    %520 = vmatprep.subr.mxu0 0.0
    %521 = vmatpush1.msra.mxu0 0.0
    %522 = vmatprep.subr.mxu0 0.0
    %523 = vmatpush1.msra.mxu0 0.0
    %524 = vmatprep.subr.mxu0 0.0
    %525 = vmatpush1.msra.mxu0 0.0
    %526 = vmatprep.subr.mxu0 0.0
    %527 = vmatpush1.msra.mxu0 0.0
    %528 = vmatprep.subr.mxu0 0.0
    %529 = vmatpush1.msra.mxu0 0.0
    %530 = vmatprep.subr.mxu0 0.0
    %531 = vmatpush1.msra.mxu0 0.0
    %532 = vmatprep.subr.mxu0 0.0
    %533 = vmatpush1.msra.mxu0 0.0
    %534 = vmatprep.subr.mxu0 0.0
    %535 = vmatpush1.msra.mxu0 0.0
    %536 = vmatprep.subr.mxu0 0.0
    %537 = vmatpush1.msra.mxu0 0.0
    %538 = vmatprep.subr.mxu0 0.0
    %539 = vmatpush1.msra.mxu0 0.0
    %540 = vmatprep.subr.mxu0 0.0
    %541 = vmatpush1.msra.mxu0 0.0
    %542 = vmatprep.subr.mxu0 0.0
    %543 = vmatpush1.msra.mxu0 0.0
    %544 = vmatprep.subr.mxu0 0.0
    %545 = vmatpush1.msra.mxu0 0.0
    %546 = vmatprep.subr.mxu0 0.0
    %547 = vmatpush1.msra.mxu0 0.0
    %548 = vmatprep.subr.mxu0 0.0
    %549 = vmatpush1.msra.mxu0 0.0
    %550 = vmatprep.subr.mxu0 0.0
    %551 = vmatpush1.msra.mxu0 0.0
    %552 = vmatprep.mubr.f32.mxu0 0.0
    %553 = vmatmul.mubr.f32.gmra.mrb[0].mxu0 %v477
    %v554 = vpop.f32.mrb[0].mxu0
    %v555 = vadd.f32 0.0, %v554
    %v556 = vpop.f32.mrb[0].mxu0
    %557 = vmatprep.mubr.f32.mxu0 0.0
    %558 = vmatmul.mubr.f32.gmra.mrb[0].mxu0 %v480
    %v559 = vpop.f32.mrb[0].mxu0
    %v560 = vadd.f32 0.0, %v559
    %v561 = vpop.f32.mrb[0].mxu0
    %562 = vmatprep.mubr.f32.mxu0 0.0
    %563 = vmatmul.mubr.f32.gmra.mrb[0].mxu0 %v483
    %v564 = vpop.f32.mrb[0].mxu0
    %v565 = vadd.f32 0.0, %v564
    %v566 = vpop.f32.mrb[0].mxu0
    %567 = vdwg.mxu0
    %v568 = vadd.f32 %v270, %v555
    %v569 = vadd.f32 %v275, %v560
    %v570 = vadd.f32 %v280, %v565
    %s571 = scalar_lea.vmem %s2, 176
    %v572 = vld [vmem:[%s571] sm:$0xff]
    %v573 = vld [vmem:[%s571 + $0x8] sm:$0xff]
    %v574 = vld [vmem:[%s571 + $0x10] sm:$0xff]
    %v575 = vld [vmem:[%s571 + $0x18] sm:$0xff]
    %v576 = vld [vmem:[%s571 + $0x20] sm:$0xff]
    %v577 = vld [vmem:[%s571 + $0x28] sm:$0xff]
    %v578 = vld [vmem:[%s571 + $0x30] sm:$0xff]
    %v579 = vld [vmem:[%s571 + $0x38] sm:$0xff]
    %v580 = vld [vmem:[%s571 + $0x40] sm:$0xff]
    %v581 = vld [vmem:[%s571 + $0x48] sm:$0xff]
    %v582 = vld [vmem:[%s571 + $0x50] sm:$0xf]
    %v584 = vsel %vm107, %v582, 0
    %586 = vmatprep.subr.mxu0 0.0
    %587 = vmatpush1.msra.mxu0 %v572
    %588 = vmatprep.subr.mxu0 0.0
    %589 = vmatpush1.msra.mxu0 %v573
    %590 = vmatprep.subr.mxu0 0.0
    %591 = vmatpush1.msra.mxu0 %v574
    %592 = vmatprep.subr.mxu0 0.0
    %593 = vmatpush1.msra.mxu0 %v575
    %594 = vmatprep.subr.mxu0 0.0
    %595 = vmatpush1.msra.mxu0 %v576
    %596 = vmatprep.subr.mxu0 0.0
    %597 = vmatpush1.msra.mxu0 %v577
    %598 = vmatprep.subr.mxu0 0.0
    %599 = vmatpush1.msra.mxu0 %v578
    %600 = vmatprep.subr.mxu0 0.0
    %601 = vmatpush1.msra.mxu0 %v579
    %602 = vmatprep.subr.mxu0 0.0
    %603 = vmatpush1.msra.mxu0 %v580
    %604 = vmatprep.subr.mxu0 0.0
    %605 = vmatpush1.msra.mxu0 %v581
    %606 = vmatprep.subr.mxu0 0.0
    %607 = vmatpush1.msra.mxu0 %v584
    %608 = vmatprep.subr.mxu0 0.0
    %609 = vmatpush1.msra.mxu0 0.0
    %610 = vmatprep.subr.mxu0 0.0
    %611 = vmatpush1.msra.mxu0 0.0
    %612 = vmatprep.subr.mxu0 0.0
    %613 = vmatpush1.msra.mxu0 0.0
    %614 = vmatprep.subr.mxu0 0.0
    %615 = vmatpush1.msra.mxu0 0.0
    %616 = vmatprep.subr.mxu0 0.0
    %617 = vmatpush1.msra.mxu0 0.0
    %618 = vmatprep.subr.mxu0 0.0
    %619 = vmatpush1.msra.mxu0 0.0
    %620 = vmatprep.subr.mxu0 0.0
    %621 = vmatpush1.msra.mxu0 0.0
    %622 = vmatprep.subr.mxu0 0.0
    %623 = vmatpush1.msra.mxu0 0.0
    %624 = vmatprep.subr.mxu0 0.0
    %625 = vmatpush1.msra.mxu0 0.0
    %626 = vmatprep.subr.mxu0 0.0
    %627 = vmatpush1.msra.mxu0 0.0
    %628 = vmatprep.subr.mxu0 0.0
    %629 = vmatpush1.msra.mxu0 0.0
    %630 = vmatprep.subr.mxu0 0.0
    %631 = vmatpush1.msra.mxu0 0.0
    %632 = vmatprep.subr.mxu0 0.0
    %633 = vmatpush1.msra.mxu0 0.0
    %634 = vmatprep.subr.mxu0 0.0
    %635 = vmatpush1.msra.mxu0 0.0
    %636 = vmatprep.subr.mxu0 0.0
    %637 = vmatpush1.msra.mxu0 0.0
    %638 = vmatprep.subr.mxu0 0.0
    %639 = vmatpush1.msra.mxu0 0.0
    %640 = vmatprep.subr.mxu0 0.0
    %641 = vmatpush1.msra.mxu0 0.0
    %642 = vmatprep.subr.mxu0 0.0
    %643 = vmatpush1.msra.mxu0 0.0
    %644 = vmatprep.subr.mxu0 0.0
    %645 = vmatpush1.msra.mxu0 0.0
    %646 = vmatprep.subr.mxu0 0.0
    %647 = vmatpush1.msra.mxu0 0.0
    %648 = vmatprep.subr.mxu0 0.0
    %649 = vmatpush1.msra.mxu0 0.0
    %650 = vmatprep.mubr.f32.mxu0 0.0
    %651 = vmatmul.mubr.f32.gmra.mrb[0].mxu0 %v477
    %v652 = vpop.f32.mrb[0].mxu0
    %v653 = vadd.f32 0.0, %v652
    %v654 = vpop.f32.mrb[0].mxu0
    %655 = vmatprep.mubr.f32.mxu0 0.0
    %656 = vmatmul.mubr.f32.gmra.mrb[0].mxu0 %v480
    %v657 = vpop.f32.mrb[0].mxu0
    %v658 = vadd.f32 0.0, %v657
    %v659 = vpop.f32.mrb[0].mxu0
    %660 = vmatprep.mubr.f32.mxu0 0.0
    %661 = vmatmul.mubr.f32.gmra.mrb[0].mxu0 %v483
    %v662 = vpop.f32.mrb[0].mxu0
    %v663 = vadd.f32 0.0, %v662
    %v664 = vpop.f32.mrb[0].mxu0
    %665 = vdwg.mxu0
    %v666 = vadd.f32 %v448, %v653
    %v667 = vadd.f32 %v453, %v658
    %v668 = vadd.f32 %v458, %v663
    %v669 = vld [vmem:[%s0 + $0x3] sm:$0xff]
    %v670 = vld [vmem:[%s0 + $0xb] sm:$0xff]
    %v671 = vld [vmem:[%s0 + $0x13] sm:$0xff]
    %s672 = scalar_lea.vmem %s1, 264
    %v673 = vld [vmem:[%s672] sm:$0xff]
    %v674 = vld [vmem:[%s672 + $0x8] sm:$0xff]
    %v675 = vld [vmem:[%s672 + $0x10] sm:$0xff]
    %v676 = vld [vmem:[%s672 + $0x18] sm:$0xff]
    %v677 = vld [vmem:[%s672 + $0x20] sm:$0xff]
    %v678 = vld [vmem:[%s672 + $0x28] sm:$0xff]
    %v679 = vld [vmem:[%s672 + $0x30] sm:$0xff]
    %v680 = vld [vmem:[%s672 + $0x38] sm:$0xff]
    %v681 = vld [vmem:[%s672 + $0x40] sm:$0xff]
    %v682 = vld [vmem:[%s672 + $0x48] sm:$0xff]
    %v683 = vld [vmem:[%s672 + $0x50] sm:$0xf]
    %v685 = vsel %vm97, %v669, 0
    %v688 = vsel %vm97, %v670, 0
    %v691 = vsel %vm97, %v671, 0
    %v694 = vsel %vm107, %v683, 0
    %696 = vmatprep.subr.mxu0 0.0
    %697 = vmatpush1.msra.mxu0 %v673
    %698 = vmatprep.subr.mxu0 0.0
    %699 = vmatpush1.msra.mxu0 %v674
    %700 = vmatprep.subr.mxu0 0.0
    %701 = vmatpush1.msra.mxu0 %v675
    %702 = vmatprep.subr.mxu0 0.0
    %703 = vmatpush1.msra.mxu0 %v676
    %704 = vmatprep.subr.mxu0 0.0
    %705 = vmatpush1.msra.mxu0 %v677
    %706 = vmatprep.subr.mxu0 0.0
    %707 = vmatpush1.msra.mxu0 %v678
    %708 = vmatprep.subr.mxu0 0.0
    %709 = vmatpush1.msra.mxu0 %v679
    %710 = vmatprep.subr.mxu0 0.0
    %711 = vmatpush1.msra.mxu0 %v680
    %712 = vmatprep.subr.mxu0 0.0
    %713 = vmatpush1.msra.mxu0 %v681
    %714 = vmatprep.subr.mxu0 0.0
    %715 = vmatpush1.msra.mxu0 %v682
    %716 = vmatprep.subr.mxu0 0.0
    %717 = vmatpush1.msra.mxu0 %v694
    %718 = vmatprep.subr.mxu0 0.0
    %719 = vmatpush1.msra.mxu0 0.0
    %720 = vmatprep.subr.mxu0 0.0
    %721 = vmatpush1.msra.mxu0 0.0
    %722 = vmatprep.subr.mxu0 0.0
    %723 = vmatpush1.msra.mxu0 0.0
    %724 = vmatprep.subr.mxu0 0.0
    %725 = vmatpush1.msra.mxu0 0.0
    %726 = vmatprep.subr.mxu0 0.0
    %727 = vmatpush1.msra.mxu0 0.0
    %728 = vmatprep.subr.mxu0 0.0
    %729 = vmatpush1.msra.mxu0 0.0
    %730 = vmatprep.subr.mxu0 0.0
    %731 = vmatpush1.msra.mxu0 0.0
    %732 = vmatprep.subr.mxu0 0.0
    %733 = vmatpush1.msra.mxu0 0.0
    %734 = vmatprep.subr.mxu0 0.0
    %735 = vmatpush1.msra.mxu0 0.0
    %736 = vmatprep.subr.mxu0 0.0
    %737 = vmatpush1.msra.mxu0 0.0
    %738 = vmatprep.subr.mxu0 0.0
    %739 = vmatpush1.msra.mxu0 0.0
    %740 = vmatprep.subr.mxu0 0.0
    %741 = vmatpush1.msra.mxu0 0.0
    %742 = vmatprep.subr.mxu0 0.0
    %743 = vmatpush1.msra.mxu0 0.0
    %744 = vmatprep.subr.mxu0 0.0
    %745 = vmatpush1.msra.mxu0 0.0
    %746 = vmatprep.subr.mxu0 0.0
    %747 = vmatpush1.msra.mxu0 0.0
    %748 = vmatprep.subr.mxu0 0.0
    %749 = vmatpush1.msra.mxu0 0.0
    %750 = vmatprep.subr.mxu0 0.0
    %751 = vmatpush1.msra.mxu0 0.0
    %752 = vmatprep.subr.mxu0 0.0
    %753 = vmatpush1.msra.mxu0 0.0
    %754 = vmatprep.subr.mxu0 0.0
    %755 = vmatpush1.msra.mxu0 0.0
    %756 = vmatprep.subr.mxu0 0.0
    %757 = vmatpush1.msra.mxu0 0.0
    %758 = vmatprep.subr.mxu0 0.0
    %759 = vmatpush1.msra.mxu0 0.0
    %760 = vmatprep.mubr.f32.mxu0 0.0
    %761 = vmatmul.mubr.f32.gmra.mrb[0].mxu0 %v685
    %v762 = vpop.f32.mrb[0].mxu0
    %v763 = vadd.f32 0.0, %v762
    %v764 = vpop.f32.mrb[0].mxu0
    %765 = vmatprep.mubr.f32.mxu0 0.0
    %766 = vmatmul.mubr.f32.gmra.mrb[0].mxu0 %v688
    %v767 = vpop.f32.mrb[0].mxu0
    %v768 = vadd.f32 0.0, %v767
    %v769 = vpop.f32.mrb[0].mxu0
    %770 = vmatprep.mubr.f32.mxu0 0.0
    %771 = vmatmul.mubr.f32.gmra.mrb[0].mxu0 %v691
    %v772 = vpop.f32.mrb[0].mxu0
    %v773 = vadd.f32 0.0, %v772
    %v774 = vpop.f32.mrb[0].mxu0
    %775 = vdwg.mxu0
    %v776 = vadd.f32 %v568, %v763
    %v777 = vadd.f32 %v569, %v768
    %v778 = vadd.f32 %v570, %v773
    %s779 = scalar_lea.vmem %s2, 264
    %v780 = vld [vmem:[%s779] sm:$0xff]
    %v781 = vld [vmem:[%s779 + $0x8] sm:$0xff]
    %v782 = vld [vmem:[%s779 + $0x10] sm:$0xff]
    %v783 = vld [vmem:[%s779 + $0x18] sm:$0xff]
    %v784 = vld [vmem:[%s779 + $0x20] sm:$0xff]
    %v785 = vld [vmem:[%s779 + $0x28] sm:$0xff]
    %v786 = vld [vmem:[%s779 + $0x30] sm:$0xff]
    %v787 = vld [vmem:[%s779 + $0x38] sm:$0xff]
    %v788 = vld [vmem:[%s779 + $0x40] sm:$0xff]
    %v789 = vld [vmem:[%s779 + $0x48] sm:$0xff]
    %v790 = vld [vmem:[%s779 + $0x50] sm:$0xf]
    %v792 = vsel %vm107, %v790, 0
    %794 = vmatprep.subr.mxu0 0.0
    %795 = vmatpush1.msra.mxu0 %v780
    %796 = vmatprep.subr.mxu0 0.0
    %797 = vmatpush1.msra.mxu0 %v781
    %798 = vmatprep.subr.mxu0 0.0
    %799 = vmatpush1.msra.mxu0 %v782
    %800 = vmatprep.subr.mxu0 0.0
    %801 = vmatpush1.msra.mxu0 %v783
    %802 = vmatprep.subr.mxu0 0.0
    %803 = vmatpush1.msra.mxu0 %v784
    %804 = vmatprep.subr.mxu0 0.0
    %805 = vmatpush1.msra.mxu0 %v785
    %806 = vmatprep.subr.mxu0 0.0
    %807 = vmatpush1.msra.mxu0 %v786
    %808 = vmatprep.subr.mxu0 0.0
    %809 = vmatpush1.msra.mxu0 %v787
    %810 = vmatprep.subr.mxu0 0.0
    %811 = vmatpush1.msra.mxu0 %v788
    %812 = vmatprep.subr.mxu0 0.0
    %813 = vmatpush1.msra.mxu0 %v789
    %814 = vmatprep.subr.mxu0 0.0
    %815 = vmatpush1.msra.mxu0 %v792
    %816 = vmatprep.subr.mxu0 0.0
    %817 = vmatpush1.msra.mxu0 0.0
    %818 = vmatprep.subr.mxu0 0.0
    %819 = vmatpush1.msra.mxu0 0.0
    %820 = vmatprep.subr.mxu0 0.0
    %821 = vmatpush1.msra.mxu0 0.0
    %822 = vmatprep.subr.mxu0 0.0
    %823 = vmatpush1.msra.mxu0 0.0
    %824 = vmatprep.subr.mxu0 0.0
    %825 = vmatpush1.msra.mxu0 0.0
    %826 = vmatprep.subr.mxu0 0.0
    %827 = vmatpush1.msra.mxu0 0.0
    %828 = vmatprep.subr.mxu0 0.0
    %829 = vmatpush1.msra.mxu0 0.0
    %830 = vmatprep.subr.mxu0 0.0
    %831 = vmatpush1.msra.mxu0 0.0
    %832 = vmatprep.subr.mxu0 0.0
    %833 = vmatpush1.msra.mxu0 0.0
    %834 = vmatprep.subr.mxu0 0.0
    %835 = vmatpush1.msra.mxu0 0.0
    %836 = vmatprep.subr.mxu0 0.0
    %837 = vmatpush1.msra.mxu0 0.0
    %838 = vmatprep.subr.mxu0 0.0
    %839 = vmatpush1.msra.mxu0 0.0
    %840 = vmatprep.subr.mxu0 0.0
    %841 = vmatpush1.msra.mxu0 0.0
    %842 = vmatprep.subr.mxu0 0.0
    %843 = vmatpush1.msra.mxu0 0.0
    %844 = vmatprep.subr.mxu0 0.0
    %845 = vmatpush1.msra.mxu0 0.0
    %846 = vmatprep.subr.mxu0 0.0
    %847 = vmatpush1.msra.mxu0 0.0
    %848 = vmatprep.subr.mxu0 0.0
    %849 = vmatpush1.msra.mxu0 0.0
    %850 = vmatprep.subr.mxu0 0.0
    %851 = vmatpush1.msra.mxu0 0.0
    %852 = vmatprep.subr.mxu0 0.0
    %853 = vmatpush1.msra.mxu0 0.0
    %854 = vmatprep.subr.mxu0 0.0
    %855 = vmatpush1.msra.mxu0 0.0
    %856 = vmatprep.subr.mxu0 0.0
    %857 = vmatpush1.msra.mxu0 0.0
    %858 = vmatprep.mubr.f32.mxu0 0.0
    %859 = vmatmul.mubr.f32.gmra.mrb[0].mxu0 %v685
    %v860 = vpop.f32.mrb[0].mxu0
    %v861 = vadd.f32 0.0, %v860
    %v862 = vpop.f32.mrb[0].mxu0
    %863 = vmatprep.mubr.f32.mxu0 0.0
    %864 = vmatmul.mubr.f32.gmra.mrb[0].mxu0 %v688
    %v865 = vpop.f32.mrb[0].mxu0
    %v866 = vadd.f32 0.0, %v865
    %v867 = vpop.f32.mrb[0].mxu0
    %868 = vmatprep.mubr.f32.mxu0 0.0
    %869 = vmatmul.mubr.f32.gmra.mrb[0].mxu0 %v691
    %v870 = vpop.f32.mrb[0].mxu0
    %v871 = vadd.f32 0.0, %v870
    %v872 = vpop.f32.mrb[0].mxu0
    %873 = vdwg.mxu0
    %v874 = vadd.f32 %v666, %v861
    %v875 = vadd.f32 %v667, %v866
    %v876 = vadd.f32 %v668, %v871
    %v877 = vld [vmem:[%s0 + $0x4] sm:$0xff]
    %v878 = vld [vmem:[%s0 + $0xc] sm:$0xff]
    %v879 = vld [vmem:[%s0 + $0x14] sm:$0xff]
    %s880 = scalar_lea.vmem %s1, 352
    %v881 = vld [vmem:[%s880] sm:$0xff]
    %v882 = vld [vmem:[%s880 + $0x8] sm:$0xff]
    %v883 = vld [vmem:[%s880 + $0x10] sm:$0xff]
    %v884 = vld [vmem:[%s880 + $0x18] sm:$0xff]
    %v885 = vld [vmem:[%s880 + $0x20] sm:$0xff]
    %v886 = vld [vmem:[%s880 + $0x28] sm:$0xff]
    %v887 = vld [vmem:[%s880 + $0x30] sm:$0xff]
    %v888 = vld [vmem:[%s880 + $0x38] sm:$0xff]
    %v889 = vld [vmem:[%s880 + $0x40] sm:$0xff]
    %v890 = vld [vmem:[%s880 + $0x48] sm:$0xff]
    %v891 = vld [vmem:[%s880 + $0x50] sm:$0xf]
    %v893 = vsel %vm97, %v877, 0
    %v896 = vsel %vm97, %v878, 0
    %v899 = vsel %vm97, %v879, 0
    %v902 = vsel %vm107, %v891, 0
    %904 = vmatprep.subr.mxu0 0.0
    %905 = vmatpush1.msra.mxu0 %v881
    %906 = vmatprep.subr.mxu0 0.0
    %907 = vmatpush1.msra.mxu0 %v882
    %908 = vmatprep.subr.mxu0 0.0
    %909 = vmatpush1.msra.mxu0 %v883
    %910 = vmatprep.subr.mxu0 0.0
    %911 = vmatpush1.msra.mxu0 %v884
    %912 = vmatprep.subr.mxu0 0.0
    %913 = vmatpush1.msra.mxu0 %v885
    %914 = vmatprep.subr.mxu0 0.0
    %915 = vmatpush1.msra.mxu0 %v886
    %916 = vmatprep.subr.mxu0 0.0
    %917 = vmatpush1.msra.mxu0 %v887
    %918 = vmatprep.subr.mxu0 0.0
    %919 = vmatpush1.msra.mxu0 %v888
    %920 = vmatprep.subr.mxu0 0.0
    %921 = vmatpush1.msra.mxu0 %v889
    %922 = vmatprep.subr.mxu0 0.0
    %923 = vmatpush1.msra.mxu0 %v890
    %924 = vmatprep.subr.mxu0 0.0
    %925 = vmatpush1.msra.mxu0 %v902
    %926 = vmatprep.subr.mxu0 0.0
    %927 = vmatpush1.msra.mxu0 0.0
    %928 = vmatprep.subr.mxu0 0.0
    %929 = vmatpush1.msra.mxu0 0.0
    %930 = vmatprep.subr.mxu0 0.0
    %931 = vmatpush1.msra.mxu0 0.0
    %932 = vmatprep.subr.mxu0 0.0
    %933 = vmatpush1.msra.mxu0 0.0
    %934 = vmatprep.subr.mxu0 0.0
    %935 = vmatpush1.msra.mxu0 0.0
    %936 = vmatprep.subr.mxu0 0.0
    %937 = vmatpush1.msra.mxu0 0.0
    %938 = vmatprep.subr.mxu0 0.0
    %939 = vmatpush1.msra.mxu0 0.0
    %940 = vmatprep.subr.mxu0 0.0
    %941 = vmatpush1.msra.mxu0 0.0
    %942 = vmatprep.subr.mxu0 0.0
    %943 = vmatpush1.msra.mxu0 0.0
    %944 = vmatprep.subr.mxu0 0.0
    %945 = vmatpush1.msra.mxu0 0.0
    %946 = vmatprep.subr.mxu0 0.0
    %947 = vmatpush1.msra.mxu0 0.0
    %948 = vmatprep.subr.mxu0 0.0
    %949 = vmatpush1.msra.mxu0 0.0
    %950 = vmatprep.subr.mxu0 0.0
    %951 = vmatpush1.msra.mxu0 0.0
    %952 = vmatprep.subr.mxu0 0.0
    %953 = vmatpush1.msra.mxu0 0.0
    %954 = vmatprep.subr.mxu0 0.0
    %955 = vmatpush1.msra.mxu0 0.0
    %956 = vmatprep.subr.mxu0 0.0
    %957 = vmatpush1.msra.mxu0 0.0
    %958 = vmatprep.subr.mxu0 0.0
    %959 = vmatpush1.msra.mxu0 0.0
    %960 = vmatprep.subr.mxu0 0.0
    %961 = vmatpush1.msra.mxu0 0.0
    %962 = vmatprep.subr.mxu0 0.0
    %963 = vmatpush1.msra.mxu0 0.0
    %964 = vmatprep.subr.mxu0 0.0
    %965 = vmatpush1.msra.mxu0 0.0
    %966 = vmatprep.subr.mxu0 0.0
    %967 = vmatpush1.msra.mxu0 0.0
    %968 = vmatprep.mubr.f32.mxu0 0.0
    %969 = vmatmul.mubr.f32.gmra.mrb[0].mxu0 %v893
    %v970 = vpop.f32.mrb[0].mxu0
    %v971 = vadd.f32 0.0, %v970
    %v972 = vpop.f32.mrb[0].mxu0
    %973 = vmatprep.mubr.f32.mxu0 0.0
    %974 = vmatmul.mubr.f32.gmra.mrb[0].mxu0 %v896
    %v975 = vpop.f32.mrb[0].mxu0
    %v976 = vadd.f32 0.0, %v975
    %v977 = vpop.f32.mrb[0].mxu0
    %978 = vmatprep.mubr.f32.mxu0 0.0
    %979 = vmatmul.mubr.f32.gmra.mrb[0].mxu0 %v899
    %v980 = vpop.f32.mrb[0].mxu0
    %v981 = vadd.f32 0.0, %v980
    %v982 = vpop.f32.mrb[0].mxu0
    %983 = vdwg.mxu0
    %v984 = vadd.f32 %v776, %v971
    %v985 = vadd.f32 %v777, %v976
    %v986 = vadd.f32 %v778, %v981
    %s987 = scalar_lea.vmem %s2, 352
    %v988 = vld [vmem:[%s987] sm:$0xff]
    %v989 = vld [vmem:[%s987 + $0x8] sm:$0xff]
    %v990 = vld [vmem:[%s987 + $0x10] sm:$0xff]
    %v991 = vld [vmem:[%s987 + $0x18] sm:$0xff]
    %v992 = vld [vmem:[%s987 + $0x20] sm:$0xff]
    %v993 = vld [vmem:[%s987 + $0x28] sm:$0xff]
    %v994 = vld [vmem:[%s987 + $0x30] sm:$0xff]
    %v995 = vld [vmem:[%s987 + $0x38] sm:$0xff]
    %v996 = vld [vmem:[%s987 + $0x40] sm:$0xff]
    %v997 = vld [vmem:[%s987 + $0x48] sm:$0xff]
    %v998 = vld [vmem:[%s987 + $0x50] sm:$0xf]
    %v1000 = vsel %vm107, %v998, 0
    %1002 = vmatprep.subr.mxu0 0.0
    %1003 = vmatpush1.msra.mxu0 %v988
    %1004 = vmatprep.subr.mxu0 0.0
    %1005 = vmatpush1.msra.mxu0 %v989
    %1006 = vmatprep.subr.mxu0 0.0
    %1007 = vmatpush1.msra.mxu0 %v990
    %1008 = vmatprep.subr.mxu0 0.0
    %1009 = vmatpush1.msra.mxu0 %v991
    %1010 = vmatprep.subr.mxu0 0.0
    %1011 = vmatpush1.msra.mxu0 %v992
    %1012 = vmatprep.subr.mxu0 0.0
    %1013 = vmatpush1.msra.mxu0 %v993
    %1014 = vmatprep.subr.mxu0 0.0
    %1015 = vmatpush1.msra.mxu0 %v994
    %1016 = vmatprep.subr.mxu0 0.0
    %1017 = vmatpush1.msra.mxu0 %v995
    %1018 = vmatprep.subr.mxu0 0.0
    %1019 = vmatpush1.msra.mxu0 %v996
    %1020 = vmatprep.subr.mxu0 0.0
    %1021 = vmatpush1.msra.mxu0 %v997
    %1022 = vmatprep.subr.mxu0 0.0
    %1023 = vmatpush1.msra.mxu0 %v1000
    %1024 = vmatprep.subr.mxu0 0.0
    %1025 = vmatpush1.msra.mxu0 0.0
    %1026 = vmatprep.subr.mxu0 0.0
    %1027 = vmatpush1.msra.mxu0 0.0
    %1028 = vmatprep.subr.mxu0 0.0
    %1029 = vmatpush1.msra.mxu0 0.0
    %1030 = vmatprep.subr.mxu0 0.0
    %1031 = vmatpush1.msra.mxu0 0.0
    %1032 = vmatprep.subr.mxu0 0.0
    %1033 = vmatpush1.msra.mxu0 0.0
    %1034 = vmatprep.subr.mxu0 0.0
    %1035 = vmatpush1.msra.mxu0 0.0
    %1036 = vmatprep.subr.mxu0 0.0
    %1037 = vmatpush1.msra.mxu0 0.0
    %1038 = vmatprep.subr.mxu0 0.0
    %1039 = vmatpush1.msra.mxu0 0.0
    %1040 = vmatprep.subr.mxu0 0.0
    %1041 = vmatpush1.msra.mxu0 0.0
    %1042 = vmatprep.subr.mxu0 0.0
    %1043 = vmatpush1.msra.mxu0 0.0
    %1044 = vmatprep.subr.mxu0 0.0
    %1045 = vmatpush1.msra.mxu0 0.0
    %1046 = vmatprep.subr.mxu0 0.0
    %1047 = vmatpush1.msra.mxu0 0.0
    %1048 = vmatprep.subr.mxu0 0.0
    %1049 = vmatpush1.msra.mxu0 0.0
    %1050 = vmatprep.subr.mxu0 0.0
    %1051 = vmatpush1.msra.mxu0 0.0
    %1052 = vmatprep.subr.mxu0 0.0
    %1053 = vmatpush1.msra.mxu0 0.0
    %1054 = vmatprep.subr.mxu0 0.0
    %1055 = vmatpush1.msra.mxu0 0.0
    %1056 = vmatprep.subr.mxu0 0.0
    %1057 = vmatpush1.msra.mxu0 0.0
    %1058 = vmatprep.subr.mxu0 0.0
    %1059 = vmatpush1.msra.mxu0 0.0
    %1060 = vmatprep.subr.mxu0 0.0
    %1061 = vmatpush1.msra.mxu0 0.0
    %1062 = vmatprep.subr.mxu0 0.0
    %1063 = vmatpush1.msra.mxu0 0.0
    %1064 = vmatprep.subr.mxu0 0.0
    %1065 = vmatpush1.msra.mxu0 0.0
    %1066 = vmatprep.mubr.f32.mxu0 0.0
    %1067 = vmatmul.mubr.f32.gmra.mrb[0].mxu0 %v893
    %v1068 = vpop.f32.mrb[0].mxu0
    %v1069 = vadd.f32 0.0, %v1068
    %v1070 = vpop.f32.mrb[0].mxu0
    %1071 = vmatprep.mubr.f32.mxu0 0.0
    %1072 = vmatmul.mubr.f32.gmra.mrb[0].mxu0 %v896
    %v1073 = vpop.f32.mrb[0].mxu0
    %v1074 = vadd.f32 0.0, %v1073
    %v1075 = vpop.f32.mrb[0].mxu0
    %1076 = vmatprep.mubr.f32.mxu0 0.0
    %1077 = vmatmul.mubr.f32.gmra.mrb[0].mxu0 %v899
    %v1078 = vpop.f32.mrb[0].mxu0
    %v1079 = vadd.f32 0.0, %v1078
    %v1080 = vpop.f32.mrb[0].mxu0
    %1081 = vdwg.mxu0
    %v1082 = vadd.f32 %v874, %v1069
    %v1083 = vadd.f32 %v875, %v1074
    %v1084 = vadd.f32 %v876, %v1079
    %v1085 = vmax.f32 %v984, %v1082
    %v1086 = vmax.f32 %v985, %v1083
    %v1087 = vmax.f32 %v986, %v1084
    %v1088 = vld [vmem:[%s4] sm:$0xff]
    %v1089 = vld [vmem:[%s4 + $0x8] sm:$0xf]
    %vm1090 = vcmask 195584
    %v1092 = vsel %vm1090, %v1088, 0
    %v1095 = vsel %vm1090, %v1089, 0
    %1097 = vmatprep.subr.mxu0 0.0
    %1098 = vmatpush1.msra.mxu0 %v1085
    %1099 = vmatprep.subr.mxu0 0.0
    %1100 = vmatpush1.msra.mxu0 %v1086
    %1101 = vmatprep.subr.mxu0 0.0
    %1102 = vmatpush1.msra.mxu0 %v1087
    %1103 = vmatprep.subr.mxu0 0.0
    %1104 = vmatpush1.msra.mxu0 0.0
    %1105 = vmatprep.subr.mxu0 0.0
    %1106 = vmatpush1.msra.mxu0 0.0
    %1107 = vmatprep.subr.mxu0 0.0
    %1108 = vmatpush1.msra.mxu0 0.0
    %1109 = vmatprep.subr.mxu0 0.0
    %1110 = vmatpush1.msra.mxu0 0.0
    %1111 = vmatprep.subr.mxu0 0.0
    %1112 = vmatpush1.msra.mxu0 0.0
    %1113 = vmatprep.subr.mxu0 0.0
    %1114 = vmatpush1.msra.mxu0 0.0
    %1115 = vmatprep.subr.mxu0 0.0
    %1116 = vmatpush1.msra.mxu0 0.0
    %1117 = vmatprep.subr.mxu0 0.0
    %1118 = vmatpush1.msra.mxu0 0.0
    %1119 = vmatprep.subr.mxu0 0.0
    %1120 = vmatpush1.msra.mxu0 0.0
    %1121 = vmatprep.subr.mxu0 0.0
    %1122 = vmatpush1.msra.mxu0 0.0
    %1123 = vmatprep.subr.mxu0 0.0
    %1124 = vmatpush1.msra.mxu0 0.0
    %1125 = vmatprep.subr.mxu0 0.0
    %1126 = vmatpush1.msra.mxu0 0.0
    %1127 = vmatprep.subr.mxu0 0.0
    %1128 = vmatpush1.msra.mxu0 0.0
    %1129 = vmatprep.subr.mxu0 0.0
    %1130 = vmatpush1.msra.mxu0 0.0
    %1131 = vmatprep.subr.mxu0 0.0
    %1132 = vmatpush1.msra.mxu0 0.0
    %1133 = vmatprep.subr.mxu0 0.0
    %1134 = vmatpush1.msra.mxu0 0.0
    %1135 = vmatprep.subr.mxu0 0.0
    %1136 = vmatpush1.msra.mxu0 0.0
    %1137 = vmatprep.subr.mxu0 0.0
    %1138 = vmatpush1.msra.mxu0 0.0
    %1139 = vmatprep.subr.mxu0 0.0
    %1140 = vmatpush1.msra.mxu0 0.0
    %1141 = vmatprep.subr.mxu0 0.0
    %1142 = vmatpush1.msra.mxu0 0.0
    %1143 = vmatprep.subr.mxu0 0.0
    %1144 = vmatpush1.msra.mxu0 0.0
    %1145 = vmatprep.subr.mxu0 0.0
    %1146 = vmatpush1.msra.mxu0 0.0
    %1147 = vmatprep.subr.mxu0 0.0
    %1148 = vmatpush1.msra.mxu0 0.0
    %1149 = vmatprep.subr.mxu0 0.0
    %1150 = vmatpush1.msra.mxu0 0.0
    %1151 = vmatprep.subr.mxu0 0.0
    %1152 = vmatpush1.msra.mxu0 0.0
    %1153 = vmatprep.subr.mxu0 0.0
    %1154 = vmatpush1.msra.mxu0 0.0
    %1155 = vmatprep.subr.mxu0 0.0
    %1156 = vmatpush1.msra.mxu0 0.0
    %1157 = vmatprep.subr.mxu0 0.0
    %1158 = vmatpush1.msra.mxu0 0.0
    %1159 = vmatprep.subr.mxu0 0.0
    %1160 = vmatpush1.msra.mxu0 0.0
    %1161 = vmatprep.mubr.f32.mxu0 0.0
    %1162 = vmatmul.mubr.f32.gmra.mrb[0].mxu0 %v1092
    %v1163 = vpop.f32.mrb[0].mxu0
    %v1164 = vadd.f32 0.0, %v1163
    %v1165 = vpop.f32.mrb[0].mxu0
    %1166 = vmatprep.mubr.f32.mxu0 0.0
    %1167 = vmatmul.mubr.f32.gmra.mrb[0].mxu0 %v1095
    %v1168 = vpop.f32.mrb[0].mxu0
    %v1169 = vadd.f32 0.0, %v1168
    %v1170 = vpop.f32.mrb[0].mxu0
    %1171 = vdwg.mxu0
    %v1172 = vld [vmem:[%s5] sm:$0xff]
    %v1173 = vld [vmem:[%s5 + $0x8] sm:$0xf]
    %v1175 = vsel %vm1090, %v1172, 0
    %v1178 = vsel %vm1090, %v1173, 0
    %1180 = vmatprep.subr.mxu0 0.0
    %1181 = vmatpush1.msra.mxu0 %v1085
    %1182 = vmatprep.subr.mxu0 0.0
    %1183 = vmatpush1.msra.mxu0 %v1086
    %1184 = vmatprep.subr.mxu0 0.0
    %1185 = vmatpush1.msra.mxu0 %v1087
    %1186 = vmatprep.subr.mxu0 0.0
    %1187 = vmatpush1.msra.mxu0 0.0
    %1188 = vmatprep.subr.mxu0 0.0
    %1189 = vmatpush1.msra.mxu0 0.0
    %1190 = vmatprep.subr.mxu0 0.0
    %1191 = vmatpush1.msra.mxu0 0.0
    %1192 = vmatprep.subr.mxu0 0.0
    %1193 = vmatpush1.msra.mxu0 0.0
    %1194 = vmatprep.subr.mxu0 0.0
    %1195 = vmatpush1.msra.mxu0 0.0
    %1196 = vmatprep.subr.mxu0 0.0
    %1197 = vmatpush1.msra.mxu0 0.0
    %1198 = vmatprep.subr.mxu0 0.0
    %1199 = vmatpush1.msra.mxu0 0.0
    %1200 = vmatprep.subr.mxu0 0.0
    %1201 = vmatpush1.msra.mxu0 0.0
    %1202 = vmatprep.subr.mxu0 0.0
    %1203 = vmatpush1.msra.mxu0 0.0
    %1204 = vmatprep.subr.mxu0 0.0
    %1205 = vmatpush1.msra.mxu0 0.0
    %1206 = vmatprep.subr.mxu0 0.0
    %1207 = vmatpush1.msra.mxu0 0.0
    %1208 = vmatprep.subr.mxu0 0.0
    %1209 = vmatpush1.msra.mxu0 0.0
    %1210 = vmatprep.subr.mxu0 0.0
    %1211 = vmatpush1.msra.mxu0 0.0
    %1212 = vmatprep.subr.mxu0 0.0
    %1213 = vmatpush1.msra.mxu0 0.0
    %1214 = vmatprep.subr.mxu0 0.0
    %1215 = vmatpush1.msra.mxu0 0.0
    %1216 = vmatprep.subr.mxu0 0.0
    %1217 = vmatpush1.msra.mxu0 0.0
    %1218 = vmatprep.subr.mxu0 0.0
    %1219 = vmatpush1.msra.mxu0 0.0
    %1220 = vmatprep.subr.mxu0 0.0
    %1221 = vmatpush1.msra.mxu0 0.0
    %1222 = vmatprep.subr.mxu0 0.0
    %1223 = vmatpush1.msra.mxu0 0.0
    %1224 = vmatprep.subr.mxu0 0.0
    %1225 = vmatpush1.msra.mxu0 0.0
    %1226 = vmatprep.subr.mxu0 0.0
    %1227 = vmatpush1.msra.mxu0 0.0
    %1228 = vmatprep.subr.mxu0 0.0
    %1229 = vmatpush1.msra.mxu0 0.0
    %1230 = vmatprep.subr.mxu0 0.0
    %1231 = vmatpush1.msra.mxu0 0.0
    %1232 = vmatprep.subr.mxu0 0.0
    %1233 = vmatpush1.msra.mxu0 0.0
    %1234 = vmatprep.subr.mxu0 0.0
    %1235 = vmatpush1.msra.mxu0 0.0
    %1236 = vmatprep.subr.mxu0 0.0
    %1237 = vmatpush1.msra.mxu0 0.0
    %1238 = vmatprep.subr.mxu0 0.0
    %1239 = vmatpush1.msra.mxu0 0.0
    %1240 = vmatprep.subr.mxu0 0.0
    %1241 = vmatpush1.msra.mxu0 0.0
    %1242 = vmatprep.subr.mxu0 0.0
    %1243 = vmatpush1.msra.mxu0 0.0
    %1244 = vmatprep.mubr.f32.mxu0 0.0
    %1245 = vmatmul.mubr.f32.gmra.mrb[0].mxu0 %v1175
    %v1246 = vpop.f32.mrb[0].mxu0
    %v1247 = vadd.f32 0.0, %v1246
    %v1248 = vpop.f32.mrb[0].mxu0
    %1249 = vmatprep.mubr.f32.mxu0 0.0
    %1250 = vmatmul.mubr.f32.gmra.mrb[0].mxu0 %v1178
    %v1251 = vpop.f32.mrb[0].mxu0
    %v1252 = vadd.f32 0.0, %v1251
    %v1253 = vpop.f32.mrb[0].mxu0
    %1254 = vdwg.mxu0
    %v1255 = vmax.f32 %v1164, %v1247
    %v1256 = vmax.f32 %v1169, %v1252
    %v1257 = vld [vmem:[%s3] sm:$0x1]
    %v1259 = vlaneseq
    %v1260 = vshrl.u32 %v1259, 7
    %v1261 = vsub.s32 0, %v1260
    %v1262 = vrot.slane %v1257, %v1261
    %v1264 = vadd.f32 %v1255, %v1262
    %v1265 = vadd.f32 %v1256, %v1262
    %v1266 = vmax.f32 %v1264, 0.0
    %v1267 = vmax.f32 %v1265, 0.0
    %vm1268 = vcmask 588800
    %1269 = vst.msk [vmem:[#allocation2] sm:$0xff] %vm1268, %v1266
    %vm1270 = vcmask 584704
    %1271 = vst.msk [vmem:[#allocation2 + $0x8] sm:$0xf] %vm1270, %v1267
    %v1272 = vld [vmem:[#allocation2] sm:$0xff]
    %v1273 = vld [vmem:[%s6] sm:$0xff]
    %v1274 = vld [vmem:[%s6 + $0x8] sm:$0xff]
    %v1275 = vld [vmem:[%s6 + $0x10] sm:$0xff]
    %v1276 = vld [vmem:[%s6 + $0x18] sm:$0xff]
    %v1277 = vld [vmem:[%s6 + $0x20] sm:$0xff]
    %v1278 = vld [vmem:[%s6 + $0x28] sm:$0xff]
    %v1279 = vld [vmem:[%s6 + $0x30] sm:$0xff]
    %v1280 = vld [vmem:[%s6 + $0x38] sm:$0xff]
    %v1281 = vld [vmem:[%s6 + $0x40] sm:$0xff]
    %v1282 = vld [vmem:[%s7] sm:$0xff]
    %v1283 = vld [vmem:[%s7 + $0x8] sm:$0xff]
    %v1284 = vld [vmem:[%s7 + $0x10] sm:$0xff]
    %v1285 = vld [vmem:[%s7 + $0x18] sm:$0xff]
    %v1286 = vld [vmem:[%s7 + $0x20] sm:$0xff]
    %v1287 = vld [vmem:[%s7 + $0x28] sm:$0xff]
    %v1288 = vld [vmem:[%s7 + $0x30] sm:$0xff]
    %v1289 = vld [vmem:[%s7 + $0x38] sm:$0xff]
    %v1290 = vld [vmem:[%s7 + $0x40] sm:$0xff]
    %v1291 = vld [vmem:[#allocation2 + $0x1] sm:$0xff]
    %s1292 = scalar_lea.vmem %s6, 72
    %v1293 = vld [vmem:[%s1292] sm:$0xff]
    %v1294 = vld [vmem:[%s1292 + $0x8] sm:$0xff]
    %v1295 = vld [vmem:[%s1292 + $0x10] sm:$0xff]
    %v1296 = vld [vmem:[%s1292 + $0x18] sm:$0xff]
    %v1297 = vld [vmem:[%s1292 + $0x20] sm:$0xff]
    %v1298 = vld [vmem:[%s1292 + $0x28] sm:$0xff]
    %v1299 = vld [vmem:[%s1292 + $0x30] sm:$0xff]
    %v1300 = vld [vmem:[%s1292 + $0x38] sm:$0xff]
    %v1301 = vld [vmem:[%s1292 + $0x40] sm:$0xff]
    %v1303 = vsel %vm1268, %v1291, 0
    %1305 = vmatprep.subr.mxu0 0.0
    %1306 = vmatpush1.msra.mxu0 %v1293
    %1307 = vmatprep.subr.mxu0 0.0
    %1308 = vmatpush1.msra.mxu0 %v1294
    %1309 = vmatprep.subr.mxu0 0.0
    %1310 = vmatpush1.msra.mxu0 %v1295
    %1311 = vmatprep.subr.mxu0 0.0
    %1312 = vmatpush1.msra.mxu0 %v1296
    %1313 = vmatprep.subr.mxu0 0.0
    %1314 = vmatpush1.msra.mxu0 %v1297
    %1315 = vmatprep.subr.mxu0 0.0
    %1316 = vmatpush1.msra.mxu0 %v1298
    %1317 = vmatprep.subr.mxu0 0.0
    %1318 = vmatpush1.msra.mxu0 %v1299
    %1319 = vmatprep.subr.mxu0 0.0
    %1320 = vmatpush1.msra.mxu0 %v1300
    %1321 = vmatprep.subr.mxu0 0.0
    %1322 = vmatpush1.msra.mxu0 %v1301
    %1323 = vmatprep.subr.mxu0 0.0
    %1324 = vmatpush1.msra.mxu0 0.0
    %1325 = vmatprep.subr.mxu0 0.0
    %1326 = vmatpush1.msra.mxu0 0.0
    %1327 = vmatprep.subr.mxu0 0.0
    %1328 = vmatpush1.msra.mxu0 0.0
    %1329 = vmatprep.subr.mxu0 0.0
    %1330 = vmatpush1.msra.mxu0 0.0
    %1331 = vmatprep.subr.mxu0 0.0
    %1332 = vmatpush1.msra.mxu0 0.0
    %1333 = vmatprep.subr.mxu0 0.0
    %1334 = vmatpush1.msra.mxu0 0.0
    %1335 = vmatprep.subr.mxu0 0.0
    %1336 = vmatpush1.msra.mxu0 0.0
    %1337 = vmatprep.subr.mxu0 0.0
    %1338 = vmatpush1.msra.mxu0 0.0
    %1339 = vmatprep.subr.mxu0 0.0
    %1340 = vmatpush1.msra.mxu0 0.0
    %1341 = vmatprep.subr.mxu0 0.0
    %1342 = vmatpush1.msra.mxu0 0.0
    %1343 = vmatprep.subr.mxu0 0.0
    %1344 = vmatpush1.msra.mxu0 0.0
    %1345 = vmatprep.subr.mxu0 0.0
    %1346 = vmatpush1.msra.mxu0 0.0
    %1347 = vmatprep.subr.mxu0 0.0
    %1348 = vmatpush1.msra.mxu0 0.0
    %1349 = vmatprep.subr.mxu0 0.0
    %1350 = vmatpush1.msra.mxu0 0.0
    %1351 = vmatprep.subr.mxu0 0.0
    %1352 = vmatpush1.msra.mxu0 0.0
    %1353 = vmatprep.subr.mxu0 0.0
    %1354 = vmatpush1.msra.mxu0 0.0
    %1355 = vmatprep.subr.mxu0 0.0
    %1356 = vmatpush1.msra.mxu0 0.0
    %1357 = vmatprep.subr.mxu0 0.0
    %1358 = vmatpush1.msra.mxu0 0.0
    %1359 = vmatprep.subr.mxu0 0.0
    %1360 = vmatpush1.msra.mxu0 0.0
    %1361 = vmatprep.subr.mxu0 0.0
    %1362 = vmatpush1.msra.mxu0 0.0
    %1363 = vmatprep.subr.mxu0 0.0
    %1364 = vmatpush1.msra.mxu0 0.0
    %1365 = vmatprep.subr.mxu0 0.0
    %1366 = vmatpush1.msra.mxu0 0.0
    %1367 = vmatprep.subr.mxu0 0.0
    %1368 = vmatpush1.msra.mxu0 0.0
    %1369 = vmatprep.mubr.f32.mxu0 0.0
    %1370 = vmatmul.mubr.f32.gmra.mrb[0].mxu0 %v1303
    %v1371 = vpop.f32.mrb[0].mxu0
    %v1372 = vadd.f32 0.0, %v1371
    %v1373 = vpop.f32.mrb[0].mxu0
    %1374 = vdwg.mxu0
    %v1376 = vsel %vm1268, %v1272, 0
    %1378 = vmatprep.subr.mxu0 0.0
    %1379 = vmatpush1.msra.mxu0 %v1273
    %1380 = vmatprep.subr.mxu0 0.0
    %1381 = vmatpush1.msra.mxu0 %v1274
    %1382 = vmatprep.subr.mxu0 0.0
    %1383 = vmatpush1.msra.mxu0 %v1275
    %1384 = vmatprep.subr.mxu0 0.0
    %1385 = vmatpush1.msra.mxu0 %v1276
    %1386 = vmatprep.subr.mxu0 0.0
    %1387 = vmatpush1.msra.mxu0 %v1277
    %1388 = vmatprep.subr.mxu0 0.0
    %1389 = vmatpush1.msra.mxu0 %v1278
    %1390 = vmatprep.subr.mxu0 0.0
    %1391 = vmatpush1.msra.mxu0 %v1279
    %1392 = vmatprep.subr.mxu0 0.0
    %1393 = vmatpush1.msra.mxu0 %v1280
    %1394 = vmatprep.subr.mxu0 0.0
    %1395 = vmatpush1.msra.mxu0 %v1281
    %1396 = vmatprep.subr.mxu0 0.0
    %1397 = vmatpush1.msra.mxu0 0.0
    %1398 = vmatprep.subr.mxu0 0.0
    %1399 = vmatpush1.msra.mxu0 0.0
    %1400 = vmatprep.subr.mxu0 0.0
    %1401 = vmatpush1.msra.mxu0 0.0
    %1402 = vmatprep.subr.mxu0 0.0
    %1403 = vmatpush1.msra.mxu0 0.0
    %1404 = vmatprep.subr.mxu0 0.0
    %1405 = vmatpush1.msra.mxu0 0.0
    %1406 = vmatprep.subr.mxu0 0.0
    %1407 = vmatpush1.msra.mxu0 0.0
    %1408 = vmatprep.subr.mxu0 0.0
    %1409 = vmatpush1.msra.mxu0 0.0
    %1410 = vmatprep.subr.mxu0 0.0
    %1411 = vmatpush1.msra.mxu0 0.0
    %1412 = vmatprep.subr.mxu0 0.0
    %1413 = vmatpush1.msra.mxu0 0.0
    %1414 = vmatprep.subr.mxu0 0.0
    %1415 = vmatpush1.msra.mxu0 0.0
    %1416 = vmatprep.subr.mxu0 0.0
    %1417 = vmatpush1.msra.mxu0 0.0
    %1418 = vmatprep.subr.mxu0 0.0
    %1419 = vmatpush1.msra.mxu0 0.0
    %1420 = vmatprep.subr.mxu0 0.0
    %1421 = vmatpush1.msra.mxu0 0.0
    %1422 = vmatprep.subr.mxu0 0.0
    %1423 = vmatpush1.msra.mxu0 0.0
    %1424 = vmatprep.subr.mxu0 0.0
    %1425 = vmatpush1.msra.mxu0 0.0
    %1426 = vmatprep.subr.mxu0 0.0
    %1427 = vmatpush1.msra.mxu0 0.0
    %1428 = vmatprep.subr.mxu0 0.0
    %1429 = vmatpush1.msra.mxu0 0.0
    %1430 = vmatprep.subr.mxu0 0.0
    %1431 = vmatpush1.msra.mxu0 0.0
    %1432 = vmatprep.subr.mxu0 0.0
    %1433 = vmatpush1.msra.mxu0 0.0
    %1434 = vmatprep.subr.mxu0 0.0
    %1435 = vmatpush1.msra.mxu0 0.0
    %1436 = vmatprep.subr.mxu0 0.0
    %1437 = vmatpush1.msra.mxu0 0.0
    %1438 = vmatprep.subr.mxu0 0.0
    %1439 = vmatpush1.msra.mxu0 0.0
    %1440 = vmatprep.subr.mxu0 0.0
    %1441 = vmatpush1.msra.mxu0 0.0
    %1442 = vmatprep.mubr.f32.mxu0 0.0
    %1443 = vmatmul.mubr.f32.gmra.mrb[0].mxu0 %v1376
    %v1444 = vpop.f32.mrb[0].mxu0
    %v1445 = vadd.f32 %v1372, %v1444
    %v1446 = vpop.f32.mrb[0].mxu0
    %1447 = vdwg.mxu0
    %s1448 = scalar_lea.vmem %s7, 72
    %v1449 = vld [vmem:[%s1448] sm:$0xff]
    %v1450 = vld [vmem:[%s1448 + $0x8] sm:$0xff]
    %v1451 = vld [vmem:[%s1448 + $0x10] sm:$0xff]
    %v1452 = vld [vmem:[%s1448 + $0x18] sm:$0xff]
    %v1453 = vld [vmem:[%s1448 + $0x20] sm:$0xff]
    %v1454 = vld [vmem:[%s1448 + $0x28] sm:$0xff]
    %v1455 = vld [vmem:[%s1448 + $0x30] sm:$0xff]
    %v1456 = vld [vmem:[%s1448 + $0x38] sm:$0xff]
    %v1457 = vld [vmem:[%s1448 + $0x40] sm:$0xff]
    %1458 = vmatprep.subr.mxu0 0.0
    %1459 = vmatpush1.msra.mxu0 %v1449
    %1460 = vmatprep.subr.mxu0 0.0
    %1461 = vmatpush1.msra.mxu0 %v1450
    %1462 = vmatprep.subr.mxu0 0.0
    %1463 = vmatpush1.msra.mxu0 %v1451
    %1464 = vmatprep.subr.mxu0 0.0
    %1465 = vmatpush1.msra.mxu0 %v1452
    %1466 = vmatprep.subr.mxu0 0.0
    %1467 = vmatpush1.msra.mxu0 %v1453
    %1468 = vmatprep.subr.mxu0 0.0
    %1469 = vmatpush1.msra.mxu0 %v1454
    %1470 = vmatprep.subr.mxu0 0.0
    %1471 = vmatpush1.msra.mxu0 %v1455
    %1472 = vmatprep.subr.mxu0 0.0
    %1473 = vmatpush1.msra.mxu0 %v1456
    %1474 = vmatprep.subr.mxu0 0.0
    %1475 = vmatpush1.msra.mxu0 %v1457
    %1476 = vmatprep.subr.mxu0 0.0
    %1477 = vmatpush1.msra.mxu0 0.0
    %1478 = vmatprep.subr.mxu0 0.0
    %1479 = vmatpush1.msra.mxu0 0.0
    %1480 = vmatprep.subr.mxu0 0.0
    %1481 = vmatpush1.msra.mxu0 0.0
    %1482 = vmatprep.subr.mxu0 0.0
    %1483 = vmatpush1.msra.mxu0 0.0
    %1484 = vmatprep.subr.mxu0 0.0
    %1485 = vmatpush1.msra.mxu0 0.0
    %1486 = vmatprep.subr.mxu0 0.0
    %1487 = vmatpush1.msra.mxu0 0.0
    %1488 = vmatprep.subr.mxu0 0.0
    %1489 = vmatpush1.msra.mxu0 0.0
    %1490 = vmatprep.subr.mxu0 0.0
    %1491 = vmatpush1.msra.mxu0 0.0
    %1492 = vmatprep.subr.mxu0 0.0
    %1493 = vmatpush1.msra.mxu0 0.0
    %1494 = vmatprep.subr.mxu0 0.0
    %1495 = vmatpush1.msra.mxu0 0.0
    %1496 = vmatprep.subr.mxu0 0.0
    %1497 = vmatpush1.msra.mxu0 0.0
    %1498 = vmatprep.subr.mxu0 0.0
    %1499 = vmatpush1.msra.mxu0 0.0
    %1500 = vmatprep.subr.mxu0 0.0
    %1501 = vmatpush1.msra.mxu0 0.0
    %1502 = vmatprep.subr.mxu0 0.0
    %1503 = vmatpush1.msra.mxu0 0.0
    %1504 = vmatprep.subr.mxu0 0.0
    %1505 = vmatpush1.msra.mxu0 0.0
    %1506 = vmatprep.subr.mxu0 0.0
    %1507 = vmatpush1.msra.mxu0 0.0
    %1508 = vmatprep.subr.mxu0 0.0
    %1509 = vmatpush1.msra.mxu0 0.0
    %1510 = vmatprep.subr.mxu0 0.0
    %1511 = vmatpush1.msra.mxu0 0.0
    %1512 = vmatprep.subr.mxu0 0.0
    %1513 = vmatpush1.msra.mxu0 0.0
    %1514 = vmatprep.subr.mxu0 0.0
    %1515 = vmatpush1.msra.mxu0 0.0
    %1516 = vmatprep.subr.mxu0 0.0
    %1517 = vmatpush1.msra.mxu0 0.0
    %1518 = vmatprep.subr.mxu0 0.0
    %1519 = vmatpush1.msra.mxu0 0.0
    %1520 = vmatprep.subr.mxu0 0.0
    %1521 = vmatpush1.msra.mxu0 0.0
    %1522 = vmatprep.mubr.f32.mxu0 0.0
    %1523 = vmatmul.mubr.f32.gmra.mrb[0].mxu0 %v1303
    %v1524 = vpop.f32.mrb[0].mxu0
    %v1525 = vadd.f32 0.0, %v1524
    %v1526 = vpop.f32.mrb[0].mxu0
    %1527 = vdwg.mxu0
    %1528 = vmatprep.subr.mxu0 0.0
    %1529 = vmatpush1.msra.mxu0 %v1282
    %1530 = vmatprep.subr.mxu0 0.0
    %1531 = vmatpush1.msra.mxu0 %v1283
    %1532 = vmatprep.subr.mxu0 0.0
    %1533 = vmatpush1.msra.mxu0 %v1284
    %1534 = vmatprep.subr.mxu0 0.0
    %1535 = vmatpush1.msra.mxu0 %v1285
    %1536 = vmatprep.subr.mxu0 0.0
    %1537 = vmatpush1.msra.mxu0 %v1286
    %1538 = vmatprep.subr.mxu0 0.0
    %1539 = vmatpush1.msra.mxu0 %v1287
    %1540 = vmatprep.subr.mxu0 0.0
    %1541 = vmatpush1.msra.mxu0 %v1288
    %1542 = vmatprep.subr.mxu0 0.0
    %1543 = vmatpush1.msra.mxu0 %v1289
    %1544 = vmatprep.subr.mxu0 0.0
    %1545 = vmatpush1.msra.mxu0 %v1290
    %1546 = vmatprep.subr.mxu0 0.0
    %1547 = vmatpush1.msra.mxu0 0.0
    %1548 = vmatprep.subr.mxu0 0.0
    %1549 = vmatpush1.msra.mxu0 0.0
    %1550 = vmatprep.subr.mxu0 0.0
    %1551 = vmatpush1.msra.mxu0 0.0
    %1552 = vmatprep.subr.mxu0 0.0
    %1553 = vmatpush1.msra.mxu0 0.0
    %1554 = vmatprep.subr.mxu0 0.0
    %1555 = vmatpush1.msra.mxu0 0.0
    %1556 = vmatprep.subr.mxu0 0.0
    %1557 = vmatpush1.msra.mxu0 0.0
    %1558 = vmatprep.subr.mxu0 0.0
    %1559 = vmatpush1.msra.mxu0 0.0
    %1560 = vmatprep.subr.mxu0 0.0
    %1561 = vmatpush1.msra.mxu0 0.0
    %1562 = vmatprep.subr.mxu0 0.0
    %1563 = vmatpush1.msra.mxu0 0.0
    %1564 = vmatprep.subr.mxu0 0.0
    %1565 = vmatpush1.msra.mxu0 0.0
    %1566 = vmatprep.subr.mxu0 0.0
    %1567 = vmatpush1.msra.mxu0 0.0
    %1568 = vmatprep.subr.mxu0 0.0
    %1569 = vmatpush1.msra.mxu0 0.0
    %1570 = vmatprep.subr.mxu0 0.0
    %1571 = vmatpush1.msra.mxu0 0.0
    %1572 = vmatprep.subr.mxu0 0.0
    %1573 = vmatpush1.msra.mxu0 0.0
    %1574 = vmatprep.subr.mxu0 0.0
    %1575 = vmatpush1.msra.mxu0 0.0
    %1576 = vmatprep.subr.mxu0 0.0
    %1577 = vmatpush1.msra.mxu0 0.0
    %1578 = vmatprep.subr.mxu0 0.0
    %1579 = vmatpush1.msra.mxu0 0.0
    %1580 = vmatprep.subr.mxu0 0.0
    %1581 = vmatpush1.msra.mxu0 0.0
    %1582 = vmatprep.subr.mxu0 0.0
    %1583 = vmatpush1.msra.mxu0 0.0
    %1584 = vmatprep.subr.mxu0 0.0
    %1585 = vmatpush1.msra.mxu0 0.0
    %1586 = vmatprep.subr.mxu0 0.0
    %1587 = vmatpush1.msra.mxu0 0.0
    %1588 = vmatprep.subr.mxu0 0.0
    %1589 = vmatpush1.msra.mxu0 0.0
    %1590 = vmatprep.subr.mxu0 0.0
    %1591 = vmatpush1.msra.mxu0 0.0
    %1592 = vmatprep.mubr.f32.mxu0 0.0
    %1593 = vmatmul.mubr.f32.gmra.mrb[0].mxu0 %v1376
    %v1594 = vpop.f32.mrb[0].mxu0
    %v1595 = vadd.f32 %v1525, %v1594
    %v1596 = vpop.f32.mrb[0].mxu0
    %1597 = vdwg.mxu0
    %v1598 = vld [vmem:[#allocation2 + $0x2] sm:$0xff]
    %s1599 = scalar_lea.vmem %s6, 144
    %v1600 = vld [vmem:[%s1599] sm:$0xff]
    %v1601 = vld [vmem:[%s1599 + $0x8] sm:$0xff]
    %v1602 = vld [vmem:[%s1599 + $0x10] sm:$0xff]
    %v1603 = vld [vmem:[%s1599 + $0x18] sm:$0xff]
    %v1604 = vld [vmem:[%s1599 + $0x20] sm:$0xff]
    %v1605 = vld [vmem:[%s1599 + $0x28] sm:$0xff]
    %v1606 = vld [vmem:[%s1599 + $0x30] sm:$0xff]
    %v1607 = vld [vmem:[%s1599 + $0x38] sm:$0xff]
    %v1608 = vld [vmem:[%s1599 + $0x40] sm:$0xff]
    %v1610 = vsel %vm1268, %v1598, 0
    %1612 = vmatprep.subr.mxu0 0.0
    %1613 = vmatpush1.msra.mxu0 %v1600
    %1614 = vmatprep.subr.mxu0 0.0
    %1615 = vmatpush1.msra.mxu0 %v1601
    %1616 = vmatprep.subr.mxu0 0.0
    %1617 = vmatpush1.msra.mxu0 %v1602
    %1618 = vmatprep.subr.mxu0 0.0
    %1619 = vmatpush1.msra.mxu0 %v1603
    %1620 = vmatprep.subr.mxu0 0.0
    %1621 = vmatpush1.msra.mxu0 %v1604
    %1622 = vmatprep.subr.mxu0 0.0
    %1623 = vmatpush1.msra.mxu0 %v1605
    %1624 = vmatprep.subr.mxu0 0.0
    %1625 = vmatpush1.msra.mxu0 %v1606
    %1626 = vmatprep.subr.mxu0 0.0
    %1627 = vmatpush1.msra.mxu0 %v1607
    %1628 = vmatprep.subr.mxu0 0.0
    %1629 = vmatpush1.msra.mxu0 %v1608
    %1630 = vmatprep.subr.mxu0 0.0
    %1631 = vmatpush1.msra.mxu0 0.0
    %1632 = vmatprep.subr.mxu0 0.0
    %1633 = vmatpush1.msra.mxu0 0.0
    %1634 = vmatprep.subr.mxu0 0.0
    %1635 = vmatpush1.msra.mxu0 0.0
    %1636 = vmatprep.subr.mxu0 0.0
    %1637 = vmatpush1.msra.mxu0 0.0
    %1638 = vmatprep.subr.mxu0 0.0
    %1639 = vmatpush1.msra.mxu0 0.0
    %1640 = vmatprep.subr.mxu0 0.0
    %1641 = vmatpush1.msra.mxu0 0.0
    %1642 = vmatprep.subr.mxu0 0.0
    %1643 = vmatpush1.msra.mxu0 0.0
    %1644 = vmatprep.subr.mxu0 0.0
    %1645 = vmatpush1.msra.mxu0 0.0
    %1646 = vmatprep.subr.mxu0 0.0
    %1647 = vmatpush1.msra.mxu0 0.0
    %1648 = vmatprep.subr.mxu0 0.0
    %1649 = vmatpush1.msra.mxu0 0.0
    %1650 = vmatprep.subr.mxu0 0.0
    %1651 = vmatpush1.msra.mxu0 0.0
    %1652 = vmatprep.subr.mxu0 0.0
    %1653 = vmatpush1.msra.mxu0 0.0
    %1654 = vmatprep.subr.mxu0 0.0
    %1655 = vmatpush1.msra.mxu0 0.0
    %1656 = vmatprep.subr.mxu0 0.0
    %1657 = vmatpush1.msra.mxu0 0.0
    %1658 = vmatprep.subr.mxu0 0.0
    %1659 = vmatpush1.msra.mxu0 0.0
    %1660 = vmatprep.subr.mxu0 0.0
    %1661 = vmatpush1.msra.mxu0 0.0
    %1662 = vmatprep.subr.mxu0 0.0
    %1663 = vmatpush1.msra.mxu0 0.0
    %1664 = vmatprep.subr.mxu0 0.0
    %1665 = vmatpush1.msra.mxu0 0.0
    %1666 = vmatprep.subr.mxu0 0.0
    %1667 = vmatpush1.msra.mxu0 0.0
    %1668 = vmatprep.subr.mxu0 0.0
    %1669 = vmatpush1.msra.mxu0 0.0
    %1670 = vmatprep.subr.mxu0 0.0
    %1671 = vmatpush1.msra.mxu0 0.0
    %1672 = vmatprep.subr.mxu0 0.0
    %1673 = vmatpush1.msra.mxu0 0.0
    %1674 = vmatprep.subr.mxu0 0.0
    %1675 = vmatpush1.msra.mxu0 0.0
    %1676 = vmatprep.mubr.f32.mxu0 0.0
    %1677 = vmatmul.mubr.f32.gmra.mrb[0].mxu0 %v1610
    %v1678 = vpop.f32.mrb[0].mxu0
    %v1679 = vadd.f32 0.0, %v1678
    %v1680 = vpop.f32.mrb[0].mxu0
    %1681 = vdwg.mxu0
    %v1682 = vadd.f32 %v1445, %v1679
    %s1683 = scalar_lea.vmem %s7, 144
    %v1684 = vld [vmem:[%s1683] sm:$0xff]
    %v1685 = vld [vmem:[%s1683 + $0x8] sm:$0xff]
    %v1686 = vld [vmem:[%s1683 + $0x10] sm:$0xff]
    %v1687 = vld [vmem:[%s1683 + $0x18] sm:$0xff]
    %v1688 = vld [vmem:[%s1683 + $0x20] sm:$0xff]
    %v1689 = vld [vmem:[%s1683 + $0x28] sm:$0xff]
    %v1690 = vld [vmem:[%s1683 + $0x30] sm:$0xff]
    %v1691 = vld [vmem:[%s1683 + $0x38] sm:$0xff]
    %v1692 = vld [vmem:[%s1683 + $0x40] sm:$0xff]
    %1693 = vmatprep.subr.mxu0 0.0
    %1694 = vmatpush1.msra.mxu0 %v1684
    %1695 = vmatprep.subr.mxu0 0.0
    %1696 = vmatpush1.msra.mxu0 %v1685
    %1697 = vmatprep.subr.mxu0 0.0
    %1698 = vmatpush1.msra.mxu0 %v1686
    %1699 = vmatprep.subr.mxu0 0.0
    %1700 = vmatpush1.msra.mxu0 %v1687
    %1701 = vmatprep.subr.mxu0 0.0
    %1702 = vmatpush1.msra.mxu0 %v1688
    %1703 = vmatprep.subr.mxu0 0.0
    %1704 = vmatpush1.msra.mxu0 %v1689
    %1705 = vmatprep.subr.mxu0 0.0
    %1706 = vmatpush1.msra.mxu0 %v1690
    %1707 = vmatprep.subr.mxu0 0.0
    %1708 = vmatpush1.msra.mxu0 %v1691
    %1709 = vmatprep.subr.mxu0 0.0
    %1710 = vmatpush1.msra.mxu0 %v1692
    %1711 = vmatprep.subr.mxu0 0.0
    %1712 = vmatpush1.msra.mxu0 0.0
    %1713 = vmatprep.subr.mxu0 0.0
    %1714 = vmatpush1.msra.mxu0 0.0
    %1715 = vmatprep.subr.mxu0 0.0
    %1716 = vmatpush1.msra.mxu0 0.0
    %1717 = vmatprep.subr.mxu0 0.0
    %1718 = vmatpush1.msra.mxu0 0.0
    %1719 = vmatprep.subr.mxu0 0.0
    %1720 = vmatpush1.msra.mxu0 0.0
    %1721 = vmatprep.subr.mxu0 0.0
    %1722 = vmatpush1.msra.mxu0 0.0
    %1723 = vmatprep.subr.mxu0 0.0
    %1724 = vmatpush1.msra.mxu0 0.0
    %1725 = vmatprep.subr.mxu0 0.0
    %1726 = vmatpush1.msra.mxu0 0.0
    %1727 = vmatprep.subr.mxu0 0.0
    %1728 = vmatpush1.msra.mxu0 0.0
    %1729 = vmatprep.subr.mxu0 0.0
    %1730 = vmatpush1.msra.mxu0 0.0
    %1731 = vmatprep.subr.mxu0 0.0
    %1732 = vmatpush1.msra.mxu0 0.0
    %1733 = vmatprep.subr.mxu0 0.0
    %1734 = vmatpush1.msra.mxu0 0.0
    %1735 = vmatprep.subr.mxu0 0.0
    %1736 = vmatpush1.msra.mxu0 0.0
    %1737 = vmatprep.subr.mxu0 0.0
    %1738 = vmatpush1.msra.mxu0 0.0
    %1739 = vmatprep.subr.mxu0 0.0
    %1740 = vmatpush1.msra.mxu0 0.0
    %1741 = vmatprep.subr.mxu0 0.0
    %1742 = vmatpush1.msra.mxu0 0.0
    %1743 = vmatprep.subr.mxu0 0.0
    %1744 = vmatpush1.msra.mxu0 0.0
    %1745 = vmatprep.subr.mxu0 0.0
    %1746 = vmatpush1.msra.mxu0 0.0
    %1747 = vmatprep.subr.mxu0 0.0
    %1748 = vmatpush1.msra.mxu0 0.0
    %1749 = vmatprep.subr.mxu0 0.0
    %1750 = vmatpush1.msra.mxu0 0.0
    %1751 = vmatprep.subr.mxu0 0.0
    %1752 = vmatpush1.msra.mxu0 0.0
    %1753 = vmatprep.subr.mxu0 0.0
    %1754 = vmatpush1.msra.mxu0 0.0
    %1755 = vmatprep.subr.mxu0 0.0
    %1756 = vmatpush1.msra.mxu0 0.0
    %1757 = vmatprep.mubr.f32.mxu0 0.0
    %1758 = vmatmul.mubr.f32.gmra.mrb[0].mxu0 %v1610
    %v1759 = vpop.f32.mrb[0].mxu0
    %v1760 = vadd.f32 0.0, %v1759
    %v1761 = vpop.f32.mrb[0].mxu0
    %1762 = vdwg.mxu0
    %v1763 = vadd.f32 %v1595, %v1760
    %v1764 = vld [vmem:[#allocation2 + $0x3] sm:$0xff]
    %s1765 = scalar_lea.vmem %s6, 216
    %v1766 = vld [vmem:[%s1765] sm:$0xff]
    %v1767 = vld [vmem:[%s1765 + $0x8] sm:$0xff]
    %v1768 = vld [vmem:[%s1765 + $0x10] sm:$0xff]
    %v1769 = vld [vmem:[%s1765 + $0x18] sm:$0xff]
    %v1770 = vld [vmem:[%s1765 + $0x20] sm:$0xff]
    %v1771 = vld [vmem:[%s1765 + $0x28] sm:$0xff]
    %v1772 = vld [vmem:[%s1765 + $0x30] sm:$0xff]
    %v1773 = vld [vmem:[%s1765 + $0x38] sm:$0xff]
    %v1774 = vld [vmem:[%s1765 + $0x40] sm:$0xff]
    %v1776 = vsel %vm1268, %v1764, 0
    %1778 = vmatprep.subr.mxu0 0.0
    %1779 = vmatpush1.msra.mxu0 %v1766
    %1780 = vmatprep.subr.mxu0 0.0
    %1781 = vmatpush1.msra.mxu0 %v1767
    %1782 = vmatprep.subr.mxu0 0.0
    %1783 = vmatpush1.msra.mxu0 %v1768
    %1784 = vmatprep.subr.mxu0 0.0
    %1785 = vmatpush1.msra.mxu0 %v1769
    %1786 = vmatprep.subr.mxu0 0.0
    %1787 = vmatpush1.msra.mxu0 %v1770
    %1788 = vmatprep.subr.mxu0 0.0
    %1789 = vmatpush1.msra.mxu0 %v1771
    %1790 = vmatprep.subr.mxu0 0.0
    %1791 = vmatpush1.msra.mxu0 %v1772
    %1792 = vmatprep.subr.mxu0 0.0
    %1793 = vmatpush1.msra.mxu0 %v1773
    %1794 = vmatprep.subr.mxu0 0.0
    %1795 = vmatpush1.msra.mxu0 %v1774
    %1796 = vmatprep.subr.mxu0 0.0
    %1797 = vmatpush1.msra.mxu0 0.0
    %1798 = vmatprep.subr.mxu0 0.0
    %1799 = vmatpush1.msra.mxu0 0.0
    %1800 = vmatprep.subr.mxu0 0.0
    %1801 = vmatpush1.msra.mxu0 0.0
    %1802 = vmatprep.subr.mxu0 0.0
    %1803 = vmatpush1.msra.mxu0 0.0
    %1804 = vmatprep.subr.mxu0 0.0
    %1805 = vmatpush1.msra.mxu0 0.0
    %1806 = vmatprep.subr.mxu0 0.0
    %1807 = vmatpush1.msra.mxu0 0.0
    %1808 = vmatprep.subr.mxu0 0.0
    %1809 = vmatpush1.msra.mxu0 0.0
    %1810 = vmatprep.subr.mxu0 0.0
    %1811 = vmatpush1.msra.mxu0 0.0
    %1812 = vmatprep.subr.mxu0 0.0
    %1813 = vmatpush1.msra.mxu0 0.0
    %1814 = vmatprep.subr.mxu0 0.0
    %1815 = vmatpush1.msra.mxu0 0.0
    %1816 = vmatprep.subr.mxu0 0.0
    %1817 = vmatpush1.msra.mxu0 0.0
    %1818 = vmatprep.subr.mxu0 0.0
    %1819 = vmatpush1.msra.mxu0 0.0
    %1820 = vmatprep.subr.mxu0 0.0
    %1821 = vmatpush1.msra.mxu0 0.0
    %1822 = vmatprep.subr.mxu0 0.0
    %1823 = vmatpush1.msra.mxu0 0.0
    %1824 = vmatprep.subr.mxu0 0.0
    %1825 = vmatpush1.msra.mxu0 0.0
    %1826 = vmatprep.subr.mxu0 0.0
    %1827 = vmatpush1.msra.mxu0 0.0
    %1828 = vmatprep.subr.mxu0 0.0
    %1829 = vmatpush1.msra.mxu0 0.0
    %1830 = vmatprep.subr.mxu0 0.0
    %1831 = vmatpush1.msra.mxu0 0.0
    %1832 = vmatprep.subr.mxu0 0.0
    %1833 = vmatpush1.msra.mxu0 0.0
    %1834 = vmatprep.subr.mxu0 0.0
    %1835 = vmatpush1.msra.mxu0 0.0
    %1836 = vmatprep.subr.mxu0 0.0
    %1837 = vmatpush1.msra.mxu0 0.0
    %1838 = vmatprep.subr.mxu0 0.0
    %1839 = vmatpush1.msra.mxu0 0.0
    %1840 = vmatprep.subr.mxu0 0.0
    %1841 = vmatpush1.msra.mxu0 0.0
    %1842 = vmatprep.mubr.f32.mxu0 0.0
    %1843 = vmatmul.mubr.f32.gmra.mrb[0].mxu0 %v1776
    %v1844 = vpop.f32.mrb[0].mxu0
    %v1845 = vadd.f32 0.0, %v1844
    %v1846 = vpop.f32.mrb[0].mxu0
    %1847 = vdwg.mxu0
    %v1848 = vadd.f32 %v1682, %v1845
    %s1849 = scalar_lea.vmem %s7, 216
    %v1850 = vld [vmem:[%s1849] sm:$0xff]
    %v1851 = vld [vmem:[%s1849 + $0x8] sm:$0xff]
    %v1852 = vld [vmem:[%s1849 + $0x10] sm:$0xff]
    %v1853 = vld [vmem:[%s1849 + $0x18] sm:$0xff]
    %v1854 = vld [vmem:[%s1849 + $0x20] sm:$0xff]
    %v1855 = vld [vmem:[%s1849 + $0x28] sm:$0xff]
    %v1856 = vld [vmem:[%s1849 + $0x30] sm:$0xff]
    %v1857 = vld [vmem:[%s1849 + $0x38] sm:$0xff]
    %v1858 = vld [vmem:[%s1849 + $0x40] sm:$0xff]
    %1859 = vmatprep.subr.mxu0 0.0
    %1860 = vmatpush1.msra.mxu0 %v1850
    %1861 = vmatprep.subr.mxu0 0.0
    %1862 = vmatpush1.msra.mxu0 %v1851
    %1863 = vmatprep.subr.mxu0 0.0
    %1864 = vmatpush1.msra.mxu0 %v1852
    %1865 = vmatprep.subr.mxu0 0.0
    %1866 = vmatpush1.msra.mxu0 %v1853
    %1867 = vmatprep.subr.mxu0 0.0
    %1868 = vmatpush1.msra.mxu0 %v1854
    %1869 = vmatprep.subr.mxu0 0.0
    %1870 = vmatpush1.msra.mxu0 %v1855
    %1871 = vmatprep.subr.mxu0 0.0
    %1872 = vmatpush1.msra.mxu0 %v1856
    %1873 = vmatprep.subr.mxu0 0.0
    %1874 = vmatpush1.msra.mxu0 %v1857
    %1875 = vmatprep.subr.mxu0 0.0
    %1876 = vmatpush1.msra.mxu0 %v1858
    %1877 = vmatprep.subr.mxu0 0.0
    %1878 = vmatpush1.msra.mxu0 0.0
    %1879 = vmatprep.subr.mxu0 0.0
    %1880 = vmatpush1.msra.mxu0 0.0
    %1881 = vmatprep.subr.mxu0 0.0
    %1882 = vmatpush1.msra.mxu0 0.0
    %1883 = vmatprep.subr.mxu0 0.0
    %1884 = vmatpush1.msra.mxu0 0.0
    %1885 = vmatprep.subr.mxu0 0.0
    %1886 = vmatpush1.msra.mxu0 0.0
    %1887 = vmatprep.subr.mxu0 0.0
    %1888 = vmatpush1.msra.mxu0 0.0
    %1889 = vmatprep.subr.mxu0 0.0
    %1890 = vmatpush1.msra.mxu0 0.0
    %1891 = vmatprep.subr.mxu0 0.0
    %1892 = vmatpush1.msra.mxu0 0.0
    %1893 = vmatprep.subr.mxu0 0.0
    %1894 = vmatpush1.msra.mxu0 0.0
    %1895 = vmatprep.subr.mxu0 0.0
    %1896 = vmatpush1.msra.mxu0 0.0
    %1897 = vmatprep.subr.mxu0 0.0
    %1898 = vmatpush1.msra.mxu0 0.0
    %1899 = vmatprep.subr.mxu0 0.0
    %1900 = vmatpush1.msra.mxu0 0.0
    %1901 = vmatprep.subr.mxu0 0.0
    %1902 = vmatpush1.msra.mxu0 0.0
    %1903 = vmatprep.subr.mxu0 0.0
    %1904 = vmatpush1.msra.mxu0 0.0
    %1905 = vmatprep.subr.mxu0 0.0
    %1906 = vmatpush1.msra.mxu0 0.0
    %1907 = vmatprep.subr.mxu0 0.0
    %1908 = vmatpush1.msra.mxu0 0.0
    %1909 = vmatprep.subr.mxu0 0.0
    %1910 = vmatpush1.msra.mxu0 0.0
    %1911 = vmatprep.subr.mxu0 0.0
    %1912 = vmatpush1.msra.mxu0 0.0
    %1913 = vmatprep.subr.mxu0 0.0
    %1914 = vmatpush1.msra.mxu0 0.0
    %1915 = vmatprep.subr.mxu0 0.0
    %1916 = vmatpush1.msra.mxu0 0.0
    %1917 = vmatprep.subr.mxu0 0.0
    %1918 = vmatpush1.msra.mxu0 0.0
    %1919 = vmatprep.subr.mxu0 0.0
    %1920 = vmatpush1.msra.mxu0 0.0
    %1921 = vmatprep.subr.mxu0 0.0
    %1922 = vmatpush1.msra.mxu0 0.0
    %1923 = vmatprep.mubr.f32.mxu0 0.0
    %1924 = vmatmul.mubr.f32.gmra.mrb[0].mxu0 %v1776
    %v1925 = vpop.f32.mrb[0].mxu0
    %v1926 = vadd.f32 0.0, %v1925
    %v1927 = vpop.f32.mrb[0].mxu0
    %1928 = vdwg.mxu0
    %v1929 = vadd.f32 %v1763, %v1926
    %v1930 = vld [vmem:[#allocation2 + $0x4] sm:$0xff]
    %s1931 = scalar_lea.vmem %s6, 288
    %v1932 = vld [vmem:[%s1931] sm:$0xff]
    %v1933 = vld [vmem:[%s1931 + $0x8] sm:$0xff]
    %v1934 = vld [vmem:[%s1931 + $0x10] sm:$0xff]
    %v1935 = vld [vmem:[%s1931 + $0x18] sm:$0xff]
    %v1936 = vld [vmem:[%s1931 + $0x20] sm:$0xff]
    %v1937 = vld [vmem:[%s1931 + $0x28] sm:$0xff]
    %v1938 = vld [vmem:[%s1931 + $0x30] sm:$0xff]
    %v1939 = vld [vmem:[%s1931 + $0x38] sm:$0xff]
    %v1940 = vld [vmem:[%s1931 + $0x40] sm:$0xff]
    %v1942 = vsel %vm1268, %v1930, 0
    %1944 = vmatprep.subr.mxu0 0.0
    %1945 = vmatpush1.msra.mxu0 %v1932
    %1946 = vmatprep.subr.mxu0 0.0
    %1947 = vmatpush1.msra.mxu0 %v1933
    %1948 = vmatprep.subr.mxu0 0.0
    %1949 = vmatpush1.msra.mxu0 %v1934
    %1950 = vmatprep.subr.mxu0 0.0
    %1951 = vmatpush1.msra.mxu0 %v1935
    %1952 = vmatprep.subr.mxu0 0.0
    %1953 = vmatpush1.msra.mxu0 %v1936
    %1954 = vmatprep.subr.mxu0 0.0
    %1955 = vmatpush1.msra.mxu0 %v1937
    %1956 = vmatprep.subr.mxu0 0.0
    %1957 = vmatpush1.msra.mxu0 %v1938
    %1958 = vmatprep.subr.mxu0 0.0
    %1959 = vmatpush1.msra.mxu0 %v1939
    %1960 = vmatprep.subr.mxu0 0.0
    %1961 = vmatpush1.msra.mxu0 %v1940
    %1962 = vmatprep.subr.mxu0 0.0
    %1963 = vmatpush1.msra.mxu0 0.0
    %1964 = vmatprep.subr.mxu0 0.0
    %1965 = vmatpush1.msra.mxu0 0.0
    %1966 = vmatprep.subr.mxu0 0.0
    %1967 = vmatpush1.msra.mxu0 0.0
    %1968 = vmatprep.subr.mxu0 0.0
    %1969 = vmatpush1.msra.mxu0 0.0
    %1970 = vmatprep.subr.mxu0 0.0
    %1971 = vmatpush1.msra.mxu0 0.0
    %1972 = vmatprep.subr.mxu0 0.0
    %1973 = vmatpush1.msra.mxu0 0.0
    %1974 = vmatprep.subr.mxu0 0.0
    %1975 = vmatpush1.msra.mxu0 0.0
    %1976 = vmatprep.subr.mxu0 0.0
    %1977 = vmatpush1.msra.mxu0 0.0
    %1978 = vmatprep.subr.mxu0 0.0
    %1979 = vmatpush1.msra.mxu0 0.0
    %1980 = vmatprep.subr.mxu0 0.0
    %1981 = vmatpush1.msra.mxu0 0.0
    %1982 = vmatprep.subr.mxu0 0.0
    %1983 = vmatpush1.msra.mxu0 0.0
    %1984 = vmatprep.subr.mxu0 0.0
    %1985 = vmatpush1.msra.mxu0 0.0
    %1986 = vmatprep.subr.mxu0 0.0
    %1987 = vmatpush1.msra.mxu0 0.0
    %1988 = vmatprep.subr.mxu0 0.0
    %1989 = vmatpush1.msra.mxu0 0.0
    %1990 = vmatprep.subr.mxu0 0.0
    %1991 = vmatpush1.msra.mxu0 0.0
    %1992 = vmatprep.subr.mxu0 0.0
    %1993 = vmatpush1.msra.mxu0 0.0
    %1994 = vmatprep.subr.mxu0 0.0
    %1995 = vmatpush1.msra.mxu0 0.0
    %1996 = vmatprep.subr.mxu0 0.0
    %1997 = vmatpush1.msra.mxu0 0.0
    %1998 = vmatprep.subr.mxu0 0.0
    %1999 = vmatpush1.msra.mxu0 0.0
    %2000 = vmatprep.subr.mxu0 0.0
    %2001 = vmatpush1.msra.mxu0 0.0
    %2002 = vmatprep.subr.mxu0 0.0
    %2003 = vmatpush1.msra.mxu0 0.0
    %2004 = vmatprep.subr.mxu0 0.0
    %2005 = vmatpush1.msra.mxu0 0.0
    %2006 = vmatprep.subr.mxu0 0.0
    %2007 = vmatpush1.msra.mxu0 0.0
    %2008 = vmatprep.mubr.f32.mxu0 0.0
    %2009 = vmatmul.mubr.f32.gmra.mrb[0].mxu0 %v1942
    %v2010 = vpop.f32.mrb[0].mxu0
    %v2011 = vadd.f32 0.0, %v2010
    %v2012 = vpop.f32.mrb[0].mxu0
    %2013 = vdwg.mxu0
    %v2014 = vadd.f32 %v1848, %v2011
    %s2015 = scalar_lea.vmem %s7, 288
    %v2016 = vld [vmem:[%s2015] sm:$0xff]
    %v2017 = vld [vmem:[%s2015 + $0x8] sm:$0xff]
    %v2018 = vld [vmem:[%s2015 + $0x10] sm:$0xff]
    %v2019 = vld [vmem:[%s2015 + $0x18] sm:$0xff]
    %v2020 = vld [vmem:[%s2015 + $0x20] sm:$0xff]
    %v2021 = vld [vmem:[%s2015 + $0x28] sm:$0xff]
    %v2022 = vld [vmem:[%s2015 + $0x30] sm:$0xff]
    %v2023 = vld [vmem:[%s2015 + $0x38] sm:$0xff]
    %v2024 = vld [vmem:[%s2015 + $0x40] sm:$0xff]
    %2025 = vmatprep.subr.mxu0 0.0
    %2026 = vmatpush1.msra.mxu0 %v2016
    %2027 = vmatprep.subr.mxu0 0.0
    %2028 = vmatpush1.msra.mxu0 %v2017
    %2029 = vmatprep.subr.mxu0 0.0
    %2030 = vmatpush1.msra.mxu0 %v2018
    %2031 = vmatprep.subr.mxu0 0.0
    %2032 = vmatpush1.msra.mxu0 %v2019
    %2033 = vmatprep.subr.mxu0 0.0
    %2034 = vmatpush1.msra.mxu0 %v2020
    %2035 = vmatprep.subr.mxu0 0.0
    %2036 = vmatpush1.msra.mxu0 %v2021
    %2037 = vmatprep.subr.mxu0 0.0
    %2038 = vmatpush1.msra.mxu0 %v2022
    %2039 = vmatprep.subr.mxu0 0.0
    %2040 = vmatpush1.msra.mxu0 %v2023
    %2041 = vmatprep.subr.mxu0 0.0
    %2042 = vmatpush1.msra.mxu0 %v2024
    %2043 = vmatprep.subr.mxu0 0.0
    %2044 = vmatpush1.msra.mxu0 0.0
    %2045 = vmatprep.subr.mxu0 0.0
    %2046 = vmatpush1.msra.mxu0 0.0
    %2047 = vmatprep.subr.mxu0 0.0
    %2048 = vmatpush1.msra.mxu0 0.0
    %2049 = vmatprep.subr.mxu0 0.0
    %2050 = vmatpush1.msra.mxu0 0.0
    %2051 = vmatprep.subr.mxu0 0.0
    %2052 = vmatpush1.msra.mxu0 0.0
    %2053 = vmatprep.subr.mxu0 0.0
    %2054 = vmatpush1.msra.mxu0 0.0
    %2055 = vmatprep.subr.mxu0 0.0
    %2056 = vmatpush1.msra.mxu0 0.0
    %2057 = vmatprep.subr.mxu0 0.0
    %2058 = vmatpush1.msra.mxu0 0.0
    %2059 = vmatprep.subr.mxu0 0.0
    %2060 = vmatpush1.msra.mxu0 0.0
    %2061 = vmatprep.subr.mxu0 0.0
    %2062 = vmatpush1.msra.mxu0 0.0
    %2063 = vmatprep.subr.mxu0 0.0
    %2064 = vmatpush1.msra.mxu0 0.0
    %2065 = vmatprep.subr.mxu0 0.0
    %2066 = vmatpush1.msra.mxu0 0.0
    %2067 = vmatprep.subr.mxu0 0.0
    %2068 = vmatpush1.msra.mxu0 0.0
    %2069 = vmatprep.subr.mxu0 0.0
    %2070 = vmatpush1.msra.mxu0 0.0
    %2071 = vmatprep.subr.mxu0 0.0
    %2072 = vmatpush1.msra.mxu0 0.0
    %2073 = vmatprep.subr.mxu0 0.0
    %2074 = vmatpush1.msra.mxu0 0.0
    %2075 = vmatprep.subr.mxu0 0.0
    %2076 = vmatpush1.msra.mxu0 0.0
    %2077 = vmatprep.subr.mxu0 0.0
    %2078 = vmatpush1.msra.mxu0 0.0
    %2079 = vmatprep.subr.mxu0 0.0
    %2080 = vmatpush1.msra.mxu0 0.0
    %2081 = vmatprep.subr.mxu0 0.0
    %2082 = vmatpush1.msra.mxu0 0.0
    %2083 = vmatprep.subr.mxu0 0.0
    %2084 = vmatpush1.msra.mxu0 0.0
    %2085 = vmatprep.subr.mxu0 0.0
    %2086 = vmatpush1.msra.mxu0 0.0
    %2087 = vmatprep.subr.mxu0 0.0
    %2088 = vmatpush1.msra.mxu0 0.0
    %2089 = vmatprep.mubr.f32.mxu0 0.0
    %2090 = vmatmul.mubr.f32.gmra.mrb[0].mxu0 %v1942
    %v2091 = vpop.f32.mrb[0].mxu0
    %v2092 = vadd.f32 0.0, %v2091
    %v2093 = vpop.f32.mrb[0].mxu0
    %2094 = vdwg.mxu0
    %v2095 = vadd.f32 %v1929, %v2092
    %v2096 = vmax.f32 %v2014, %v2095
    %v2097 = vld [vmem:[%s9] sm:$0xf]
    %vm2098 = vcmask 64512
    %v2100 = vsel %vm2098, %v2097, 0
    %2102 = vmatprep.subr.mxu0 0.0
    %2103 = vmatpush1.msra.mxu0 %v2096
    %2104 = vmatprep.subr.mxu0 0.0
    %2105 = vmatpush1.msra.mxu0 0.0
    %2106 = vmatprep.subr.mxu0 0.0
    %2107 = vmatpush1.msra.mxu0 0.0
    %2108 = vmatprep.subr.mxu0 0.0
    %2109 = vmatpush1.msra.mxu0 0.0
    %2110 = vmatprep.subr.mxu0 0.0
    %2111 = vmatpush1.msra.mxu0 0.0
    %2112 = vmatprep.subr.mxu0 0.0
    %2113 = vmatpush1.msra.mxu0 0.0
    %2114 = vmatprep.subr.mxu0 0.0
    %2115 = vmatpush1.msra.mxu0 0.0
    %2116 = vmatprep.subr.mxu0 0.0
    %2117 = vmatpush1.msra.mxu0 0.0
    %2118 = vmatprep.subr.mxu0 0.0
    %2119 = vmatpush1.msra.mxu0 0.0
    %2120 = vmatprep.subr.mxu0 0.0
    %2121 = vmatpush1.msra.mxu0 0.0
    %2122 = vmatprep.subr.mxu0 0.0
    %2123 = vmatpush1.msra.mxu0 0.0
    %2124 = vmatprep.subr.mxu0 0.0
    %2125 = vmatpush1.msra.mxu0 0.0
    %2126 = vmatprep.subr.mxu0 0.0
    %2127 = vmatpush1.msra.mxu0 0.0
    %2128 = vmatprep.subr.mxu0 0.0
    %2129 = vmatpush1.msra.mxu0 0.0
    %2130 = vmatprep.subr.mxu0 0.0
    %2131 = vmatpush1.msra.mxu0 0.0
    %2132 = vmatprep.subr.mxu0 0.0
    %2133 = vmatpush1.msra.mxu0 0.0
    %2134 = vmatprep.subr.mxu0 0.0
    %2135 = vmatpush1.msra.mxu0 0.0
    %2136 = vmatprep.subr.mxu0 0.0
    %2137 = vmatpush1.msra.mxu0 0.0
    %2138 = vmatprep.subr.mxu0 0.0
    %2139 = vmatpush1.msra.mxu0 0.0
    %2140 = vmatprep.subr.mxu0 0.0
    %2141 = vmatpush1.msra.mxu0 0.0
    %2142 = vmatprep.subr.mxu0 0.0
    %2143 = vmatpush1.msra.mxu0 0.0
    %2144 = vmatprep.subr.mxu0 0.0
    %2145 = vmatpush1.msra.mxu0 0.0
    %2146 = vmatprep.subr.mxu0 0.0
    %2147 = vmatpush1.msra.mxu0 0.0
    %2148 = vmatprep.subr.mxu0 0.0
    %2149 = vmatpush1.msra.mxu0 0.0
    %2150 = vmatprep.subr.mxu0 0.0
    %2151 = vmatpush1.msra.mxu0 0.0
    %2152 = vmatprep.subr.mxu0 0.0
    %2153 = vmatpush1.msra.mxu0 0.0
    %2154 = vmatprep.subr.mxu0 0.0
    %2155 = vmatpush1.msra.mxu0 0.0
    %2156 = vmatprep.subr.mxu0 0.0
    %2157 = vmatpush1.msra.mxu0 0.0
    %2158 = vmatprep.subr.mxu0 0.0
    %2159 = vmatpush1.msra.mxu0 0.0
    %2160 = vmatprep.subr.mxu0 0.0
    %2161 = vmatpush1.msra.mxu0 0.0
    %2162 = vmatprep.subr.mxu0 0.0
    %2163 = vmatpush1.msra.mxu0 0.0
    %2164 = vmatprep.subr.mxu0 0.0
    %2165 = vmatpush1.msra.mxu0 0.0
    %2166 = vmatprep.mubr.f32.mxu0 0.0
    %2167 = vmatmul.mubr.f32.gmra.mrb[0].mxu0 %v2100
    %v2168 = vpop.f32.mrb[0].mxu0
    %v2169 = vadd.f32 0.0, %v2168
    %v2170 = vpop.f32.mrb[0].mxu0
    %2171 = vdwg.mxu0
    %v2172 = vld [vmem:[%s10] sm:$0xf]
    %v2174 = vsel %vm2098, %v2172, 0
    %2176 = vmatprep.subr.mxu0 0.0
    %2177 = vmatpush1.msra.mxu0 %v2096
    %2178 = vmatprep.subr.mxu0 0.0
    %2179 = vmatpush1.msra.mxu0 0.0
    %2180 = vmatprep.subr.mxu0 0.0
    %2181 = vmatpush1.msra.mxu0 0.0
    %2182 = vmatprep.subr.mxu0 0.0
    %2183 = vmatpush1.msra.mxu0 0.0
    %2184 = vmatprep.subr.mxu0 0.0
    %2185 = vmatpush1.msra.mxu0 0.0
    %2186 = vmatprep.subr.mxu0 0.0
    %2187 = vmatpush1.msra.mxu0 0.0
    %2188 = vmatprep.subr.mxu0 0.0
    %2189 = vmatpush1.msra.mxu0 0.0
    %2190 = vmatprep.subr.mxu0 0.0
    %2191 = vmatpush1.msra.mxu0 0.0
    %2192 = vmatprep.subr.mxu0 0.0
    %2193 = vmatpush1.msra.mxu0 0.0
    %2194 = vmatprep.subr.mxu0 0.0
    %2195 = vmatpush1.msra.mxu0 0.0
    %2196 = vmatprep.subr.mxu0 0.0
    %2197 = vmatpush1.msra.mxu0 0.0
    %2198 = vmatprep.subr.mxu0 0.0
    %2199 = vmatpush1.msra.mxu0 0.0
    %2200 = vmatprep.subr.mxu0 0.0
    %2201 = vmatpush1.msra.mxu0 0.0
    %2202 = vmatprep.subr.mxu0 0.0
    %2203 = vmatpush1.msra.mxu0 0.0
    %2204 = vmatprep.subr.mxu0 0.0
    %2205 = vmatpush1.msra.mxu0 0.0
    %2206 = vmatprep.subr.mxu0 0.0
    %2207 = vmatpush1.msra.mxu0 0.0
    %2208 = vmatprep.subr.mxu0 0.0
    %2209 = vmatpush1.msra.mxu0 0.0
    %2210 = vmatprep.subr.mxu0 0.0
    %2211 = vmatpush1.msra.mxu0 0.0
    %2212 = vmatprep.subr.mxu0 0.0
    %2213 = vmatpush1.msra.mxu0 0.0
    %2214 = vmatprep.subr.mxu0 0.0
    %2215 = vmatpush1.msra.mxu0 0.0
    %2216 = vmatprep.subr.mxu0 0.0
    %2217 = vmatpush1.msra.mxu0 0.0
    %2218 = vmatprep.subr.mxu0 0.0
    %2219 = vmatpush1.msra.mxu0 0.0
    %2220 = vmatprep.subr.mxu0 0.0
    %2221 = vmatpush1.msra.mxu0 0.0
    %2222 = vmatprep.subr.mxu0 0.0
    %2223 = vmatpush1.msra.mxu0 0.0
    %2224 = vmatprep.subr.mxu0 0.0
    %2225 = vmatpush1.msra.mxu0 0.0
    %2226 = vmatprep.subr.mxu0 0.0
    %2227 = vmatpush1.msra.mxu0 0.0
    %2228 = vmatprep.subr.mxu0 0.0
    %2229 = vmatpush1.msra.mxu0 0.0
    %2230 = vmatprep.subr.mxu0 0.0
    %2231 = vmatpush1.msra.mxu0 0.0
    %2232 = vmatprep.subr.mxu0 0.0
    %2233 = vmatpush1.msra.mxu0 0.0
    %2234 = vmatprep.subr.mxu0 0.0
    %2235 = vmatpush1.msra.mxu0 0.0
    %2236 = vmatprep.subr.mxu0 0.0
    %2237 = vmatpush1.msra.mxu0 0.0
    %2238 = vmatprep.subr.mxu0 0.0
    %2239 = vmatpush1.msra.mxu0 0.0
    %2240 = vmatprep.mubr.f32.mxu0 0.0
    %2241 = vmatmul.mubr.f32.gmra.mrb[0].mxu0 %v2174
    %v2242 = vpop.f32.mrb[0].mxu0
    %v2243 = vadd.f32 0.0, %v2242
    %v2244 = vpop.f32.mrb[0].mxu0
    %2245 = vdwg.mxu0
    %v2246 = vmax.f32 %v2169, %v2243
    %v2247 = vld [vmem:[%s8] sm:$0x1]
    %v2249 = vlaneseq
    %v2250 = vshrl.u32 %v2249, 7
    %v2251 = vsub.s32 0, %v2250
    %v2252 = vrot.slane %v2247, %v2251
    %v2254 = vadd.f32 %v2246, %v2252
    %v2255 = vmax.f32 %v2254, 0.0
    %vm2256 = vcmask 519168
    %2257 = vst.msk [vmem:[#allocation3] sm:$0xf] %vm2256, %v2255
    %v2258 = vld [vmem:[#allocation3] sm:$0x1]
    %v2259 = vld [vmem:[%s11] sm:$0xff]
    %v2260 = vld [vmem:[%s11 + $0x8] sm:$0xff]
    %v2261 = vld [vmem:[%s11 + $0x10] sm:$0xff]
    %v2262 = vld [vmem:[%s11 + $0x18] sm:$0xff]
    %v2263 = vld [vmem:[%s11 + $0x20] sm:$0xff]
    %v2264 = vld [vmem:[%s11 + $0x28] sm:$0xff]
    %v2265 = vld [vmem:[%s11 + $0x30] sm:$0xff]
    %v2266 = vld [vmem:[%s11 + $0x38] sm:$0xff]
    %v2267 = vld [vmem:[#allocation3 + $0x1] sm:$0x1]
    %s2268 = scalar_lea.vmem %s11, 64
    %v2269 = vld [vmem:[%s2268] sm:$0xff]
    %v2270 = vld [vmem:[%s2268 + $0x8] sm:$0xff]
    %v2271 = vld [vmem:[%s2268 + $0x10] sm:$0xff]
    %v2272 = vld [vmem:[%s2268 + $0x18] sm:$0xff]
    %v2273 = vld [vmem:[%s2268 + $0x20] sm:$0xff]
    %v2274 = vld [vmem:[%s2268 + $0x28] sm:$0xff]
    %v2275 = vld [vmem:[%s2268 + $0x30] sm:$0xff]
    %v2276 = vld [vmem:[%s2268 + $0x38] sm:$0xff]
    %vm2277 = vcmask 523264
    %v2279 = vsel %vm2277, %v2267, 0
    %2281 = vmatprep.subr.mxu0 0.0
    %2282 = vmatpush1.msra.mxu0 %v2269
    %2283 = vmatprep.subr.mxu0 0.0
    %2284 = vmatpush1.msra.mxu0 %v2270
    %2285 = vmatprep.subr.mxu0 0.0
    %2286 = vmatpush1.msra.mxu0 %v2271
    %2287 = vmatprep.subr.mxu0 0.0
    %2288 = vmatpush1.msra.mxu0 %v2272
    %2289 = vmatprep.subr.mxu0 0.0
    %2290 = vmatpush1.msra.mxu0 %v2273
    %2291 = vmatprep.subr.mxu0 0.0
    %2292 = vmatpush1.msra.mxu0 %v2274
    %2293 = vmatprep.subr.mxu0 0.0
    %2294 = vmatpush1.msra.mxu0 %v2275
    %2295 = vmatprep.subr.mxu0 0.0
    %2296 = vmatpush1.msra.mxu0 %v2276
    %2297 = vmatprep.subr.mxu0 0.0
    %2298 = vmatpush1.msra.mxu0 0.0
    %2299 = vmatprep.subr.mxu0 0.0
    %2300 = vmatpush1.msra.mxu0 0.0
    %2301 = vmatprep.subr.mxu0 0.0
    %2302 = vmatpush1.msra.mxu0 0.0
    %2303 = vmatprep.subr.mxu0 0.0
    %2304 = vmatpush1.msra.mxu0 0.0
    %2305 = vmatprep.subr.mxu0 0.0
    %2306 = vmatpush1.msra.mxu0 0.0
    %2307 = vmatprep.subr.mxu0 0.0
    %2308 = vmatpush1.msra.mxu0 0.0
    %2309 = vmatprep.subr.mxu0 0.0
    %2310 = vmatpush1.msra.mxu0 0.0
    %2311 = vmatprep.subr.mxu0 0.0
    %2312 = vmatpush1.msra.mxu0 0.0
    %2313 = vmatprep.subr.mxu0 0.0
    %2314 = vmatpush1.msra.mxu0 0.0
    %2315 = vmatprep.subr.mxu0 0.0
    %2316 = vmatpush1.msra.mxu0 0.0
    %2317 = vmatprep.subr.mxu0 0.0
    %2318 = vmatpush1.msra.mxu0 0.0
    %2319 = vmatprep.subr.mxu0 0.0
    %2320 = vmatpush1.msra.mxu0 0.0
    %2321 = vmatprep.subr.mxu0 0.0
    %2322 = vmatpush1.msra.mxu0 0.0
    %2323 = vmatprep.subr.mxu0 0.0
    %2324 = vmatpush1.msra.mxu0 0.0
    %2325 = vmatprep.subr.mxu0 0.0
    %2326 = vmatpush1.msra.mxu0 0.0
    %2327 = vmatprep.subr.mxu0 0.0
    %2328 = vmatpush1.msra.mxu0 0.0
    %2329 = vmatprep.subr.mxu0 0.0
    %2330 = vmatpush1.msra.mxu0 0.0
    %2331 = vmatprep.subr.mxu0 0.0
    %2332 = vmatpush1.msra.mxu0 0.0
    %2333 = vmatprep.subr.mxu0 0.0
    %2334 = vmatpush1.msra.mxu0 0.0
    %2335 = vmatprep.subr.mxu0 0.0
    %2336 = vmatpush1.msra.mxu0 0.0
    %2337 = vmatprep.subr.mxu0 0.0
    %2338 = vmatpush1.msra.mxu0 0.0
    %2339 = vmatprep.subr.mxu0 0.0
    %2340 = vmatpush1.msra.mxu0 0.0
    %2341 = vmatprep.subr.mxu0 0.0
    %2342 = vmatpush1.msra.mxu0 0.0
    %2343 = vmatprep.subr.mxu0 0.0
    %2344 = vmatpush1.msra.mxu0 0.0
    %2345 = vmatprep.mubr.f32.mxu0 0.0
    %2346 = vmatmul.mubr.f32.gmra.mrb[0].mxu0 %v2279
    %v2347 = vpop.f32.mrb[0].mxu0
    %v2348 = vadd.f32 0.0, %v2347
    %v2349 = vpop.f32.mrb[0].mxu0
    %2350 = vdwg.mxu0
    %v2352 = vsel %vm2277, %v2258, 0
    %2354 = vmatprep.subr.mxu0 0.0
    %2355 = vmatpush1.msra.mxu0 %v2259
    %2356 = vmatprep.subr.mxu0 0.0
    %2357 = vmatpush1.msra.mxu0 %v2260
    %2358 = vmatprep.subr.mxu0 0.0
    %2359 = vmatpush1.msra.mxu0 %v2261
    %2360 = vmatprep.subr.mxu0 0.0
    %2361 = vmatpush1.msra.mxu0 %v2262
    %2362 = vmatprep.subr.mxu0 0.0
    %2363 = vmatpush1.msra.mxu0 %v2263
    %2364 = vmatprep.subr.mxu0 0.0
    %2365 = vmatpush1.msra.mxu0 %v2264
    %2366 = vmatprep.subr.mxu0 0.0
    %2367 = vmatpush1.msra.mxu0 %v2265
    %2368 = vmatprep.subr.mxu0 0.0
    %2369 = vmatpush1.msra.mxu0 %v2266
    %2370 = vmatprep.subr.mxu0 0.0
    %2371 = vmatpush1.msra.mxu0 0.0
    %2372 = vmatprep.subr.mxu0 0.0
    %2373 = vmatpush1.msra.mxu0 0.0
    %2374 = vmatprep.subr.mxu0 0.0
    %2375 = vmatpush1.msra.mxu0 0.0
    %2376 = vmatprep.subr.mxu0 0.0
    %2377 = vmatpush1.msra.mxu0 0.0
    %2378 = vmatprep.subr.mxu0 0.0
    %2379 = vmatpush1.msra.mxu0 0.0
    %2380 = vmatprep.subr.mxu0 0.0
    %2381 = vmatpush1.msra.mxu0 0.0
    %2382 = vmatprep.subr.mxu0 0.0
    %2383 = vmatpush1.msra.mxu0 0.0
    %2384 = vmatprep.subr.mxu0 0.0
    %2385 = vmatpush1.msra.mxu0 0.0
    %2386 = vmatprep.subr.mxu0 0.0
    %2387 = vmatpush1.msra.mxu0 0.0
    %2388 = vmatprep.subr.mxu0 0.0
    %2389 = vmatpush1.msra.mxu0 0.0
    %2390 = vmatprep.subr.mxu0 0.0
    %2391 = vmatpush1.msra.mxu0 0.0
    %2392 = vmatprep.subr.mxu0 0.0
    %2393 = vmatpush1.msra.mxu0 0.0
    %2394 = vmatprep.subr.mxu0 0.0
    %2395 = vmatpush1.msra.mxu0 0.0
    %2396 = vmatprep.subr.mxu0 0.0
    %2397 = vmatpush1.msra.mxu0 0.0
    %2398 = vmatprep.subr.mxu0 0.0
    %2399 = vmatpush1.msra.mxu0 0.0
    %2400 = vmatprep.subr.mxu0 0.0
    %2401 = vmatpush1.msra.mxu0 0.0
    %2402 = vmatprep.subr.mxu0 0.0
    %2403 = vmatpush1.msra.mxu0 0.0
    %2404 = vmatprep.subr.mxu0 0.0
    %2405 = vmatpush1.msra.mxu0 0.0
    %2406 = vmatprep.subr.mxu0 0.0
    %2407 = vmatpush1.msra.mxu0 0.0
    %2408 = vmatprep.subr.mxu0 0.0
    %2409 = vmatpush1.msra.mxu0 0.0
    %2410 = vmatprep.subr.mxu0 0.0
    %2411 = vmatpush1.msra.mxu0 0.0
    %2412 = vmatprep.subr.mxu0 0.0
    %2413 = vmatpush1.msra.mxu0 0.0
    %2414 = vmatprep.subr.mxu0 0.0
    %2415 = vmatpush1.msra.mxu0 0.0
    %2416 = vmatprep.subr.mxu0 0.0
    %2417 = vmatpush1.msra.mxu0 0.0
    %2418 = vmatprep.mubr.f32.mxu0 0.0
    %2419 = vmatmul.mubr.f32.gmra.mrb[0].mxu0 %v2352
    %v2420 = vpop.f32.mrb[0].mxu0
    %v2421 = vadd.f32 %v2348, %v2420
    %v2422 = vpop.f32.mrb[0].mxu0
    %2423 = vdwg.mxu0
    %v2424 = vld [vmem:[#allocation3 + $0x2] sm:$0x1]
    %s2425 = scalar_lea.vmem %s11, 128
    %v2426 = vld [vmem:[%s2425] sm:$0xff]
    %v2427 = vld [vmem:[%s2425 + $0x8] sm:$0xff]
    %v2428 = vld [vmem:[%s2425 + $0x10] sm:$0xff]
    %v2429 = vld [vmem:[%s2425 + $0x18] sm:$0xff]
    %v2430 = vld [vmem:[%s2425 + $0x20] sm:$0xff]
    %v2431 = vld [vmem:[%s2425 + $0x28] sm:$0xff]
    %v2432 = vld [vmem:[%s2425 + $0x30] sm:$0xff]
    %v2433 = vld [vmem:[%s2425 + $0x38] sm:$0xff]
    %v2435 = vsel %vm2277, %v2424, 0
    %2437 = vmatprep.subr.mxu0 0.0
    %2438 = vmatpush1.msra.mxu0 %v2426
    %2439 = vmatprep.subr.mxu0 0.0
    %2440 = vmatpush1.msra.mxu0 %v2427
    %2441 = vmatprep.subr.mxu0 0.0
    %2442 = vmatpush1.msra.mxu0 %v2428
    %2443 = vmatprep.subr.mxu0 0.0
    %2444 = vmatpush1.msra.mxu0 %v2429
    %2445 = vmatprep.subr.mxu0 0.0
    %2446 = vmatpush1.msra.mxu0 %v2430
    %2447 = vmatprep.subr.mxu0 0.0
    %2448 = vmatpush1.msra.mxu0 %v2431
    %2449 = vmatprep.subr.mxu0 0.0
    %2450 = vmatpush1.msra.mxu0 %v2432
    %2451 = vmatprep.subr.mxu0 0.0
    %2452 = vmatpush1.msra.mxu0 %v2433
    %2453 = vmatprep.subr.mxu0 0.0
    %2454 = vmatpush1.msra.mxu0 0.0
    %2455 = vmatprep.subr.mxu0 0.0
    %2456 = vmatpush1.msra.mxu0 0.0
    %2457 = vmatprep.subr.mxu0 0.0
    %2458 = vmatpush1.msra.mxu0 0.0
    %2459 = vmatprep.subr.mxu0 0.0
    %2460 = vmatpush1.msra.mxu0 0.0
    %2461 = vmatprep.subr.mxu0 0.0
    %2462 = vmatpush1.msra.mxu0 0.0
    %2463 = vmatprep.subr.mxu0 0.0
    %2464 = vmatpush1.msra.mxu0 0.0
    %2465 = vmatprep.subr.mxu0 0.0
    %2466 = vmatpush1.msra.mxu0 0.0
    %2467 = vmatprep.subr.mxu0 0.0
    %2468 = vmatpush1.msra.mxu0 0.0
    %2469 = vmatprep.subr.mxu0 0.0
    %2470 = vmatpush1.msra.mxu0 0.0
    %2471 = vmatprep.subr.mxu0 0.0
    %2472 = vmatpush1.msra.mxu0 0.0
    %2473 = vmatprep.subr.mxu0 0.0
    %2474 = vmatpush1.msra.mxu0 0.0
    %2475 = vmatprep.subr.mxu0 0.0
    %2476 = vmatpush1.msra.mxu0 0.0
    %2477 = vmatprep.subr.mxu0 0.0
    %2478 = vmatpush1.msra.mxu0 0.0
    %2479 = vmatprep.subr.mxu0 0.0
    %2480 = vmatpush1.msra.mxu0 0.0
    %2481 = vmatprep.subr.mxu0 0.0
    %2482 = vmatpush1.msra.mxu0 0.0
    %2483 = vmatprep.subr.mxu0 0.0
    %2484 = vmatpush1.msra.mxu0 0.0
    %2485 = vmatprep.subr.mxu0 0.0
    %2486 = vmatpush1.msra.mxu0 0.0
    %2487 = vmatprep.subr.mxu0 0.0
    %2488 = vmatpush1.msra.mxu0 0.0
    %2489 = vmatprep.subr.mxu0 0.0
    %2490 = vmatpush1.msra.mxu0 0.0
    %2491 = vmatprep.subr.mxu0 0.0
    %2492 = vmatpush1.msra.mxu0 0.0
    %2493 = vmatprep.subr.mxu0 0.0
    %2494 = vmatpush1.msra.mxu0 0.0
    %2495 = vmatprep.subr.mxu0 0.0
    %2496 = vmatpush1.msra.mxu0 0.0
    %2497 = vmatprep.subr.mxu0 0.0
    %2498 = vmatpush1.msra.mxu0 0.0
    %2499 = vmatprep.subr.mxu0 0.0
    %2500 = vmatpush1.msra.mxu0 0.0
    %2501 = vmatprep.mubr.f32.mxu0 0.0
    %2502 = vmatmul.mubr.f32.gmra.mrb[0].mxu0 %v2435
    %v2503 = vpop.f32.mrb[0].mxu0
    %v2504 = vadd.f32 0.0, %v2503
    %v2505 = vpop.f32.mrb[0].mxu0
    %2506 = vdwg.mxu0
    %v2507 = vadd.f32 %v2421, %v2504
    %v2508 = vld [vmem:[#allocation3 + $0x3] sm:$0x1]
    %s2509 = scalar_lea.vmem %s11, 192
    %v2510 = vld [vmem:[%s2509] sm:$0xff]
    %v2511 = vld [vmem:[%s2509 + $0x8] sm:$0xff]
    %v2512 = vld [vmem:[%s2509 + $0x10] sm:$0xff]
    %v2513 = vld [vmem:[%s2509 + $0x18] sm:$0xff]
    %v2514 = vld [vmem:[%s2509 + $0x20] sm:$0xff]
    %v2515 = vld [vmem:[%s2509 + $0x28] sm:$0xff]
    %v2516 = vld [vmem:[%s2509 + $0x30] sm:$0xff]
    %v2517 = vld [vmem:[%s2509 + $0x38] sm:$0xff]
    %v2519 = vsel %vm2277, %v2508, 0
    %2521 = vmatprep.subr.mxu0 0.0
    %2522 = vmatpush1.msra.mxu0 %v2510
    %2523 = vmatprep.subr.mxu0 0.0
    %2524 = vmatpush1.msra.mxu0 %v2511
    %2525 = vmatprep.subr.mxu0 0.0
    %2526 = vmatpush1.msra.mxu0 %v2512
    %2527 = vmatprep.subr.mxu0 0.0
    %2528 = vmatpush1.msra.mxu0 %v2513
    %2529 = vmatprep.subr.mxu0 0.0
    %2530 = vmatpush1.msra.mxu0 %v2514
    %2531 = vmatprep.subr.mxu0 0.0
    %2532 = vmatpush1.msra.mxu0 %v2515
    %2533 = vmatprep.subr.mxu0 0.0
    %2534 = vmatpush1.msra.mxu0 %v2516
    %2535 = vmatprep.subr.mxu0 0.0
    %2536 = vmatpush1.msra.mxu0 %v2517
    %2537 = vmatprep.subr.mxu0 0.0
    %2538 = vmatpush1.msra.mxu0 0.0
    %2539 = vmatprep.subr.mxu0 0.0
    %2540 = vmatpush1.msra.mxu0 0.0
    %2541 = vmatprep.subr.mxu0 0.0
    %2542 = vmatpush1.msra.mxu0 0.0
    %2543 = vmatprep.subr.mxu0 0.0
    %2544 = vmatpush1.msra.mxu0 0.0
    %2545 = vmatprep.subr.mxu0 0.0
    %2546 = vmatpush1.msra.mxu0 0.0
    %2547 = vmatprep.subr.mxu0 0.0
    %2548 = vmatpush1.msra.mxu0 0.0
    %2549 = vmatprep.subr.mxu0 0.0
    %2550 = vmatpush1.msra.mxu0 0.0
    %2551 = vmatprep.subr.mxu0 0.0
    %2552 = vmatpush1.msra.mxu0 0.0
    %2553 = vmatprep.subr.mxu0 0.0
    %2554 = vmatpush1.msra.mxu0 0.0
    %2555 = vmatprep.subr.mxu0 0.0
    %2556 = vmatpush1.msra.mxu0 0.0
    %2557 = vmatprep.subr.mxu0 0.0
    %2558 = vmatpush1.msra.mxu0 0.0
    %2559 = vmatprep.subr.mxu0 0.0
    %2560 = vmatpush1.msra.mxu0 0.0
    %2561 = vmatprep.subr.mxu0 0.0
    %2562 = vmatpush1.msra.mxu0 0.0
    %2563 = vmatprep.subr.mxu0 0.0
    %2564 = vmatpush1.msra.mxu0 0.0
    %2565 = vmatprep.subr.mxu0 0.0
    %2566 = vmatpush1.msra.mxu0 0.0
    %2567 = vmatprep.subr.mxu0 0.0
    %2568 = vmatpush1.msra.mxu0 0.0
    %2569 = vmatprep.subr.mxu0 0.0
    %2570 = vmatpush1.msra.mxu0 0.0
    %2571 = vmatprep.subr.mxu0 0.0
    %2572 = vmatpush1.msra.mxu0 0.0
    %2573 = vmatprep.subr.mxu0 0.0
    %2574 = vmatpush1.msra.mxu0 0.0
    %2575 = vmatprep.subr.mxu0 0.0
    %2576 = vmatpush1.msra.mxu0 0.0
    %2577 = vmatprep.subr.mxu0 0.0
    %2578 = vmatpush1.msra.mxu0 0.0
    %2579 = vmatprep.subr.mxu0 0.0
    %2580 = vmatpush1.msra.mxu0 0.0
    %2581 = vmatprep.subr.mxu0 0.0
    %2582 = vmatpush1.msra.mxu0 0.0
    %2583 = vmatprep.subr.mxu0 0.0
    %2584 = vmatpush1.msra.mxu0 0.0
    %2585 = vmatprep.mubr.f32.mxu0 0.0
    %2586 = vmatmul.mubr.f32.gmra.mrb[0].mxu0 %v2519
    %v2587 = vpop.f32.mrb[0].mxu0
    %v2588 = vadd.f32 0.0, %v2587
    %v2589 = vpop.f32.mrb[0].mxu0
    %2590 = vdwg.mxu0
    %v2591 = vadd.f32 %v2507, %v2588
    %v2592 = vld [vmem:[%s12] sm:$0x1]
    %v2593 = vadd.f32 %v2591, %v2592
    %v2594 = vmax.f32 %v2593, 0.0
    %v2595 = vld [vmem:[%s13] sm:$0xff]
    %v2596 = vld [vmem:[%s13 + $0x8] sm:$0xff]
    %v2597 = vld [vmem:[%s13 + $0x10] sm:$0xff]
    %v2598 = vld [vmem:[%s13 + $0x18] sm:$0xff]
    %v2599 = vld [vmem:[%s13 + $0x20] sm:$0xff]
    %v2600 = vld [vmem:[%s13 + $0x28] sm:$0xff]
    %v2601 = vld [vmem:[%s13 + $0x30] sm:$0xff]
    %v2602 = vld [vmem:[%s13 + $0x38] sm:$0xff]
    %v2603 = vld [vmem:[%s13 + $0x40] sm:$0xff]
    %v2604 = vld [vmem:[%s13 + $0x48] sm:$0xff]
    %v2605 = vld [vmem:[%s13 + $0x50] sm:$0xff]
    %v2606 = vld [vmem:[%s13 + $0x58] sm:$0xff]
    %v2607 = vld [vmem:[%s13 + $0x60] sm:$0xff]
    %v2608 = vld [vmem:[%s13 + $0x68] sm:$0xff]
    %v2609 = vld [vmem:[%s13 + $0x70] sm:$0xff]
    %v2610 = vld [vmem:[%s14] sm:$0x1]
    %vm2611 = vcmask 982016
    %v2613 = vsel %vm2611, %v2594, 0
    %2615 = vmatprep.subr.mxu0 0.0
    %2616 = vmatpush1.msra.mxu0 %v2595
    %2617 = vmatprep.subr.mxu0 0.0
    %2618 = vmatpush1.msra.mxu0 %v2596
    %2619 = vmatprep.subr.mxu0 0.0
    %2620 = vmatpush1.msra.mxu0 %v2597
    %2621 = vmatprep.subr.mxu0 0.0
    %2622 = vmatpush1.msra.mxu0 %v2598
    %2623 = vmatprep.subr.mxu0 0.0
    %2624 = vmatpush1.msra.mxu0 %v2599
    %2625 = vmatprep.subr.mxu0 0.0
    %2626 = vmatpush1.msra.mxu0 %v2600
    %2627 = vmatprep.subr.mxu0 0.0
    %2628 = vmatpush1.msra.mxu0 %v2601
    %2629 = vmatprep.subr.mxu0 0.0
    %2630 = vmatpush1.msra.mxu0 %v2602
    %2631 = vmatprep.subr.mxu0 0.0
    %2632 = vmatpush1.msra.mxu0 %v2603
    %2633 = vmatprep.subr.mxu0 0.0
    %2634 = vmatpush1.msra.mxu0 %v2604
    %2635 = vmatprep.subr.mxu0 0.0
    %2636 = vmatpush1.msra.mxu0 %v2605
    %2637 = vmatprep.subr.mxu0 0.0
    %2638 = vmatpush1.msra.mxu0 %v2606
    %2639 = vmatprep.subr.mxu0 0.0
    %2640 = vmatpush1.msra.mxu0 %v2607
    %2641 = vmatprep.subr.mxu0 0.0
    %2642 = vmatpush1.msra.mxu0 %v2608
    %2643 = vmatprep.subr.mxu0 0.0
    %2644 = vmatpush1.msra.mxu0 %v2609
    %2645 = vmatprep.subr.mxu0 0.0
    %2646 = vmatpush1.msra.mxu0 0.0
    %2647 = vmatprep.subr.mxu0 0.0
    %2648 = vmatpush1.msra.mxu0 0.0
    %2649 = vmatprep.subr.mxu0 0.0
    %2650 = vmatpush1.msra.mxu0 0.0
    %2651 = vmatprep.subr.mxu0 0.0
    %2652 = vmatpush1.msra.mxu0 0.0
    %2653 = vmatprep.subr.mxu0 0.0
    %2654 = vmatpush1.msra.mxu0 0.0
    %2655 = vmatprep.subr.mxu0 0.0
    %2656 = vmatpush1.msra.mxu0 0.0
    %2657 = vmatprep.subr.mxu0 0.0
    %2658 = vmatpush1.msra.mxu0 0.0
    %2659 = vmatprep.subr.mxu0 0.0
    %2660 = vmatpush1.msra.mxu0 0.0
    %2661 = vmatprep.subr.mxu0 0.0
    %2662 = vmatpush1.msra.mxu0 0.0
    %2663 = vmatprep.subr.mxu0 0.0
    %2664 = vmatpush1.msra.mxu0 0.0
    %2665 = vmatprep.subr.mxu0 0.0
    %2666 = vmatpush1.msra.mxu0 0.0
    %2667 = vmatprep.subr.mxu0 0.0
    %2668 = vmatpush1.msra.mxu0 0.0
    %2669 = vmatprep.subr.mxu0 0.0
    %2670 = vmatpush1.msra.mxu0 0.0
    %2671 = vmatprep.subr.mxu0 0.0
    %2672 = vmatpush1.msra.mxu0 0.0
    %2673 = vmatprep.subr.mxu0 0.0
    %2674 = vmatpush1.msra.mxu0 0.0
    %2675 = vmatprep.subr.mxu0 0.0
    %2676 = vmatpush1.msra.mxu0 0.0
    %2677 = vmatprep.subr.mxu0 0.0
    %2678 = vmatpush1.msra.mxu0 0.0
    %2679 = vmatprep.mubr.f32.mxu0 0.0
    %2680 = vmatmul.mubr.f32.gmra.mrb[0].mxu0 %v2613
    %v2681 = vpop.f32.mrb[0].mxu0
    %v2682 = vadd.f32 %v2610, %v2681
    %v2683 = vpop.f32.mrb[0].mxu0
    %2684 = vdwg.mxu0
    %v2685 = vmax.f32 %v2682, 0.0
    %v2686 = vld [vmem:[%s15] sm:$0xff]
    %v2687 = vld [vmem:[%s15 + $0x8] sm:$0xff]
    %v2688 = vld [vmem:[%s15 + $0x10] sm:$0xff]
    %v2689 = vld [vmem:[%s15 + $0x18] sm:$0xff]
    %v2690 = vld [vmem:[%s15 + $0x20] sm:$0xff]
    %v2691 = vld [vmem:[%s15 + $0x28] sm:$0xff]
    %v2692 = vld [vmem:[%s15 + $0x30] sm:$0xff]
    %v2693 = vld [vmem:[%s15 + $0x38] sm:$0xff]
    %v2694 = vld [vmem:[%s15 + $0x40] sm:$0xff]
    %v2695 = vld [vmem:[%s15 + $0x48] sm:$0xff]
    %v2696 = vld [vmem:[%s15 + $0x50] sm:$0xf]
    %v2697 = vld [vmem:[%s16] sm:$0x1]
    %v2699 = vsel %vm97, %v2685, 0
    %v2702 = vsel %vm107, %v2696, 0
    %2704 = vmatprep.subr.mxu0 0.0
    %2705 = vmatpush1.msra.mxu0 %v2686
    %2706 = vmatprep.subr.mxu0 0.0
    %2707 = vmatpush1.msra.mxu0 %v2687
    %2708 = vmatprep.subr.mxu0 0.0
    %2709 = vmatpush1.msra.mxu0 %v2688
    %2710 = vmatprep.subr.mxu0 0.0
    %2711 = vmatpush1.msra.mxu0 %v2689
    %2712 = vmatprep.subr.mxu0 0.0
    %2713 = vmatpush1.msra.mxu0 %v2690
    %2714 = vmatprep.subr.mxu0 0.0
    %2715 = vmatpush1.msra.mxu0 %v2691
    %2716 = vmatprep.subr.mxu0 0.0
    %2717 = vmatpush1.msra.mxu0 %v2692
    %2718 = vmatprep.subr.mxu0 0.0
    %2719 = vmatpush1.msra.mxu0 %v2693
    %2720 = vmatprep.subr.mxu0 0.0
    %2721 = vmatpush1.msra.mxu0 %v2694
    %2722 = vmatprep.subr.mxu0 0.0
    %2723 = vmatpush1.msra.mxu0 %v2695
    %2724 = vmatprep.subr.mxu0 0.0
    %2725 = vmatpush1.msra.mxu0 %v2702
    %2726 = vmatprep.subr.mxu0 0.0
    %2727 = vmatpush1.msra.mxu0 0.0
    %2728 = vmatprep.subr.mxu0 0.0
    %2729 = vmatpush1.msra.mxu0 0.0
    %2730 = vmatprep.subr.mxu0 0.0
    %2731 = vmatpush1.msra.mxu0 0.0
    %2732 = vmatprep.subr.mxu0 0.0
    %2733 = vmatpush1.msra.mxu0 0.0
    %2734 = vmatprep.subr.mxu0 0.0
    %2735 = vmatpush1.msra.mxu0 0.0
    %2736 = vmatprep.subr.mxu0 0.0
    %2737 = vmatpush1.msra.mxu0 0.0
    %2738 = vmatprep.subr.mxu0 0.0
    %2739 = vmatpush1.msra.mxu0 0.0
    %2740 = vmatprep.subr.mxu0 0.0
    %2741 = vmatpush1.msra.mxu0 0.0
    %2742 = vmatprep.subr.mxu0 0.0
    %2743 = vmatpush1.msra.mxu0 0.0
    %2744 = vmatprep.subr.mxu0 0.0
    %2745 = vmatpush1.msra.mxu0 0.0
    %2746 = vmatprep.subr.mxu0 0.0
    %2747 = vmatpush1.msra.mxu0 0.0
    %2748 = vmatprep.subr.mxu0 0.0
    %2749 = vmatpush1.msra.mxu0 0.0
    %2750 = vmatprep.subr.mxu0 0.0
    %2751 = vmatpush1.msra.mxu0 0.0
    %2752 = vmatprep.subr.mxu0 0.0
    %2753 = vmatpush1.msra.mxu0 0.0
    %2754 = vmatprep.subr.mxu0 0.0
    %2755 = vmatpush1.msra.mxu0 0.0
    %2756 = vmatprep.subr.mxu0 0.0
    %2757 = vmatpush1.msra.mxu0 0.0
    %2758 = vmatprep.subr.mxu0 0.0
    %2759 = vmatpush1.msra.mxu0 0.0
    %2760 = vmatprep.subr.mxu0 0.0
    %2761 = vmatpush1.msra.mxu0 0.0
    %2762 = vmatprep.subr.mxu0 0.0
    %2763 = vmatpush1.msra.mxu0 0.0
    %2764 = vmatprep.subr.mxu0 0.0
    %2765 = vmatpush1.msra.mxu0 0.0
    %2766 = vmatprep.subr.mxu0 0.0
    %2767 = vmatpush1.msra.mxu0 0.0
    %2768 = vmatprep.mubr.f32.mxu0 0.0
    %2769 = vmatmul.mubr.f32.gmra.mrb[0].mxu0 %v2699
    %v2770 = vpop.f32.mrb[0].mxu0
    %v2771 = vadd.f32 %v2697, %v2770
    %v2772 = vpop.f32.mrb[0].mxu0
    %2773 = vdwg.mxu0
    %vm2774 = vcmask 73728
    %2775 = vst.msk [vmem:[#allocation4] sm:$0x1] %vm2774, %v2771
    %v2776 = vld [vmem:[%s0 + $0x1c] sm:$0xff]
    %v2777 = vld [vmem:[%s0 + $0x24] sm:$0xff]
    %v2778 = vld [vmem:[%s0 + $0x2c] sm:$0xff]
    %v2779 = vld [vmem:[%s1] sm:$0xff]
    %v2780 = vld [vmem:[%s1 + $0x8] sm:$0xff]
    %v2781 = vld [vmem:[%s1 + $0x10] sm:$0xff]
    %v2782 = vld [vmem:[%s1 + $0x18] sm:$0xff]
    %v2783 = vld [vmem:[%s1 + $0x20] sm:$0xff]
    %v2784 = vld [vmem:[%s1 + $0x28] sm:$0xff]
    %v2785 = vld [vmem:[%s1 + $0x30] sm:$0xff]
    %v2786 = vld [vmem:[%s1 + $0x38] sm:$0xff]
    %v2787 = vld [vmem:[%s1 + $0x40] sm:$0xff]
    %v2788 = vld [vmem:[%s1 + $0x48] sm:$0xff]
    %v2789 = vld [vmem:[%s1 + $0x50] sm:$0xf]
    %v2790 = vld [vmem:[%s2] sm:$0xff]
    %v2791 = vld [vmem:[%s2 + $0x8] sm:$0xff]
    %v2792 = vld [vmem:[%s2 + $0x10] sm:$0xff]
    %v2793 = vld [vmem:[%s2 + $0x18] sm:$0xff]
    %v2794 = vld [vmem:[%s2 + $0x20] sm:$0xff]
    %v2795 = vld [vmem:[%s2 + $0x28] sm:$0xff]
    %v2796 = vld [vmem:[%s2 + $0x30] sm:$0xff]
    %v2797 = vld [vmem:[%s2 + $0x38] sm:$0xff]
    %v2798 = vld [vmem:[%s2 + $0x40] sm:$0xff]
    %v2799 = vld [vmem:[%s2 + $0x48] sm:$0xff]
    %v2800 = vld [vmem:[%s2 + $0x50] sm:$0xf]
    %v2801 = vld [vmem:[%s0 + $0x1d] sm:$0xff]
    %v2802 = vld [vmem:[%s0 + $0x25] sm:$0xff]
    %v2803 = vld [vmem:[%s0 + $0x2d] sm:$0xff]
    %v2804 = vld [vmem:[%s85] sm:$0xff]
    %v2805 = vld [vmem:[%s85 + $0x8] sm:$0xff]
    %v2806 = vld [vmem:[%s85 + $0x10] sm:$0xff]
    %v2807 = vld [vmem:[%s85 + $0x18] sm:$0xff]
    %v2808 = vld [vmem:[%s85 + $0x20] sm:$0xff]
    %v2809 = vld [vmem:[%s85 + $0x28] sm:$0xff]
    %v2810 = vld [vmem:[%s85 + $0x30] sm:$0xff]
    %v2811 = vld [vmem:[%s85 + $0x38] sm:$0xff]
    %v2812 = vld [vmem:[%s85 + $0x40] sm:$0xff]
    %v2813 = vld [vmem:[%s85 + $0x48] sm:$0xff]
    %v2814 = vld [vmem:[%s85 + $0x50] sm:$0xf]
    %v2816 = vsel %vm97, %v2801, 0
    %v2819 = vsel %vm97, %v2802, 0
    %v2822 = vsel %vm97, %v2803, 0
    %v2825 = vsel %vm107, %v2814, 0
    %2827 = vmatprep.subr.mxu0 0.0
    %2828 = vmatpush1.msra.mxu0 %v2804
    %2829 = vmatprep.subr.mxu0 0.0
    %2830 = vmatpush1.msra.mxu0 %v2805
    %2831 = vmatprep.subr.mxu0 0.0
    %2832 = vmatpush1.msra.mxu0 %v2806
    %2833 = vmatprep.subr.mxu0 0.0
    %2834 = vmatpush1.msra.mxu0 %v2807
    %2835 = vmatprep.subr.mxu0 0.0
    %2836 = vmatpush1.msra.mxu0 %v2808
    %2837 = vmatprep.subr.mxu0 0.0
    %2838 = vmatpush1.msra.mxu0 %v2809
    %2839 = vmatprep.subr.mxu0 0.0
    %2840 = vmatpush1.msra.mxu0 %v2810
    %2841 = vmatprep.subr.mxu0 0.0
    %2842 = vmatpush1.msra.mxu0 %v2811
    %2843 = vmatprep.subr.mxu0 0.0
    %2844 = vmatpush1.msra.mxu0 %v2812
    %2845 = vmatprep.subr.mxu0 0.0
    %2846 = vmatpush1.msra.mxu0 %v2813
    %2847 = vmatprep.subr.mxu0 0.0
    %2848 = vmatpush1.msra.mxu0 %v2825
    %2849 = vmatprep.subr.mxu0 0.0
    %2850 = vmatpush1.msra.mxu0 0.0
    %2851 = vmatprep.subr.mxu0 0.0
    %2852 = vmatpush1.msra.mxu0 0.0
    %2853 = vmatprep.subr.mxu0 0.0
    %2854 = vmatpush1.msra.mxu0 0.0
    %2855 = vmatprep.subr.mxu0 0.0
    %2856 = vmatpush1.msra.mxu0 0.0
    %2857 = vmatprep.subr.mxu0 0.0
    %2858 = vmatpush1.msra.mxu0 0.0
    %2859 = vmatprep.subr.mxu0 0.0
    %2860 = vmatpush1.msra.mxu0 0.0
    %2861 = vmatprep.subr.mxu0 0.0
    %2862 = vmatpush1.msra.mxu0 0.0
    %2863 = vmatprep.subr.mxu0 0.0
    %2864 = vmatpush1.msra.mxu0 0.0
    %2865 = vmatprep.subr.mxu0 0.0
    %2866 = vmatpush1.msra.mxu0 0.0
    %2867 = vmatprep.subr.mxu0 0.0
    %2868 = vmatpush1.msra.mxu0 0.0
    %2869 = vmatprep.subr.mxu0 0.0
    %2870 = vmatpush1.msra.mxu0 0.0
    %2871 = vmatprep.subr.mxu0 0.0
    %2872 = vmatpush1.msra.mxu0 0.0
    %2873 = vmatprep.subr.mxu0 0.0
    %2874 = vmatpush1.msra.mxu0 0.0
    %2875 = vmatprep.subr.mxu0 0.0
    %2876 = vmatpush1.msra.mxu0 0.0
    %2877 = vmatprep.subr.mxu0 0.0
    %2878 = vmatpush1.msra.mxu0 0.0
    %2879 = vmatprep.subr.mxu0 0.0
    %2880 = vmatpush1.msra.mxu0 0.0
    %2881 = vmatprep.subr.mxu0 0.0
    %2882 = vmatpush1.msra.mxu0 0.0
    %2883 = vmatprep.subr.mxu0 0.0
    %2884 = vmatpush1.msra.mxu0 0.0
    %2885 = vmatprep.subr.mxu0 0.0
    %2886 = vmatpush1.msra.mxu0 0.0
    %2887 = vmatprep.subr.mxu0 0.0
    %2888 = vmatpush1.msra.mxu0 0.0
    %2889 = vmatprep.subr.mxu0 0.0
    %2890 = vmatpush1.msra.mxu0 0.0
    %2891 = vmatprep.mubr.f32.mxu0 0.0
    %2892 = vmatmul.mubr.f32.gmra.mrb[0].mxu0 %v2816
    %v2893 = vpop.f32.mrb[0].mxu0
    %v2894 = vadd.f32 0.0, %v2893
    %v2895 = vpop.f32.mrb[0].mxu0
    %2896 = vmatprep.mubr.f32.mxu0 0.0
    %2897 = vmatmul.mubr.f32.gmra.mrb[0].mxu0 %v2819
    %v2898 = vpop.f32.mrb[0].mxu0
    %v2899 = vadd.f32 0.0, %v2898
    %v2900 = vpop.f32.mrb[0].mxu0
    %2901 = vmatprep.mubr.f32.mxu0 0.0
    %2902 = vmatmul.mubr.f32.gmra.mrb[0].mxu0 %v2822
    %v2903 = vpop.f32.mrb[0].mxu0
    %v2904 = vadd.f32 0.0, %v2903
    %v2905 = vpop.f32.mrb[0].mxu0
    %2906 = vdwg.mxu0
    %v2908 = vsel %vm97, %v2776, 0
    %v2911 = vsel %vm97, %v2777, 0
    %v2914 = vsel %vm97, %v2778, 0
    %v2917 = vsel %vm107, %v2789, 0
    %2919 = vmatprep.subr.mxu0 0.0
    %2920 = vmatpush1.msra.mxu0 %v2779
    %2921 = vmatprep.subr.mxu0 0.0
    %2922 = vmatpush1.msra.mxu0 %v2780
    %2923 = vmatprep.subr.mxu0 0.0
    %2924 = vmatpush1.msra.mxu0 %v2781
    %2925 = vmatprep.subr.mxu0 0.0
    %2926 = vmatpush1.msra.mxu0 %v2782
    %2927 = vmatprep.subr.mxu0 0.0
    %2928 = vmatpush1.msra.mxu0 %v2783
    %2929 = vmatprep.subr.mxu0 0.0
    %2930 = vmatpush1.msra.mxu0 %v2784
    %2931 = vmatprep.subr.mxu0 0.0
    %2932 = vmatpush1.msra.mxu0 %v2785
    %2933 = vmatprep.subr.mxu0 0.0
    %2934 = vmatpush1.msra.mxu0 %v2786
    %2935 = vmatprep.subr.mxu0 0.0
    %2936 = vmatpush1.msra.mxu0 %v2787
    %2937 = vmatprep.subr.mxu0 0.0
    %2938 = vmatpush1.msra.mxu0 %v2788
    %2939 = vmatprep.subr.mxu0 0.0
    %2940 = vmatpush1.msra.mxu0 %v2917
    %2941 = vmatprep.subr.mxu0 0.0
    %2942 = vmatpush1.msra.mxu0 0.0
    %2943 = vmatprep.subr.mxu0 0.0
    %2944 = vmatpush1.msra.mxu0 0.0
    %2945 = vmatprep.subr.mxu0 0.0
    %2946 = vmatpush1.msra.mxu0 0.0
    %2947 = vmatprep.subr.mxu0 0.0
    %2948 = vmatpush1.msra.mxu0 0.0
    %2949 = vmatprep.subr.mxu0 0.0
    %2950 = vmatpush1.msra.mxu0 0.0
    %2951 = vmatprep.subr.mxu0 0.0
    %2952 = vmatpush1.msra.mxu0 0.0
    %2953 = vmatprep.subr.mxu0 0.0
    %2954 = vmatpush1.msra.mxu0 0.0
    %2955 = vmatprep.subr.mxu0 0.0
    %2956 = vmatpush1.msra.mxu0 0.0
    %2957 = vmatprep.subr.mxu0 0.0
    %2958 = vmatpush1.msra.mxu0 0.0
    %2959 = vmatprep.subr.mxu0 0.0
    %2960 = vmatpush1.msra.mxu0 0.0
    %2961 = vmatprep.subr.mxu0 0.0
    %2962 = vmatpush1.msra.mxu0 0.0
    %2963 = vmatprep.subr.mxu0 0.0
    %2964 = vmatpush1.msra.mxu0 0.0
    %2965 = vmatprep.subr.mxu0 0.0
    %2966 = vmatpush1.msra.mxu0 0.0
    %2967 = vmatprep.subr.mxu0 0.0
    %2968 = vmatpush1.msra.mxu0 0.0
    %2969 = vmatprep.subr.mxu0 0.0
    %2970 = vmatpush1.msra.mxu0 0.0
    %2971 = vmatprep.subr.mxu0 0.0
    %2972 = vmatpush1.msra.mxu0 0.0
    %2973 = vmatprep.subr.mxu0 0.0
    %2974 = vmatpush1.msra.mxu0 0.0
    %2975 = vmatprep.subr.mxu0 0.0
    %2976 = vmatpush1.msra.mxu0 0.0
    %2977 = vmatprep.subr.mxu0 0.0
    %2978 = vmatpush1.msra.mxu0 0.0
    %2979 = vmatprep.subr.mxu0 0.0
    %2980 = vmatpush1.msra.mxu0 0.0
    %2981 = vmatprep.subr.mxu0 0.0
    %2982 = vmatpush1.msra.mxu0 0.0
    %2983 = vmatprep.mubr.f32.mxu0 0.0
    %2984 = vmatmul.mubr.f32.gmra.mrb[0].mxu0 %v2908
    %v2985 = vpop.f32.mrb[0].mxu0
    %v2986 = vadd.f32 %v2894, %v2985
    %v2987 = vpop.f32.mrb[0].mxu0
    %2988 = vmatprep.mubr.f32.mxu0 0.0
    %2989 = vmatmul.mubr.f32.gmra.mrb[0].mxu0 %v2911
    %v2990 = vpop.f32.mrb[0].mxu0
    %v2991 = vadd.f32 %v2899, %v2990
    %v2992 = vpop.f32.mrb[0].mxu0
    %2993 = vmatprep.mubr.f32.mxu0 0.0
    %2994 = vmatmul.mubr.f32.gmra.mrb[0].mxu0 %v2914
    %v2995 = vpop.f32.mrb[0].mxu0
    %v2996 = vadd.f32 %v2904, %v2995
    %v2997 = vpop.f32.mrb[0].mxu0
    %2998 = vdwg.mxu0
    %v2999 = vld [vmem:[%s283] sm:$0xff]
    %v3000 = vld [vmem:[%s283 + $0x8] sm:$0xff]
    %v3001 = vld [vmem:[%s283 + $0x10] sm:$0xff]
    %v3002 = vld [vmem:[%s283 + $0x18] sm:$0xff]
    %v3003 = vld [vmem:[%s283 + $0x20] sm:$0xff]
    %v3004 = vld [vmem:[%s283 + $0x28] sm:$0xff]
    %v3005 = vld [vmem:[%s283 + $0x30] sm:$0xff]
    %v3006 = vld [vmem:[%s283 + $0x38] sm:$0xff]
    %v3007 = vld [vmem:[%s283 + $0x40] sm:$0xff]
    %v3008 = vld [vmem:[%s283 + $0x48] sm:$0xff]
    %v3009 = vld [vmem:[%s283 + $0x50] sm:$0xf]
    %v3011 = vsel %vm107, %v3009, 0
    %3013 = vmatprep.subr.mxu0 0.0
    %3014 = vmatpush1.msra.mxu0 %v2999
    %3015 = vmatprep.subr.mxu0 0.0
    %3016 = vmatpush1.msra.mxu0 %v3000
    %3017 = vmatprep.subr.mxu0 0.0
    %3018 = vmatpush1.msra.mxu0 %v3001
    %3019 = vmatprep.subr.mxu0 0.0
    %3020 = vmatpush1.msra.mxu0 %v3002
    %3021 = vmatprep.subr.mxu0 0.0
    %3022 = vmatpush1.msra.mxu0 %v3003
    %3023 = vmatprep.subr.mxu0 0.0
    %3024 = vmatpush1.msra.mxu0 %v3004
    %3025 = vmatprep.subr.mxu0 0.0
    %3026 = vmatpush1.msra.mxu0 %v3005
    %3027 = vmatprep.subr.mxu0 0.0
    %3028 = vmatpush1.msra.mxu0 %v3006
    %3029 = vmatprep.subr.mxu0 0.0
    %3030 = vmatpush1.msra.mxu0 %v3007
    %3031 = vmatprep.subr.mxu0 0.0
    %3032 = vmatpush1.msra.mxu0 %v3008
    %3033 = vmatprep.subr.mxu0 0.0
    %3034 = vmatpush1.msra.mxu0 %v3011
    %3035 = vmatprep.subr.mxu0 0.0
    %3036 = vmatpush1.msra.mxu0 0.0
    %3037 = vmatprep.subr.mxu0 0.0
    %3038 = vmatpush1.msra.mxu0 0.0
    %3039 = vmatprep.subr.mxu0 0.0
    %3040 = vmatpush1.msra.mxu0 0.0
    %3041 = vmatprep.subr.mxu0 0.0
    %3042 = vmatpush1.msra.mxu0 0.0
    %3043 = vmatprep.subr.mxu0 0.0
    %3044 = vmatpush1.msra.mxu0 0.0
    %3045 = vmatprep.subr.mxu0 0.0
    %3046 = vmatpush1.msra.mxu0 0.0
    %3047 = vmatprep.subr.mxu0 0.0
    %3048 = vmatpush1.msra.mxu0 0.0
    %3049 = vmatprep.subr.mxu0 0.0
    %3050 = vmatpush1.msra.mxu0 0.0
    %3051 = vmatprep.subr.mxu0 0.0
    %3052 = vmatpush1.msra.mxu0 0.0
    %3053 = vmatprep.subr.mxu0 0.0
    %3054 = vmatpush1.msra.mxu0 0.0
    %3055 = vmatprep.subr.mxu0 0.0
    %3056 = vmatpush1.msra.mxu0 0.0
    %3057 = vmatprep.subr.mxu0 0.0
    %3058 = vmatpush1.msra.mxu0 0.0
    %3059 = vmatprep.subr.mxu0 0.0
    %3060 = vmatpush1.msra.mxu0 0.0
    %3061 = vmatprep.subr.mxu0 0.0
    %3062 = vmatpush1.msra.mxu0 0.0
    %3063 = vmatprep.subr.mxu0 0.0
    %3064 = vmatpush1.msra.mxu0 0.0
    %3065 = vmatprep.subr.mxu0 0.0
    %3066 = vmatpush1.msra.mxu0 0.0
    %3067 = vmatprep.subr.mxu0 0.0
    %3068 = vmatpush1.msra.mxu0 0.0
    %3069 = vmatprep.subr.mxu0 0.0
    %3070 = vmatpush1.msra.mxu0 0.0
    %3071 = vmatprep.subr.mxu0 0.0
    %3072 = vmatpush1.msra.mxu0 0.0
    %3073 = vmatprep.subr.mxu0 0.0
    %3074 = vmatpush1.msra.mxu0 0.0
    %3075 = vmatprep.subr.mxu0 0.0
    %3076 = vmatpush1.msra.mxu0 0.0
    %3077 = vmatprep.mubr.f32.mxu0 0.0
    %3078 = vmatmul.mubr.f32.gmra.mrb[0].mxu0 %v2816
    %v3079 = vpop.f32.mrb[0].mxu0
    %v3080 = vadd.f32 0.0, %v3079
    %v3081 = vpop.f32.mrb[0].mxu0
    %3082 = vmatprep.mubr.f32.mxu0 0.0
    %3083 = vmatmul.mubr.f32.gmra.mrb[0].mxu0 %v2819
    %v3084 = vpop.f32.mrb[0].mxu0
    %v3085 = vadd.f32 0.0, %v3084
    %v3086 = vpop.f32.mrb[0].mxu0
    %3087 = vmatprep.mubr.f32.mxu0 0.0
    %3088 = vmatmul.mubr.f32.gmra.mrb[0].mxu0 %v2822
    %v3089 = vpop.f32.mrb[0].mxu0
    %v3090 = vadd.f32 0.0, %v3089
    %v3091 = vpop.f32.mrb[0].mxu0
    %3092 = vdwg.mxu0
    %v3094 = vsel %vm107, %v2800, 0
    %3096 = vmatprep.subr.mxu0 0.0
    %3097 = vmatpush1.msra.mxu0 %v2790
    %3098 = vmatprep.subr.mxu0 0.0
    %3099 = vmatpush1.msra.mxu0 %v2791
    %3100 = vmatprep.subr.mxu0 0.0
    %3101 = vmatpush1.msra.mxu0 %v2792
    %3102 = vmatprep.subr.mxu0 0.0
    %3103 = vmatpush1.msra.mxu0 %v2793
    %3104 = vmatprep.subr.mxu0 0.0
    %3105 = vmatpush1.msra.mxu0 %v2794
    %3106 = vmatprep.subr.mxu0 0.0
    %3107 = vmatpush1.msra.mxu0 %v2795
    %3108 = vmatprep.subr.mxu0 0.0
    %3109 = vmatpush1.msra.mxu0 %v2796
    %3110 = vmatprep.subr.mxu0 0.0
    %3111 = vmatpush1.msra.mxu0 %v2797
    %3112 = vmatprep.subr.mxu0 0.0
    %3113 = vmatpush1.msra.mxu0 %v2798
    %3114 = vmatprep.subr.mxu0 0.0
    %3115 = vmatpush1.msra.mxu0 %v2799
    %3116 = vmatprep.subr.mxu0 0.0
    %3117 = vmatpush1.msra.mxu0 %v3094
    %3118 = vmatprep.subr.mxu0 0.0
    %3119 = vmatpush1.msra.mxu0 0.0
    %3120 = vmatprep.subr.mxu0 0.0
    %3121 = vmatpush1.msra.mxu0 0.0
    %3122 = vmatprep.subr.mxu0 0.0
    %3123 = vmatpush1.msra.mxu0 0.0
    %3124 = vmatprep.subr.mxu0 0.0
    %3125 = vmatpush1.msra.mxu0 0.0
    %3126 = vmatprep.subr.mxu0 0.0
    %3127 = vmatpush1.msra.mxu0 0.0
    %3128 = vmatprep.subr.mxu0 0.0
    %3129 = vmatpush1.msra.mxu0 0.0
    %3130 = vmatprep.subr.mxu0 0.0
    %3131 = vmatpush1.msra.mxu0 0.0
    %3132 = vmatprep.subr.mxu0 0.0
    %3133 = vmatpush1.msra.mxu0 0.0
    %3134 = vmatprep.subr.mxu0 0.0
    %3135 = vmatpush1.msra.mxu0 0.0
    %3136 = vmatprep.subr.mxu0 0.0
    %3137 = vmatpush1.msra.mxu0 0.0
    %3138 = vmatprep.subr.mxu0 0.0
    %3139 = vmatpush1.msra.mxu0 0.0
    %3140 = vmatprep.subr.mxu0 0.0
    %3141 = vmatpush1.msra.mxu0 0.0
    %3142 = vmatprep.subr.mxu0 0.0
    %3143 = vmatpush1.msra.mxu0 0.0
    %3144 = vmatprep.subr.mxu0 0.0
    %3145 = vmatpush1.msra.mxu0 0.0
    %3146 = vmatprep.subr.mxu0 0.0
    %3147 = vmatpush1.msra.mxu0 0.0
    %3148 = vmatprep.subr.mxu0 0.0
    %3149 = vmatpush1.msra.mxu0 0.0
    %3150 = vmatprep.subr.mxu0 0.0
    %3151 = vmatpush1.msra.mxu0 0.0
    %3152 = vmatprep.subr.mxu0 0.0
    %3153 = vmatpush1.msra.mxu0 0.0
    %3154 = vmatprep.subr.mxu0 0.0
    %3155 = vmatpush1.msra.mxu0 0.0
    %3156 = vmatprep.subr.mxu0 0.0
    %3157 = vmatpush1.msra.mxu0 0.0
    %3158 = vmatprep.subr.mxu0 0.0
    %3159 = vmatpush1.msra.mxu0 0.0
    %3160 = vmatprep.mubr.f32.mxu0 0.0
    %3161 = vmatmul.mubr.f32.gmra.mrb[0].mxu0 %v2908
    %v3162 = vpop.f32.mrb[0].mxu0
    %v3163 = vadd.f32 %v3080, %v3162
    %v3164 = vpop.f32.mrb[0].mxu0
    %3165 = vmatprep.mubr.f32.mxu0 0.0
    %3166 = vmatmul.mubr.f32.gmra.mrb[0].mxu0 %v2911
    %v3167 = vpop.f32.mrb[0].mxu0
    %v3168 = vadd.f32 %v3085, %v3167
    %v3169 = vpop.f32.mrb[0].mxu0
    %3170 = vmatprep.mubr.f32.mxu0 0.0
    %3171 = vmatmul.mubr.f32.gmra.mrb[0].mxu0 %v2914
    %v3172 = vpop.f32.mrb[0].mxu0
    %v3173 = vadd.f32 %v3090, %v3172
    %v3174 = vpop.f32.mrb[0].mxu0
    %3175 = vdwg.mxu0
    %v3176 = vld [vmem:[%s0 + $0x1e] sm:$0xff]
    %v3177 = vld [vmem:[%s0 + $0x26] sm:$0xff]
    %v3178 = vld [vmem:[%s0 + $0x2e] sm:$0xff]
    %v3179 = vld [vmem:[%s464] sm:$0xff]
    %v3180 = vld [vmem:[%s464 + $0x8] sm:$0xff]
    %v3181 = vld [vmem:[%s464 + $0x10] sm:$0xff]
    %v3182 = vld [vmem:[%s464 + $0x18] sm:$0xff]
    %v3183 = vld [vmem:[%s464 + $0x20] sm:$0xff]
    %v3184 = vld [vmem:[%s464 + $0x28] sm:$0xff]
    %v3185 = vld [vmem:[%s464 + $0x30] sm:$0xff]
    %v3186 = vld [vmem:[%s464 + $0x38] sm:$0xff]
    %v3187 = vld [vmem:[%s464 + $0x40] sm:$0xff]
    %v3188 = vld [vmem:[%s464 + $0x48] sm:$0xff]
    %v3189 = vld [vmem:[%s464 + $0x50] sm:$0xf]
    %v3191 = vsel %vm97, %v3176, 0
    %v3194 = vsel %vm97, %v3177, 0
    %v3197 = vsel %vm97, %v3178, 0
    %v3200 = vsel %vm107, %v3189, 0
    %3202 = vmatprep.subr.mxu0 0.0
    %3203 = vmatpush1.msra.mxu0 %v3179
    %3204 = vmatprep.subr.mxu0 0.0
    %3205 = vmatpush1.msra.mxu0 %v3180
    %3206 = vmatprep.subr.mxu0 0.0
    %3207 = vmatpush1.msra.mxu0 %v3181
    %3208 = vmatprep.subr.mxu0 0.0
    %3209 = vmatpush1.msra.mxu0 %v3182
    %3210 = vmatprep.subr.mxu0 0.0
    %3211 = vmatpush1.msra.mxu0 %v3183
    %3212 = vmatprep.subr.mxu0 0.0
    %3213 = vmatpush1.msra.mxu0 %v3184
    %3214 = vmatprep.subr.mxu0 0.0
    %3215 = vmatpush1.msra.mxu0 %v3185
    %3216 = vmatprep.subr.mxu0 0.0
    %3217 = vmatpush1.msra.mxu0 %v3186
    %3218 = vmatprep.subr.mxu0 0.0
    %3219 = vmatpush1.msra.mxu0 %v3187
    %3220 = vmatprep.subr.mxu0 0.0
    %3221 = vmatpush1.msra.mxu0 %v3188
    %3222 = vmatprep.subr.mxu0 0.0
    %3223 = vmatpush1.msra.mxu0 %v3200
    %3224 = vmatprep.subr.mxu0 0.0
    %3225 = vmatpush1.msra.mxu0 0.0
    %3226 = vmatprep.subr.mxu0 0.0
    %3227 = vmatpush1.msra.mxu0 0.0
    %3228 = vmatprep.subr.mxu0 0.0
    %3229 = vmatpush1.msra.mxu0 0.0
    %3230 = vmatprep.subr.mxu0 0.0
    %3231 = vmatpush1.msra.mxu0 0.0
    %3232 = vmatprep.subr.mxu0 0.0
    %3233 = vmatpush1.msra.mxu0 0.0
    %3234 = vmatprep.subr.mxu0 0.0
    %3235 = vmatpush1.msra.mxu0 0.0
    %3236 = vmatprep.subr.mxu0 0.0
    %3237 = vmatpush1.msra.mxu0 0.0
    %3238 = vmatprep.subr.mxu0 0.0
    %3239 = vmatpush1.msra.mxu0 0.0
    %3240 = vmatprep.subr.mxu0 0.0
    %3241 = vmatpush1.msra.mxu0 0.0
    %3242 = vmatprep.subr.mxu0 0.0
    %3243 = vmatpush1.msra.mxu0 0.0
    %3244 = vmatprep.subr.mxu0 0.0
    %3245 = vmatpush1.msra.mxu0 0.0
    %3246 = vmatprep.subr.mxu0 0.0
    %3247 = vmatpush1.msra.mxu0 0.0
    %3248 = vmatprep.subr.mxu0 0.0
    %3249 = vmatpush1.msra.mxu0 0.0
    %3250 = vmatprep.subr.mxu0 0.0
    %3251 = vmatpush1.msra.mxu0 0.0
    %3252 = vmatprep.subr.mxu0 0.0
    %3253 = vmatpush1.msra.mxu0 0.0
    %3254 = vmatprep.subr.mxu0 0.0
    %3255 = vmatpush1.msra.mxu0 0.0
    %3256 = vmatprep.subr.mxu0 0.0
    %3257 = vmatpush1.msra.mxu0 0.0
    %3258 = vmatprep.subr.mxu0 0.0
    %3259 = vmatpush1.msra.mxu0 0.0
    %3260 = vmatprep.subr.mxu0 0.0
    %3261 = vmatpush1.msra.mxu0 0.0
    %3262 = vmatprep.subr.mxu0 0.0
    %3263 = vmatpush1.msra.mxu0 0.0
    %3264 = vmatprep.subr.mxu0 0.0
    %3265 = vmatpush1.msra.mxu0 0.0
    %3266 = vmatprep.mubr.f32.mxu0 0.0
    %3267 = vmatmul.mubr.f32.gmra.mrb[0].mxu0 %v3191
    %v3268 = vpop.f32.mrb[0].mxu0
    %v3269 = vadd.f32 0.0, %v3268
    %v3270 = vpop.f32.mrb[0].mxu0
    %3271 = vmatprep.mubr.f32.mxu0 0.0
    %3272 = vmatmul.mubr.f32.gmra.mrb[0].mxu0 %v3194
    %v3273 = vpop.f32.mrb[0].mxu0
    %v3274 = vadd.f32 0.0, %v3273
    %v3275 = vpop.f32.mrb[0].mxu0
    %3276 = vmatprep.mubr.f32.mxu0 0.0
    %3277 = vmatmul.mubr.f32.gmra.mrb[0].mxu0 %v3197
    %v3278 = vpop.f32.mrb[0].mxu0
    %v3279 = vadd.f32 0.0, %v3278
    %v3280 = vpop.f32.mrb[0].mxu0
    %3281 = vdwg.mxu0
    %v3282 = vadd.f32 %v2986, %v3269
    %v3283 = vadd.f32 %v2991, %v3274
    %v3284 = vadd.f32 %v2996, %v3279
    %v3285 = vld [vmem:[%s571] sm:$0xff]
    %v3286 = vld [vmem:[%s571 + $0x8] sm:$0xff]
    %v3287 = vld [vmem:[%s571 + $0x10] sm:$0xff]
    %v3288 = vld [vmem:[%s571 + $0x18] sm:$0xff]
    %v3289 = vld [vmem:[%s571 + $0x20] sm:$0xff]
    %v3290 = vld [vmem:[%s571 + $0x28] sm:$0xff]
    %v3291 = vld [vmem:[%s571 + $0x30] sm:$0xff]
    %v3292 = vld [vmem:[%s571 + $0x38] sm:$0xff]
    %v3293 = vld [vmem:[%s571 + $0x40] sm:$0xff]
    %v3294 = vld [vmem:[%s571 + $0x48] sm:$0xff]
    %v3295 = vld [vmem:[%s571 + $0x50] sm:$0xf]
    %v3297 = vsel %vm107, %v3295, 0
    %3299 = vmatprep.subr.mxu0 0.0
    %3300 = vmatpush1.msra.mxu0 %v3285
    %3301 = vmatprep.subr.mxu0 0.0
    %3302 = vmatpush1.msra.mxu0 %v3286
    %3303 = vmatprep.subr.mxu0 0.0
    %3304 = vmatpush1.msra.mxu0 %v3287
    %3305 = vmatprep.subr.mxu0 0.0
    %3306 = vmatpush1.msra.mxu0 %v3288
    %3307 = vmatprep.subr.mxu0 0.0
    %3308 = vmatpush1.msra.mxu0 %v3289
    %3309 = vmatprep.subr.mxu0 0.0
    %3310 = vmatpush1.msra.mxu0 %v3290
    %3311 = vmatprep.subr.mxu0 0.0
    %3312 = vmatpush1.msra.mxu0 %v3291
    %3313 = vmatprep.subr.mxu0 0.0
    %3314 = vmatpush1.msra.mxu0 %v3292
    %3315 = vmatprep.subr.mxu0 0.0
    %3316 = vmatpush1.msra.mxu0 %v3293
    %3317 = vmatprep.subr.mxu0 0.0
    %3318 = vmatpush1.msra.mxu0 %v3294
    %3319 = vmatprep.subr.mxu0 0.0
    %3320 = vmatpush1.msra.mxu0 %v3297
    %3321 = vmatprep.subr.mxu0 0.0
    %3322 = vmatpush1.msra.mxu0 0.0
    %3323 = vmatprep.subr.mxu0 0.0
    %3324 = vmatpush1.msra.mxu0 0.0
    %3325 = vmatprep.subr.mxu0 0.0
    %3326 = vmatpush1.msra.mxu0 0.0
    %3327 = vmatprep.subr.mxu0 0.0
    %3328 = vmatpush1.msra.mxu0 0.0
    %3329 = vmatprep.subr.mxu0 0.0
    %3330 = vmatpush1.msra.mxu0 0.0
    %3331 = vmatprep.subr.mxu0 0.0
    %3332 = vmatpush1.msra.mxu0 0.0
    %3333 = vmatprep.subr.mxu0 0.0
    %3334 = vmatpush1.msra.mxu0 0.0
    %3335 = vmatprep.subr.mxu0 0.0
    %3336 = vmatpush1.msra.mxu0 0.0
    %3337 = vmatprep.subr.mxu0 0.0
    %3338 = vmatpush1.msra.mxu0 0.0
    %3339 = vmatprep.subr.mxu0 0.0
    %3340 = vmatpush1.msra.mxu0 0.0
    %3341 = vmatprep.subr.mxu0 0.0
    %3342 = vmatpush1.msra.mxu0 0.0
    %3343 = vmatprep.subr.mxu0 0.0
    %3344 = vmatpush1.msra.mxu0 0.0
    %3345 = vmatprep.subr.mxu0 0.0
    %3346 = vmatpush1.msra.mxu0 0.0
    %3347 = vmatprep.subr.mxu0 0.0
    %3348 = vmatpush1.msra.mxu0 0.0
    %3349 = vmatprep.subr.mxu0 0.0
    %3350 = vmatpush1.msra.mxu0 0.0
    %3351 = vmatprep.subr.mxu0 0.0
    %3352 = vmatpush1.msra.mxu0 0.0
    %3353 = vmatprep.subr.mxu0 0.0
    %3354 = vmatpush1.msra.mxu0 0.0
    %3355 = vmatprep.subr.mxu0 0.0
    %3356 = vmatpush1.msra.mxu0 0.0
    %3357 = vmatprep.subr.mxu0 0.0
    %3358 = vmatpush1.msra.mxu0 0.0
    %3359 = vmatprep.subr.mxu0 0.0
    %3360 = vmatpush1.msra.mxu0 0.0
    %3361 = vmatprep.subr.mxu0 0.0
    %3362 = vmatpush1.msra.mxu0 0.0
    %3363 = vmatprep.mubr.f32.mxu0 0.0
    %3364 = vmatmul.mubr.f32.gmra.mrb[0].mxu0 %v3191
    %v3365 = vpop.f32.mrb[0].mxu0
    %v3366 = vadd.f32 0.0, %v3365
    %v3367 = vpop.f32.mrb[0].mxu0
    %3368 = vmatprep.mubr.f32.mxu0 0.0
    %3369 = vmatmul.mubr.f32.gmra.mrb[0].mxu0 %v3194
    %v3370 = vpop.f32.mrb[0].mxu0
    %v3371 = vadd.f32 0.0, %v3370
    %v3372 = vpop.f32.mrb[0].mxu0
    %3373 = vmatprep.mubr.f32.mxu0 0.0
    %3374 = vmatmul.mubr.f32.gmra.mrb[0].mxu0 %v3197
    %v3375 = vpop.f32.mrb[0].mxu0
    %v3376 = vadd.f32 0.0, %v3375
    %v3377 = vpop.f32.mrb[0].mxu0
    %3378 = vdwg.mxu0
    %v3379 = vadd.f32 %v3163, %v3366
    %v3380 = vadd.f32 %v3168, %v3371
    %v3381 = vadd.f32 %v3173, %v3376
    %v3382 = vld [vmem:[%s0 + $0x1f] sm:$0xff]
    %v3383 = vld [vmem:[%s0 + $0x27] sm:$0xff]
    %v3384 = vld [vmem:[%s0 + $0x2f] sm:$0xff]
    %v3385 = vld [vmem:[%s672] sm:$0xff]
    %v3386 = vld [vmem:[%s672 + $0x8] sm:$0xff]
    %v3387 = vld [vmem:[%s672 + $0x10] sm:$0xff]
    %v3388 = vld [vmem:[%s672 + $0x18] sm:$0xff]
    %v3389 = vld [vmem:[%s672 + $0x20] sm:$0xff]
    %v3390 = vld [vmem:[%s672 + $0x28] sm:$0xff]
    %v3391 = vld [vmem:[%s672 + $0x30] sm:$0xff]
    %v3392 = vld [vmem:[%s672 + $0x38] sm:$0xff]
    %v3393 = vld [vmem:[%s672 + $0x40] sm:$0xff]
    %v3394 = vld [vmem:[%s672 + $0x48] sm:$0xff]
    %v3395 = vld [vmem:[%s672 + $0x50] sm:$0xf]
    %v3397 = vsel %vm97, %v3382, 0
    %v3400 = vsel %vm97, %v3383, 0
    %v3403 = vsel %vm97, %v3384, 0
    %v3406 = vsel %vm107, %v3395, 0
    %3408 = vmatprep.subr.mxu0 0.0
    %3409 = vmatpush1.msra.mxu0 %v3385
    %3410 = vmatprep.subr.mxu0 0.0
    %3411 = vmatpush1.msra.mxu0 %v3386
    %3412 = vmatprep.subr.mxu0 0.0
    %3413 = vmatpush1.msra.mxu0 %v3387
    %3414 = vmatprep.subr.mxu0 0.0
    %3415 = vmatpush1.msra.mxu0 %v3388
    %3416 = vmatprep.subr.mxu0 0.0
    %3417 = vmatpush1.msra.mxu0 %v3389
    %3418 = vmatprep.subr.mxu0 0.0
    %3419 = vmatpush1.msra.mxu0 %v3390
    %3420 = vmatprep.subr.mxu0 0.0
    %3421 = vmatpush1.msra.mxu0 %v3391
    %3422 = vmatprep.subr.mxu0 0.0
    %3423 = vmatpush1.msra.mxu0 %v3392
    %3424 = vmatprep.subr.mxu0 0.0
    %3425 = vmatpush1.msra.mxu0 %v3393
    %3426 = vmatprep.subr.mxu0 0.0
    %3427 = vmatpush1.msra.mxu0 %v3394
    %3428 = vmatprep.subr.mxu0 0.0
    %3429 = vmatpush1.msra.mxu0 %v3406
    %3430 = vmatprep.subr.mxu0 0.0
    %3431 = vmatpush1.msra.mxu0 0.0
    %3432 = vmatprep.subr.mxu0 0.0
    %3433 = vmatpush1.msra.mxu0 0.0
    %3434 = vmatprep.subr.mxu0 0.0
    %3435 = vmatpush1.msra.mxu0 0.0
    %3436 = vmatprep.subr.mxu0 0.0
    %3437 = vmatpush1.msra.mxu0 0.0
    %3438 = vmatprep.subr.mxu0 0.0
    %3439 = vmatpush1.msra.mxu0 0.0
    %3440 = vmatprep.subr.mxu0 0.0
    %3441 = vmatpush1.msra.mxu0 0.0
    %3442 = vmatprep.subr.mxu0 0.0
    %3443 = vmatpush1.msra.mxu0 0.0
    %3444 = vmatprep.subr.mxu0 0.0
    %3445 = vmatpush1.msra.mxu0 0.0
    %3446 = vmatprep.subr.mxu0 0.0
    %3447 = vmatpush1.msra.mxu0 0.0
    %3448 = vmatprep.subr.mxu0 0.0
    %3449 = vmatpush1.msra.mxu0 0.0
    %3450 = vmatprep.subr.mxu0 0.0
    %3451 = vmatpush1.msra.mxu0 0.0
    %3452 = vmatprep.subr.mxu0 0.0
    %3453 = vmatpush1.msra.mxu0 0.0
    %3454 = vmatprep.subr.mxu0 0.0
    %3455 = vmatpush1.msra.mxu0 0.0
    %3456 = vmatprep.subr.mxu0 0.0
    %3457 = vmatpush1.msra.mxu0 0.0
    %3458 = vmatprep.subr.mxu0 0.0
    %3459 = vmatpush1.msra.mxu0 0.0
    %3460 = vmatprep.subr.mxu0 0.0
    %3461 = vmatpush1.msra.mxu0 0.0
    %3462 = vmatprep.subr.mxu0 0.0
    %3463 = vmatpush1.msra.mxu0 0.0
    %3464 = vmatprep.subr.mxu0 0.0
    %3465 = vmatpush1.msra.mxu0 0.0
    %3466 = vmatprep.subr.mxu0 0.0
    %3467 = vmatpush1.msra.mxu0 0.0
    %3468 = vmatprep.subr.mxu0 0.0
    %3469 = vmatpush1.msra.mxu0 0.0
    %3470 = vmatprep.subr.mxu0 0.0
    %3471 = vmatpush1.msra.mxu0 0.0
    %3472 = vmatprep.mubr.f32.mxu0 0.0
    %3473 = vmatmul.mubr.f32.gmra.mrb[0].mxu0 %v3397
    %v3474 = vpop.f32.mrb[0].mxu0
    %v3475 = vadd.f32 0.0, %v3474
    %v3476 = vpop.f32.mrb[0].mxu0
    %3477 = vmatprep.mubr.f32.mxu0 0.0
    %3478 = vmatmul.mubr.f32.gmra.mrb[0].mxu0 %v3400
    %v3479 = vpop.f32.mrb[0].mxu0
    %v3480 = vadd.f32 0.0, %v3479
    %v3481 = vpop.f32.mrb[0].mxu0
    %3482 = vmatprep.mubr.f32.mxu0 0.0
    %3483 = vmatmul.mubr.f32.gmra.mrb[0].mxu0 %v3403
    %v3484 = vpop.f32.mrb[0].mxu0
    %v3485 = vadd.f32 0.0, %v3484
    %v3486 = vpop.f32.mrb[0].mxu0
    %3487 = vdwg.mxu0
    %v3488 = vadd.f32 %v3282, %v3475
    %v3489 = vadd.f32 %v3283, %v3480
    %v3490 = vadd.f32 %v3284, %v3485
    %v3491 = vld [vmem:[%s779] sm:$0xff]
    %v3492 = vld [vmem:[%s779 + $0x8] sm:$0xff]
    %v3493 = vld [vmem:[%s779 + $0x10] sm:$0xff]
    %v3494 = vld [vmem:[%s779 + $0x18] sm:$0xff]
    %v3495 = vld [vmem:[%s779 + $0x20] sm:$0xff]
    %v3496 = vld [vmem:[%s779 + $0x28] sm:$0xff]
    %v3497 = vld [vmem:[%s779 + $0x30] sm:$0xff]
    %v3498 = vld [vmem:[%s779 + $0x38] sm:$0xff]
    %v3499 = vld [vmem:[%s779 + $0x40] sm:$0xff]
    %v3500 = vld [vmem:[%s779 + $0x48] sm:$0xff]
    %v3501 = vld [vmem:[%s779 + $0x50] sm:$0xf]
    %v3503 = vsel %vm107, %v3501, 0
    %3505 = vmatprep.subr.mxu0 0.0
    %3506 = vmatpush1.msra.mxu0 %v3491
    %3507 = vmatprep.subr.mxu0 0.0
    %3508 = vmatpush1.msra.mxu0 %v3492
    %3509 = vmatprep.subr.mxu0 0.0
    %3510 = vmatpush1.msra.mxu0 %v3493
    %3511 = vmatprep.subr.mxu0 0.0
    %3512 = vmatpush1.msra.mxu0 %v3494
    %3513 = vmatprep.subr.mxu0 0.0
    %3514 = vmatpush1.msra.mxu0 %v3495
    %3515 = vmatprep.subr.mxu0 0.0
    %3516 = vmatpush1.msra.mxu0 %v3496
    %3517 = vmatprep.subr.mxu0 0.0
    %3518 = vmatpush1.msra.mxu0 %v3497
    %3519 = vmatprep.subr.mxu0 0.0
    %3520 = vmatpush1.msra.mxu0 %v3498
    %3521 = vmatprep.subr.mxu0 0.0
    %3522 = vmatpush1.msra.mxu0 %v3499
    %3523 = vmatprep.subr.mxu0 0.0
    %3524 = vmatpush1.msra.mxu0 %v3500
    %3525 = vmatprep.subr.mxu0 0.0
    %3526 = vmatpush1.msra.mxu0 %v3503
    %3527 = vmatprep.subr.mxu0 0.0
    %3528 = vmatpush1.msra.mxu0 0.0
    %3529 = vmatprep.subr.mxu0 0.0
    %3530 = vmatpush1.msra.mxu0 0.0
    %3531 = vmatprep.subr.mxu0 0.0
    %3532 = vmatpush1.msra.mxu0 0.0
    %3533 = vmatprep.subr.mxu0 0.0
    %3534 = vmatpush1.msra.mxu0 0.0
    %3535 = vmatprep.subr.mxu0 0.0
    %3536 = vmatpush1.msra.mxu0 0.0
    %3537 = vmatprep.subr.mxu0 0.0
    %3538 = vmatpush1.msra.mxu0 0.0
    %3539 = vmatprep.subr.mxu0 0.0
    %3540 = vmatpush1.msra.mxu0 0.0
    %3541 = vmatprep.subr.mxu0 0.0
    %3542 = vmatpush1.msra.mxu0 0.0
    %3543 = vmatprep.subr.mxu0 0.0
    %3544 = vmatpush1.msra.mxu0 0.0
    %3545 = vmatprep.subr.mxu0 0.0
    %3546 = vmatpush1.msra.mxu0 0.0
    %3547 = vmatprep.subr.mxu0 0.0
    %3548 = vmatpush1.msra.mxu0 0.0
    %3549 = vmatprep.subr.mxu0 0.0
    %3550 = vmatpush1.msra.mxu0 0.0
    %3551 = vmatprep.subr.mxu0 0.0
    %3552 = vmatpush1.msra.mxu0 0.0
    %3553 = vmatprep.subr.mxu0 0.0
    %3554 = vmatpush1.msra.mxu0 0.0
    %3555 = vmatprep.subr.mxu0 0.0
    %3556 = vmatpush1.msra.mxu0 0.0
    %3557 = vmatprep.subr.mxu0 0.0
    %3558 = vmatpush1.msra.mxu0 0.0
    %3559 = vmatprep.subr.mxu0 0.0
    %3560 = vmatpush1.msra.mxu0 0.0
    %3561 = vmatprep.subr.mxu0 0.0
    %3562 = vmatpush1.msra.mxu0 0.0
    %3563 = vmatprep.subr.mxu0 0.0
    %3564 = vmatpush1.msra.mxu0 0.0
    %3565 = vmatprep.subr.mxu0 0.0
    %3566 = vmatpush1.msra.mxu0 0.0
    %3567 = vmatprep.subr.mxu0 0.0
    %3568 = vmatpush1.msra.mxu0 0.0
    %3569 = vmatprep.mubr.f32.mxu0 0.0
    %3570 = vmatmul.mubr.f32.gmra.mrb[0].mxu0 %v3397
    %v3571 = vpop.f32.mrb[0].mxu0
    %v3572 = vadd.f32 0.0, %v3571
    %v3573 = vpop.f32.mrb[0].mxu0
    %3574 = vmatprep.mubr.f32.mxu0 0.0
    %3575 = vmatmul.mubr.f32.gmra.mrb[0].mxu0 %v3400
    %v3576 = vpop.f32.mrb[0].mxu0
    %v3577 = vadd.f32 0.0, %v3576
    %v3578 = vpop.f32.mrb[0].mxu0
    %3579 = vmatprep.mubr.f32.mxu0 0.0
    %3580 = vmatmul.mubr.f32.gmra.mrb[0].mxu0 %v3403
    %v3581 = vpop.f32.mrb[0].mxu0
    %v3582 = vadd.f32 0.0, %v3581
    %v3583 = vpop.f32.mrb[0].mxu0
    %3584 = vdwg.mxu0
    %v3585 = vadd.f32 %v3379, %v3572
    %v3586 = vadd.f32 %v3380, %v3577
    %v3587 = vadd.f32 %v3381, %v3582
    %v3588 = vld [vmem:[%s0 + $0x20] sm:$0xff]
    %v3589 = vld [vmem:[%s0 + $0x28] sm:$0xff]
    %v3590 = vld [vmem:[%s0 + $0x30] sm:$0xff]
    %v3591 = vld [vmem:[%s880] sm:$0xff]
    %v3592 = vld [vmem:[%s880 + $0x8] sm:$0xff]
    %v3593 = vld [vmem:[%s880 + $0x10] sm:$0xff]
    %v3594 = vld [vmem:[%s880 + $0x18] sm:$0xff]
    %v3595 = vld [vmem:[%s880 + $0x20] sm:$0xff]
    %v3596 = vld [vmem:[%s880 + $0x28] sm:$0xff]
    %v3597 = vld [vmem:[%s880 + $0x30] sm:$0xff]
    %v3598 = vld [vmem:[%s880 + $0x38] sm:$0xff]
    %v3599 = vld [vmem:[%s880 + $0x40] sm:$0xff]
    %v3600 = vld [vmem:[%s880 + $0x48] sm:$0xff]
    %v3601 = vld [vmem:[%s880 + $0x50] sm:$0xf]
    %v3603 = vsel %vm97, %v3588, 0
    %v3606 = vsel %vm97, %v3589, 0
    %v3609 = vsel %vm97, %v3590, 0
    %v3612 = vsel %vm107, %v3601, 0
    %3614 = vmatprep.subr.mxu0 0.0
    %3615 = vmatpush1.msra.mxu0 %v3591
    %3616 = vmatprep.subr.mxu0 0.0
    %3617 = vmatpush1.msra.mxu0 %v3592
    %3618 = vmatprep.subr.mxu0 0.0
    %3619 = vmatpush1.msra.mxu0 %v3593
    %3620 = vmatprep.subr.mxu0 0.0
    %3621 = vmatpush1.msra.mxu0 %v3594
    %3622 = vmatprep.subr.mxu0 0.0
    %3623 = vmatpush1.msra.mxu0 %v3595
    %3624 = vmatprep.subr.mxu0 0.0
    %3625 = vmatpush1.msra.mxu0 %v3596
    %3626 = vmatprep.subr.mxu0 0.0
    %3627 = vmatpush1.msra.mxu0 %v3597
    %3628 = vmatprep.subr.mxu0 0.0
    %3629 = vmatpush1.msra.mxu0 %v3598
    %3630 = vmatprep.subr.mxu0 0.0
    %3631 = vmatpush1.msra.mxu0 %v3599
    %3632 = vmatprep.subr.mxu0 0.0
    %3633 = vmatpush1.msra.mxu0 %v3600
    %3634 = vmatprep.subr.mxu0 0.0
    %3635 = vmatpush1.msra.mxu0 %v3612
    %3636 = vmatprep.subr.mxu0 0.0
    %3637 = vmatpush1.msra.mxu0 0.0
    %3638 = vmatprep.subr.mxu0 0.0
    %3639 = vmatpush1.msra.mxu0 0.0
    %3640 = vmatprep.subr.mxu0 0.0
    %3641 = vmatpush1.msra.mxu0 0.0
    %3642 = vmatprep.subr.mxu0 0.0
    %3643 = vmatpush1.msra.mxu0 0.0
    %3644 = vmatprep.subr.mxu0 0.0
    %3645 = vmatpush1.msra.mxu0 0.0
    %3646 = vmatprep.subr.mxu0 0.0
    %3647 = vmatpush1.msra.mxu0 0.0
    %3648 = vmatprep.subr.mxu0 0.0
    %3649 = vmatpush1.msra.mxu0 0.0
    %3650 = vmatprep.subr.mxu0 0.0
    %3651 = vmatpush1.msra.mxu0 0.0
    %3652 = vmatprep.subr.mxu0 0.0
    %3653 = vmatpush1.msra.mxu0 0.0
    %3654 = vmatprep.subr.mxu0 0.0
    %3655 = vmatpush1.msra.mxu0 0.0
    %3656 = vmatprep.subr.mxu0 0.0
    %3657 = vmatpush1.msra.mxu0 0.0
    %3658 = vmatprep.subr.mxu0 0.0
    %3659 = vmatpush1.msra.mxu0 0.0
    %3660 = vmatprep.subr.mxu0 0.0
    %3661 = vmatpush1.msra.mxu0 0.0
    %3662 = vmatprep.subr.mxu0 0.0
    %3663 = vmatpush1.msra.mxu0 0.0
    %3664 = vmatprep.subr.mxu0 0.0
    %3665 = vmatpush1.msra.mxu0 0.0
    %3666 = vmatprep.subr.mxu0 0.0
    %3667 = vmatpush1.msra.mxu0 0.0
    %3668 = vmatprep.subr.mxu0 0.0
    %3669 = vmatpush1.msra.mxu0 0.0
    %3670 = vmatprep.subr.mxu0 0.0
    %3671 = vmatpush1.msra.mxu0 0.0
    %3672 = vmatprep.subr.mxu0 0.0
    %3673 = vmatpush1.msra.mxu0 0.0
    %3674 = vmatprep.subr.mxu0 0.0
    %3675 = vmatpush1.msra.mxu0 0.0
    %3676 = vmatprep.subr.mxu0 0.0
    %3677 = vmatpush1.msra.mxu0 0.0
    %3678 = vmatprep.mubr.f32.mxu0 0.0
    %3679 = vmatmul.mubr.f32.gmra.mrb[0].mxu0 %v3603
    %v3680 = vpop.f32.mrb[0].mxu0
    %v3681 = vadd.f32 0.0, %v3680
    %v3682 = vpop.f32.mrb[0].mxu0
    %3683 = vmatprep.mubr.f32.mxu0 0.0
    %3684 = vmatmul.mubr.f32.gmra.mrb[0].mxu0 %v3606
    %v3685 = vpop.f32.mrb[0].mxu0
    %v3686 = vadd.f32 0.0, %v3685
    %v3687 = vpop.f32.mrb[0].mxu0
    %3688 = vmatprep.mubr.f32.mxu0 0.0
    %3689 = vmatmul.mubr.f32.gmra.mrb[0].mxu0 %v3609
    %v3690 = vpop.f32.mrb[0].mxu0
    %v3691 = vadd.f32 0.0, %v3690
    %v3692 = vpop.f32.mrb[0].mxu0
    %3693 = vdwg.mxu0
    %v3694 = vadd.f32 %v3488, %v3681
    %v3695 = vadd.f32 %v3489, %v3686
    %v3696 = vadd.f32 %v3490, %v3691
    %v3697 = vld [vmem:[%s987] sm:$0xff]
    %v3698 = vld [vmem:[%s987 + $0x8] sm:$0xff]
    %v3699 = vld [vmem:[%s987 + $0x10] sm:$0xff]
    %v3700 = vld [vmem:[%s987 + $0x18] sm:$0xff]
    %v3701 = vld [vmem:[%s987 + $0x20] sm:$0xff]
    %v3702 = vld [vmem:[%s987 + $0x28] sm:$0xff]
    %v3703 = vld [vmem:[%s987 + $0x30] sm:$0xff]
    %v3704 = vld [vmem:[%s987 + $0x38] sm:$0xff]
    %v3705 = vld [vmem:[%s987 + $0x40] sm:$0xff]
    %v3706 = vld [vmem:[%s987 + $0x48] sm:$0xff]
    %v3707 = vld [vmem:[%s987 + $0x50] sm:$0xf]
    %v3709 = vsel %vm107, %v3707, 0
    %3711 = vmatprep.subr.mxu0 0.0
    %3712 = vmatpush1.msra.mxu0 %v3697
    %3713 = vmatprep.subr.mxu0 0.0
    %3714 = vmatpush1.msra.mxu0 %v3698
    %3715 = vmatprep.subr.mxu0 0.0
    %3716 = vmatpush1.msra.mxu0 %v3699
    %3717 = vmatprep.subr.mxu0 0.0
    %3718 = vmatpush1.msra.mxu0 %v3700
    %3719 = vmatprep.subr.mxu0 0.0
    %3720 = vmatpush1.msra.mxu0 %v3701
    %3721 = vmatprep.subr.mxu0 0.0
    %3722 = vmatpush1.msra.mxu0 %v3702
    %3723 = vmatprep.subr.mxu0 0.0
    %3724 = vmatpush1.msra.mxu0 %v3703
    %3725 = vmatprep.subr.mxu0 0.0
    %3726 = vmatpush1.msra.mxu0 %v3704
    %3727 = vmatprep.subr.mxu0 0.0
    %3728 = vmatpush1.msra.mxu0 %v3705
    %3729 = vmatprep.subr.mxu0 0.0
    %3730 = vmatpush1.msra.mxu0 %v3706
    %3731 = vmatprep.subr.mxu0 0.0
    %3732 = vmatpush1.msra.mxu0 %v3709
    %3733 = vmatprep.subr.mxu0 0.0
    %3734 = vmatpush1.msra.mxu0 0.0
    %3735 = vmatprep.subr.mxu0 0.0
    %3736 = vmatpush1.msra.mxu0 0.0
    %3737 = vmatprep.subr.mxu0 0.0
    %3738 = vmatpush1.msra.mxu0 0.0
    %3739 = vmatprep.subr.mxu0 0.0
    %3740 = vmatpush1.msra.mxu0 0.0
    %3741 = vmatprep.subr.mxu0 0.0
    %3742 = vmatpush1.msra.mxu0 0.0
    %3743 = vmatprep.subr.mxu0 0.0
    %3744 = vmatpush1.msra.mxu0 0.0
    %3745 = vmatprep.subr.mxu0 0.0
    %3746 = vmatpush1.msra.mxu0 0.0
    %3747 = vmatprep.subr.mxu0 0.0
    %3748 = vmatpush1.msra.mxu0 0.0
    %3749 = vmatprep.subr.mxu0 0.0
    %3750 = vmatpush1.msra.mxu0 0.0
    %3751 = vmatprep.subr.mxu0 0.0
    %3752 = vmatpush1.msra.mxu0 0.0
    %3753 = vmatprep.subr.mxu0 0.0
    %3754 = vmatpush1.msra.mxu0 0.0
    %3755 = vmatprep.subr.mxu0 0.0
    %3756 = vmatpush1.msra.mxu0 0.0
    %3757 = vmatprep.subr.mxu0 0.0
    %3758 = vmatpush1.msra.mxu0 0.0
    %3759 = vmatprep.subr.mxu0 0.0
    %3760 = vmatpush1.msra.mxu0 0.0
    %3761 = vmatprep.subr.mxu0 0.0
    %3762 = vmatpush1.msra.mxu0 0.0
    %3763 = vmatprep.subr.mxu0 0.0
    %3764 = vmatpush1.msra.mxu0 0.0
    %3765 = vmatprep.subr.mxu0 0.0
    %3766 = vmatpush1.msra.mxu0 0.0
    %3767 = vmatprep.subr.mxu0 0.0
    %3768 = vmatpush1.msra.mxu0 0.0
    %3769 = vmatprep.subr.mxu0 0.0
    %3770 = vmatpush1.msra.mxu0 0.0
    %3771 = vmatprep.subr.mxu0 0.0
    %3772 = vmatpush1.msra.mxu0 0.0
    %3773 = vmatprep.subr.mxu0 0.0
    %3774 = vmatpush1.msra.mxu0 0.0
    %3775 = vmatprep.mubr.f32.mxu0 0.0
    %3776 = vmatmul.mubr.f32.gmra.mrb[0].mxu0 %v3603
    %v3777 = vpop.f32.mrb[0].mxu0
    %v3778 = vadd.f32 0.0, %v3777
    %v3779 = vpop.f32.mrb[0].mxu0
    %3780 = vmatprep.mubr.f32.mxu0 0.0
    %3781 = vmatmul.mubr.f32.gmra.mrb[0].mxu0 %v3606
    %v3782 = vpop.f32.mrb[0].mxu0
    %v3783 = vadd.f32 0.0, %v3782
    %v3784 = vpop.f32.mrb[0].mxu0
    %3785 = vmatprep.mubr.f32.mxu0 0.0
    %3786 = vmatmul.mubr.f32.gmra.mrb[0].mxu0 %v3609
    %v3787 = vpop.f32.mrb[0].mxu0
    %v3788 = vadd.f32 0.0, %v3787
    %v3789 = vpop.f32.mrb[0].mxu0
    %3790 = vdwg.mxu0
    %v3791 = vadd.f32 %v3585, %v3778
    %v3792 = vadd.f32 %v3586, %v3783
    %v3793 = vadd.f32 %v3587, %v3788
    %v3794 = vmax.f32 %v3694, %v3791
    %v3795 = vmax.f32 %v3695, %v3792
    %v3796 = vmax.f32 %v3696, %v3793
    %v3797 = vld [vmem:[%s4] sm:$0xff]
    %v3798 = vld [vmem:[%s4 + $0x8] sm:$0xf]
    %v3800 = vsel %vm1090, %v3797, 0
    %v3803 = vsel %vm1090, %v3798, 0
    %3805 = vmatprep.subr.mxu0 0.0
    %3806 = vmatpush1.msra.mxu0 %v3794
    %3807 = vmatprep.subr.mxu0 0.0
    %3808 = vmatpush1.msra.mxu0 %v3795
    %3809 = vmatprep.subr.mxu0 0.0
    %3810 = vmatpush1.msra.mxu0 %v3796
    %3811 = vmatprep.subr.mxu0 0.0
    %3812 = vmatpush1.msra.mxu0 0.0
    %3813 = vmatprep.subr.mxu0 0.0
    %3814 = vmatpush1.msra.mxu0 0.0
    %3815 = vmatprep.subr.mxu0 0.0
    %3816 = vmatpush1.msra.mxu0 0.0
    %3817 = vmatprep.subr.mxu0 0.0
    %3818 = vmatpush1.msra.mxu0 0.0
    %3819 = vmatprep.subr.mxu0 0.0
    %3820 = vmatpush1.msra.mxu0 0.0
    %3821 = vmatprep.subr.mxu0 0.0
    %3822 = vmatpush1.msra.mxu0 0.0
    %3823 = vmatprep.subr.mxu0 0.0
    %3824 = vmatpush1.msra.mxu0 0.0
    %3825 = vmatprep.subr.mxu0 0.0
    %3826 = vmatpush1.msra.mxu0 0.0
    %3827 = vmatprep.subr.mxu0 0.0
    %3828 = vmatpush1.msra.mxu0 0.0
    %3829 = vmatprep.subr.mxu0 0.0
    %3830 = vmatpush1.msra.mxu0 0.0
    %3831 = vmatprep.subr.mxu0 0.0
    %3832 = vmatpush1.msra.mxu0 0.0
    %3833 = vmatprep.subr.mxu0 0.0
    %3834 = vmatpush1.msra.mxu0 0.0
    %3835 = vmatprep.subr.mxu0 0.0
    %3836 = vmatpush1.msra.mxu0 0.0
    %3837 = vmatprep.subr.mxu0 0.0
    %3838 = vmatpush1.msra.mxu0 0.0
    %3839 = vmatprep.subr.mxu0 0.0
    %3840 = vmatpush1.msra.mxu0 0.0
    %3841 = vmatprep.subr.mxu0 0.0
    %3842 = vmatpush1.msra.mxu0 0.0
    %3843 = vmatprep.subr.mxu0 0.0
    %3844 = vmatpush1.msra.mxu0 0.0
    %3845 = vmatprep.subr.mxu0 0.0
    %3846 = vmatpush1.msra.mxu0 0.0
    %3847 = vmatprep.subr.mxu0 0.0
    %3848 = vmatpush1.msra.mxu0 0.0
    %3849 = vmatprep.subr.mxu0 0.0
    %3850 = vmatpush1.msra.mxu0 0.0
    %3851 = vmatprep.subr.mxu0 0.0
    %3852 = vmatpush1.msra.mxu0 0.0
    %3853 = vmatprep.subr.mxu0 0.0
    %3854 = vmatpush1.msra.mxu0 0.0
    %3855 = vmatprep.subr.mxu0 0.0
    %3856 = vmatpush1.msra.mxu0 0.0
    %3857 = vmatprep.subr.mxu0 0.0
    %3858 = vmatpush1.msra.mxu0 0.0
    %3859 = vmatprep.subr.mxu0 0.0
    %3860 = vmatpush1.msra.mxu0 0.0
    %3861 = vmatprep.subr.mxu0 0.0
    %3862 = vmatpush1.msra.mxu0 0.0
    %3863 = vmatprep.subr.mxu0 0.0
    %3864 = vmatpush1.msra.mxu0 0.0
    %3865 = vmatprep.subr.mxu0 0.0
    %3866 = vmatpush1.msra.mxu0 0.0
    %3867 = vmatprep.subr.mxu0 0.0
    %3868 = vmatpush1.msra.mxu0 0.0
    %3869 = vmatprep.mubr.f32.mxu0 0.0
    %3870 = vmatmul.mubr.f32.gmra.mrb[0].mxu0 %v3800
    %v3871 = vpop.f32.mrb[0].mxu0
    %v3872 = vadd.f32 0.0, %v3871
    %v3873 = vpop.f32.mrb[0].mxu0
    %3874 = vmatprep.mubr.f32.mxu0 0.0
    %3875 = vmatmul.mubr.f32.gmra.mrb[0].mxu0 %v3803
    %v3876 = vpop.f32.mrb[0].mxu0
    %v3877 = vadd.f32 0.0, %v3876
    %v3878 = vpop.f32.mrb[0].mxu0
    %3879 = vdwg.mxu0
    %v3880 = vld [vmem:[%s5] sm:$0xff]
    %v3881 = vld [vmem:[%s5 + $0x8] sm:$0xf]
    %v3883 = vsel %vm1090, %v3880, 0
    %v3886 = vsel %vm1090, %v3881, 0
    %3888 = vmatprep.subr.mxu0 0.0
    %3889 = vmatpush1.msra.mxu0 %v3794
    %3890 = vmatprep.subr.mxu0 0.0
    %3891 = vmatpush1.msra.mxu0 %v3795
    %3892 = vmatprep.subr.mxu0 0.0
    %3893 = vmatpush1.msra.mxu0 %v3796
    %3894 = vmatprep.subr.mxu0 0.0
    %3895 = vmatpush1.msra.mxu0 0.0
    %3896 = vmatprep.subr.mxu0 0.0
    %3897 = vmatpush1.msra.mxu0 0.0
    %3898 = vmatprep.subr.mxu0 0.0
    %3899 = vmatpush1.msra.mxu0 0.0
    %3900 = vmatprep.subr.mxu0 0.0
    %3901 = vmatpush1.msra.mxu0 0.0
    %3902 = vmatprep.subr.mxu0 0.0
    %3903 = vmatpush1.msra.mxu0 0.0
    %3904 = vmatprep.subr.mxu0 0.0
    %3905 = vmatpush1.msra.mxu0 0.0
    %3906 = vmatprep.subr.mxu0 0.0
    %3907 = vmatpush1.msra.mxu0 0.0
    %3908 = vmatprep.subr.mxu0 0.0
    %3909 = vmatpush1.msra.mxu0 0.0
    %3910 = vmatprep.subr.mxu0 0.0
    %3911 = vmatpush1.msra.mxu0 0.0
    %3912 = vmatprep.subr.mxu0 0.0
    %3913 = vmatpush1.msra.mxu0 0.0
    %3914 = vmatprep.subr.mxu0 0.0
    %3915 = vmatpush1.msra.mxu0 0.0
    %3916 = vmatprep.subr.mxu0 0.0
    %3917 = vmatpush1.msra.mxu0 0.0
    %3918 = vmatprep.subr.mxu0 0.0
    %3919 = vmatpush1.msra.mxu0 0.0
    %3920 = vmatprep.subr.mxu0 0.0
    %3921 = vmatpush1.msra.mxu0 0.0
    %3922 = vmatprep.subr.mxu0 0.0
    %3923 = vmatpush1.msra.mxu0 0.0
    %3924 = vmatprep.subr.mxu0 0.0
    %3925 = vmatpush1.msra.mxu0 0.0
    %3926 = vmatprep.subr.mxu0 0.0
    %3927 = vmatpush1.msra.mxu0 0.0
    %3928 = vmatprep.subr.mxu0 0.0
    %3929 = vmatpush1.msra.mxu0 0.0
    %3930 = vmatprep.subr.mxu0 0.0
    %3931 = vmatpush1.msra.mxu0 0.0
    %3932 = vmatprep.subr.mxu0 0.0
    %3933 = vmatpush1.msra.mxu0 0.0
    %3934 = vmatprep.subr.mxu0 0.0
    %3935 = vmatpush1.msra.mxu0 0.0
    %3936 = vmatprep.subr.mxu0 0.0
    %3937 = vmatpush1.msra.mxu0 0.0
    %3938 = vmatprep.subr.mxu0 0.0
    %3939 = vmatpush1.msra.mxu0 0.0
    %3940 = vmatprep.subr.mxu0 0.0
    %3941 = vmatpush1.msra.mxu0 0.0
    %3942 = vmatprep.subr.mxu0 0.0
    %3943 = vmatpush1.msra.mxu0 0.0
    %3944 = vmatprep.subr.mxu0 0.0
    %3945 = vmatpush1.msra.mxu0 0.0
    %3946 = vmatprep.subr.mxu0 0.0
    %3947 = vmatpush1.msra.mxu0 0.0
    %3948 = vmatprep.subr.mxu0 0.0
    %3949 = vmatpush1.msra.mxu0 0.0
    %3950 = vmatprep.subr.mxu0 0.0
    %3951 = vmatpush1.msra.mxu0 0.0
    %3952 = vmatprep.mubr.f32.mxu0 0.0
    %3953 = vmatmul.mubr.f32.gmra.mrb[0].mxu0 %v3883
    %v3954 = vpop.f32.mrb[0].mxu0
    %v3955 = vadd.f32 0.0, %v3954
    %v3956 = vpop.f32.mrb[0].mxu0
    %3957 = vmatprep.mubr.f32.mxu0 0.0
    %3958 = vmatmul.mubr.f32.gmra.mrb[0].mxu0 %v3886
    %v3959 = vpop.f32.mrb[0].mxu0
    %v3960 = vadd.f32 0.0, %v3959
    %v3961 = vpop.f32.mrb[0].mxu0
    %3962 = vdwg.mxu0
    %v3963 = vmax.f32 %v3872, %v3955
    %v3964 = vmax.f32 %v3877, %v3960
    %v3965 = vld [vmem:[%s3] sm:$0x1]
    %v3967 = vlaneseq
    %v3968 = vshrl.u32 %v3967, 7
    %v3969 = vsub.s32 0, %v3968
    %v3970 = vrot.slane %v3965, %v3969
    %v3972 = vadd.f32 %v3963, %v3970
    %v3973 = vadd.f32 %v3964, %v3970
    %v3974 = vmax.f32 %v3972, 0.0
    %v3975 = vmax.f32 %v3973, 0.0
    %s3976 = scalar_lea.vmem [#allocation2], 16
    %3977 = vst.msk [vmem:[%s3976] sm:$0xff] %vm1268, %v3974
    %3978 = vst.msk [vmem:[%s3976 + $0x8] sm:$0xf] %vm1270, %v3975
    %v3979 = vld [vmem:[%s3976] sm:$0xff]
    %v3980 = vld [vmem:[%s6] sm:$0xff]
    %v3981 = vld [vmem:[%s6 + $0x8] sm:$0xff]
    %v3982 = vld [vmem:[%s6 + $0x10] sm:$0xff]
    %v3983 = vld [vmem:[%s6 + $0x18] sm:$0xff]
    %v3984 = vld [vmem:[%s6 + $0x20] sm:$0xff]
    %v3985 = vld [vmem:[%s6 + $0x28] sm:$0xff]
    %v3986 = vld [vmem:[%s6 + $0x30] sm:$0xff]
    %v3987 = vld [vmem:[%s6 + $0x38] sm:$0xff]
    %v3988 = vld [vmem:[%s6 + $0x40] sm:$0xff]
    %v3989 = vld [vmem:[%s7] sm:$0xff]
    %v3990 = vld [vmem:[%s7 + $0x8] sm:$0xff]
    %v3991 = vld [vmem:[%s7 + $0x10] sm:$0xff]
    %v3992 = vld [vmem:[%s7 + $0x18] sm:$0xff]
    %v3993 = vld [vmem:[%s7 + $0x20] sm:$0xff]
    %v3994 = vld [vmem:[%s7 + $0x28] sm:$0xff]
    %v3995 = vld [vmem:[%s7 + $0x30] sm:$0xff]
    %v3996 = vld [vmem:[%s7 + $0x38] sm:$0xff]
    %v3997 = vld [vmem:[%s7 + $0x40] sm:$0xff]
    %v3998 = vld [vmem:[%s3976 + $0x1] sm:$0xff]
    %v3999 = vld [vmem:[%s1292] sm:$0xff]
    %v4000 = vld [vmem:[%s1292 + $0x8] sm:$0xff]
    %v4001 = vld [vmem:[%s1292 + $0x10] sm:$0xff]
    %v4002 = vld [vmem:[%s1292 + $0x18] sm:$0xff]
    %v4003 = vld [vmem:[%s1292 + $0x20] sm:$0xff]
    %v4004 = vld [vmem:[%s1292 + $0x28] sm:$0xff]
    %v4005 = vld [vmem:[%s1292 + $0x30] sm:$0xff]
    %v4006 = vld [vmem:[%s1292 + $0x38] sm:$0xff]
    %v4007 = vld [vmem:[%s1292 + $0x40] sm:$0xff]
    %v4009 = vsel %vm1268, %v3998, 0
    %4011 = vmatprep.subr.mxu0 0.0
    %4012 = vmatpush1.msra.mxu0 %v3999
    %4013 = vmatprep.subr.mxu0 0.0
    %4014 = vmatpush1.msra.mxu0 %v4000
    %4015 = vmatprep.subr.mxu0 0.0
    %4016 = vmatpush1.msra.mxu0 %v4001
    %4017 = vmatprep.subr.mxu0 0.0
    %4018 = vmatpush1.msra.mxu0 %v4002
    %4019 = vmatprep.subr.mxu0 0.0
    %4020 = vmatpush1.msra.mxu0 %v4003
    %4021 = vmatprep.subr.mxu0 0.0
    %4022 = vmatpush1.msra.mxu0 %v4004
    %4023 = vmatprep.subr.mxu0 0.0
    %4024 = vmatpush1.msra.mxu0 %v4005
    %4025 = vmatprep.subr.mxu0 0.0
    %4026 = vmatpush1.msra.mxu0 %v4006
    %4027 = vmatprep.subr.mxu0 0.0
    %4028 = vmatpush1.msra.mxu0 %v4007
    %4029 = vmatprep.subr.mxu0 0.0
    %4030 = vmatpush1.msra.mxu0 0.0
    %4031 = vmatprep.subr.mxu0 0.0
    %4032 = vmatpush1.msra.mxu0 0.0
    %4033 = vmatprep.subr.mxu0 0.0
    %4034 = vmatpush1.msra.mxu0 0.0
    %4035 = vmatprep.subr.mxu0 0.0
    %4036 = vmatpush1.msra.mxu0 0.0
    %4037 = vmatprep.subr.mxu0 0.0
    %4038 = vmatpush1.msra.mxu0 0.0
    %4039 = vmatprep.subr.mxu0 0.0
    %4040 = vmatpush1.msra.mxu0 0.0
    %4041 = vmatprep.subr.mxu0 0.0
    %4042 = vmatpush1.msra.mxu0 0.0
    %4043 = vmatprep.subr.mxu0 0.0
    %4044 = vmatpush1.msra.mxu0 0.0
    %4045 = vmatprep.subr.mxu0 0.0
    %4046 = vmatpush1.msra.mxu0 0.0
    %4047 = vmatprep.subr.mxu0 0.0
    %4048 = vmatpush1.msra.mxu0 0.0
    %4049 = vmatprep.subr.mxu0 0.0
    %4050 = vmatpush1.msra.mxu0 0.0
    %4051 = vmatprep.subr.mxu0 0.0
    %4052 = vmatpush1.msra.mxu0 0.0
    %4053 = vmatprep.subr.mxu0 0.0
    %4054 = vmatpush1.msra.mxu0 0.0
    %4055 = vmatprep.subr.mxu0 0.0
    %4056 = vmatpush1.msra.mxu0 0.0
    %4057 = vmatprep.subr.mxu0 0.0
    %4058 = vmatpush1.msra.mxu0 0.0
    %4059 = vmatprep.subr.mxu0 0.0
    %4060 = vmatpush1.msra.mxu0 0.0
    %4061 = vmatprep.subr.mxu0 0.0
    %4062 = vmatpush1.msra.mxu0 0.0
    %4063 = vmatprep.subr.mxu0 0.0
    %4064 = vmatpush1.msra.mxu0 0.0
    %4065 = vmatprep.subr.mxu0 0.0
    %4066 = vmatpush1.msra.mxu0 0.0
    %4067 = vmatprep.subr.mxu0 0.0
    %4068 = vmatpush1.msra.mxu0 0.0
    %4069 = vmatprep.subr.mxu0 0.0
    %4070 = vmatpush1.msra.mxu0 0.0
    %4071 = vmatprep.subr.mxu0 0.0
    %4072 = vmatpush1.msra.mxu0 0.0
    %4073 = vmatprep.subr.mxu0 0.0
    %4074 = vmatpush1.msra.mxu0 0.0
    %4075 = vmatprep.mubr.f32.mxu0 0.0
    %4076 = vmatmul.mubr.f32.gmra.mrb[0].mxu0 %v4009
    %v4077 = vpop.f32.mrb[0].mxu0
    %v4078 = vadd.f32 0.0, %v4077
    %v4079 = vpop.f32.mrb[0].mxu0
    %4080 = vdwg.mxu0
    %v4082 = vsel %vm1268, %v3979, 0
    %4084 = vmatprep.subr.mxu0 0.0
    %4085 = vmatpush1.msra.mxu0 %v3980
    %4086 = vmatprep.subr.mxu0 0.0
    %4087 = vmatpush1.msra.mxu0 %v3981
    %4088 = vmatprep.subr.mxu0 0.0
    %4089 = vmatpush1.msra.mxu0 %v3982
    %4090 = vmatprep.subr.mxu0 0.0
    %4091 = vmatpush1.msra.mxu0 %v3983
    %4092 = vmatprep.subr.mxu0 0.0
    %4093 = vmatpush1.msra.mxu0 %v3984
    %4094 = vmatprep.subr.mxu0 0.0
    %4095 = vmatpush1.msra.mxu0 %v3985
    %4096 = vmatprep.subr.mxu0 0.0
    %4097 = vmatpush1.msra.mxu0 %v3986
    %4098 = vmatprep.subr.mxu0 0.0
    %4099 = vmatpush1.msra.mxu0 %v3987
    %4100 = vmatprep.subr.mxu0 0.0
    %4101 = vmatpush1.msra.mxu0 %v3988
    %4102 = vmatprep.subr.mxu0 0.0
    %4103 = vmatpush1.msra.mxu0 0.0
    %4104 = vmatprep.subr.mxu0 0.0
    %4105 = vmatpush1.msra.mxu0 0.0
    %4106 = vmatprep.subr.mxu0 0.0
    %4107 = vmatpush1.msra.mxu0 0.0
    %4108 = vmatprep.subr.mxu0 0.0
    %4109 = vmatpush1.msra.mxu0 0.0
    %4110 = vmatprep.subr.mxu0 0.0
    %4111 = vmatpush1.msra.mxu0 0.0
    %4112 = vmatprep.subr.mxu0 0.0
    %4113 = vmatpush1.msra.mxu0 0.0
    %4114 = vmatprep.subr.mxu0 0.0
    %4115 = vmatpush1.msra.mxu0 0.0
    %4116 = vmatprep.subr.mxu0 0.0
    %4117 = vmatpush1.msra.mxu0 0.0
    %4118 = vmatprep.subr.mxu0 0.0
    %4119 = vmatpush1.msra.mxu0 0.0
    %4120 = vmatprep.subr.mxu0 0.0
    %4121 = vmatpush1.msra.mxu0 0.0
    %4122 = vmatprep.subr.mxu0 0.0
    %4123 = vmatpush1.msra.mxu0 0.0
    %4124 = vmatprep.subr.mxu0 0.0
    %4125 = vmatpush1.msra.mxu0 0.0
    %4126 = vmatprep.subr.mxu0 0.0
    %4127 = vmatpush1.msra.mxu0 0.0
    %4128 = vmatprep.subr.mxu0 0.0
    %4129 = vmatpush1.msra.mxu0 0.0
    %4130 = vmatprep.subr.mxu0 0.0
    %4131 = vmatpush1.msra.mxu0 0.0
    %4132 = vmatprep.subr.mxu0 0.0
    %4133 = vmatpush1.msra.mxu0 0.0
    %4134 = vmatprep.subr.mxu0 0.0
    %4135 = vmatpush1.msra.mxu0 0.0
    %4136 = vmatprep.subr.mxu0 0.0
    %4137 = vmatpush1.msra.mxu0 0.0
    %4138 = vmatprep.subr.mxu0 0.0
    %4139 = vmatpush1.msra.mxu0 0.0
    %4140 = vmatprep.subr.mxu0 0.0
    %4141 = vmatpush1.msra.mxu0 0.0
    %4142 = vmatprep.subr.mxu0 0.0
    %4143 = vmatpush1.msra.mxu0 0.0
    %4144 = vmatprep.subr.mxu0 0.0
    %4145 = vmatpush1.msra.mxu0 0.0
    %4146 = vmatprep.subr.mxu0 0.0
    %4147 = vmatpush1.msra.mxu0 0.0
    %4148 = vmatprep.mubr.f32.mxu0 0.0
    %4149 = vmatmul.mubr.f32.gmra.mrb[0].mxu0 %v4082
    %v4150 = vpop.f32.mrb[0].mxu0
    %v4151 = vadd.f32 %v4078, %v4150
    %v4152 = vpop.f32.mrb[0].mxu0
    %4153 = vdwg.mxu0
    %v4154 = vld [vmem:[%s1448] sm:$0xff]
    %v4155 = vld [vmem:[%s1448 + $0x8] sm:$0xff]
    %v4156 = vld [vmem:[%s1448 + $0x10] sm:$0xff]
    %v4157 = vld [vmem:[%s1448 + $0x18] sm:$0xff]
    %v4158 = vld [vmem:[%s1448 + $0x20] sm:$0xff]
    %v4159 = vld [vmem:[%s1448 + $0x28] sm:$0xff]
    %v4160 = vld [vmem:[%s1448 + $0x30] sm:$0xff]
    %v4161 = vld [vmem:[%s1448 + $0x38] sm:$0xff]
    %v4162 = vld [vmem:[%s1448 + $0x40] sm:$0xff]
    %4163 = vmatprep.subr.mxu0 0.0
    %4164 = vmatpush1.msra.mxu0 %v4154
    %4165 = vmatprep.subr.mxu0 0.0
    %4166 = vmatpush1.msra.mxu0 %v4155
    %4167 = vmatprep.subr.mxu0 0.0
    %4168 = vmatpush1.msra.mxu0 %v4156
    %4169 = vmatprep.subr.mxu0 0.0
    %4170 = vmatpush1.msra.mxu0 %v4157
    %4171 = vmatprep.subr.mxu0 0.0
    %4172 = vmatpush1.msra.mxu0 %v4158
    %4173 = vmatprep.subr.mxu0 0.0
    %4174 = vmatpush1.msra.mxu0 %v4159
    %4175 = vmatprep.subr.mxu0 0.0
    %4176 = vmatpush1.msra.mxu0 %v4160
    %4177 = vmatprep.subr.mxu0 0.0
    %4178 = vmatpush1.msra.mxu0 %v4161
    %4179 = vmatprep.subr.mxu0 0.0
    %4180 = vmatpush1.msra.mxu0 %v4162
    %4181 = vmatprep.subr.mxu0 0.0
    %4182 = vmatpush1.msra.mxu0 0.0
    %4183 = vmatprep.subr.mxu0 0.0
    %4184 = vmatpush1.msra.mxu0 0.0
    %4185 = vmatprep.subr.mxu0 0.0
    %4186 = vmatpush1.msra.mxu0 0.0
    %4187 = vmatprep.subr.mxu0 0.0
    %4188 = vmatpush1.msra.mxu0 0.0
    %4189 = vmatprep.subr.mxu0 0.0
    %4190 = vmatpush1.msra.mxu0 0.0
    %4191 = vmatprep.subr.mxu0 0.0
    %4192 = vmatpush1.msra.mxu0 0.0
    %4193 = vmatprep.subr.mxu0 0.0
    %4194 = vmatpush1.msra.mxu0 0.0
    %4195 = vmatprep.subr.mxu0 0.0
    %4196 = vmatpush1.msra.mxu0 0.0
    %4197 = vmatprep.subr.mxu0 0.0
    %4198 = vmatpush1.msra.mxu0 0.0
    %4199 = vmatprep.subr.mxu0 0.0
    %4200 = vmatpush1.msra.mxu0 0.0
    %4201 = vmatprep.subr.mxu0 0.0
    %4202 = vmatpush1.msra.mxu0 0.0
    %4203 = vmatprep.subr.mxu0 0.0
    %4204 = vmatpush1.msra.mxu0 0.0
    %4205 = vmatprep.subr.mxu0 0.0
    %4206 = vmatpush1.msra.mxu0 0.0
    %4207 = vmatprep.subr.mxu0 0.0
    %4208 = vmatpush1.msra.mxu0 0.0
    %4209 = vmatprep.subr.mxu0 0.0
    %4210 = vmatpush1.msra.mxu0 0.0
    %4211 = vmatprep.subr.mxu0 0.0
    %4212 = vmatpush1.msra.mxu0 0.0
    %4213 = vmatprep.subr.mxu0 0.0
    %4214 = vmatpush1.msra.mxu0 0.0
    %4215 = vmatprep.subr.mxu0 0.0
    %4216 = vmatpush1.msra.mxu0 0.0
    %4217 = vmatprep.subr.mxu0 0.0
    %4218 = vmatpush1.msra.mxu0 0.0
    %4219 = vmatprep.subr.mxu0 0.0
    %4220 = vmatpush1.msra.mxu0 0.0
    %4221 = vmatprep.subr.mxu0 0.0
    %4222 = vmatpush1.msra.mxu0 0.0
    %4223 = vmatprep.subr.mxu0 0.0
    %4224 = vmatpush1.msra.mxu0 0.0
    %4225 = vmatprep.subr.mxu0 0.0
    %4226 = vmatpush1.msra.mxu0 0.0
    %4227 = vmatprep.mubr.f32.mxu0 0.0
    %4228 = vmatmul.mubr.f32.gmra.mrb[0].mxu0 %v4009
    %v4229 = vpop.f32.mrb[0].mxu0
    %v4230 = vadd.f32 0.0, %v4229
    %v4231 = vpop.f32.mrb[0].mxu0
    %4232 = vdwg.mxu0
    %4233 = vmatprep.subr.mxu0 0.0
    %4234 = vmatpush1.msra.mxu0 %v3989
    %4235 = vmatprep.subr.mxu0 0.0
    %4236 = vmatpush1.msra.mxu0 %v3990
    %4237 = vmatprep.subr.mxu0 0.0
    %4238 = vmatpush1.msra.mxu0 %v3991
    %4239 = vmatprep.subr.mxu0 0.0
    %4240 = vmatpush1.msra.mxu0 %v3992
    %4241 = vmatprep.subr.mxu0 0.0
    %4242 = vmatpush1.msra.mxu0 %v3993
    %4243 = vmatprep.subr.mxu0 0.0
    %4244 = vmatpush1.msra.mxu0 %v3994
    %4245 = vmatprep.subr.mxu0 0.0
    %4246 = vmatpush1.msra.mxu0 %v3995
    %4247 = vmatprep.subr.mxu0 0.0
    %4248 = vmatpush1.msra.mxu0 %v3996
    %4249 = vmatprep.subr.mxu0 0.0
    %4250 = vmatpush1.msra.mxu0 %v3997
    %4251 = vmatprep.subr.mxu0 0.0
    %4252 = vmatpush1.msra.mxu0 0.0
    %4253 = vmatprep.subr.mxu0 0.0
    %4254 = vmatpush1.msra.mxu0 0.0
    %4255 = vmatprep.subr.mxu0 0.0
    %4256 = vmatpush1.msra.mxu0 0.0
    %4257 = vmatprep.subr.mxu0 0.0
    %4258 = vmatpush1.msra.mxu0 0.0
    %4259 = vmatprep.subr.mxu0 0.0
    %4260 = vmatpush1.msra.mxu0 0.0
    %4261 = vmatprep.subr.mxu0 0.0
    %4262 = vmatpush1.msra.mxu0 0.0
    %4263 = vmatprep.subr.mxu0 0.0
    %4264 = vmatpush1.msra.mxu0 0.0
    %4265 = vmatprep.subr.mxu0 0.0
    %4266 = vmatpush1.msra.mxu0 0.0
    %4267 = vmatprep.subr.mxu0 0.0
    %4268 = vmatpush1.msra.mxu0 0.0
    %4269 = vmatprep.subr.mxu0 0.0
    %4270 = vmatpush1.msra.mxu0 0.0
    %4271 = vmatprep.subr.mxu0 0.0
    %4272 = vmatpush1.msra.mxu0 0.0
    %4273 = vmatprep.subr.mxu0 0.0
    %4274 = vmatpush1.msra.mxu0 0.0
    %4275 = vmatprep.subr.mxu0 0.0
    %4276 = vmatpush1.msra.mxu0 0.0
    %4277 = vmatprep.subr.mxu0 0.0
    %4278 = vmatpush1.msra.mxu0 0.0
    %4279 = vmatprep.subr.mxu0 0.0
    %4280 = vmatpush1.msra.mxu0 0.0
    %4281 = vmatprep.subr.mxu0 0.0
    %4282 = vmatpush1.msra.mxu0 0.0
    %4283 = vmatprep.subr.mxu0 0.0
    %4284 = vmatpush1.msra.mxu0 0.0
    %4285 = vmatprep.subr.mxu0 0.0
    %4286 = vmatpush1.msra.mxu0 0.0
    %4287 = vmatprep.subr.mxu0 0.0
    %4288 = vmatpush1.msra.mxu0 0.0
    %4289 = vmatprep.subr.mxu0 0.0
    %4290 = vmatpush1.msra.mxu0 0.0
    %4291 = vmatprep.subr.mxu0 0.0
    %4292 = vmatpush1.msra.mxu0 0.0
    %4293 = vmatprep.subr.mxu0 0.0
    %4294 = vmatpush1.msra.mxu0 0.0
    %4295 = vmatprep.subr.mxu0 0.0
    %4296 = vmatpush1.msra.mxu0 0.0
    %4297 = vmatprep.mubr.f32.mxu0 0.0
    %4298 = vmatmul.mubr.f32.gmra.mrb[0].mxu0 %v4082
    %v4299 = vpop.f32.mrb[0].mxu0
    %v4300 = vadd.f32 %v4230, %v4299
    %v4301 = vpop.f32.mrb[0].mxu0
    %4302 = vdwg.mxu0
    %v4303 = vld [vmem:[%s3976 + $0x2] sm:$0xff]
    %v4304 = vld [vmem:[%s1599] sm:$0xff]
    %v4305 = vld [vmem:[%s1599 + $0x8] sm:$0xff]
    %v4306 = vld [vmem:[%s1599 + $0x10] sm:$0xff]
    %v4307 = vld [vmem:[%s1599 + $0x18] sm:$0xff]
    %v4308 = vld [vmem:[%s1599 + $0x20] sm:$0xff]
    %v4309 = vld [vmem:[%s1599 + $0x28] sm:$0xff]
    %v4310 = vld [vmem:[%s1599 + $0x30] sm:$0xff]
    %v4311 = vld [vmem:[%s1599 + $0x38] sm:$0xff]
    %v4312 = vld [vmem:[%s1599 + $0x40] sm:$0xff]
    %v4314 = vsel %vm1268, %v4303, 0
    %4316 = vmatprep.subr.mxu0 0.0
    %4317 = vmatpush1.msra.mxu0 %v4304
    %4318 = vmatprep.subr.mxu0 0.0
    %4319 = vmatpush1.msra.mxu0 %v4305
    %4320 = vmatprep.subr.mxu0 0.0
    %4321 = vmatpush1.msra.mxu0 %v4306
    %4322 = vmatprep.subr.mxu0 0.0
    %4323 = vmatpush1.msra.mxu0 %v4307
    %4324 = vmatprep.subr.mxu0 0.0
    %4325 = vmatpush1.msra.mxu0 %v4308
    %4326 = vmatprep.subr.mxu0 0.0
    %4327 = vmatpush1.msra.mxu0 %v4309
    %4328 = vmatprep.subr.mxu0 0.0
    %4329 = vmatpush1.msra.mxu0 %v4310
    %4330 = vmatprep.subr.mxu0 0.0
    %4331 = vmatpush1.msra.mxu0 %v4311
    %4332 = vmatprep.subr.mxu0 0.0
    %4333 = vmatpush1.msra.mxu0 %v4312
    %4334 = vmatprep.subr.mxu0 0.0
    %4335 = vmatpush1.msra.mxu0 0.0
    %4336 = vmatprep.subr.mxu0 0.0
    %4337 = vmatpush1.msra.mxu0 0.0
    %4338 = vmatprep.subr.mxu0 0.0
    %4339 = vmatpush1.msra.mxu0 0.0
    %4340 = vmatprep.subr.mxu0 0.0
    %4341 = vmatpush1.msra.mxu0 0.0
    %4342 = vmatprep.subr.mxu0 0.0
    %4343 = vmatpush1.msra.mxu0 0.0
    %4344 = vmatprep.subr.mxu0 0.0
    %4345 = vmatpush1.msra.mxu0 0.0
    %4346 = vmatprep.subr.mxu0 0.0
    %4347 = vmatpush1.msra.mxu0 0.0
    %4348 = vmatprep.subr.mxu0 0.0
    %4349 = vmatpush1.msra.mxu0 0.0
    %4350 = vmatprep.subr.mxu0 0.0
    %4351 = vmatpush1.msra.mxu0 0.0
    %4352 = vmatprep.subr.mxu0 0.0
    %4353 = vmatpush1.msra.mxu0 0.0
    %4354 = vmatprep.subr.mxu0 0.0
    %4355 = vmatpush1.msra.mxu0 0.0
    %4356 = vmatprep.subr.mxu0 0.0
    %4357 = vmatpush1.msra.mxu0 0.0
    %4358 = vmatprep.subr.mxu0 0.0
    %4359 = vmatpush1.msra.mxu0 0.0
    %4360 = vmatprep.subr.mxu0 0.0
    %4361 = vmatpush1.msra.mxu0 0.0
    %4362 = vmatprep.subr.mxu0 0.0
    %4363 = vmatpush1.msra.mxu0 0.0
    %4364 = vmatprep.subr.mxu0 0.0
    %4365 = vmatpush1.msra.mxu0 0.0
    %4366 = vmatprep.subr.mxu0 0.0
    %4367 = vmatpush1.msra.mxu0 0.0
    %4368 = vmatprep.subr.mxu0 0.0
    %4369 = vmatpush1.msra.mxu0 0.0
    %4370 = vmatprep.subr.mxu0 0.0
    %4371 = vmatpush1.msra.mxu0 0.0
    %4372 = vmatprep.subr.mxu0 0.0
    %4373 = vmatpush1.msra.mxu0 0.0
    %4374 = vmatprep.subr.mxu0 0.0
    %4375 = vmatpush1.msra.mxu0 0.0
    %4376 = vmatprep.subr.mxu0 0.0
    %4377 = vmatpush1.msra.mxu0 0.0
    %4378 = vmatprep.subr.mxu0 0.0
    %4379 = vmatpush1.msra.mxu0 0.0
    %4380 = vmatprep.mubr.f32.mxu0 0.0
    %4381 = vmatmul.mubr.f32.gmra.mrb[0].mxu0 %v4314
    %v4382 = vpop.f32.mrb[0].mxu0
    %v4383 = vadd.f32 0.0, %v4382
    %v4384 = vpop.f32.mrb[0].mxu0
    %4385 = vdwg.mxu0
    %v4386 = vadd.f32 %v4151, %v4383
    %v4387 = vld [vmem:[%s1683] sm:$0xff]
    %v4388 = vld [vmem:[%s1683 + $0x8] sm:$0xff]
    %v4389 = vld [vmem:[%s1683 + $0x10] sm:$0xff]
    %v4390 = vld [vmem:[%s1683 + $0x18] sm:$0xff]
    %v4391 = vld [vmem:[%s1683 + $0x20] sm:$0xff]
    %v4392 = vld [vmem:[%s1683 + $0x28] sm:$0xff]
    %v4393 = vld [vmem:[%s1683 + $0x30] sm:$0xff]
    %v4394 = vld [vmem:[%s1683 + $0x38] sm:$0xff]
    %v4395 = vld [vmem:[%s1683 + $0x40] sm:$0xff]
    %4396 = vmatprep.subr.mxu0 0.0
    %4397 = vmatpush1.msra.mxu0 %v4387
    %4398 = vmatprep.subr.mxu0 0.0
    %4399 = vmatpush1.msra.mxu0 %v4388
    %4400 = vmatprep.subr.mxu0 0.0
    %4401 = vmatpush1.msra.mxu0 %v4389
    %4402 = vmatprep.subr.mxu0 0.0
    %4403 = vmatpush1.msra.mxu0 %v4390
    %4404 = vmatprep.subr.mxu0 0.0
    %4405 = vmatpush1.msra.mxu0 %v4391
    %4406 = vmatprep.subr.mxu0 0.0
    %4407 = vmatpush1.msra.mxu0 %v4392
    %4408 = vmatprep.subr.mxu0 0.0
    %4409 = vmatpush1.msra.mxu0 %v4393
    %4410 = vmatprep.subr.mxu0 0.0
    %4411 = vmatpush1.msra.mxu0 %v4394
    %4412 = vmatprep.subr.mxu0 0.0
    %4413 = vmatpush1.msra.mxu0 %v4395
    %4414 = vmatprep.subr.mxu0 0.0
    %4415 = vmatpush1.msra.mxu0 0.0
    %4416 = vmatprep.subr.mxu0 0.0
    %4417 = vmatpush1.msra.mxu0 0.0
    %4418 = vmatprep.subr.mxu0 0.0
    %4419 = vmatpush1.msra.mxu0 0.0
    %4420 = vmatprep.subr.mxu0 0.0
    %4421 = vmatpush1.msra.mxu0 0.0
    %4422 = vmatprep.subr.mxu0 0.0
    %4423 = vmatpush1.msra.mxu0 0.0
    %4424 = vmatprep.subr.mxu0 0.0
    %4425 = vmatpush1.msra.mxu0 0.0
    %4426 = vmatprep.subr.mxu0 0.0
    %4427 = vmatpush1.msra.mxu0 0.0
    %4428 = vmatprep.subr.mxu0 0.0
    %4429 = vmatpush1.msra.mxu0 0.0
    %4430 = vmatprep.subr.mxu0 0.0
    %4431 = vmatpush1.msra.mxu0 0.0
    %4432 = vmatprep.subr.mxu0 0.0
    %4433 = vmatpush1.msra.mxu0 0.0
    %4434 = vmatprep.subr.mxu0 0.0
    %4435 = vmatpush1.msra.mxu0 0.0
    %4436 = vmatprep.subr.mxu0 0.0
    %4437 = vmatpush1.msra.mxu0 0.0
    %4438 = vmatprep.subr.mxu0 0.0
    %4439 = vmatpush1.msra.mxu0 0.0
    %4440 = vmatprep.subr.mxu0 0.0
    %4441 = vmatpush1.msra.mxu0 0.0
    %4442 = vmatprep.subr.mxu0 0.0
    %4443 = vmatpush1.msra.mxu0 0.0
    %4444 = vmatprep.subr.mxu0 0.0
    %4445 = vmatpush1.msra.mxu0 0.0
    %4446 = vmatprep.subr.mxu0 0.0
    %4447 = vmatpush1.msra.mxu0 0.0
    %4448 = vmatprep.subr.mxu0 0.0
    %4449 = vmatpush1.msra.mxu0 0.0
    %4450 = vmatprep.subr.mxu0 0.0
    %4451 = vmatpush1.msra.mxu0 0.0
    %4452 = vmatprep.subr.mxu0 0.0
    %4453 = vmatpush1.msra.mxu0 0.0
    %4454 = vmatprep.subr.mxu0 0.0
    %4455 = vmatpush1.msra.mxu0 0.0
    %4456 = vmatprep.subr.mxu0 0.0
    %4457 = vmatpush1.msra.mxu0 0.0
    %4458 = vmatprep.subr.mxu0 0.0
    %4459 = vmatpush1.msra.mxu0 0.0
    %4460 = vmatprep.mubr.f32.mxu0 0.0
    %4461 = vmatmul.mubr.f32.gmra.mrb[0].mxu0 %v4314
    %v4462 = vpop.f32.mrb[0].mxu0
    %v4463 = vadd.f32 0.0, %v4462
    %v4464 = vpop.f32.mrb[0].mxu0
    %4465 = vdwg.mxu0
    %v4466 = vadd.f32 %v4300, %v4463
    %v4467 = vld [vmem:[%s3976 + $0x3] sm:$0xff]
    %v4468 = vld [vmem:[%s1765] sm:$0xff]
    %v4469 = vld [vmem:[%s1765 + $0x8] sm:$0xff]
    %v4470 = vld [vmem:[%s1765 + $0x10] sm:$0xff]
    %v4471 = vld [vmem:[%s1765 + $0x18] sm:$0xff]
    %v4472 = vld [vmem:[%s1765 + $0x20] sm:$0xff]
    %v4473 = vld [vmem:[%s1765 + $0x28] sm:$0xff]
    %v4474 = vld [vmem:[%s1765 + $0x30] sm:$0xff]
    %v4475 = vld [vmem:[%s1765 + $0x38] sm:$0xff]
    %v4476 = vld [vmem:[%s1765 + $0x40] sm:$0xff]
    %v4478 = vsel %vm1268, %v4467, 0
    %4480 = vmatprep.subr.mxu0 0.0
    %4481 = vmatpush1.msra.mxu0 %v4468
    %4482 = vmatprep.subr.mxu0 0.0
    %4483 = vmatpush1.msra.mxu0 %v4469
    %4484 = vmatprep.subr.mxu0 0.0
    %4485 = vmatpush1.msra.mxu0 %v4470
    %4486 = vmatprep.subr.mxu0 0.0
    %4487 = vmatpush1.msra.mxu0 %v4471
    %4488 = vmatprep.subr.mxu0 0.0
    %4489 = vmatpush1.msra.mxu0 %v4472
    %4490 = vmatprep.subr.mxu0 0.0
    %4491 = vmatpush1.msra.mxu0 %v4473
    %4492 = vmatprep.subr.mxu0 0.0
    %4493 = vmatpush1.msra.mxu0 %v4474
    %4494 = vmatprep.subr.mxu0 0.0
    %4495 = vmatpush1.msra.mxu0 %v4475
    %4496 = vmatprep.subr.mxu0 0.0
    %4497 = vmatpush1.msra.mxu0 %v4476
    %4498 = vmatprep.subr.mxu0 0.0
    %4499 = vmatpush1.msra.mxu0 0.0
    %4500 = vmatprep.subr.mxu0 0.0
    %4501 = vmatpush1.msra.mxu0 0.0
    %4502 = vmatprep.subr.mxu0 0.0
    %4503 = vmatpush1.msra.mxu0 0.0
    %4504 = vmatprep.subr.mxu0 0.0
    %4505 = vmatpush1.msra.mxu0 0.0
    %4506 = vmatprep.subr.mxu0 0.0
    %4507 = vmatpush1.msra.mxu0 0.0
    %4508 = vmatprep.subr.mxu0 0.0
    %4509 = vmatpush1.msra.mxu0 0.0
    %4510 = vmatprep.subr.mxu0 0.0
    %4511 = vmatpush1.msra.mxu0 0.0
    %4512 = vmatprep.subr.mxu0 0.0
    %4513 = vmatpush1.msra.mxu0 0.0
    %4514 = vmatprep.subr.mxu0 0.0
    %4515 = vmatpush1.msra.mxu0 0.0
    %4516 = vmatprep.subr.mxu0 0.0
    %4517 = vmatpush1.msra.mxu0 0.0
    %4518 = vmatprep.subr.mxu0 0.0
    %4519 = vmatpush1.msra.mxu0 0.0
    %4520 = vmatprep.subr.mxu0 0.0
    %4521 = vmatpush1.msra.mxu0 0.0
    %4522 = vmatprep.subr.mxu0 0.0
    %4523 = vmatpush1.msra.mxu0 0.0
    %4524 = vmatprep.subr.mxu0 0.0
    %4525 = vmatpush1.msra.mxu0 0.0
    %4526 = vmatprep.subr.mxu0 0.0
    %4527 = vmatpush1.msra.mxu0 0.0
    %4528 = vmatprep.subr.mxu0 0.0
    %4529 = vmatpush1.msra.mxu0 0.0
    %4530 = vmatprep.subr.mxu0 0.0
    %4531 = vmatpush1.msra.mxu0 0.0
    %4532 = vmatprep.subr.mxu0 0.0
    %4533 = vmatpush1.msra.mxu0 0.0
    %4534 = vmatprep.subr.mxu0 0.0
    %4535 = vmatpush1.msra.mxu0 0.0
    %4536 = vmatprep.subr.mxu0 0.0
    %4537 = vmatpush1.msra.mxu0 0.0
    %4538 = vmatprep.subr.mxu0 0.0
    %4539 = vmatpush1.msra.mxu0 0.0
    %4540 = vmatprep.subr.mxu0 0.0
    %4541 = vmatpush1.msra.mxu0 0.0
    %4542 = vmatprep.subr.mxu0 0.0
    %4543 = vmatpush1.msra.mxu0 0.0
    %4544 = vmatprep.mubr.f32.mxu0 0.0
    %4545 = vmatmul.mubr.f32.gmra.mrb[0].mxu0 %v4478
    %v4546 = vpop.f32.mrb[0].mxu0
    %v4547 = vadd.f32 0.0, %v4546
    %v4548 = vpop.f32.mrb[0].mxu0
    %4549 = vdwg.mxu0
    %v4550 = vadd.f32 %v4386, %v4547
    %v4551 = vld [vmem:[%s1849] sm:$0xff]
    %v4552 = vld [vmem:[%s1849 + $0x8] sm:$0xff]
    %v4553 = vld [vmem:[%s1849 + $0x10] sm:$0xff]
    %v4554 = vld [vmem:[%s1849 + $0x18] sm:$0xff]
    %v4555 = vld [vmem:[%s1849 + $0x20] sm:$0xff]
    %v4556 = vld [vmem:[%s1849 + $0x28] sm:$0xff]
    %v4557 = vld [vmem:[%s1849 + $0x30] sm:$0xff]
    %v4558 = vld [vmem:[%s1849 + $0x38] sm:$0xff]
    %v4559 = vld [vmem:[%s1849 + $0x40] sm:$0xff]
    %4560 = vmatprep.subr.mxu0 0.0
    %4561 = vmatpush1.msra.mxu0 %v4551
    %4562 = vmatprep.subr.mxu0 0.0
    %4563 = vmatpush1.msra.mxu0 %v4552
    %4564 = vmatprep.subr.mxu0 0.0
    %4565 = vmatpush1.msra.mxu0 %v4553
    %4566 = vmatprep.subr.mxu0 0.0
    %4567 = vmatpush1.msra.mxu0 %v4554
    %4568 = vmatprep.subr.mxu0 0.0
    %4569 = vmatpush1.msra.mxu0 %v4555
    %4570 = vmatprep.subr.mxu0 0.0
    %4571 = vmatpush1.msra.mxu0 %v4556
    %4572 = vmatprep.subr.mxu0 0.0
    %4573 = vmatpush1.msra.mxu0 %v4557
    %4574 = vmatprep.subr.mxu0 0.0
    %4575 = vmatpush1.msra.mxu0 %v4558
    %4576 = vmatprep.subr.mxu0 0.0
    %4577 = vmatpush1.msra.mxu0 %v4559
    %4578 = vmatprep.subr.mxu0 0.0
    %4579 = vmatpush1.msra.mxu0 0.0
    %4580 = vmatprep.subr.mxu0 0.0
    %4581 = vmatpush1.msra.mxu0 0.0
    %4582 = vmatprep.subr.mxu0 0.0
    %4583 = vmatpush1.msra.mxu0 0.0
    %4584 = vmatprep.subr.mxu0 0.0
    %4585 = vmatpush1.msra.mxu0 0.0
    %4586 = vmatprep.subr.mxu0 0.0
    %4587 = vmatpush1.msra.mxu0 0.0
    %4588 = vmatprep.subr.mxu0 0.0
    %4589 = vmatpush1.msra.mxu0 0.0
    %4590 = vmatprep.subr.mxu0 0.0
    %4591 = vmatpush1.msra.mxu0 0.0
    %4592 = vmatprep.subr.mxu0 0.0
    %4593 = vmatpush1.msra.mxu0 0.0
    %4594 = vmatprep.subr.mxu0 0.0
    %4595 = vmatpush1.msra.mxu0 0.0
    %4596 = vmatprep.subr.mxu0 0.0
    %4597 = vmatpush1.msra.mxu0 0.0
    %4598 = vmatprep.subr.mxu0 0.0
    %4599 = vmatpush1.msra.mxu0 0.0
    %4600 = vmatprep.subr.mxu0 0.0
    %4601 = vmatpush1.msra.mxu0 0.0
    %4602 = vmatprep.subr.mxu0 0.0
    %4603 = vmatpush1.msra.mxu0 0.0
    %4604 = vmatprep.subr.mxu0 0.0
    %4605 = vmatpush1.msra.mxu0 0.0
    %4606 = vmatprep.subr.mxu0 0.0
    %4607 = vmatpush1.msra.mxu0 0.0
    %4608 = vmatprep.subr.mxu0 0.0
    %4609 = vmatpush1.msra.mxu0 0.0
    %4610 = vmatprep.subr.mxu0 0.0
    %4611 = vmatpush1.msra.mxu0 0.0
    %4612 = vmatprep.subr.mxu0 0.0
    %4613 = vmatpush1.msra.mxu0 0.0
    %4614 = vmatprep.subr.mxu0 0.0
    %4615 = vmatpush1.msra.mxu0 0.0
    %4616 = vmatprep.subr.mxu0 0.0
    %4617 = vmatpush1.msra.mxu0 0.0
    %4618 = vmatprep.subr.mxu0 0.0
    %4619 = vmatpush1.msra.mxu0 0.0
    %4620 = vmatprep.subr.mxu0 0.0
    %4621 = vmatpush1.msra.mxu0 0.0
    %4622 = vmatprep.subr.mxu0 0.0
    %4623 = vmatpush1.msra.mxu0 0.0
    %4624 = vmatprep.mubr.f32.mxu0 0.0
    %4625 = vmatmul.mubr.f32.gmra.mrb[0].mxu0 %v4478
    %v4626 = vpop.f32.mrb[0].mxu0
    %v4627 = vadd.f32 0.0, %v4626
    %v4628 = vpop.f32.mrb[0].mxu0
    %4629 = vdwg.mxu0
    %v4630 = vadd.f32 %v4466, %v4627
    %v4631 = vld [vmem:[%s3976 + $0x4] sm:$0xff]
    %v4632 = vld [vmem:[%s1931] sm:$0xff]
    %v4633 = vld [vmem:[%s1931 + $0x8] sm:$0xff]
    %v4634 = vld [vmem:[%s1931 + $0x10] sm:$0xff]
    %v4635 = vld [vmem:[%s1931 + $0x18] sm:$0xff]
    %v4636 = vld [vmem:[%s1931 + $0x20] sm:$0xff]
    %v4637 = vld [vmem:[%s1931 + $0x28] sm:$0xff]
    %v4638 = vld [vmem:[%s1931 + $0x30] sm:$0xff]
    %v4639 = vld [vmem:[%s1931 + $0x38] sm:$0xff]
    %v4640 = vld [vmem:[%s1931 + $0x40] sm:$0xff]
    %v4642 = vsel %vm1268, %v4631, 0
    %4644 = vmatprep.subr.mxu0 0.0
    %4645 = vmatpush1.msra.mxu0 %v4632
    %4646 = vmatprep.subr.mxu0 0.0
    %4647 = vmatpush1.msra.mxu0 %v4633
    %4648 = vmatprep.subr.mxu0 0.0
    %4649 = vmatpush1.msra.mxu0 %v4634
    %4650 = vmatprep.subr.mxu0 0.0
    %4651 = vmatpush1.msra.mxu0 %v4635
    %4652 = vmatprep.subr.mxu0 0.0
    %4653 = vmatpush1.msra.mxu0 %v4636
    %4654 = vmatprep.subr.mxu0 0.0
    %4655 = vmatpush1.msra.mxu0 %v4637
    %4656 = vmatprep.subr.mxu0 0.0
    %4657 = vmatpush1.msra.mxu0 %v4638
    %4658 = vmatprep.subr.mxu0 0.0
    %4659 = vmatpush1.msra.mxu0 %v4639
    %4660 = vmatprep.subr.mxu0 0.0
    %4661 = vmatpush1.msra.mxu0 %v4640
    %4662 = vmatprep.subr.mxu0 0.0
    %4663 = vmatpush1.msra.mxu0 0.0
    %4664 = vmatprep.subr.mxu0 0.0
    %4665 = vmatpush1.msra.mxu0 0.0
    %4666 = vmatprep.subr.mxu0 0.0
    %4667 = vmatpush1.msra.mxu0 0.0
    %4668 = vmatprep.subr.mxu0 0.0
    %4669 = vmatpush1.msra.mxu0 0.0
    %4670 = vmatprep.subr.mxu0 0.0
    %4671 = vmatpush1.msra.mxu0 0.0
    %4672 = vmatprep.subr.mxu0 0.0
    %4673 = vmatpush1.msra.mxu0 0.0
    %4674 = vmatprep.subr.mxu0 0.0
    %4675 = vmatpush1.msra.mxu0 0.0
    %4676 = vmatprep.subr.mxu0 0.0
    %4677 = vmatpush1.msra.mxu0 0.0
    %4678 = vmatprep.subr.mxu0 0.0
    %4679 = vmatpush1.msra.mxu0 0.0
    %4680 = vmatprep.subr.mxu0 0.0
    %4681 = vmatpush1.msra.mxu0 0.0
    %4682 = vmatprep.subr.mxu0 0.0
    %4683 = vmatpush1.msra.mxu0 0.0
    %4684 = vmatprep.subr.mxu0 0.0
    %4685 = vmatpush1.msra.mxu0 0.0
    %4686 = vmatprep.subr.mxu0 0.0
    %4687 = vmatpush1.msra.mxu0 0.0
    %4688 = vmatprep.subr.mxu0 0.0
    %4689 = vmatpush1.msra.mxu0 0.0
    %4690 = vmatprep.subr.mxu0 0.0
    %4691 = vmatpush1.msra.mxu0 0.0
    %4692 = vmatprep.subr.mxu0 0.0
    %4693 = vmatpush1.msra.mxu0 0.0
    %4694 = vmatprep.subr.mxu0 0.0
    %4695 = vmatpush1.msra.mxu0 0.0
    %4696 = vmatprep.subr.mxu0 0.0
    %4697 = vmatpush1.msra.mxu0 0.0
    %4698 = vmatprep.subr.mxu0 0.0
    %4699 = vmatpush1.msra.mxu0 0.0
    %4700 = vmatprep.subr.mxu0 0.0
    %4701 = vmatpush1.msra.mxu0 0.0
    %4702 = vmatprep.subr.mxu0 0.0
    %4703 = vmatpush1.msra.mxu0 0.0
    %4704 = vmatprep.subr.mxu0 0.0
    %4705 = vmatpush1.msra.mxu0 0.0
    %4706 = vmatprep.subr.mxu0 0.0
    %4707 = vmatpush1.msra.mxu0 0.0
    %4708 = vmatprep.mubr.f32.mxu0 0.0
    %4709 = vmatmul.mubr.f32.gmra.mrb[0].mxu0 %v4642
    %v4710 = vpop.f32.mrb[0].mxu0
    %v4711 = vadd.f32 0.0, %v4710
    %v4712 = vpop.f32.mrb[0].mxu0
    %4713 = vdwg.mxu0
    %v4714 = vadd.f32 %v4550, %v4711
    %v4715 = vld [vmem:[%s2015] sm:$0xff]
    %v4716 = vld [vmem:[%s2015 + $0x8] sm:$0xff]
    %v4717 = vld [vmem:[%s2015 + $0x10] sm:$0xff]
    %v4718 = vld [vmem:[%s2015 + $0x18] sm:$0xff]
    %v4719 = vld [vmem:[%s2015 + $0x20] sm:$0xff]
    %v4720 = vld [vmem:[%s2015 + $0x28] sm:$0xff]
    %v4721 = vld [vmem:[%s2015 + $0x30] sm:$0xff]
    %v4722 = vld [vmem:[%s2015 + $0x38] sm:$0xff]
    %v4723 = vld [vmem:[%s2015 + $0x40] sm:$0xff]
    %4724 = vmatprep.subr.mxu0 0.0
    %4725 = vmatpush1.msra.mxu0 %v4715
    %4726 = vmatprep.subr.mxu0 0.0
    %4727 = vmatpush1.msra.mxu0 %v4716
    %4728 = vmatprep.subr.mxu0 0.0
    %4729 = vmatpush1.msra.mxu0 %v4717
    %4730 = vmatprep.subr.mxu0 0.0
    %4731 = vmatpush1.msra.mxu0 %v4718
    %4732 = vmatprep.subr.mxu0 0.0
    %4733 = vmatpush1.msra.mxu0 %v4719
    %4734 = vmatprep.subr.mxu0 0.0
    %4735 = vmatpush1.msra.mxu0 %v4720
    %4736 = vmatprep.subr.mxu0 0.0
    %4737 = vmatpush1.msra.mxu0 %v4721
    %4738 = vmatprep.subr.mxu0 0.0
    %4739 = vmatpush1.msra.mxu0 %v4722
    %4740 = vmatprep.subr.mxu0 0.0
    %4741 = vmatpush1.msra.mxu0 %v4723
    %4742 = vmatprep.subr.mxu0 0.0
    %4743 = vmatpush1.msra.mxu0 0.0
    %4744 = vmatprep.subr.mxu0 0.0
    %4745 = vmatpush1.msra.mxu0 0.0
    %4746 = vmatprep.subr.mxu0 0.0
    %4747 = vmatpush1.msra.mxu0 0.0
    %4748 = vmatprep.subr.mxu0 0.0
    %4749 = vmatpush1.msra.mxu0 0.0
    %4750 = vmatprep.subr.mxu0 0.0
    %4751 = vmatpush1.msra.mxu0 0.0
    %4752 = vmatprep.subr.mxu0 0.0
    %4753 = vmatpush1.msra.mxu0 0.0
    %4754 = vmatprep.subr.mxu0 0.0
    %4755 = vmatpush1.msra.mxu0 0.0
    %4756 = vmatprep.subr.mxu0 0.0
    %4757 = vmatpush1.msra.mxu0 0.0
    %4758 = vmatprep.subr.mxu0 0.0
    %4759 = vmatpush1.msra.mxu0 0.0
    %4760 = vmatprep.subr.mxu0 0.0
    %4761 = vmatpush1.msra.mxu0 0.0
    %4762 = vmatprep.subr.mxu0 0.0
    %4763 = vmatpush1.msra.mxu0 0.0
    %4764 = vmatprep.subr.mxu0 0.0
    %4765 = vmatpush1.msra.mxu0 0.0
    %4766 = vmatprep.subr.mxu0 0.0
    %4767 = vmatpush1.msra.mxu0 0.0
    %4768 = vmatprep.subr.mxu0 0.0
    %4769 = vmatpush1.msra.mxu0 0.0
    %4770 = vmatprep.subr.mxu0 0.0
    %4771 = vmatpush1.msra.mxu0 0.0
    %4772 = vmatprep.subr.mxu0 0.0
    %4773 = vmatpush1.msra.mxu0 0.0
    %4774 = vmatprep.subr.mxu0 0.0
    %4775 = vmatpush1.msra.mxu0 0.0
    %4776 = vmatprep.subr.mxu0 0.0
    %4777 = vmatpush1.msra.mxu0 0.0
    %4778 = vmatprep.subr.mxu0 0.0
    %4779 = vmatpush1.msra.mxu0 0.0
    %4780 = vmatprep.subr.mxu0 0.0
    %4781 = vmatpush1.msra.mxu0 0.0
    %4782 = vmatprep.subr.mxu0 0.0
    %4783 = vmatpush1.msra.mxu0 0.0
    %4784 = vmatprep.subr.mxu0 0.0
    %4785 = vmatpush1.msra.mxu0 0.0
    %4786 = vmatprep.subr.mxu0 0.0
    %4787 = vmatpush1.msra.mxu0 0.0
    %4788 = vmatprep.mubr.f32.mxu0 0.0
    %4789 = vmatmul.mubr.f32.gmra.mrb[0].mxu0 %v4642
    %v4790 = vpop.f32.mrb[0].mxu0
    %v4791 = vadd.f32 0.0, %v4790
    %v4792 = vpop.f32.mrb[0].mxu0
    %4793 = vdwg.mxu0
    %v4794 = vadd.f32 %v4630, %v4791
    %v4795 = vmax.f32 %v4714, %v4794
    %v4796 = vld [vmem:[%s9] sm:$0xf]
    %v4798 = vsel %vm2098, %v4796, 0
    %4800 = vmatprep.subr.mxu0 0.0
    %4801 = vmatpush1.msra.mxu0 %v4795
    %4802 = vmatprep.subr.mxu0 0.0
    %4803 = vmatpush1.msra.mxu0 0.0
    %4804 = vmatprep.subr.mxu0 0.0
    %4805 = vmatpush1.msra.mxu0 0.0
    %4806 = vmatprep.subr.mxu0 0.0
    %4807 = vmatpush1.msra.mxu0 0.0
    %4808 = vmatprep.subr.mxu0 0.0
    %4809 = vmatpush1.msra.mxu0 0.0
    %4810 = vmatprep.subr.mxu0 0.0
    %4811 = vmatpush1.msra.mxu0 0.0
    %4812 = vmatprep.subr.mxu0 0.0
    %4813 = vmatpush1.msra.mxu0 0.0
    %4814 = vmatprep.subr.mxu0 0.0
    %4815 = vmatpush1.msra.mxu0 0.0
    %4816 = vmatprep.subr.mxu0 0.0
    %4817 = vmatpush1.msra.mxu0 0.0
    %4818 = vmatprep.subr.mxu0 0.0
    %4819 = vmatpush1.msra.mxu0 0.0
    %4820 = vmatprep.subr.mxu0 0.0
    %4821 = vmatpush1.msra.mxu0 0.0
    %4822 = vmatprep.subr.mxu0 0.0
    %4823 = vmatpush1.msra.mxu0 0.0
    %4824 = vmatprep.subr.mxu0 0.0
    %4825 = vmatpush1.msra.mxu0 0.0
    %4826 = vmatprep.subr.mxu0 0.0
    %4827 = vmatpush1.msra.mxu0 0.0
    %4828 = vmatprep.subr.mxu0 0.0
    %4829 = vmatpush1.msra.mxu0 0.0
    %4830 = vmatprep.subr.mxu0 0.0
    %4831 = vmatpush1.msra.mxu0 0.0
    %4832 = vmatprep.subr.mxu0 0.0
    %4833 = vmatpush1.msra.mxu0 0.0
    %4834 = vmatprep.subr.mxu0 0.0
    %4835 = vmatpush1.msra.mxu0 0.0
    %4836 = vmatprep.subr.mxu0 0.0
    %4837 = vmatpush1.msra.mxu0 0.0
    %4838 = vmatprep.subr.mxu0 0.0
    %4839 = vmatpush1.msra.mxu0 0.0
    %4840 = vmatprep.subr.mxu0 0.0
    %4841 = vmatpush1.msra.mxu0 0.0
    %4842 = vmatprep.subr.mxu0 0.0
    %4843 = vmatpush1.msra.mxu0 0.0
    %4844 = vmatprep.subr.mxu0 0.0
    %4845 = vmatpush1.msra.mxu0 0.0
    %4846 = vmatprep.subr.mxu0 0.0
    %4847 = vmatpush1.msra.mxu0 0.0
    %4848 = vmatprep.subr.mxu0 0.0
    %4849 = vmatpush1.msra.mxu0 0.0
    %4850 = vmatprep.subr.mxu0 0.0
    %4851 = vmatpush1.msra.mxu0 0.0
    %4852 = vmatprep.subr.mxu0 0.0
    %4853 = vmatpush1.msra.mxu0 0.0
    %4854 = vmatprep.subr.mxu0 0.0
    %4855 = vmatpush1.msra.mxu0 0.0
    %4856 = vmatprep.subr.mxu0 0.0
    %4857 = vmatpush1.msra.mxu0 0.0
    %4858 = vmatprep.subr.mxu0 0.0
    %4859 = vmatpush1.msra.mxu0 0.0
    %4860 = vmatprep.subr.mxu0 0.0
    %4861 = vmatpush1.msra.mxu0 0.0
    %4862 = vmatprep.subr.mxu0 0.0
    %4863 = vmatpush1.msra.mxu0 0.0
    %4864 = vmatprep.mubr.f32.mxu0 0.0
    %4865 = vmatmul.mubr.f32.gmra.mrb[0].mxu0 %v4798
    %v4866 = vpop.f32.mrb[0].mxu0
    %v4867 = vadd.f32 0.0, %v4866
    %v4868 = vpop.f32.mrb[0].mxu0
    %4869 = vdwg.mxu0
    %v4870 = vld [vmem:[%s10] sm:$0xf]
    %v4872 = vsel %vm2098, %v4870, 0
    %4874 = vmatprep.subr.mxu0 0.0
    %4875 = vmatpush1.msra.mxu0 %v4795
    %4876 = vmatprep.subr.mxu0 0.0
    %4877 = vmatpush1.msra.mxu0 0.0
    %4878 = vmatprep.subr.mxu0 0.0
    %4879 = vmatpush1.msra.mxu0 0.0
    %4880 = vmatprep.subr.mxu0 0.0
    %4881 = vmatpush1.msra.mxu0 0.0
    %4882 = vmatprep.subr.mxu0 0.0
    %4883 = vmatpush1.msra.mxu0 0.0
    %4884 = vmatprep.subr.mxu0 0.0
    %4885 = vmatpush1.msra.mxu0 0.0
    %4886 = vmatprep.subr.mxu0 0.0
    %4887 = vmatpush1.msra.mxu0 0.0
    %4888 = vmatprep.subr.mxu0 0.0
    %4889 = vmatpush1.msra.mxu0 0.0
    %4890 = vmatprep.subr.mxu0 0.0
    %4891 = vmatpush1.msra.mxu0 0.0
    %4892 = vmatprep.subr.mxu0 0.0
    %4893 = vmatpush1.msra.mxu0 0.0
    %4894 = vmatprep.subr.mxu0 0.0
    %4895 = vmatpush1.msra.mxu0 0.0
    %4896 = vmatprep.subr.mxu0 0.0
    %4897 = vmatpush1.msra.mxu0 0.0
    %4898 = vmatprep.subr.mxu0 0.0
    %4899 = vmatpush1.msra.mxu0 0.0
    %4900 = vmatprep.subr.mxu0 0.0
    %4901 = vmatpush1.msra.mxu0 0.0
    %4902 = vmatprep.subr.mxu0 0.0
    %4903 = vmatpush1.msra.mxu0 0.0
    %4904 = vmatprep.subr.mxu0 0.0
    %4905 = vmatpush1.msra.mxu0 0.0
    %4906 = vmatprep.subr.mxu0 0.0
    %4907 = vmatpush1.msra.mxu0 0.0
    %4908 = vmatprep.subr.mxu0 0.0
    %4909 = vmatpush1.msra.mxu0 0.0
    %4910 = vmatprep.subr.mxu0 0.0
    %4911 = vmatpush1.msra.mxu0 0.0
    %4912 = vmatprep.subr.mxu0 0.0
    %4913 = vmatpush1.msra.mxu0 0.0
    %4914 = vmatprep.subr.mxu0 0.0
    %4915 = vmatpush1.msra.mxu0 0.0
    %4916 = vmatprep.subr.mxu0 0.0
    %4917 = vmatpush1.msra.mxu0 0.0
    %4918 = vmatprep.subr.mxu0 0.0
    %4919 = vmatpush1.msra.mxu0 0.0
    %4920 = vmatprep.subr.mxu0 0.0
    %4921 = vmatpush1.msra.mxu0 0.0
    %4922 = vmatprep.subr.mxu0 0.0
    %4923 = vmatpush1.msra.mxu0 0.0
    %4924 = vmatprep.subr.mxu0 0.0
    %4925 = vmatpush1.msra.mxu0 0.0
    %4926 = vmatprep.subr.mxu0 0.0
    %4927 = vmatpush1.msra.mxu0 0.0
    %4928 = vmatprep.subr.mxu0 0.0
    %4929 = vmatpush1.msra.mxu0 0.0
    %4930 = vmatprep.subr.mxu0 0.0
    %4931 = vmatpush1.msra.mxu0 0.0
    %4932 = vmatprep.subr.mxu0 0.0
    %4933 = vmatpush1.msra.mxu0 0.0
    %4934 = vmatprep.subr.mxu0 0.0
    %4935 = vmatpush1.msra.mxu0 0.0
    %4936 = vmatprep.subr.mxu0 0.0
    %4937 = vmatpush1.msra.mxu0 0.0
    %4938 = vmatprep.mubr.f32.mxu0 0.0
    %4939 = vmatmul.mubr.f32.gmra.mrb[0].mxu0 %v4872
    %v4940 = vpop.f32.mrb[0].mxu0
    %v4941 = vadd.f32 0.0, %v4940
    %v4942 = vpop.f32.mrb[0].mxu0
    %4943 = vdwg.mxu0
    %v4944 = vmax.f32 %v4867, %v4941
    %v4945 = vld [vmem:[%s8] sm:$0x1]
    %v4947 = vlaneseq
    %v4948 = vshrl.u32 %v4947, 7
    %v4949 = vsub.s32 0, %v4948
    %v4950 = vrot.slane %v4945, %v4949
    %v4952 = vadd.f32 %v4944, %v4950
    %v4953 = vmax.f32 %v4952, 0.0
    %s4954 = scalar_lea.vmem [#allocation3], 4
    %4955 = vst.msk [vmem:[%s4954] sm:$0xf] %vm2256, %v4953
    %v4956 = vld [vmem:[%s4954] sm:$0x1]
    %v4957 = vld [vmem:[%s11] sm:$0xff]
    %v4958 = vld [vmem:[%s11 + $0x8] sm:$0xff]
    %v4959 = vld [vmem:[%s11 + $0x10] sm:$0xff]
    %v4960 = vld [vmem:[%s11 + $0x18] sm:$0xff]
    %v4961 = vld [vmem:[%s11 + $0x20] sm:$0xff]
    %v4962 = vld [vmem:[%s11 + $0x28] sm:$0xff]
    %v4963 = vld [vmem:[%s11 + $0x30] sm:$0xff]
    %v4964 = vld [vmem:[%s11 + $0x38] sm:$0xff]
    %v4965 = vld [vmem:[%s4954 + $0x1] sm:$0x1]
    %v4966 = vld [vmem:[%s2268] sm:$0xff]
    %v4967 = vld [vmem:[%s2268 + $0x8] sm:$0xff]
    %v4968 = vld [vmem:[%s2268 + $0x10] sm:$0xff]
    %v4969 = vld [vmem:[%s2268 + $0x18] sm:$0xff]
    %v4970 = vld [vmem:[%s2268 + $0x20] sm:$0xff]
    %v4971 = vld [vmem:[%s2268 + $0x28] sm:$0xff]
    %v4972 = vld [vmem:[%s2268 + $0x30] sm:$0xff]
    %v4973 = vld [vmem:[%s2268 + $0x38] sm:$0xff]
    %v4975 = vsel %vm2277, %v4965, 0
    %4977 = vmatprep.subr.mxu0 0.0
    %4978 = vmatpush1.msra.mxu0 %v4966
    %4979 = vmatprep.subr.mxu0 0.0
    %4980 = vmatpush1.msra.mxu0 %v4967
    %4981 = vmatprep.subr.mxu0 0.0
    %4982 = vmatpush1.msra.mxu0 %v4968
    %4983 = vmatprep.subr.mxu0 0.0
    %4984 = vmatpush1.msra.mxu0 %v4969
    %4985 = vmatprep.subr.mxu0 0.0
    %4986 = vmatpush1.msra.mxu0 %v4970
    %4987 = vmatprep.subr.mxu0 0.0
    %4988 = vmatpush1.msra.mxu0 %v4971
    %4989 = vmatprep.subr.mxu0 0.0
    %4990 = vmatpush1.msra.mxu0 %v4972
    %4991 = vmatprep.subr.mxu0 0.0
    %4992 = vmatpush1.msra.mxu0 %v4973
    %4993 = vmatprep.subr.mxu0 0.0
    %4994 = vmatpush1.msra.mxu0 0.0
    %4995 = vmatprep.subr.mxu0 0.0
    %4996 = vmatpush1.msra.mxu0 0.0
    %4997 = vmatprep.subr.mxu0 0.0
    %4998 = vmatpush1.msra.mxu0 0.0
    %4999 = vmatprep.subr.mxu0 0.0
    %5000 = vmatpush1.msra.mxu0 0.0
    %5001 = vmatprep.subr.mxu0 0.0
    %5002 = vmatpush1.msra.mxu0 0.0
    %5003 = vmatprep.subr.mxu0 0.0
    %5004 = vmatpush1.msra.mxu0 0.0
    %5005 = vmatprep.subr.mxu0 0.0
    %5006 = vmatpush1.msra.mxu0 0.0
    %5007 = vmatprep.subr.mxu0 0.0
    %5008 = vmatpush1.msra.mxu0 0.0
    %5009 = vmatprep.subr.mxu0 0.0
    %5010 = vmatpush1.msra.mxu0 0.0
    %5011 = vmatprep.subr.mxu0 0.0
    %5012 = vmatpush1.msra.mxu0 0.0
    %5013 = vmatprep.subr.mxu0 0.0
    %5014 = vmatpush1.msra.mxu0 0.0
    %5015 = vmatprep.subr.mxu0 0.0
    %5016 = vmatpush1.msra.mxu0 0.0
    %5017 = vmatprep.subr.mxu0 0.0
    %5018 = vmatpush1.msra.mxu0 0.0
    %5019 = vmatprep.subr.mxu0 0.0
    %5020 = vmatpush1.msra.mxu0 0.0
    %5021 = vmatprep.subr.mxu0 0.0
    %5022 = vmatpush1.msra.mxu0 0.0
    %5023 = vmatprep.subr.mxu0 0.0
    %5024 = vmatpush1.msra.mxu0 0.0
    %5025 = vmatprep.subr.mxu0 0.0
    %5026 = vmatpush1.msra.mxu0 0.0
    %5027 = vmatprep.subr.mxu0 0.0
    %5028 = vmatpush1.msra.mxu0 0.0
    %5029 = vmatprep.subr.mxu0 0.0
    %5030 = vmatpush1.msra.mxu0 0.0
    %5031 = vmatprep.subr.mxu0 0.0
    %5032 = vmatpush1.msra.mxu0 0.0
    %5033 = vmatprep.subr.mxu0 0.0
    %5034 = vmatpush1.msra.mxu0 0.0
    %5035 = vmatprep.subr.mxu0 0.0
    %5036 = vmatpush1.msra.mxu0 0.0
    %5037 = vmatprep.subr.mxu0 0.0
    %5038 = vmatpush1.msra.mxu0 0.0
    %5039 = vmatprep.subr.mxu0 0.0
    %5040 = vmatpush1.msra.mxu0 0.0
    %5041 = vmatprep.mubr.f32.mxu0 0.0
    %5042 = vmatmul.mubr.f32.gmra.mrb[0].mxu0 %v4975
    %v5043 = vpop.f32.mrb[0].mxu0
    %v5044 = vadd.f32 0.0, %v5043
    %v5045 = vpop.f32.mrb[0].mxu0
    %5046 = vdwg.mxu0
    %v5048 = vsel %vm2277, %v4956, 0
    %5050 = vmatprep.subr.mxu0 0.0
    %5051 = vmatpush1.msra.mxu0 %v4957
    %5052 = vmatprep.subr.mxu0 0.0
    %5053 = vmatpush1.msra.mxu0 %v4958
    %5054 = vmatprep.subr.mxu0 0.0
    %5055 = vmatpush1.msra.mxu0 %v4959
    %5056 = vmatprep.subr.mxu0 0.0
    %5057 = vmatpush1.msra.mxu0 %v4960
    %5058 = vmatprep.subr.mxu0 0.0
    %5059 = vmatpush1.msra.mxu0 %v4961
    %5060 = vmatprep.subr.mxu0 0.0
    %5061 = vmatpush1.msra.mxu0 %v4962
    %5062 = vmatprep.subr.mxu0 0.0
    %5063 = vmatpush1.msra.mxu0 %v4963
    %5064 = vmatprep.subr.mxu0 0.0
    %5065 = vmatpush1.msra.mxu0 %v4964
    %5066 = vmatprep.subr.mxu0 0.0
    %5067 = vmatpush1.msra.mxu0 0.0
    %5068 = vmatprep.subr.mxu0 0.0
    %5069 = vmatpush1.msra.mxu0 0.0
    %5070 = vmatprep.subr.mxu0 0.0
    %5071 = vmatpush1.msra.mxu0 0.0
    %5072 = vmatprep.subr.mxu0 0.0
    %5073 = vmatpush1.msra.mxu0 0.0
    %5074 = vmatprep.subr.mxu0 0.0
    %5075 = vmatpush1.msra.mxu0 0.0
    %5076 = vmatprep.subr.mxu0 0.0
    %5077 = vmatpush1.msra.mxu0 0.0
    %5078 = vmatprep.subr.mxu0 0.0
    %5079 = vmatpush1.msra.mxu0 0.0
    %5080 = vmatprep.subr.mxu0 0.0
    %5081 = vmatpush1.msra.mxu0 0.0
    %5082 = vmatprep.subr.mxu0 0.0
    %5083 = vmatpush1.msra.mxu0 0.0
    %5084 = vmatprep.subr.mxu0 0.0
    %5085 = vmatpush1.msra.mxu0 0.0
    %5086 = vmatprep.subr.mxu0 0.0
    %5087 = vmatpush1.msra.mxu0 0.0
    %5088 = vmatprep.subr.mxu0 0.0
    %5089 = vmatpush1.msra.mxu0 0.0
    %5090 = vmatprep.subr.mxu0 0.0
    %5091 = vmatpush1.msra.mxu0 0.0
    %5092 = vmatprep.subr.mxu0 0.0
    %5093 = vmatpush1.msra.mxu0 0.0
    %5094 = vmatprep.subr.mxu0 0.0
    %5095 = vmatpush1.msra.mxu0 0.0
    %5096 = vmatprep.subr.mxu0 0.0
    %5097 = vmatpush1.msra.mxu0 0.0
    %5098 = vmatprep.subr.mxu0 0.0
    %5099 = vmatpush1.msra.mxu0 0.0
    %5100 = vmatprep.subr.mxu0 0.0
    %5101 = vmatpush1.msra.mxu0 0.0
    %5102 = vmatprep.subr.mxu0 0.0
    %5103 = vmatpush1.msra.mxu0 0.0
    %5104 = vmatprep.subr.mxu0 0.0
    %5105 = vmatpush1.msra.mxu0 0.0
    %5106 = vmatprep.subr.mxu0 0.0
    %5107 = vmatpush1.msra.mxu0 0.0
    %5108 = vmatprep.subr.mxu0 0.0
    %5109 = vmatpush1.msra.mxu0 0.0
    %5110 = vmatprep.subr.mxu0 0.0
    %5111 = vmatpush1.msra.mxu0 0.0
    %5112 = vmatprep.subr.mxu0 0.0
    %5113 = vmatpush1.msra.mxu0 0.0
    %5114 = vmatprep.mubr.f32.mxu0 0.0
    %5115 = vmatmul.mubr.f32.gmra.mrb[0].mxu0 %v5048
    %v5116 = vpop.f32.mrb[0].mxu0
    %v5117 = vadd.f32 %v5044, %v5116
    %v5118 = vpop.f32.mrb[0].mxu0
    %5119 = vdwg.mxu0
    %v5120 = vld [vmem:[%s4954 + $0x2] sm:$0x1]
    %v5121 = vld [vmem:[%s2425] sm:$0xff]
    %v5122 = vld [vmem:[%s2425 + $0x8] sm:$0xff]
    %v5123 = vld [vmem:[%s2425 + $0x10] sm:$0xff]
    %v5124 = vld [vmem:[%s2425 + $0x18] sm:$0xff]
    %v5125 = vld [vmem:[%s2425 + $0x20] sm:$0xff]
    %v5126 = vld [vmem:[%s2425 + $0x28] sm:$0xff]
    %v5127 = vld [vmem:[%s2425 + $0x30] sm:$0xff]
    %v5128 = vld [vmem:[%s2425 + $0x38] sm:$0xff]
    %v5130 = vsel %vm2277, %v5120, 0
    %5132 = vmatprep.subr.mxu0 0.0
    %5133 = vmatpush1.msra.mxu0 %v5121
    %5134 = vmatprep.subr.mxu0 0.0
    %5135 = vmatpush1.msra.mxu0 %v5122
    %5136 = vmatprep.subr.mxu0 0.0
    %5137 = vmatpush1.msra.mxu0 %v5123
    %5138 = vmatprep.subr.mxu0 0.0
    %5139 = vmatpush1.msra.mxu0 %v5124
    %5140 = vmatprep.subr.mxu0 0.0
    %5141 = vmatpush1.msra.mxu0 %v5125
    %5142 = vmatprep.subr.mxu0 0.0
    %5143 = vmatpush1.msra.mxu0 %v5126
    %5144 = vmatprep.subr.mxu0 0.0
    %5145 = vmatpush1.msra.mxu0 %v5127
    %5146 = vmatprep.subr.mxu0 0.0
    %5147 = vmatpush1.msra.mxu0 %v5128
    %5148 = vmatprep.subr.mxu0 0.0
    %5149 = vmatpush1.msra.mxu0 0.0
    %5150 = vmatprep.subr.mxu0 0.0
    %5151 = vmatpush1.msra.mxu0 0.0
    %5152 = vmatprep.subr.mxu0 0.0
    %5153 = vmatpush1.msra.mxu0 0.0
    %5154 = vmatprep.subr.mxu0 0.0
    %5155 = vmatpush1.msra.mxu0 0.0
    %5156 = vmatprep.subr.mxu0 0.0
    %5157 = vmatpush1.msra.mxu0 0.0
    %5158 = vmatprep.subr.mxu0 0.0
    %5159 = vmatpush1.msra.mxu0 0.0
    %5160 = vmatprep.subr.mxu0 0.0
    %5161 = vmatpush1.msra.mxu0 0.0
    %5162 = vmatprep.subr.mxu0 0.0
    %5163 = vmatpush1.msra.mxu0 0.0
    %5164 = vmatprep.subr.mxu0 0.0
    %5165 = vmatpush1.msra.mxu0 0.0
    %5166 = vmatprep.subr.mxu0 0.0
    %5167 = vmatpush1.msra.mxu0 0.0
    %5168 = vmatprep.subr.mxu0 0.0
    %5169 = vmatpush1.msra.mxu0 0.0
    %5170 = vmatprep.subr.mxu0 0.0
    %5171 = vmatpush1.msra.mxu0 0.0
    %5172 = vmatprep.subr.mxu0 0.0
    %5173 = vmatpush1.msra.mxu0 0.0
    %5174 = vmatprep.subr.mxu0 0.0
    %5175 = vmatpush1.msra.mxu0 0.0
    %5176 = vmatprep.subr.mxu0 0.0
    %5177 = vmatpush1.msra.mxu0 0.0
    %5178 = vmatprep.subr.mxu0 0.0
    %5179 = vmatpush1.msra.mxu0 0.0
    %5180 = vmatprep.subr.mxu0 0.0
    %5181 = vmatpush1.msra.mxu0 0.0
    %5182 = vmatprep.subr.mxu0 0.0
    %5183 = vmatpush1.msra.mxu0 0.0
    %5184 = vmatprep.subr.mxu0 0.0
    %5185 = vmatpush1.msra.mxu0 0.0
    %5186 = vmatprep.subr.mxu0 0.0
    %5187 = vmatpush1.msra.mxu0 0.0
    %5188 = vmatprep.subr.mxu0 0.0
    %5189 = vmatpush1.msra.mxu0 0.0
    %5190 = vmatprep.subr.mxu0 0.0
    %5191 = vmatpush1.msra.mxu0 0.0
    %5192 = vmatprep.subr.mxu0 0.0
    %5193 = vmatpush1.msra.mxu0 0.0
    %5194 = vmatprep.subr.mxu0 0.0
    %5195 = vmatpush1.msra.mxu0 0.0
    %5196 = vmatprep.mubr.f32.mxu0 0.0
    %5197 = vmatmul.mubr.f32.gmra.mrb[0].mxu0 %v5130
    %v5198 = vpop.f32.mrb[0].mxu0
    %v5199 = vadd.f32 0.0, %v5198
    %v5200 = vpop.f32.mrb[0].mxu0
    %5201 = vdwg.mxu0
    %v5202 = vadd.f32 %v5117, %v5199
    %v5203 = vld [vmem:[%s4954 + $0x3] sm:$0x1]
    %v5204 = vld [vmem:[%s2509] sm:$0xff]
    %v5205 = vld [vmem:[%s2509 + $0x8] sm:$0xff]
    %v5206 = vld [vmem:[%s2509 + $0x10] sm:$0xff]
    %v5207 = vld [vmem:[%s2509 + $0x18] sm:$0xff]
    %v5208 = vld [vmem:[%s2509 + $0x20] sm:$0xff]
    %v5209 = vld [vmem:[%s2509 + $0x28] sm:$0xff]
    %v5210 = vld [vmem:[%s2509 + $0x30] sm:$0xff]
    %v5211 = vld [vmem:[%s2509 + $0x38] sm:$0xff]
    %v5213 = vsel %vm2277, %v5203, 0
    %5215 = vmatprep.subr.mxu0 0.0
    %5216 = vmatpush1.msra.mxu0 %v5204
    %5217 = vmatprep.subr.mxu0 0.0
    %5218 = vmatpush1.msra.mxu0 %v5205
    %5219 = vmatprep.subr.mxu0 0.0
    %5220 = vmatpush1.msra.mxu0 %v5206
    %5221 = vmatprep.subr.mxu0 0.0
    %5222 = vmatpush1.msra.mxu0 %v5207
    %5223 = vmatprep.subr.mxu0 0.0
    %5224 = vmatpush1.msra.mxu0 %v5208
    %5225 = vmatprep.subr.mxu0 0.0
    %5226 = vmatpush1.msra.mxu0 %v5209
    %5227 = vmatprep.subr.mxu0 0.0
    %5228 = vmatpush1.msra.mxu0 %v5210
    %5229 = vmatprep.subr.mxu0 0.0
    %5230 = vmatpush1.msra.mxu0 %v5211
    %5231 = vmatprep.subr.mxu0 0.0
    %5232 = vmatpush1.msra.mxu0 0.0
    %5233 = vmatprep.subr.mxu0 0.0
    %5234 = vmatpush1.msra.mxu0 0.0
    %5235 = vmatprep.subr.mxu0 0.0
    %5236 = vmatpush1.msra.mxu0 0.0
    %5237 = vmatprep.subr.mxu0 0.0
    %5238 = vmatpush1.msra.mxu0 0.0
    %5239 = vmatprep.subr.mxu0 0.0
    %5240 = vmatpush1.msra.mxu0 0.0
    %5241 = vmatprep.subr.mxu0 0.0
    %5242 = vmatpush1.msra.mxu0 0.0
    %5243 = vmatprep.subr.mxu0 0.0
    %5244 = vmatpush1.msra.mxu0 0.0
    %5245 = vmatprep.subr.mxu0 0.0
    %5246 = vmatpush1.msra.mxu0 0.0
    %5247 = vmatprep.subr.mxu0 0.0
    %5248 = vmatpush1.msra.mxu0 0.0
    %5249 = vmatprep.subr.mxu0 0.0
    %5250 = vmatpush1.msra.mxu0 0.0
    %5251 = vmatprep.subr.mxu0 0.0
    %5252 = vmatpush1.msra.mxu0 0.0
    %5253 = vmatprep.subr.mxu0 0.0
    %5254 = vmatpush1.msra.mxu0 0.0
    %5255 = vmatprep.subr.mxu0 0.0
    %5256 = vmatpush1.msra.mxu0 0.0
    %5257 = vmatprep.subr.mxu0 0.0
    %5258 = vmatpush1.msra.mxu0 0.0
    %5259 = vmatprep.subr.mxu0 0.0
    %5260 = vmatpush1.msra.mxu0 0.0
    %5261 = vmatprep.subr.mxu0 0.0
    %5262 = vmatpush1.msra.mxu0 0.0
    %5263 = vmatprep.subr.mxu0 0.0
    %5264 = vmatpush1.msra.mxu0 0.0
    %5265 = vmatprep.subr.mxu0 0.0
    %5266 = vmatpush1.msra.mxu0 0.0
    %5267 = vmatprep.subr.mxu0 0.0
    %5268 = vmatpush1.msra.mxu0 0.0
    %5269 = vmatprep.subr.mxu0 0.0
    %5270 = vmatpush1.msra.mxu0 0.0
    %5271 = vmatprep.subr.mxu0 0.0
    %5272 = vmatpush1.msra.mxu0 0.0
    %5273 = vmatprep.subr.mxu0 0.0
    %5274 = vmatpush1.msra.mxu0 0.0
    %5275 = vmatprep.subr.mxu0 0.0
    %5276 = vmatpush1.msra.mxu0 0.0
    %5277 = vmatprep.subr.mxu0 0.0
    %5278 = vmatpush1.msra.mxu0 0.0
    %5279 = vmatprep.mubr.f32.mxu0 0.0
    %5280 = vmatmul.mubr.f32.gmra.mrb[0].mxu0 %v5213
    %v5281 = vpop.f32.mrb[0].mxu0
    %v5282 = vadd.f32 0.0, %v5281
    %v5283 = vpop.f32.mrb[0].mxu0
    %5284 = vdwg.mxu0
    %v5285 = vadd.f32 %v5202, %v5282
    %v5286 = vld [vmem:[%s12] sm:$0x1]
    %v5287 = vadd.f32 %v5285, %v5286
    %v5288 = vmax.f32 %v5287, 0.0
    %v5289 = vld [vmem:[%s13] sm:$0xff]
    %v5290 = vld [vmem:[%s13 + $0x8] sm:$0xff]
    %v5291 = vld [vmem:[%s13 + $0x10] sm:$0xff]
    %v5292 = vld [vmem:[%s13 + $0x18] sm:$0xff]
    %v5293 = vld [vmem:[%s13 + $0x20] sm:$0xff]
    %v5294 = vld [vmem:[%s13 + $0x28] sm:$0xff]
    %v5295 = vld [vmem:[%s13 + $0x30] sm:$0xff]
    %v5296 = vld [vmem:[%s13 + $0x38] sm:$0xff]
    %v5297 = vld [vmem:[%s13 + $0x40] sm:$0xff]
    %v5298 = vld [vmem:[%s13 + $0x48] sm:$0xff]
    %v5299 = vld [vmem:[%s13 + $0x50] sm:$0xff]
    %v5300 = vld [vmem:[%s13 + $0x58] sm:$0xff]
    %v5301 = vld [vmem:[%s13 + $0x60] sm:$0xff]
    %v5302 = vld [vmem:[%s13 + $0x68] sm:$0xff]
    %v5303 = vld [vmem:[%s13 + $0x70] sm:$0xff]
    %v5304 = vld [vmem:[%s14] sm:$0x1]
    %v5306 = vsel %vm2611, %v5288, 0
    %5308 = vmatprep.subr.mxu0 0.0
    %5309 = vmatpush1.msra.mxu0 %v5289
    %5310 = vmatprep.subr.mxu0 0.0
    %5311 = vmatpush1.msra.mxu0 %v5290
    %5312 = vmatprep.subr.mxu0 0.0
    %5313 = vmatpush1.msra.mxu0 %v5291
    %5314 = vmatprep.subr.mxu0 0.0
    %5315 = vmatpush1.msra.mxu0 %v5292
    %5316 = vmatprep.subr.mxu0 0.0
    %5317 = vmatpush1.msra.mxu0 %v5293
    %5318 = vmatprep.subr.mxu0 0.0
    %5319 = vmatpush1.msra.mxu0 %v5294
    %5320 = vmatprep.subr.mxu0 0.0
    %5321 = vmatpush1.msra.mxu0 %v5295
    %5322 = vmatprep.subr.mxu0 0.0
    %5323 = vmatpush1.msra.mxu0 %v5296
    %5324 = vmatprep.subr.mxu0 0.0
    %5325 = vmatpush1.msra.mxu0 %v5297
    %5326 = vmatprep.subr.mxu0 0.0
    %5327 = vmatpush1.msra.mxu0 %v5298
    %5328 = vmatprep.subr.mxu0 0.0
    %5329 = vmatpush1.msra.mxu0 %v5299
    %5330 = vmatprep.subr.mxu0 0.0
    %5331 = vmatpush1.msra.mxu0 %v5300
    %5332 = vmatprep.subr.mxu0 0.0
    %5333 = vmatpush1.msra.mxu0 %v5301
    %5334 = vmatprep.subr.mxu0 0.0
    %5335 = vmatpush1.msra.mxu0 %v5302
    %5336 = vmatprep.subr.mxu0 0.0
    %5337 = vmatpush1.msra.mxu0 %v5303
    %5338 = vmatprep.subr.mxu0 0.0
    %5339 = vmatpush1.msra.mxu0 0.0
    %5340 = vmatprep.subr.mxu0 0.0
    %5341 = vmatpush1.msra.mxu0 0.0
    %5342 = vmatprep.subr.mxu0 0.0
    %5343 = vmatpush1.msra.mxu0 0.0
    %5344 = vmatprep.subr.mxu0 0.0
    %5345 = vmatpush1.msra.mxu0 0.0
    %5346 = vmatprep.subr.mxu0 0.0
    %5347 = vmatpush1.msra.mxu0 0.0
    %5348 = vmatprep.subr.mxu0 0.0
    %5349 = vmatpush1.msra.mxu0 0.0
    %5350 = vmatprep.subr.mxu0 0.0
    %5351 = vmatpush1.msra.mxu0 0.0
    %5352 = vmatprep.subr.mxu0 0.0
    %5353 = vmatpush1.msra.mxu0 0.0
    %5354 = vmatprep.subr.mxu0 0.0
    %5355 = vmatpush1.msra.mxu0 0.0
    %5356 = vmatprep.subr.mxu0 0.0
    %5357 = vmatpush1.msra.mxu0 0.0
    %5358 = vmatprep.subr.mxu0 0.0
    %5359 = vmatpush1.msra.mxu0 0.0
    %5360 = vmatprep.subr.mxu0 0.0
    %5361 = vmatpush1.msra.mxu0 0.0
    %5362 = vmatprep.subr.mxu0 0.0
    %5363 = vmatpush1.msra.mxu0 0.0
    %5364 = vmatprep.subr.mxu0 0.0
    %5365 = vmatpush1.msra.mxu0 0.0
    %5366 = vmatprep.subr.mxu0 0.0
    %5367 = vmatpush1.msra.mxu0 0.0
    %5368 = vmatprep.subr.mxu0 0.0
    %5369 = vmatpush1.msra.mxu0 0.0
    %5370 = vmatprep.subr.mxu0 0.0
    %5371 = vmatpush1.msra.mxu0 0.0
    %5372 = vmatprep.mubr.f32.mxu0 0.0
    %5373 = vmatmul.mubr.f32.gmra.mrb[0].mxu0 %v5306
    %v5374 = vpop.f32.mrb[0].mxu0
    %v5375 = vadd.f32 %v5304, %v5374
    %v5376 = vpop.f32.mrb[0].mxu0
    %5377 = vdwg.mxu0
    %v5378 = vmax.f32 %v5375, 0.0
    %v5379 = vld [vmem:[%s15] sm:$0xff]
    %v5380 = vld [vmem:[%s15 + $0x8] sm:$0xff]
    %v5381 = vld [vmem:[%s15 + $0x10] sm:$0xff]
    %v5382 = vld [vmem:[%s15 + $0x18] sm:$0xff]
    %v5383 = vld [vmem:[%s15 + $0x20] sm:$0xff]
    %v5384 = vld [vmem:[%s15 + $0x28] sm:$0xff]
    %v5385 = vld [vmem:[%s15 + $0x30] sm:$0xff]
    %v5386 = vld [vmem:[%s15 + $0x38] sm:$0xff]
    %v5387 = vld [vmem:[%s15 + $0x40] sm:$0xff]
    %v5388 = vld [vmem:[%s15 + $0x48] sm:$0xff]
    %v5389 = vld [vmem:[%s15 + $0x50] sm:$0xf]
    %v5390 = vld [vmem:[%s16] sm:$0x1]
    %v5392 = vsel %vm97, %v5378, 0
    %v5395 = vsel %vm107, %v5389, 0
    %5397 = vmatprep.subr.mxu0 0.0
    %5398 = vmatpush1.msra.mxu0 %v5379
    %5399 = vmatprep.subr.mxu0 0.0
    %5400 = vmatpush1.msra.mxu0 %v5380
    %5401 = vmatprep.subr.mxu0 0.0
    %5402 = vmatpush1.msra.mxu0 %v5381
    %5403 = vmatprep.subr.mxu0 0.0
    %5404 = vmatpush1.msra.mxu0 %v5382
    %5405 = vmatprep.subr.mxu0 0.0
    %5406 = vmatpush1.msra.mxu0 %v5383
    %5407 = vmatprep.subr.mxu0 0.0
    %5408 = vmatpush1.msra.mxu0 %v5384
    %5409 = vmatprep.subr.mxu0 0.0
    %5410 = vmatpush1.msra.mxu0 %v5385
    %5411 = vmatprep.subr.mxu0 0.0
    %5412 = vmatpush1.msra.mxu0 %v5386
    %5413 = vmatprep.subr.mxu0 0.0
    %5414 = vmatpush1.msra.mxu0 %v5387
    %5415 = vmatprep.subr.mxu0 0.0
    %5416 = vmatpush1.msra.mxu0 %v5388
    %5417 = vmatprep.subr.mxu0 0.0
    %5418 = vmatpush1.msra.mxu0 %v5395
    %5419 = vmatprep.subr.mxu0 0.0
    %5420 = vmatpush1.msra.mxu0 0.0
    %5421 = vmatprep.subr.mxu0 0.0
    %5422 = vmatpush1.msra.mxu0 0.0
    %5423 = vmatprep.subr.mxu0 0.0
    %5424 = vmatpush1.msra.mxu0 0.0
    %5425 = vmatprep.subr.mxu0 0.0
    %5426 = vmatpush1.msra.mxu0 0.0
    %5427 = vmatprep.subr.mxu0 0.0
    %5428 = vmatpush1.msra.mxu0 0.0
    %5429 = vmatprep.subr.mxu0 0.0
    %5430 = vmatpush1.msra.mxu0 0.0
    %5431 = vmatprep.subr.mxu0 0.0
    %5432 = vmatpush1.msra.mxu0 0.0
    %5433 = vmatprep.subr.mxu0 0.0
    %5434 = vmatpush1.msra.mxu0 0.0
    %5435 = vmatprep.subr.mxu0 0.0
    %5436 = vmatpush1.msra.mxu0 0.0
    %5437 = vmatprep.subr.mxu0 0.0
    %5438 = vmatpush1.msra.mxu0 0.0
    %5439 = vmatprep.subr.mxu0 0.0
    %5440 = vmatpush1.msra.mxu0 0.0
    %5441 = vmatprep.subr.mxu0 0.0
    %5442 = vmatpush1.msra.mxu0 0.0
    %5443 = vmatprep.subr.mxu0 0.0
    %5444 = vmatpush1.msra.mxu0 0.0
    %5445 = vmatprep.subr.mxu0 0.0
    %5446 = vmatpush1.msra.mxu0 0.0
    %5447 = vmatprep.subr.mxu0 0.0
    %5448 = vmatpush1.msra.mxu0 0.0
    %5449 = vmatprep.subr.mxu0 0.0
    %5450 = vmatpush1.msra.mxu0 0.0
    %5451 = vmatprep.subr.mxu0 0.0
    %5452 = vmatpush1.msra.mxu0 0.0
    %5453 = vmatprep.subr.mxu0 0.0
    %5454 = vmatpush1.msra.mxu0 0.0
    %5455 = vmatprep.subr.mxu0 0.0
    %5456 = vmatpush1.msra.mxu0 0.0
    %5457 = vmatprep.subr.mxu0 0.0
    %5458 = vmatpush1.msra.mxu0 0.0
    %5459 = vmatprep.subr.mxu0 0.0
    %5460 = vmatpush1.msra.mxu0 0.0
    %5461 = vmatprep.mubr.f32.mxu0 0.0
    %5462 = vmatmul.mubr.f32.gmra.mrb[0].mxu0 %v5392
    %v5463 = vpop.f32.mrb[0].mxu0
    %v5464 = vadd.f32 %v5390, %v5463
    %v5465 = vpop.f32.mrb[0].mxu0
    %5466 = vdwg.mxu0
    %s5467 = scalar_lea.vmem [#allocation4], 1
    %5468 = vst.msk [vmem:[%s5467] sm:$0x1] %vm2774, %v5464
    // Predicated region
    $region70: #{lenet_forward.1} parent=1 // pred_check
      _
    $region71: #{lenet_forward.1} parent=1 // pred_check_branch
      %5470 = sbr.rel (0) target = $region73
    $region72: #{lenet_forward.1} parent=1 // pred_region
      %s5472 = ssub.s32 32, 32
      %5473 = vsyncadd [#allocation5], %s5472
      %s5474 = sshll.u32 [#allocation4], 4
      %s5475 = int_to_ptr.vmem [resolvable:$true] %s5474
      %5480 = dma.vmem_to_hbm [thread:$0]  %s5475, 32, %s17, [#allocation5], 16, 16, 1
    $region73: #{lenet_forward.1} parent=1 // pred_fallthru
      _
    // Predicated region
    $region74: #{lenet_forward.1} parent=1 // pred_check
      _
    $region75: #{lenet_forward.1} parent=1 // pred_check_branch
      %5482 = sbr.rel (0) target = $region77
    $region76: #{lenet_forward.1} parent=1 // pred_region
      %5483 = dma.done [#allocation5], 32
    $region77: #{lenet_forward.1} parent=1 // pred_fallthru
      _
    %5484 = vsyncpa [#allocation5], 1

</llo_original>
